<compile_context>
chip_gen: v7x
topology: tpu7x:2x2x1
jax: 0.10.0
libtpu: 0.0.40
codegen_flags: <defaults>
</compile_context>

<pallas_src>
import jax
import jax.numpy as jnp
from jax import lax
from jax.experimental import pallas as pl
from jax.experimental.pallas import tpu as pltpu

# ---- problem sizes (DECNet(D=4, C=3, k=4), one graph of N=16 points) ----
N = 16   # number of points
D = 4    # input feature dim
C = 3    # output classes
K = 4    # k nearest neighbours (self included, as in torch_geometric knn(x, x, k))
H1 = 32  # conv1 width
H2 = 64  # conv2 width
H3 = 96  # lin1 / mlp1 width

BIG = 1e30  # plain Python float (module-scope jnp scalars would be captured consts)

_HIGH = jax.lax.Precision.HIGHEST   # exact f32 matmuls -> kernel matches jnp reference

_SLAB_COLS = 128


# ---------------------------------------------------------------------------
# packed parameter slab: every prepared tensor lives at a static, 8-row-aligned
# row range (aligned starts -> every in-kernel slice is sublane-tile aligned)
# ---------------------------------------------------------------------------
_PARAM_LAYOUT = [
    # name,      rows,      cols (read extent; unset lanes/rows are zero)
    ("c1_wpq",   D,         2 * H1),      # fused [ (Wa-Wb)^T | Wb^T ] of conv1 layer 1
    ("c1_b1",    1,         H1),
    ("c1_w2",    H1,        H1),          # conv1 layer 2 weight, BN1 folded in
    ("c1_b2",    1,         H1),          # conv1 layer 2 bias,   BN1 folded in
    ("c1_s2",    1,         H1),          # conv1 BN2 scale
    ("c1_t2",    1,         H1),          # conv1 BN2 shift
    ("c2_wpq",   H1,        2 * H2),      # fused conv2 weight (128 lanes -> lane dense)
    ("c2_b",     1,         H2),
    ("c2_s",     1,         H2),
    ("c2_t",     1,         H2),
    ("l1_w",     H1 + H2,   H3),
    ("l1_b",     1,         H3),
    ("l1_s",     1,         H3),
    ("l1_t",     1,         H3),
    ("m1_w",     H3,        H3),
    ("m1_b",     1,         H3),
    ("m2_w",     H3,        _SLAB_COLS),  # mlp1 layer 2 weight, BN1 folded in; lane-padded
    ("m2_b",     1,         _SLAB_COLS),  # (only the first C lanes are non-zero)
    ("m2_s",     1,         _SLAB_COLS),
    ("m2_t",     1,         _SLAB_COLS),
]


def _build_offsets():
    offs, r = {}, 0
    for name, rows, cols in _PARAM_LAYOUT:
        offs[name] = (r, rows, cols)
        r += ((rows + 7) // 8) * 8          # next param starts on a sublane tile
    return offs, ((r + 7) // 8) * 8


_PARAM_OFFS, _SLAB_ROWS = _build_offsets()


def _param(p, name):
    """Static slice of the packed slab; works on a Ref (kernel) or jnp array (reference)."""
    r0, rows, cols = _PARAM_OFFS[name]
    return p[r0:r0 + rows, 0:cols]


# ---------------------------------------------------------------------------
# shared math (traced inside the Pallas kernel; reused verbatim as reference)
# ---------------------------------------------------------------------------
def _dot(a, b):
    return jnp.dot(a, b, preferred_element_type=jnp.float32, precision=_HIGH)


def _dot_t(a, b):
    """a @ b.T without materializing a transpose."""
    return lax.dot_general(a, b, (((1,), (1,)), ((), ())),
                           preferred_element_type=jnp.float32, precision=_HIGH)


def _knn_score(feat):
    """score[i, j] = |x_j|^2 - 2 <x_i, x_j>  =  |x_i - x_j|^2 - |x_i|^2.
    The dropped |x_i|^2 term is constant per row, so the per-row ordering (and
    hence the k-NN selection) equals squared Euclidean distance.  Gram form on
    the MXU, no [N, N, F] intermediate."""
    n, f = feat.shape
    gram = _dot_t(feat, feat)                                       # [n, n]
    sqj = _dot_t(jnp.ones((1, f), jnp.float32), feat * feat)        # [1, n] = |x_j|^2
    return sqj - 2.0 * gram


def _knn_edge_max(score, edge_fn, col):
    """max-aggregation over the K nearest neighbours (self included).

    Each of the K rounds picks, per node i, the not-yet-used neighbour j with
    the smallest score (ties -> lowest index j), builds the one-hot row-selection
    matrix, and edge_fn(sel) returns the [n, hdim] edge features for exactly
    those N selected edges; a running elementwise max accumulates the result.
    Only N*K edges are evaluated (vs N*N dense) and every op is rank-2."""
    n = score.shape[0]
    work = score
    out = None
    for r in range(K):
        m = jnp.min(work, axis=1, keepdims=True)                    # [n, 1]
        first = jnp.min(jnp.where(work <= m, col, float(n)),
                        axis=1, keepdims=True)                      # lowest argmin col
        sel = col == first                                          # one True per row
        e = edge_fn(jnp.where(sel, 1.0, 0.0))
        out = e if out is None else jnp.maximum(out, e)
        if r + 1 < K:
            work = jnp.where(sel, BIG, work)                        # retire used edges
    return out


def _forward_from_slab(x, p):
    P = lambda name: _param(p, name)
    n = x.shape[0]
    col = lax.broadcasted_iota(jnp.int32, (n, n), 1).astype(jnp.float32)  # shared iota

    # ---- DynamicEdgeConv 1: MLP([2D, 32, 32]), aggr='max', k-NN on x ----
    score1 = _knn_score(x)
    pq = _dot(x, P("c1_wpq"))                      # fused p/q matmul  [n, 2*H1]
    p1 = pq[:, :H1] + P("c1_b1")                   # bias added on [n, H1] (not per edge)
    q1 = pq[:, H1:]
    w2, b2 = P("c1_w2"), P("c1_b2")                # BN1 folded in host-side (exact)
    s2 = P("c1_s2")

    def conv1_edge(sel):
        qj = _dot(sel, q1)                         # exact neighbour gather (one-hot matmul)
        e1 = jnp.maximum(p1 + qj, 0.0)             # Linear1 + ReLU
        return jnp.maximum(_dot(e1, w2) + b2, 0.0) * s2   # Linear2 + ReLU + BN2 scale

    # BN2 shift commutes with the max-aggregation -> applied once afterwards.
    x1 = _knn_edge_max(score1, conv1_edge, col) + P("c1_t2")   # [n, 32]

    # ---- DynamicEdgeConv 2: MLP([64, 64]), aggr='max', k-NN recomputed on x1 ----
    score2 = _knn_score(x1)
    pq = _dot(x1, P("c2_wpq"))                     # [n, 128] (lane dense)
    p2 = pq[:, :H2] + P("c2_b")
    q2 = pq[:, H2:]
    sc = P("c2_s")

    def conv2_edge(sel):
        qj = _dot(sel, q2)
        return jnp.maximum(p2 + qj, 0.0) * sc      # Linear + ReLU + BN scale (before max)

    x2 = _knn_edge_max(score2, conv2_edge, col) + P("c2_t")    # [n, 64]

    # ---- lin1 on concat([x1, x2]) (concat avoided: weight rows split statically) ----
    wl = P("l1_w")
    h = _dot(x1, wl[:H1, :]) + _dot(x2, wl[H1:, :]) + P("l1_b")
    h = jnp.maximum(h, 0.0) * P("l1_s") + P("l1_t")

    # ---- global_max_pool (data.batch == zeros -> single graph) ----
    g = jnp.max(h, axis=0, keepdims=True)          # [1, 96]

    # ---- mlp1 = MLP([96, 96, C]); BN of layer 1 folded into the layer-2 Linear.
    # Layer-2 weights are lane-padded to 128 (pad lanes are all-zero) so the
    # final matmul result / store is lane-dense; logits live in lanes [0, C).
    g = jnp.maximum(_dot(g, P("m1_w")) + P("m1_b"), 0.0)
    return jnp.maximum(_dot(g, P("m2_w")) + P("m2_b"), 0.0) * P("m2_s") + P("m2_t")


# ---------------------------------------------------------------------------
# Pallas kernel: single program, everything resident in VMEM (no grid: total
# footprint < 300 KiB, far below every generation's VMEM; a grid would only
# add per-step overhead)
# ---------------------------------------------------------------------------
def decnet_kernel(x_ref, p_ref, out_ref):
    out_ref[...] = _forward_from_slab(x_ref[...], p_ref)


def decnet_forward(x, slab):
    vmem = pl.BlockSpec(memory_space=pltpu.MemorySpace.VMEM)
    padded = pl.pallas_call(
        decnet_kernel,
        out_shape=jax.ShapeDtypeStruct((1, _SLAB_COLS), jnp.float32),  # lane-dense store
        in_specs=[vmem, vmem],
        out_specs=vmem,
    )(x, slab)
    return padded[:, :C]                                              # [1, C] logits


# ---------------------------------------------------------------------------
# deterministic parameter init (torch layouts) + exact host-side fusion/folding
# ---------------------------------------------------------------------------
def _linear_init(key, fin, fout):
    kw, kb = jax.random.split(key)
    bound = float(fin) ** -0.5
    w = jax.random.uniform(kw, (fout, fin), jnp.float32, -bound, bound)  # torch [out, in]
    b = jax.random.uniform(kb, (fout,), jnp.float32, -bound, bound)
    return w, b


def _bn_eval(key, f):
    # BatchNorm1d eval with fresh running stats (mean=0, var=1):
    #   y = x / sqrt(1 + eps) * gamma + beta  ->  per-channel (scale, shift).
    kg, kb = jax.random.split(key)
    gamma = 1.0 + 0.1 * jax.random.normal(kg, (f,), jnp.float32)
    beta = 0.1 * jax.random.normal(kb, (f,), jnp.float32)
    return gamma / jnp.sqrt(jnp.float32(1.0 + 1e-5)), beta


def init_prepared_params(key):
    ks = jax.random.split(key, 6)
    prep = {}

    # conv1 layer 1: Linear(2D -> 32) + BN1 (BN1 folded into layer 2 below)
    w1, b1 = _linear_init(ks[0], 2 * D, H1)
    s1, t1 = _bn_eval(jax.random.fold_in(ks[0], 1), H1)
    wa, wb = w1[:, :D], w1[:, D:]
    prep["c1_wpq"] = jnp.concatenate([(wa - wb).T, wb.T], axis=1)        # [D, 2*H1]
    prep["c1_b1"] = b1.reshape(1, H1)
    # conv1 layer 2: Linear(32 -> 32) + BN2, with BN1 folded in (exact: affine
    # composed with the following Linear, no nonlinearity in between)
    w2, b2 = _linear_init(ks[1], H1, H1)
    s2, t2 = _bn_eval(jax.random.fold_in(ks[1], 1), H1)
    prep["c1_w2"] = s1[:, None] * w2.T                                   # [32, 32]
    prep["c1_b2"] = (t1 @ w2.T + b2).reshape(1, H1)
    prep["c1_s2"] = s2.reshape(1, H1)
    prep["c1_t2"] = t2.reshape(1, H1)

    # conv2: Linear(64 -> 64) + BN (BN kept per-edge: it does not commute with max)
    w, b = _linear_init(ks[2], 2 * H1, H2)
    s, t = _bn_eval(jax.random.fold_in(ks[2], 1), H2)
    wa, wb = w[:, :H1], w[:, H1:]
    prep["c2_wpq"] = jnp.concatenate([(wa - wb).T, wb.T], axis=1)        # [32, 128]
    prep["c2_b"] = b.reshape(1, H2)
    prep["c2_s"] = s.reshape(1, H2)
    prep["c2_t"] = t.reshape(1, H2)

    # lin1: Linear(96 -> 96) + BN
    w, b = _linear_init(ks[3], H1 + H2, H3)
    s, t = _bn_eval(jax.random.fold_in(ks[3], 1), H3)
    prep["l1_w"] = w.T
    prep["l1_b"] = b.reshape(1, H3)
    prep["l1_s"] = s.reshape(1, H3)
    prep["l1_t"] = t.reshape(1, H3)

    # mlp1 layer 1: Linear(96 -> 96) + BN (BN folded into layer 2)
    wm1, bm1 = _linear_init(ks[4], H3, H3)
    sm1, tm1 = _bn_eval(jax.random.fold_in(ks[4], 1), H3)
    prep["m1_w"] = wm1.T
    prep["m1_b"] = bm1.reshape(1, H3)
    # mlp1 layer 2: Linear(96 -> C) + BN (lane-padding to 128 happens in pack_params:
    # unset lanes stay zero, so padded logits are exactly 0 and are sliced off host-side)
    wm2, bm2 = _linear_init(ks[5], H3, C)
    sm2, tm2 = _bn_eval(jax.random.fold_in(ks[5], 1), C)
    prep["m2_w"] = sm1[:, None] * wm2.T                                  # [96, C]
    prep["m2_b"] = (tm1 @ wm2.T + bm2).reshape(1, C)
    prep["m2_s"] = sm2.reshape(1, C)
    prep["m2_t"] = tm2.reshape(1, C)
    return prep


def pack_params(prep):
    """Pack every prepared tensor into one [rows, 128] f32 slab (single DMA).
    Each tensor starts on an 8-row boundary; un-set rows/lanes are zero."""
    slab = jnp.zeros((_SLAB_ROWS, _SLAB_COLS), jnp.float32)
    for name, (r0, rows, cols) in _PARAM_OFFS.items():
        arr = jnp.asarray(prep[name], jnp.float32)
        pr, pc = arr.shape
        assert pr <= rows and pc <= cols, name
        slab = slab.at[r0:r0 + pr, 0:pc].set(arr)
    return slab


if __name__ == "__main__":
    key = jax.random.PRNGKey(0)
    kx, kp = jax.random.split(key)
    x = jax.random.normal(kx, (N, D), jnp.float32)       # data.x : [num_nodes, D]
    slab = pack_params(init_prepared_params(kp))

    out = decnet_forward(x, slab)
    jax.block_until_ready(out)
    assert out.shape == (1, C) and out.dtype == jnp.float32

    # pure-JAX reference: identical math on the identical packed parameters
    ref = _forward_from_slab(x, slab)[:, :C]
    assert jnp.allclose(out, ref, atol=1e-3, rtol=1e-3), (out, ref)

    print("KERNEL_OK")
</pallas_src>

<mosaic_0001>
module attributes {stable_mosaic.version = 11 : i64} {
  func.func @decnet_kernel(%arg0: memref<16x4xf32, #tpu.memory_space<vmem>>, %arg1: memref<472x128xf32, #tpu.memory_space<vmem>>, %arg2: memref<1x128xf32, #tpu.memory_space<vmem>>) attributes {dimension_semantics = [], scalar_prefetch = 0 : i64, scratch_operands = 0 : i64, tpu.core_type = #tpu.core_type<tc>} {
    %c0 = arith.constant 0 : index
    %c0_0 = arith.constant 0 : index
    %0 = vector.load %arg0[%c0, %c0_0] : memref<16x4xf32, #tpu.memory_space<vmem>>, vector<16x4xf32>
    %1 = tpu.iota {dimensions = array<i32: 1>} : vector<16x16xi32>
    %2 = arith.sitofp %1 : vector<16x16xi32> to vector<16x16xf32>
    %cst = arith.constant dense<0.000000e+00> : vector<16x16xf32>
    %3 = tpu.matmul %0, %0, %cst {dimension_numbers = #tpu.dot_dimension_numbers<[1], [1], [0], [0], [0, 0, 1, 0], [], []>, precision = #tpu.contract_precision<fp32>} : vector<16x4xf32>, vector<16x4xf32>, vector<16x16xf32> -> vector<16x16xf32>
    %cst_1 = arith.constant 1.000000e+00 : f32
    %4 = vector.broadcast %cst_1 : f32 to vector<1x4xf32>
    %5 = arith.mulf %0, %0 : vector<16x4xf32>
    %cst_2 = arith.constant dense<0.000000e+00> : vector<1x16xf32>
    %6 = tpu.matmul %4, %5, %cst_2 {dimension_numbers = #tpu.dot_dimension_numbers<[1], [1], [0], [0], [0, 0, 1, 0], [], []>, precision = #tpu.contract_precision<fp32>} : vector<1x4xf32>, vector<16x4xf32>, vector<1x16xf32> -> vector<1x16xf32>
    %cst_3 = arith.constant 2.000000e+00 : f32
    %7 = vector.broadcast %cst_3 : f32 to vector<16x16xf32>
    %8 = arith.mulf %7, %3 : vector<16x16xf32>
    %9 = vector.broadcast %6 : vector<1x16xf32> to vector<16x16xf32>
    %10 = arith.subf %9, %8 : vector<16x16xf32>
    %c0_4 = arith.constant 0 : index
    %c0_5 = arith.constant 0 : index
    %11 = vector.load %arg1[%c0_4, %c0_5] : memref<472x128xf32, #tpu.memory_space<vmem>>, vector<4x64xf32>
    %cst_6 = arith.constant dense<0.000000e+00> : vector<16x64xf32>
    %12 = tpu.matmul %0, %11, %cst_6 {dimension_numbers = #tpu.dot_dimension_numbers<[1], [0], [0], [1], [0, 0, 1, 1], [], []>, precision = #tpu.contract_precision<fp32>} : vector<16x4xf32>, vector<4x64xf32>, vector<16x64xf32> -> vector<16x64xf32>
    %13 = vector.extract_strided_slice %12 {offsets = [0, 0], sizes = [16, 32], strides = [1, 1]} : vector<16x64xf32> to vector<16x32xf32>
    %c8 = arith.constant 8 : index
    %c0_7 = arith.constant 0 : index
    %14 = vector.load %arg1[%c8, %c0_7] : memref<472x128xf32, #tpu.memory_space<vmem>>, vector<1x32xf32>
    %15 = vector.broadcast %14 : vector<1x32xf32> to vector<16x32xf32>
    %16 = arith.addf %13, %15 : vector<16x32xf32>
    %17 = vector.extract_strided_slice %12 {offsets = [0, 32], sizes = [16, 32], strides = [1, 1]} : vector<16x64xf32> to vector<16x32xf32>
    %c16 = arith.constant 16 : index
    %c0_8 = arith.constant 0 : index
    %18 = vector.load %arg1[%c16, %c0_8] : memref<472x128xf32, #tpu.memory_space<vmem>>, vector<32x32xf32>
    %c48 = arith.constant 48 : index
    %c0_9 = arith.constant 0 : index
    %19 = vector.load %arg1[%c48, %c0_9] : memref<472x128xf32, #tpu.memory_space<vmem>>, vector<1x32xf32>
    %c56 = arith.constant 56 : index
    %c0_10 = arith.constant 0 : index
    %20 = vector.load %arg1[%c56, %c0_10] : memref<472x128xf32, #tpu.memory_space<vmem>>, vector<1x32xf32>
    %cst_11 = arith.constant dense<0x7F800000> : vector<16xf32>
    %21 = vector.multi_reduction <minimumf>, %10, %cst_11 [1] : vector<16x16xf32> to vector<16xf32>
    %22 = vector.shape_cast %21 : vector<16xf32> to vector<16x1xf32>
    %23 = vector.broadcast %22 : vector<16x1xf32> to vector<16x16xf32>
    %24 = arith.cmpf ole, %10, %23 : vector<16x16xf32>
    %cst_12 = arith.constant 1.600000e+01 : f32
    %25 = vector.broadcast %cst_12 : f32 to vector<16x16xf32>
    %26 = arith.select %24, %2, %25 : vector<16x16xi1>, vector<16x16xf32>
    %cst_13 = arith.constant dense<0x7F800000> : vector<16xf32>
    %27 = vector.multi_reduction <minimumf>, %26, %cst_13 [1] : vector<16x16xf32> to vector<16xf32>
    %28 = vector.shape_cast %27 : vector<16xf32> to vector<16x1xf32>
    %29 = vector.broadcast %28 : vector<16x1xf32> to vector<16x16xf32>
    %30 = arith.cmpf oeq, %2, %29 : vector<16x16xf32>
    %cst_14 = arith.constant 1.000000e+00 : f32
    %cst_15 = arith.constant 0.000000e+00 : f32
    %31 = vector.broadcast %cst_14 : f32 to vector<16x16xf32>
    %32 = vector.broadcast %cst_15 : f32 to vector<16x16xf32>
    %33 = arith.select %30, %31, %32 : vector<16x16xi1>, vector<16x16xf32>
    %cst_16 = arith.constant dense<0.000000e+00> : vector<16x32xf32>
    %34 = tpu.matmul %33, %17, %cst_16 {dimension_numbers = #tpu.dot_dimension_numbers<[1], [0], [0], [1], [0, 0, 1, 1], [], []>, precision = #tpu.contract_precision<fp32>} : vector<16x16xf32>, vector<16x32xf32>, vector<16x32xf32> -> vector<16x32xf32>
    %35 = arith.addf %16, %34 : vector<16x32xf32>
    %cst_17 = arith.constant 0.000000e+00 : f32
    %36 = vector.broadcast %cst_17 : f32 to vector<16x32xf32>
    %37 = arith.maximumf %35, %36 : vector<16x32xf32>
    %cst_18 = arith.constant dense<0.000000e+00> : vector<16x32xf32>
    %38 = tpu.matmul %37, %18, %cst_18 {dimension_numbers = #tpu.dot_dimension_numbers<[1], [0], [0], [1], [0, 0, 1, 1], [], []>, precision = #tpu.contract_precision<fp32>} : vector<16x32xf32>, vector<32x32xf32>, vector<16x32xf32> -> vector<16x32xf32>
    %39 = vector.broadcast %19 : vector<1x32xf32> to vector<16x32xf32>
    %40 = arith.addf %38, %39 : vector<16x32xf32>
    %cst_19 = arith.constant 0.000000e+00 : f32
    %41 = vector.broadcast %cst_19 : f32 to vector<16x32xf32>
    %42 = arith.maximumf %40, %41 : vector<16x32xf32>
    %43 = vector.broadcast %20 : vector<1x32xf32> to vector<16x32xf32>
    %44 = arith.mulf %42, %43 : vector<16x32xf32>
    %cst_20 = arith.constant 1.000000e+30 : f32
    %45 = vector.broadcast %cst_20 : f32 to vector<16x16xf32>
    %46 = arith.select %30, %45, %10 : vector<16x16xi1>, vector<16x16xf32>
    %cst_21 = arith.constant dense<0x7F800000> : vector<16xf32>
    %47 = vector.multi_reduction <minimumf>, %46, %cst_21 [1] : vector<16x16xf32> to vector<16xf32>
    %48 = vector.shape_cast %47 : vector<16xf32> to vector<16x1xf32>
    %49 = vector.broadcast %48 : vector<16x1xf32> to vector<16x16xf32>
    %50 = arith.cmpf ole, %46, %49 : vector<16x16xf32>
    %cst_22 = arith.constant 1.600000e+01 : f32
    %51 = vector.broadcast %cst_22 : f32 to vector<16x16xf32>
    %52 = arith.select %50, %2, %51 : vector<16x16xi1>, vector<16x16xf32>
    %cst_23 = arith.constant dense<0x7F800000> : vector<16xf32>
    %53 = vector.multi_reduction <minimumf>, %52, %cst_23 [1] : vector<16x16xf32> to vector<16xf32>
    %54 = vector.shape_cast %53 : vector<16xf32> to vector<16x1xf32>
    %55 = vector.broadcast %54 : vector<16x1xf32> to vector<16x16xf32>
    %56 = arith.cmpf oeq, %2, %55 : vector<16x16xf32>
    %cst_24 = arith.constant 1.000000e+00 : f32
    %cst_25 = arith.constant 0.000000e+00 : f32
    %57 = vector.broadcast %cst_24 : f32 to vector<16x16xf32>
    %58 = vector.broadcast %cst_25 : f32 to vector<16x16xf32>
    %59 = arith.select %56, %57, %58 : vector<16x16xi1>, vector<16x16xf32>
    %cst_26 = arith.constant dense<0.000000e+00> : vector<16x32xf32>
    %60 = tpu.matmul %59, %17, %cst_26 {dimension_numbers = #tpu.dot_dimension_numbers<[1], [0], [0], [1], [0, 0, 1, 1], [], []>, precision = #tpu.contract_precision<fp32>} : vector<16x16xf32>, vector<16x32xf32>, vector<16x32xf32> -> vector<16x32xf32>
    %61 = arith.addf %16, %60 : vector<16x32xf32>
    %cst_27 = arith.constant 0.000000e+00 : f32
    %62 = vector.broadcast %cst_27 : f32 to vector<16x32xf32>
    %63 = arith.maximumf %61, %62 : vector<16x32xf32>
    %cst_28 = arith.constant dense<0.000000e+00> : vector<16x32xf32>
    %64 = tpu.matmul %63, %18, %cst_28 {dimension_numbers = #tpu.dot_dimension_numbers<[1], [0], [0], [1], [0, 0, 1, 1], [], []>, precision = #tpu.contract_precision<fp32>} : vector<16x32xf32>, vector<32x32xf32>, vector<16x32xf32> -> vector<16x32xf32>
    %65 = vector.broadcast %19 : vector<1x32xf32> to vector<16x32xf32>
    %66 = arith.addf %64, %65 : vector<16x32xf32>
    %cst_29 = arith.constant 0.000000e+00 : f32
    %67 = vector.broadcast %cst_29 : f32 to vector<16x32xf32>
    %68 = arith.maximumf %66, %67 : vector<16x32xf32>
    %69 = vector.broadcast %20 : vector<1x32xf32> to vector<16x32xf32>
    %70 = arith.mulf %68, %69 : vector<16x32xf32>
    %71 = arith.maximumf %44, %70 : vector<16x32xf32>
    %cst_30 = arith.constant 1.000000e+30 : f32
    %72 = vector.broadcast %cst_30 : f32 to vector<16x16xf32>
    %73 = arith.select %56, %72, %46 : vector<16x16xi1>, vector<16x16xf32>
    %cst_31 = arith.constant dense<0x7F800000> : vector<16xf32>
    %74 = vector.multi_reduction <minimumf>, %73, %cst_31 [1] : vector<16x16xf32> to vector<16xf32>
    %75 = vector.shape_cast %74 : vector<16xf32> to vector<16x1xf32>
    %76 = vector.broadcast %75 : vector<16x1xf32> to vector<16x16xf32>
    %77 = arith.cmpf ole, %73, %76 : vector<16x16xf32>
    %cst_32 = arith.constant 1.600000e+01 : f32
    %78 = vector.broadcast %cst_32 : f32 to vector<16x16xf32>
    %79 = arith.select %77, %2, %78 : vector<16x16xi1>, vector<16x16xf32>
    %cst_33 = arith.constant dense<0x7F800000> : vector<16xf32>
    %80 = vector.multi_reduction <minimumf>, %79, %cst_33 [1] : vector<16x16xf32> to vector<16xf32>
    %81 = vector.shape_cast %80 : vector<16xf32> to vector<16x1xf32>
    %82 = vector.broadcast %81 : vector<16x1xf32> to vector<16x16xf32>
    %83 = arith.cmpf oeq, %2, %82 : vector<16x16xf32>
    %cst_34 = arith.constant 1.000000e+00 : f32
    %cst_35 = arith.constant 0.000000e+00 : f32
    %84 = vector.broadcast %cst_34 : f32 to vector<16x16xf32>
    %85 = vector.broadcast %cst_35 : f32 to vector<16x16xf32>
    %86 = arith.select %83, %84, %85 : vector<16x16xi1>, vector<16x16xf32>
    %cst_36 = arith.constant dense<0.000000e+00> : vector<16x32xf32>
    %87 = tpu.matmul %86, %17, %cst_36 {dimension_numbers = #tpu.dot_dimension_numbers<[1], [0], [0], [1], [0, 0, 1, 1], [], []>, precision = #tpu.contract_precision<fp32>} : vector<16x16xf32>, vector<16x32xf32>, vector<16x32xf32> -> vector<16x32xf32>
    %88 = arith.addf %16, %87 : vector<16x32xf32>
    %cst_37 = arith.constant 0.000000e+00 : f32
    %89 = vector.broadcast %cst_37 : f32 to vector<16x32xf32>
    %90 = arith.maximumf %88, %89 : vector<16x32xf32>
    %cst_38 = arith.constant dense<0.000000e+00> : vector<16x32xf32>
    %91 = tpu.matmul %90, %18, %cst_38 {dimension_numbers = #tpu.dot_dimension_numbers<[1], [0], [0], [1], [0, 0, 1, 1], [], []>, precision = #tpu.contract_precision<fp32>} : vector<16x32xf32>, vector<32x32xf32>, vector<16x32xf32> -> vector<16x32xf32>
    %92 = vector.broadcast %19 : vector<1x32xf32> to vector<16x32xf32>
    %93 = arith.addf %91, %92 : vector<16x32xf32>
    %cst_39 = arith.constant 0.000000e+00 : f32
    %94 = vector.broadcast %cst_39 : f32 to vector<16x32xf32>
    %95 = arith.maximumf %93, %94 : vector<16x32xf32>
    %96 = vector.broadcast %20 : vector<1x32xf32> to vector<16x32xf32>
    %97 = arith.mulf %95, %96 : vector<16x32xf32>
    %98 = arith.maximumf %71, %97 : vector<16x32xf32>
    %cst_40 = arith.constant 1.000000e+30 : f32
    %99 = vector.broadcast %cst_40 : f32 to vector<16x16xf32>
    %100 = arith.select %83, %99, %73 : vector<16x16xi1>, vector<16x16xf32>
    %cst_41 = arith.constant dense<0x7F800000> : vector<16xf32>
    %101 = vector.multi_reduction <minimumf>, %100, %cst_41 [1] : vector<16x16xf32> to vector<16xf32>
    %102 = vector.shape_cast %101 : vector<16xf32> to vector<16x1xf32>
    %103 = vector.broadcast %102 : vector<16x1xf32> to vector<16x16xf32>
    %104 = arith.cmpf ole, %100, %103 : vector<16x16xf32>
    %cst_42 = arith.constant 1.600000e+01 : f32
    %105 = vector.broadcast %cst_42 : f32 to vector<16x16xf32>
    %106 = arith.select %104, %2, %105 : vector<16x16xi1>, vector<16x16xf32>
    %cst_43 = arith.constant dense<0x7F800000> : vector<16xf32>
    %107 = vector.multi_reduction <minimumf>, %106, %cst_43 [1] : vector<16x16xf32> to vector<16xf32>
    %108 = vector.shape_cast %107 : vector<16xf32> to vector<16x1xf32>
    %109 = vector.broadcast %108 : vector<16x1xf32> to vector<16x16xf32>
    %110 = arith.cmpf oeq, %2, %109 : vector<16x16xf32>
    %cst_44 = arith.constant 1.000000e+00 : f32
    %cst_45 = arith.constant 0.000000e+00 : f32
    %111 = vector.broadcast %cst_44 : f32 to vector<16x16xf32>
    %112 = vector.broadcast %cst_45 : f32 to vector<16x16xf32>
    %113 = arith.select %110, %111, %112 : vector<16x16xi1>, vector<16x16xf32>
    %cst_46 = arith.constant dense<0.000000e+00> : vector<16x32xf32>
    %114 = tpu.matmul %113, %17, %cst_46 {dimension_numbers = #tpu.dot_dimension_numbers<[1], [0], [0], [1], [0, 0, 1, 1], [], []>, precision = #tpu.contract_precision<fp32>} : vector<16x16xf32>, vector<16x32xf32>, vector<16x32xf32> -> vector<16x32xf32>
    %115 = arith.addf %16, %114 : vector<16x32xf32>
    %cst_47 = arith.constant 0.000000e+00 : f32
    %116 = vector.broadcast %cst_47 : f32 to vector<16x32xf32>
    %117 = arith.maximumf %115, %116 : vector<16x32xf32>
    %cst_48 = arith.constant dense<0.000000e+00> : vector<16x32xf32>
    %118 = tpu.matmul %117, %18, %cst_48 {dimension_numbers = #tpu.dot_dimension_numbers<[1], [0], [0], [1], [0, 0, 1, 1], [], []>, precision = #tpu.contract_precision<fp32>} : vector<16x32xf32>, vector<32x32xf32>, vector<16x32xf32> -> vector<16x32xf32>
    %119 = vector.broadcast %19 : vector<1x32xf32> to vector<16x32xf32>
    %120 = arith.addf %118, %119 : vector<16x32xf32>
    %cst_49 = arith.constant 0.000000e+00 : f32
    %121 = vector.broadcast %cst_49 : f32 to vector<16x32xf32>
    %122 = arith.maximumf %120, %121 : vector<16x32xf32>
    %123 = vector.broadcast %20 : vector<1x32xf32> to vector<16x32xf32>
    %124 = arith.mulf %122, %123 : vector<16x32xf32>
    %125 = arith.maximumf %98, %124 : vector<16x32xf32>
    %c64 = arith.constant 64 : index
    %c0_50 = arith.constant 0 : index
    %126 = vector.load %arg1[%c64, %c0_50] : memref<472x128xf32, #tpu.memory_space<vmem>>, vector<1x32xf32>
    %127 = vector.broadcast %126 : vector<1x32xf32> to vector<16x32xf32>
    %128 = arith.addf %125, %127 : vector<16x32xf32>
    %cst_51 = arith.constant dense<0.000000e+00> : vector<16x16xf32>
    %129 = tpu.matmul %128, %128, %cst_51 {dimension_numbers = #tpu.dot_dimension_numbers<[1], [1], [0], [0], [0, 0, 1, 0], [], []>, precision = #tpu.contract_precision<fp32>} : vector<16x32xf32>, vector<16x32xf32>, vector<16x16xf32> -> vector<16x16xf32>
    %cst_52 = arith.constant 1.000000e+00 : f32
    %130 = vector.broadcast %cst_52 : f32 to vector<1x32xf32>
    %131 = arith.mulf %128, %128 : vector<16x32xf32>
    %cst_53 = arith.constant dense<0.000000e+00> : vector<1x16xf32>
    %132 = tpu.matmul %130, %131, %cst_53 {dimension_numbers = #tpu.dot_dimension_numbers<[1], [1], [0], [0], [0, 0, 1, 0], [], []>, precision = #tpu.contract_precision<fp32>} : vector<1x32xf32>, vector<16x32xf32>, vector<1x16xf32> -> vector<1x16xf32>
    %cst_54 = arith.constant 2.000000e+00 : f32
    %133 = vector.broadcast %cst_54 : f32 to vector<16x16xf32>
    %134 = arith.mulf %133, %129 : vector<16x16xf32>
    %135 = vector.broadcast %132 : vector<1x16xf32> to vector<16x16xf32>
    %136 = arith.subf %135, %134 : vector<16x16xf32>
    %c72 = arith.constant 72 : index
    %c0_55 = arith.constant 0 : index
    %137 = vector.load %arg1[%c72, %c0_55] : memref<472x128xf32, #tpu.memory_space<vmem>>, vector<32x128xf32>
    %cst_56 = arith.constant dense<0.000000e+00> : vector<16x128xf32>
    %138 = tpu.matmul %128, %137, %cst_56 {dimension_numbers = #tpu.dot_dimension_numbers<[1], [0], [0], [1], [0, 0, 1, 1], [], []>, precision = #tpu.contract_precision<fp32>} : vector<16x32xf32>, vector<32x128xf32>, vector<16x128xf32> -> vector<16x128xf32>
    %139 = vector.extract_strided_slice %138 {offsets = [0, 0], sizes = [16, 64], strides = [1, 1]} : vector<16x128xf32> to vector<16x64xf32>
    %c104 = arith.constant 104 : index
    %c0_57 = arith.constant 0 : index
    %140 = vector.load %arg1[%c104, %c0_57] : memref<472x128xf32, #tpu.memory_space<vmem>>, vector<1x64xf32>
    %141 = vector.broadcast %140 : vector<1x64xf32> to vector<16x64xf32>
    %142 = arith.addf %139, %141 : vector<16x64xf32>
    %143 = vector.extract_strided_slice %138 {offsets = [0, 64], sizes = [16, 64], strides = [1, 1]} : vector<16x128xf32> to vector<16x64xf32>
    %c112 = arith.constant 112 : index
    %c0_58 = arith.constant 0 : index
    %144 = vector.load %arg1[%c112, %c0_58] : memref<472x128xf32, #tpu.memory_space<vmem>>, vector<1x64xf32>
    %cst_59 = arith.constant dense<0x7F800000> : vector<16xf32>
    %145 = vector.multi_reduction <minimumf>, %136, %cst_59 [1] : vector<16x16xf32> to vector<16xf32>
    %146 = vector.shape_cast %145 : vector<16xf32> to vector<16x1xf32>
    %147 = vector.broadcast %146 : vector<16x1xf32> to vector<16x16xf32>
    %148 = arith.cmpf ole, %136, %147 : vector<16x16xf32>
    %cst_60 = arith.constant 1.600000e+01 : f32
    %149 = vector.broadcast %cst_60 : f32 to vector<16x16xf32>
    %150 = arith.select %148, %2, %149 : vector<16x16xi1>, vector<16x16xf32>
    %cst_61 = arith.constant dense<0x7F800000> : vector<16xf32>
    %151 = vector.multi_reduction <minimumf>, %150, %cst_61 [1] : vector<16x16xf32> to vector<16xf32>
    %152 = vector.shape_cast %151 : vector<16xf32> to vector<16x1xf32>
    %153 = vector.broadcast %152 : vector<16x1xf32> to vector<16x16xf32>
    %154 = arith.cmpf oeq, %2, %153 : vector<16x16xf32>
    %cst_62 = arith.constant 1.000000e+00 : f32
    %cst_63 = arith.constant 0.000000e+00 : f32
    %155 = vector.broadcast %cst_62 : f32 to vector<16x16xf32>
    %156 = vector.broadcast %cst_63 : f32 to vector<16x16xf32>
    %157 = arith.select %154, %155, %156 : vector<16x16xi1>, vector<16x16xf32>
    %cst_64 = arith.constant dense<0.000000e+00> : vector<16x64xf32>
    %158 = tpu.matmul %157, %143, %cst_64 {dimension_numbers = #tpu.dot_dimension_numbers<[1], [0], [0], [1], [0, 0, 1, 1], [], []>, precision = #tpu.contract_precision<fp32>} : vector<16x16xf32>, vector<16x64xf32>, vector<16x64xf32> -> vector<16x64xf32>
    %159 = arith.addf %142, %158 : vector<16x64xf32>
    %cst_65 = arith.constant 0.000000e+00 : f32
    %160 = vector.broadcast %cst_65 : f32 to vector<16x64xf32>
    %161 = arith.maximumf %159, %160 : vector<16x64xf32>
    %162 = vector.broadcast %144 : vector<1x64xf32> to vector<16x64xf32>
    %163 = arith.mulf %161, %162 : vector<16x64xf32>
    %cst_66 = arith.constant 1.000000e+30 : f32
    %164 = vector.broadcast %cst_66 : f32 to vector<16x16xf32>
    %165 = arith.select %154, %164, %136 : vector<16x16xi1>, vector<16x16xf32>
    %cst_67 = arith.constant dense<0x7F800000> : vector<16xf32>
    %166 = vector.multi_reduction <minimumf>, %165, %cst_67 [1] : vector<16x16xf32> to vector<16xf32>
    %167 = vector.shape_cast %166 : vector<16xf32> to vector<16x1xf32>
    %168 = vector.broadcast %167 : vector<16x1xf32> to vector<16x16xf32>
    %169 = arith.cmpf ole, %165, %168 : vector<16x16xf32>
    %cst_68 = arith.constant 1.600000e+01 : f32
    %170 = vector.broadcast %cst_68 : f32 to vector<16x16xf32>
    %171 = arith.select %169, %2, %170 : vector<16x16xi1>, vector<16x16xf32>
    %cst_69 = arith.constant dense<0x7F800000> : vector<16xf32>
    %172 = vector.multi_reduction <minimumf>, %171, %cst_69 [1] : vector<16x16xf32> to vector<16xf32>
    %173 = vector.shape_cast %172 : vector<16xf32> to vector<16x1xf32>
    %174 = vector.broadcast %173 : vector<16x1xf32> to vector<16x16xf32>
    %175 = arith.cmpf oeq, %2, %174 : vector<16x16xf32>
    %cst_70 = arith.constant 1.000000e+00 : f32
    %cst_71 = arith.constant 0.000000e+00 : f32
    %176 = vector.broadcast %cst_70 : f32 to vector<16x16xf32>
    %177 = vector.broadcast %cst_71 : f32 to vector<16x16xf32>
    %178 = arith.select %175, %176, %177 : vector<16x16xi1>, vector<16x16xf32>
    %cst_72 = arith.constant dense<0.000000e+00> : vector<16x64xf32>
    %179 = tpu.matmul %178, %143, %cst_72 {dimension_numbers = #tpu.dot_dimension_numbers<[1], [0], [0], [1], [0, 0, 1, 1], [], []>, precision = #tpu.contract_precision<fp32>} : vector<16x16xf32>, vector<16x64xf32>, vector<16x64xf32> -> vector<16x64xf32>
    %180 = arith.addf %142, %179 : vector<16x64xf32>
    %cst_73 = arith.constant 0.000000e+00 : f32
    %181 = vector.broadcast %cst_73 : f32 to vector<16x64xf32>
    %182 = arith.maximumf %180, %181 : vector<16x64xf32>
    %183 = vector.broadcast %144 : vector<1x64xf32> to vector<16x64xf32>
    %184 = arith.mulf %182, %183 : vector<16x64xf32>
    %185 = arith.maximumf %163, %184 : vector<16x64xf32>
    %cst_74 = arith.constant 1.000000e+30 : f32
    %186 = vector.broadcast %cst_74 : f32 to vector<16x16xf32>
    %187 = arith.select %175, %186, %165 : vector<16x16xi1>, vector<16x16xf32>
    %cst_75 = arith.constant dense<0x7F800000> : vector<16xf32>
    %188 = vector.multi_reduction <minimumf>, %187, %cst_75 [1] : vector<16x16xf32> to vector<16xf32>
    %189 = vector.shape_cast %188 : vector<16xf32> to vector<16x1xf32>
    %190 = vector.broadcast %189 : vector<16x1xf32> to vector<16x16xf32>
    %191 = arith.cmpf ole, %187, %190 : vector<16x16xf32>
    %cst_76 = arith.constant 1.600000e+01 : f32
    %192 = vector.broadcast %cst_76 : f32 to vector<16x16xf32>
    %193 = arith.select %191, %2, %192 : vector<16x16xi1>, vector<16x16xf32>
    %cst_77 = arith.constant dense<0x7F800000> : vector<16xf32>
    %194 = vector.multi_reduction <minimumf>, %193, %cst_77 [1] : vector<16x16xf32> to vector<16xf32>
    %195 = vector.shape_cast %194 : vector<16xf32> to vector<16x1xf32>
    %196 = vector.broadcast %195 : vector<16x1xf32> to vector<16x16xf32>
    %197 = arith.cmpf oeq, %2, %196 : vector<16x16xf32>
    %cst_78 = arith.constant 1.000000e+00 : f32
    %cst_79 = arith.constant 0.000000e+00 : f32
    %198 = vector.broadcast %cst_78 : f32 to vector<16x16xf32>
    %199 = vector.broadcast %cst_79 : f32 to vector<16x16xf32>
    %200 = arith.select %197, %198, %199 : vector<16x16xi1>, vector<16x16xf32>
    %cst_80 = arith.constant dense<0.000000e+00> : vector<16x64xf32>
    %201 = tpu.matmul %200, %143, %cst_80 {dimension_numbers = #tpu.dot_dimension_numbers<[1], [0], [0], [1], [0, 0, 1, 1], [], []>, precision = #tpu.contract_precision<fp32>} : vector<16x16xf32>, vector<16x64xf32>, vector<16x64xf32> -> vector<16x64xf32>
    %202 = arith.addf %142, %201 : vector<16x64xf32>
    %cst_81 = arith.constant 0.000000e+00 : f32
    %203 = vector.broadcast %cst_81 : f32 to vector<16x64xf32>
    %204 = arith.maximumf %202, %203 : vector<16x64xf32>
    %205 = vector.broadcast %144 : vector<1x64xf32> to vector<16x64xf32>
    %206 = arith.mulf %204, %205 : vector<16x64xf32>
    %207 = arith.maximumf %185, %206 : vector<16x64xf32>
    %cst_82 = arith.constant 1.000000e+30 : f32
    %208 = vector.broadcast %cst_82 : f32 to vector<16x16xf32>
    %209 = arith.select %197, %208, %187 : vector<16x16xi1>, vector<16x16xf32>
    %cst_83 = arith.constant dense<0x7F800000> : vector<16xf32>
    %210 = vector.multi_reduction <minimumf>, %209, %cst_83 [1] : vector<16x16xf32> to vector<16xf32>
    %211 = vector.shape_cast %210 : vector<16xf32> to vector<16x1xf32>
    %212 = vector.broadcast %211 : vector<16x1xf32> to vector<16x16xf32>
    %213 = arith.cmpf ole, %209, %212 : vector<16x16xf32>
    %cst_84 = arith.constant 1.600000e+01 : f32
    %214 = vector.broadcast %cst_84 : f32 to vector<16x16xf32>
    %215 = arith.select %213, %2, %214 : vector<16x16xi1>, vector<16x16xf32>
    %cst_85 = arith.constant dense<0x7F800000> : vector<16xf32>
    %216 = vector.multi_reduction <minimumf>, %215, %cst_85 [1] : vector<16x16xf32> to vector<16xf32>
    %217 = vector.shape_cast %216 : vector<16xf32> to vector<16x1xf32>
    %218 = vector.broadcast %217 : vector<16x1xf32> to vector<16x16xf32>
    %219 = arith.cmpf oeq, %2, %218 : vector<16x16xf32>
    %cst_86 = arith.constant 1.000000e+00 : f32
    %cst_87 = arith.constant 0.000000e+00 : f32
    %220 = vector.broadcast %cst_86 : f32 to vector<16x16xf32>
    %221 = vector.broadcast %cst_87 : f32 to vector<16x16xf32>
    %222 = arith.select %219, %220, %221 : vector<16x16xi1>, vector<16x16xf32>
    %cst_88 = arith.constant dense<0.000000e+00> : vector<16x64xf32>
    %223 = tpu.matmul %222, %143, %cst_88 {dimension_numbers = #tpu.dot_dimension_numbers<[1], [0], [0], [1], [0, 0, 1, 1], [], []>, precision = #tpu.contract_precision<fp32>} : vector<16x16xf32>, vector<16x64xf32>, vector<16x64xf32> -> vector<16x64xf32>
    %224 = arith.addf %142, %223 : vector<16x64xf32>
    %cst_89 = arith.constant 0.000000e+00 : f32
    %225 = vector.broadcast %cst_89 : f32 to vector<16x64xf32>
    %226 = arith.maximumf %224, %225 : vector<16x64xf32>
    %227 = vector.broadcast %144 : vector<1x64xf32> to vector<16x64xf32>
    %228 = arith.mulf %226, %227 : vector<16x64xf32>
    %229 = arith.maximumf %207, %228 : vector<16x64xf32>
    %c120 = arith.constant 120 : index
    %c0_90 = arith.constant 0 : index
    %230 = vector.load %arg1[%c120, %c0_90] : memref<472x128xf32, #tpu.memory_space<vmem>>, vector<1x64xf32>
    %231 = vector.broadcast %230 : vector<1x64xf32> to vector<16x64xf32>
    %232 = arith.addf %229, %231 : vector<16x64xf32>
    %c128 = arith.constant 128 : index
    %c0_91 = arith.constant 0 : index
    %233 = vector.load %arg1[%c128, %c0_91] : memref<472x128xf32, #tpu.memory_space<vmem>>, vector<96x96xf32>
    %234 = vector.extract_strided_slice %233 {offsets = [0, 0], sizes = [32, 96], strides = [1, 1]} : vector<96x96xf32> to vector<32x96xf32>
    %cst_92 = arith.constant dense<0.000000e+00> : vector<16x96xf32>
    %235 = tpu.matmul %128, %234, %cst_92 {dimension_numbers = #tpu.dot_dimension_numbers<[1], [0], [0], [1], [0, 0, 1, 1], [], []>, precision = #tpu.contract_precision<fp32>} : vector<16x32xf32>, vector<32x96xf32>, vector<16x96xf32> -> vector<16x96xf32>
    %236 = vector.extract_strided_slice %233 {offsets = [32, 0], sizes = [64, 96], strides = [1, 1]} : vector<96x96xf32> to vector<64x96xf32>
    %cst_93 = arith.constant dense<0.000000e+00> : vector<16x96xf32>
    %237 = tpu.matmul %232, %236, %cst_93 {dimension_numbers = #tpu.dot_dimension_numbers<[1], [0], [0], [1], [0, 0, 1, 1], [], []>, precision = #tpu.contract_precision<fp32>} : vector<16x64xf32>, vector<64x96xf32>, vector<16x96xf32> -> vector<16x96xf32>
    %238 = arith.addf %235, %237 : vector<16x96xf32>
    %c224 = arith.constant 224 : index
    %c0_94 = arith.constant 0 : index
    %239 = vector.load %arg1[%c224, %c0_94] : memref<472x128xf32, #tpu.memory_space<vmem>>, vector<1x96xf32>
    %240 = vector.broadcast %239 : vector<1x96xf32> to vector<16x96xf32>
    %241 = arith.addf %238, %240 : vector<16x96xf32>
    %cst_95 = arith.constant 0.000000e+00 : f32
    %242 = vector.broadcast %cst_95 : f32 to vector<16x96xf32>
    %243 = arith.maximumf %241, %242 : vector<16x96xf32>
    %c232 = arith.constant 232 : index
    %c0_96 = arith.constant 0 : index
    %244 = vector.load %arg1[%c232, %c0_96] : memref<472x128xf32, #tpu.memory_space<vmem>>, vector<1x96xf32>
    %245 = vector.broadcast %244 : vector<1x96xf32> to vector<16x96xf32>
    %246 = arith.mulf %243, %245 : vector<16x96xf32>
    %c240 = arith.constant 240 : index
    %c0_97 = arith.constant 0 : index
    %247 = vector.load %arg1[%c240, %c0_97] : memref<472x128xf32, #tpu.memory_space<vmem>>, vector<1x96xf32>
    %248 = vector.broadcast %247 : vector<1x96xf32> to vector<16x96xf32>
    %249 = arith.addf %246, %248 : vector<16x96xf32>
    %cst_98 = arith.constant dense<0xFF800000> : vector<96xf32>
    %250 = vector.multi_reduction <maximumf>, %249, %cst_98 [0] : vector<16x96xf32> to vector<96xf32>
    %251 = vector.shape_cast %250 : vector<96xf32> to vector<1x96xf32>
    %c248 = arith.constant 248 : index
    %c0_99 = arith.constant 0 : index
    %252 = vector.load %arg1[%c248, %c0_99] : memref<472x128xf32, #tpu.memory_space<vmem>>, vector<96x96xf32>
    %cst_100 = arith.constant dense<0.000000e+00> : vector<1x96xf32>
    %253 = tpu.matmul %251, %252, %cst_100 {dimension_numbers = #tpu.dot_dimension_numbers<[1], [0], [0], [1], [0, 0, 1, 1], [], []>, precision = #tpu.contract_precision<fp32>} : vector<1x96xf32>, vector<96x96xf32>, vector<1x96xf32> -> vector<1x96xf32>
    %c344 = arith.constant 344 : index
    %c0_101 = arith.constant 0 : index
    %254 = vector.load %arg1[%c344, %c0_101] : memref<472x128xf32, #tpu.memory_space<vmem>>, vector<1x96xf32>
    %255 = arith.addf %253, %254 : vector<1x96xf32>
    %cst_102 = arith.constant 0.000000e+00 : f32
    %256 = vector.broadcast %cst_102 : f32 to vector<1x96xf32>
    %257 = arith.maximumf %255, %256 : vector<1x96xf32>
    %c352 = arith.constant 352 : index
    %c0_103 = arith.constant 0 : index
    %258 = vector.load %arg1[%c352, %c0_103] : memref<472x128xf32, #tpu.memory_space<vmem>>, vector<96x128xf32>
    %cst_104 = arith.constant dense<0.000000e+00> : vector<1x128xf32>
    %259 = tpu.matmul %257, %258, %cst_104 {dimension_numbers = #tpu.dot_dimension_numbers<[1], [0], [0], [1], [0, 0, 1, 1], [], []>, precision = #tpu.contract_precision<fp32>} : vector<1x96xf32>, vector<96x128xf32>, vector<1x128xf32> -> vector<1x128xf32>
    %c448 = arith.constant 448 : index
    %c0_105 = arith.constant 0 : index
    %260 = vector.load %arg1[%c448, %c0_105] : memref<472x128xf32, #tpu.memory_space<vmem>>, vector<1x128xf32>
    %261 = arith.addf %259, %260 : vector<1x128xf32>
    %cst_106 = arith.constant 0.000000e+00 : f32
    %262 = vector.broadcast %cst_106 : f32 to vector<1x128xf32>
    %263 = arith.maximumf %261, %262 : vector<1x128xf32>
    %c456 = arith.constant 456 : index
    %c0_107 = arith.constant 0 : index
    %264 = vector.load %arg1[%c456, %c0_107] : memref<472x128xf32, #tpu.memory_space<vmem>>, vector<1x128xf32>
    %265 = arith.mulf %263, %264 : vector<1x128xf32>
    %c464 = arith.constant 464 : index
    %c0_108 = arith.constant 0 : index
    %266 = vector.load %arg1[%c464, %c0_108] : memref<472x128xf32, #tpu.memory_space<vmem>>, vector<1x128xf32>
    %267 = arith.addf %265, %266 : vector<1x128xf32>
    %c0_109 = arith.constant 0 : index
    %c0_110 = arith.constant 0 : index
    %268 = vector.load %arg2[%c0_109, %c0_110] : memref<1x128xf32, #tpu.memory_space<vmem>>, vector<1x128xf32>
    tpu.vector_store %arg2[%c0_109, %c0_110], %267 {strides = array<i32>} : memref<1x128xf32, #tpu.memory_space<vmem>>, vector<1x128xf32>,
    return
  }
}

</mosaic_0001>

<llo_original>
// kernel: tpu_custom_call.1
$region0: #{tpu_custom_call.1}
  #allocation0 [shape = 'u32[]', space=smem, size = 0x4, offset = 0x4, fixed_abs, tag = 'smem constant byte address 0x4 - core index']
  #allocation1 [shape = 'u32[144,128]{1,0:T(1,128)}', space=vmem, size = 0x12000, scoped, tag = 'internal scratch']
  %s0 = inlined_call_operand.vmem [shape: f32[16,4], index: 0, kind: input, shape index: {}]
  %s1 = inlined_call_operand.hbm [shape: f32[472,128], index: 1, kind: input, shape index: {}]
  %s2 = inlined_call_operand.hbm [shape: f32[1,128], index: 2, kind: output, shape index: {}]
  %s3 = sld [smem:[#allocation0]]
  $region22: #{tpu_custom_call.1} parent=0
    _
  %s5 = ssub.s32 1, %s3
  %s6 = scalar_select 0, %s5, %s3
  $region1: #{tpu_custom_call.1} parent=0
    #allocation2 [shape = 'u8[241664]{0}', space=vmem, size = 0x3b000, scoped, tag = 'input window, operand 1, single buffered']
    #allocation3 [shape = 's32[1]{0}', space=sflag, size = 0x4, scoped, tag = 'scoped memory for tpu_custom_call.1']
    #allocation4 [shape = 's32[1]{0}', space=sflag, size = 0x4, scoped, tag = 'scoped memory for tpu_custom_call.1']
    #allocation5 [shape = 'u8[512]{0}', space=vmem, size = 0x400, scoped, tag = 'output window, operand 0, single buffered']
    %7 = vsyncpa [#allocation3], 0
    %8 = vsyncpa [#allocation4], 0
    // Predicated region
    $region2: #{tpu_custom_call.1} parent=1 // pred_check
      _
    $region3: #{tpu_custom_call.1} parent=1 // pred_check_branch
      %10 = sbr.rel (0) target = $region5
    $region4: #{tpu_custom_call.1} parent=1 // pred_region
      _
    $region5: #{tpu_custom_call.1} parent=1 // pred_fallthru
      _
    // Predicated region
    $region6: #{tpu_custom_call.1} parent=1 // pred_check
      _
    $region7: #{tpu_custom_call.1} parent=1 // pred_check_branch
      %12 = sbr.rel (0) target = $region9
    $region8: #{tpu_custom_call.1} parent=1 // pred_region
      %s14 = ssub.s32 7552, 7552
      %15 = vsyncadd [#allocation3], %s14
      %s16 = sshll.u32 [#allocation2], 4
      %s17 = int_to_ptr.vmem [resolvable:$true] %s16
      %22 = dma.hbm_to_vmem [thread:$0]  %s1, 7552, %s17, [#allocation3], 128, 128, 8
    $region9: #{tpu_custom_call.1} parent=1 // pred_fallthru
      _
    // Predicated region
    $region10: #{tpu_custom_call.1} parent=1 // pred_check
      _
    $region11: #{tpu_custom_call.1} parent=1 // pred_check_branch
      %24 = sbr.rel (0) target = $region13
    $region12: #{tpu_custom_call.1} parent=1 // pred_region
      %25 = dma.done [#allocation3], 7552
    $region13: #{tpu_custom_call.1} parent=1 // pred_fallthru
      _
    %v26 = vld [vmem:[%s0] sm:$0xff]
    %v27 = vld [vmem:[%s0 + $0x8] sm:$0xff]
    %v28 = vlaneseq
    %v29 = vand.u32 %v28, 127
    %v30 = vcvt.s32.f32 %v29
    %vm31 = vcmask 31744
    %v33 = vsel %vm31, %v26, 0
    %v36 = vsel %vm31, %v27, 0
    %38 = vmatprep.subr.mxu0 0.0
    %v39 = vand.u32 %v33, 4294901760
    %40 = vmatpush1.xpose.msra.mxu0 %v39
    %41 = vmatprep.subr.mxu0 0.0
    %v42 = vand.u32 %v36, 4294901760
    %43 = vmatpush1.xpose.msra.mxu0 %v42
    %44 = vmatprep.subr.mxu0 0.0
    %45 = vmatpush1.xpose.msra.mxu0 0.0
    %46 = vmatprep.subr.mxu0 0.0
    %47 = vmatpush1.xpose.msra.mxu0 0.0
    %48 = vmatprep.subr.mxu0 0.0
    %49 = vmatpush1.xpose.msra.mxu0 0.0
    %50 = vmatprep.subr.mxu0 0.0
    %51 = vmatpush1.xpose.msra.mxu0 0.0
    %52 = vmatprep.subr.mxu0 0.0
    %53 = vmatpush1.xpose.msra.mxu0 0.0
    %54 = vmatprep.subr.mxu0 0.0
    %55 = vmatpush1.xpose.msra.mxu0 0.0
    %56 = vmatprep.subr.mxu0 0.0
    %57 = vmatpush1.xpose.msra.mxu0 0.0
    %58 = vmatprep.subr.mxu0 0.0
    %59 = vmatpush1.xpose.msra.mxu0 0.0
    %60 = vmatprep.subr.mxu0 0.0
    %61 = vmatpush1.xpose.msra.mxu0 0.0
    %62 = vmatprep.subr.mxu0 0.0
    %63 = vmatpush1.xpose.msra.mxu0 0.0
    %64 = vmatprep.subr.mxu0 0.0
    %65 = vmatpush1.xpose.msra.mxu0 0.0
    %66 = vmatprep.subr.mxu0 0.0
    %67 = vmatpush1.xpose.msra.mxu0 0.0
    %68 = vmatprep.subr.mxu0 0.0
    %69 = vmatpush1.xpose.msra.mxu0 0.0
    %70 = vmatprep.subr.mxu0 0.0
    %71 = vmatpush1.xpose.msra.mxu0 0.0
    %72 = vmatprep.subr.mxu0 0.0
    %73 = vmatpush1.xpose.msra.mxu0 0.0
    %74 = vmatprep.subr.mxu0 0.0
    %75 = vmatpush1.xpose.msra.mxu0 0.0
    %76 = vmatprep.subr.mxu0 0.0
    %77 = vmatpush1.xpose.msra.mxu0 0.0
    %78 = vmatprep.subr.mxu0 0.0
    %79 = vmatpush1.xpose.msra.mxu0 0.0
    %80 = vmatprep.subr.mxu0 0.0
    %81 = vmatpush1.xpose.msra.mxu0 0.0
    %82 = vmatprep.subr.mxu0 0.0
    %83 = vmatpush1.xpose.msra.mxu0 0.0
    %84 = vmatprep.subr.mxu0 0.0
    %85 = vmatpush1.xpose.msra.mxu0 0.0
    %86 = vmatprep.subr.mxu0 0.0
    %87 = vmatpush1.xpose.msra.mxu0 0.0
    %88 = vmatprep.subr.mxu0 0.0
    %89 = vmatpush1.xpose.msra.mxu0 0.0
    %90 = vmatprep.subr.mxu0 0.0
    %91 = vmatpush1.xpose.msra.mxu0 0.0
    %92 = vmatprep.subr.mxu0 0.0
    %93 = vmatpush1.xpose.msra.mxu0 0.0
    %94 = vmatprep.subr.mxu0 0.0
    %95 = vmatpush1.xpose.msra.mxu0 0.0
    %96 = vmatprep.subr.mxu0 0.0
    %97 = vmatpush1.xpose.msra.mxu0 0.0
    %98 = vmatprep.subr.mxu0 0.0
    %99 = vmatpush1.xpose.msra.mxu0 0.0
    %100 = vmatprep.subr.mxu0 0.0
    %101 = vmatpush1.xpose.msra.mxu0 0.0
    %102 = vmatprep.subr.mxu0 0.0
    %103 = vmatpush1.xpose.msra.mxu0 0.0
    %104 = vmatprep.mubr.f32.mxu0 0.0
    %v105 = vand.u32 %v33, 4294901760
    %v106 = vsub.f32 %v33, %v105
    %v107 = vand.u32 %v106, 4294901760
    %v108 = vsub.f32 %v106, %v107
    %v109 = vand.u32 %v108, 4294901760
    %110 = vmatmul.mubr.f32.gmra.mrb[0].mxu0 %v109
    %v111 = vpop.f32.mrb[0].mxu0
    %v112 = vadd.f32 0.0, %v111
    %v113 = vpop.f32.mrb[0].mxu0
    %114 = vmatprep.mubr.f32.mxu0 0.0
    %v115 = vand.u32 %v36, 4294901760
    %v116 = vsub.f32 %v36, %v115
    %v117 = vand.u32 %v116, 4294901760
    %v118 = vsub.f32 %v116, %v117
    %v119 = vand.u32 %v118, 4294901760
    %120 = vmatmul.mubr.f32.gmra.mrb[0].mxu0 %v119
    %v121 = vpop.f32.mrb[0].mxu0
    %v122 = vadd.f32 0.0, %v121
    %v123 = vpop.f32.mrb[0].mxu0
    %124 = vdwg.mxu0
    %125 = vmatprep.subr.mxu0 0.0
    %v126 = vand.u32 %v33, 4294901760
    %v127 = vsub.f32 %v33, %v126
    %v128 = vand.u32 %v127, 4294901760
    %v129 = vsub.f32 %v127, %v128
    %v130 = vand.u32 %v129, 4294901760
    %131 = vmatpush1.xpose.msra.mxu0 %v130
    %132 = vmatprep.subr.mxu0 0.0
    %v133 = vand.u32 %v36, 4294901760
    %v134 = vsub.f32 %v36, %v133
    %v135 = vand.u32 %v134, 4294901760
    %v136 = vsub.f32 %v134, %v135
    %v137 = vand.u32 %v136, 4294901760
    %138 = vmatpush1.xpose.msra.mxu0 %v137
    %139 = vmatprep.subr.mxu0 0.0
    %140 = vmatpush1.xpose.msra.mxu0 0.0
    %141 = vmatprep.subr.mxu0 0.0
    %142 = vmatpush1.xpose.msra.mxu0 0.0
    %143 = vmatprep.subr.mxu0 0.0
    %144 = vmatpush1.xpose.msra.mxu0 0.0
    %145 = vmatprep.subr.mxu0 0.0
    %146 = vmatpush1.xpose.msra.mxu0 0.0
    %147 = vmatprep.subr.mxu0 0.0
    %148 = vmatpush1.xpose.msra.mxu0 0.0
    %149 = vmatprep.subr.mxu0 0.0
    %150 = vmatpush1.xpose.msra.mxu0 0.0
    %151 = vmatprep.subr.mxu0 0.0
    %152 = vmatpush1.xpose.msra.mxu0 0.0
    %153 = vmatprep.subr.mxu0 0.0
    %154 = vmatpush1.xpose.msra.mxu0 0.0
    %155 = vmatprep.subr.mxu0 0.0
    %156 = vmatpush1.xpose.msra.mxu0 0.0
    %157 = vmatprep.subr.mxu0 0.0
    %158 = vmatpush1.xpose.msra.mxu0 0.0
    %159 = vmatprep.subr.mxu0 0.0
    %160 = vmatpush1.xpose.msra.mxu0 0.0
    %161 = vmatprep.subr.mxu0 0.0
    %162 = vmatpush1.xpose.msra.mxu0 0.0
    %163 = vmatprep.subr.mxu0 0.0
    %164 = vmatpush1.xpose.msra.mxu0 0.0
    %165 = vmatprep.subr.mxu0 0.0
    %166 = vmatpush1.xpose.msra.mxu0 0.0
    %167 = vmatprep.subr.mxu0 0.0
    %168 = vmatpush1.xpose.msra.mxu0 0.0
    %169 = vmatprep.subr.mxu0 0.0
    %170 = vmatpush1.xpose.msra.mxu0 0.0
    %171 = vmatprep.subr.mxu0 0.0
    %172 = vmatpush1.xpose.msra.mxu0 0.0
    %173 = vmatprep.subr.mxu0 0.0
    %174 = vmatpush1.xpose.msra.mxu0 0.0
    %175 = vmatprep.subr.mxu0 0.0
    %176 = vmatpush1.xpose.msra.mxu0 0.0
    %177 = vmatprep.subr.mxu0 0.0
    %178 = vmatpush1.xpose.msra.mxu0 0.0
    %179 = vmatprep.subr.mxu0 0.0
    %180 = vmatpush1.xpose.msra.mxu0 0.0
    %181 = vmatprep.subr.mxu0 0.0
    %182 = vmatpush1.xpose.msra.mxu0 0.0
    %183 = vmatprep.subr.mxu0 0.0
    %184 = vmatpush1.xpose.msra.mxu0 0.0
    %185 = vmatprep.subr.mxu0 0.0
    %186 = vmatpush1.xpose.msra.mxu0 0.0
    %187 = vmatprep.subr.mxu0 0.0
    %188 = vmatpush1.xpose.msra.mxu0 0.0
    %189 = vmatprep.subr.mxu0 0.0
    %190 = vmatpush1.xpose.msra.mxu0 0.0
    %191 = vmatprep.subr.mxu0 0.0
    %192 = vmatpush1.xpose.msra.mxu0 0.0
    %193 = vmatprep.subr.mxu0 0.0
    %194 = vmatpush1.xpose.msra.mxu0 0.0
    %195 = vmatprep.subr.mxu0 0.0
    %196 = vmatpush1.xpose.msra.mxu0 0.0
    %197 = vmatprep.subr.mxu0 0.0
    %198 = vmatpush1.xpose.msra.mxu0 0.0
    %199 = vmatprep.mubr.f32.mxu0 0.0
    %v200 = vand.u32 %v33, 4294901760
    %201 = vmatmul.mubr.f32.gmra.mrb[0].mxu0 %v200
    %v202 = vpop.f32.mrb[0].mxu0
    %v203 = vadd.f32 %v112, %v202
    %v204 = vpop.f32.mrb[0].mxu0
    %205 = vmatprep.mubr.f32.mxu0 0.0
    %v206 = vand.u32 %v36, 4294901760
    %207 = vmatmul.mubr.f32.gmra.mrb[0].mxu0 %v206
    %v208 = vpop.f32.mrb[0].mxu0
    %v209 = vadd.f32 %v122, %v208
    %v210 = vpop.f32.mrb[0].mxu0
    %211 = vdwg.mxu0
    %212 = vmatprep.subr.mxu0 0.0
    %v213 = vand.u32 %v33, 4294901760
    %v214 = vsub.f32 %v33, %v213
    %215 = vmatpush1.xpose.msra.mxu0 %v214
    %216 = vmatprep.subr.mxu0 0.0
    %v217 = vand.u32 %v36, 4294901760
    %v218 = vsub.f32 %v36, %v217
    %219 = vmatpush1.xpose.msra.mxu0 %v218
    %220 = vmatprep.subr.mxu0 0.0
    %221 = vmatpush1.xpose.msra.mxu0 0.0
    %222 = vmatprep.subr.mxu0 0.0
    %223 = vmatpush1.xpose.msra.mxu0 0.0
    %224 = vmatprep.subr.mxu0 0.0
    %225 = vmatpush1.xpose.msra.mxu0 0.0
    %226 = vmatprep.subr.mxu0 0.0
    %227 = vmatpush1.xpose.msra.mxu0 0.0
    %228 = vmatprep.subr.mxu0 0.0
    %229 = vmatpush1.xpose.msra.mxu0 0.0
    %230 = vmatprep.subr.mxu0 0.0
    %231 = vmatpush1.xpose.msra.mxu0 0.0
    %232 = vmatprep.subr.mxu0 0.0
    %233 = vmatpush1.xpose.msra.mxu0 0.0
    %234 = vmatprep.subr.mxu0 0.0
    %235 = vmatpush1.xpose.msra.mxu0 0.0
    %236 = vmatprep.subr.mxu0 0.0
    %237 = vmatpush1.xpose.msra.mxu0 0.0
    %238 = vmatprep.subr.mxu0 0.0
    %239 = vmatpush1.xpose.msra.mxu0 0.0
    %240 = vmatprep.subr.mxu0 0.0
    %241 = vmatpush1.xpose.msra.mxu0 0.0
    %242 = vmatprep.subr.mxu0 0.0
    %243 = vmatpush1.xpose.msra.mxu0 0.0
    %244 = vmatprep.subr.mxu0 0.0
    %245 = vmatpush1.xpose.msra.mxu0 0.0
    %246 = vmatprep.subr.mxu0 0.0
    %247 = vmatpush1.xpose.msra.mxu0 0.0
    %248 = vmatprep.subr.mxu0 0.0
    %249 = vmatpush1.xpose.msra.mxu0 0.0
    %250 = vmatprep.subr.mxu0 0.0
    %251 = vmatpush1.xpose.msra.mxu0 0.0
    %252 = vmatprep.subr.mxu0 0.0
    %253 = vmatpush1.xpose.msra.mxu0 0.0
    %254 = vmatprep.subr.mxu0 0.0
    %255 = vmatpush1.xpose.msra.mxu0 0.0
    %256 = vmatprep.subr.mxu0 0.0
    %257 = vmatpush1.xpose.msra.mxu0 0.0
    %258 = vmatprep.subr.mxu0 0.0
    %259 = vmatpush1.xpose.msra.mxu0 0.0
    %260 = vmatprep.subr.mxu0 0.0
    %261 = vmatpush1.xpose.msra.mxu0 0.0
    %262 = vmatprep.subr.mxu0 0.0
    %263 = vmatpush1.xpose.msra.mxu0 0.0
    %264 = vmatprep.subr.mxu0 0.0
    %265 = vmatpush1.xpose.msra.mxu0 0.0
    %266 = vmatprep.subr.mxu0 0.0
    %267 = vmatpush1.xpose.msra.mxu0 0.0
    %268 = vmatprep.subr.mxu0 0.0
    %269 = vmatpush1.xpose.msra.mxu0 0.0
    %270 = vmatprep.subr.mxu0 0.0
    %271 = vmatpush1.xpose.msra.mxu0 0.0
    %272 = vmatprep.subr.mxu0 0.0
    %273 = vmatpush1.xpose.msra.mxu0 0.0
    %274 = vmatprep.subr.mxu0 0.0
    %275 = vmatpush1.xpose.msra.mxu0 0.0
    %276 = vmatprep.subr.mxu0 0.0
    %277 = vmatpush1.xpose.msra.mxu0 0.0
    %278 = vmatprep.subr.mxu0 0.0
    %279 = vmatpush1.xpose.msra.mxu0 0.0
    %280 = vmatprep.mubr.f32.mxu0 0.0
    %v281 = vand.u32 %v33, 4294901760
    %v282 = vsub.f32 %v33, %v281
    %283 = vmatmul.mubr.f32.gmra.mrb[0].mxu0 %v282
    %v284 = vpop.f32.mrb[0].mxu0
    %v285 = vadd.f32 %v203, %v284
    %v286 = vpop.f32.mrb[0].mxu0
    %287 = vmatprep.mubr.f32.mxu0 0.0
    %v288 = vand.u32 %v36, 4294901760
    %v289 = vsub.f32 %v36, %v288
    %290 = vmatmul.mubr.f32.gmra.mrb[0].mxu0 %v289
    %v291 = vpop.f32.mrb[0].mxu0
    %v292 = vadd.f32 %v209, %v291
    %v293 = vpop.f32.mrb[0].mxu0
    %294 = vdwg.mxu0
    %295 = vmatprep.subr.mxu0 0.0
    %v296 = vand.u32 %v33, 4294901760
    %297 = vmatpush1.xpose.msra.mxu0 %v296
    %298 = vmatprep.subr.mxu0 0.0
    %v299 = vand.u32 %v36, 4294901760
    %300 = vmatpush1.xpose.msra.mxu0 %v299
    %301 = vmatprep.subr.mxu0 0.0
    %302 = vmatpush1.xpose.msra.mxu0 0.0
    %303 = vmatprep.subr.mxu0 0.0
    %304 = vmatpush1.xpose.msra.mxu0 0.0
    %305 = vmatprep.subr.mxu0 0.0
    %306 = vmatpush1.xpose.msra.mxu0 0.0
    %307 = vmatprep.subr.mxu0 0.0
    %308 = vmatpush1.xpose.msra.mxu0 0.0
    %309 = vmatprep.subr.mxu0 0.0
    %310 = vmatpush1.xpose.msra.mxu0 0.0
    %311 = vmatprep.subr.mxu0 0.0
    %312 = vmatpush1.xpose.msra.mxu0 0.0
    %313 = vmatprep.subr.mxu0 0.0
    %314 = vmatpush1.xpose.msra.mxu0 0.0
    %315 = vmatprep.subr.mxu0 0.0
    %316 = vmatpush1.xpose.msra.mxu0 0.0
    %317 = vmatprep.subr.mxu0 0.0
    %318 = vmatpush1.xpose.msra.mxu0 0.0
    %319 = vmatprep.subr.mxu0 0.0
    %320 = vmatpush1.xpose.msra.mxu0 0.0
    %321 = vmatprep.subr.mxu0 0.0
    %322 = vmatpush1.xpose.msra.mxu0 0.0
    %323 = vmatprep.subr.mxu0 0.0
    %324 = vmatpush1.xpose.msra.mxu0 0.0
    %325 = vmatprep.subr.mxu0 0.0
    %326 = vmatpush1.xpose.msra.mxu0 0.0
    %327 = vmatprep.subr.mxu0 0.0
    %328 = vmatpush1.xpose.msra.mxu0 0.0
    %329 = vmatprep.subr.mxu0 0.0
    %330 = vmatpush1.xpose.msra.mxu0 0.0
    %331 = vmatprep.subr.mxu0 0.0
    %332 = vmatpush1.xpose.msra.mxu0 0.0
    %333 = vmatprep.subr.mxu0 0.0
    %334 = vmatpush1.xpose.msra.mxu0 0.0
    %335 = vmatprep.subr.mxu0 0.0
    %336 = vmatpush1.xpose.msra.mxu0 0.0
    %337 = vmatprep.subr.mxu0 0.0
    %338 = vmatpush1.xpose.msra.mxu0 0.0
    %339 = vmatprep.subr.mxu0 0.0
    %340 = vmatpush1.xpose.msra.mxu0 0.0
    %341 = vmatprep.subr.mxu0 0.0
    %342 = vmatpush1.xpose.msra.mxu0 0.0
    %343 = vmatprep.subr.mxu0 0.0
    %344 = vmatpush1.xpose.msra.mxu0 0.0
    %345 = vmatprep.subr.mxu0 0.0
    %346 = vmatpush1.xpose.msra.mxu0 0.0
    %347 = vmatprep.subr.mxu0 0.0
    %348 = vmatpush1.xpose.msra.mxu0 0.0
    %349 = vmatprep.subr.mxu0 0.0
    %350 = vmatpush1.xpose.msra.mxu0 0.0
    %351 = vmatprep.subr.mxu0 0.0
    %352 = vmatpush1.xpose.msra.mxu0 0.0
    %353 = vmatprep.subr.mxu0 0.0
    %354 = vmatpush1.xpose.msra.mxu0 0.0
    %355 = vmatprep.subr.mxu0 0.0
    %356 = vmatpush1.xpose.msra.mxu0 0.0
    %357 = vmatprep.subr.mxu0 0.0
    %358 = vmatpush1.xpose.msra.mxu0 0.0
    %359 = vmatprep.subr.mxu0 0.0
    %360 = vmatpush1.xpose.msra.mxu0 0.0
    %361 = vmatprep.mubr.f32.mxu0 0.0
    %v362 = vand.u32 %v33, 4294901760
    %v363 = vsub.f32 %v33, %v362
    %v364 = vand.u32 %v363, 4294901760
    %365 = vmatmul.mubr.f32.gmra.mrb[0].mxu0 %v364
    %v366 = vpop.f32.mrb[0].mxu0
    %v367 = vadd.f32 %v285, %v366
    %v368 = vpop.f32.mrb[0].mxu0
    %369 = vmatprep.mubr.f32.mxu0 0.0
    %v370 = vand.u32 %v36, 4294901760
    %v371 = vsub.f32 %v36, %v370
    %v372 = vand.u32 %v371, 4294901760
    %373 = vmatmul.mubr.f32.gmra.mrb[0].mxu0 %v372
    %v374 = vpop.f32.mrb[0].mxu0
    %v375 = vadd.f32 %v292, %v374
    %v376 = vpop.f32.mrb[0].mxu0
    %377 = vdwg.mxu0
    %378 = vmatprep.subr.mxu0 0.0
    %v379 = vand.u32 %v33, 4294901760
    %v380 = vsub.f32 %v33, %v379
    %v381 = vand.u32 %v380, 4294901760
    %382 = vmatpush1.xpose.msra.mxu0 %v381
    %383 = vmatprep.subr.mxu0 0.0
    %v384 = vand.u32 %v36, 4294901760
    %v385 = vsub.f32 %v36, %v384
    %v386 = vand.u32 %v385, 4294901760
    %387 = vmatpush1.xpose.msra.mxu0 %v386
    %388 = vmatprep.subr.mxu0 0.0
    %389 = vmatpush1.xpose.msra.mxu0 0.0
    %390 = vmatprep.subr.mxu0 0.0
    %391 = vmatpush1.xpose.msra.mxu0 0.0
    %392 = vmatprep.subr.mxu0 0.0
    %393 = vmatpush1.xpose.msra.mxu0 0.0
    %394 = vmatprep.subr.mxu0 0.0
    %395 = vmatpush1.xpose.msra.mxu0 0.0
    %396 = vmatprep.subr.mxu0 0.0
    %397 = vmatpush1.xpose.msra.mxu0 0.0
    %398 = vmatprep.subr.mxu0 0.0
    %399 = vmatpush1.xpose.msra.mxu0 0.0
    %400 = vmatprep.subr.mxu0 0.0
    %401 = vmatpush1.xpose.msra.mxu0 0.0
    %402 = vmatprep.subr.mxu0 0.0
    %403 = vmatpush1.xpose.msra.mxu0 0.0
    %404 = vmatprep.subr.mxu0 0.0
    %405 = vmatpush1.xpose.msra.mxu0 0.0
    %406 = vmatprep.subr.mxu0 0.0
    %407 = vmatpush1.xpose.msra.mxu0 0.0
    %408 = vmatprep.subr.mxu0 0.0
    %409 = vmatpush1.xpose.msra.mxu0 0.0
    %410 = vmatprep.subr.mxu0 0.0
    %411 = vmatpush1.xpose.msra.mxu0 0.0
    %412 = vmatprep.subr.mxu0 0.0
    %413 = vmatpush1.xpose.msra.mxu0 0.0
    %414 = vmatprep.subr.mxu0 0.0
    %415 = vmatpush1.xpose.msra.mxu0 0.0
    %416 = vmatprep.subr.mxu0 0.0
    %417 = vmatpush1.xpose.msra.mxu0 0.0
    %418 = vmatprep.subr.mxu0 0.0
    %419 = vmatpush1.xpose.msra.mxu0 0.0
    %420 = vmatprep.subr.mxu0 0.0
    %421 = vmatpush1.xpose.msra.mxu0 0.0
    %422 = vmatprep.subr.mxu0 0.0
    %423 = vmatpush1.xpose.msra.mxu0 0.0
    %424 = vmatprep.subr.mxu0 0.0
    %425 = vmatpush1.xpose.msra.mxu0 0.0
    %426 = vmatprep.subr.mxu0 0.0
    %427 = vmatpush1.xpose.msra.mxu0 0.0
    %428 = vmatprep.subr.mxu0 0.0
    %429 = vmatpush1.xpose.msra.mxu0 0.0
    %430 = vmatprep.subr.mxu0 0.0
    %431 = vmatpush1.xpose.msra.mxu0 0.0
    %432 = vmatprep.subr.mxu0 0.0
    %433 = vmatpush1.xpose.msra.mxu0 0.0
    %434 = vmatprep.subr.mxu0 0.0
    %435 = vmatpush1.xpose.msra.mxu0 0.0
    %436 = vmatprep.subr.mxu0 0.0
    %437 = vmatpush1.xpose.msra.mxu0 0.0
    %438 = vmatprep.subr.mxu0 0.0
    %439 = vmatpush1.xpose.msra.mxu0 0.0
    %440 = vmatprep.subr.mxu0 0.0
    %441 = vmatpush1.xpose.msra.mxu0 0.0
    %442 = vmatprep.subr.mxu0 0.0
    %443 = vmatpush1.xpose.msra.mxu0 0.0
    %444 = vmatprep.subr.mxu0 0.0
    %445 = vmatpush1.xpose.msra.mxu0 0.0
    %446 = vmatprep.subr.mxu0 0.0
    %447 = vmatpush1.xpose.msra.mxu0 0.0
    %448 = vmatprep.mubr.f32.mxu0 0.0
    %v449 = vand.u32 %v33, 4294901760
    %450 = vmatmul.mubr.f32.gmra.mrb[0].mxu0 %v449
    %v451 = vpop.f32.mrb[0].mxu0
    %v452 = vadd.f32 %v367, %v451
    %v453 = vpop.f32.mrb[0].mxu0
    %454 = vmatprep.mubr.f32.mxu0 0.0
    %v455 = vand.u32 %v36, 4294901760
    %456 = vmatmul.mubr.f32.gmra.mrb[0].mxu0 %v455
    %v457 = vpop.f32.mrb[0].mxu0
    %v458 = vadd.f32 %v375, %v457
    %v459 = vpop.f32.mrb[0].mxu0
    %460 = vdwg.mxu0
    %461 = vmatprep.subr.mxu0 0.0
    %v462 = vand.u32 %v33, 4294901760
    %463 = vmatpush1.xpose.msra.mxu0 %v462
    %464 = vmatprep.subr.mxu0 0.0
    %v465 = vand.u32 %v36, 4294901760
    %466 = vmatpush1.xpose.msra.mxu0 %v465
    %467 = vmatprep.subr.mxu0 0.0
    %468 = vmatpush1.xpose.msra.mxu0 0.0
    %469 = vmatprep.subr.mxu0 0.0
    %470 = vmatpush1.xpose.msra.mxu0 0.0
    %471 = vmatprep.subr.mxu0 0.0
    %472 = vmatpush1.xpose.msra.mxu0 0.0
    %473 = vmatprep.subr.mxu0 0.0
    %474 = vmatpush1.xpose.msra.mxu0 0.0
    %475 = vmatprep.subr.mxu0 0.0
    %476 = vmatpush1.xpose.msra.mxu0 0.0
    %477 = vmatprep.subr.mxu0 0.0
    %478 = vmatpush1.xpose.msra.mxu0 0.0
    %479 = vmatprep.subr.mxu0 0.0
    %480 = vmatpush1.xpose.msra.mxu0 0.0
    %481 = vmatprep.subr.mxu0 0.0
    %482 = vmatpush1.xpose.msra.mxu0 0.0
    %483 = vmatprep.subr.mxu0 0.0
    %484 = vmatpush1.xpose.msra.mxu0 0.0
    %485 = vmatprep.subr.mxu0 0.0
    %486 = vmatpush1.xpose.msra.mxu0 0.0
    %487 = vmatprep.subr.mxu0 0.0
    %488 = vmatpush1.xpose.msra.mxu0 0.0
    %489 = vmatprep.subr.mxu0 0.0
    %490 = vmatpush1.xpose.msra.mxu0 0.0
    %491 = vmatprep.subr.mxu0 0.0
    %492 = vmatpush1.xpose.msra.mxu0 0.0
    %493 = vmatprep.subr.mxu0 0.0
    %494 = vmatpush1.xpose.msra.mxu0 0.0
    %495 = vmatprep.subr.mxu0 0.0
    %496 = vmatpush1.xpose.msra.mxu0 0.0
    %497 = vmatprep.subr.mxu0 0.0
    %498 = vmatpush1.xpose.msra.mxu0 0.0
    %499 = vmatprep.subr.mxu0 0.0
    %500 = vmatpush1.xpose.msra.mxu0 0.0
    %501 = vmatprep.subr.mxu0 0.0
    %502 = vmatpush1.xpose.msra.mxu0 0.0
    %503 = vmatprep.subr.mxu0 0.0
    %504 = vmatpush1.xpose.msra.mxu0 0.0
    %505 = vmatprep.subr.mxu0 0.0
    %506 = vmatpush1.xpose.msra.mxu0 0.0
    %507 = vmatprep.subr.mxu0 0.0
    %508 = vmatpush1.xpose.msra.mxu0 0.0
    %509 = vmatprep.subr.mxu0 0.0
    %510 = vmatpush1.xpose.msra.mxu0 0.0
    %511 = vmatprep.subr.mxu0 0.0
    %512 = vmatpush1.xpose.msra.mxu0 0.0
    %513 = vmatprep.subr.mxu0 0.0
    %514 = vmatpush1.xpose.msra.mxu0 0.0
    %515 = vmatprep.subr.mxu0 0.0
    %516 = vmatpush1.xpose.msra.mxu0 0.0
    %517 = vmatprep.subr.mxu0 0.0
    %518 = vmatpush1.xpose.msra.mxu0 0.0
    %519 = vmatprep.subr.mxu0 0.0
    %520 = vmatpush1.xpose.msra.mxu0 0.0
    %521 = vmatprep.subr.mxu0 0.0
    %522 = vmatpush1.xpose.msra.mxu0 0.0
    %523 = vmatprep.subr.mxu0 0.0
    %524 = vmatpush1.xpose.msra.mxu0 0.0
    %525 = vmatprep.subr.mxu0 0.0
    %526 = vmatpush1.xpose.msra.mxu0 0.0
    %527 = vmatprep.mubr.f32.mxu0 0.0
    %v528 = vand.u32 %v33, 4294901760
    %529 = vmatmul.mubr.f32.gmra.mrb[0].mxu0 %v528
    %v530 = vpop.f32.mrb[0].mxu0
    %v531 = vadd.f32 %v452, %v530
    %v532 = vpop.f32.mrb[0].mxu0
    %533 = vmatprep.mubr.f32.mxu0 0.0
    %v534 = vand.u32 %v36, 4294901760
    %535 = vmatmul.mubr.f32.gmra.mrb[0].mxu0 %v534
    %v536 = vpop.f32.mrb[0].mxu0
    %v537 = vadd.f32 %v458, %v536
    %v538 = vpop.f32.mrb[0].mxu0
    %539 = vdwg.mxu0
    %v540 = vmul.f32 %v26, %v26
    %v541 = vmul.f32 %v27, %v27
    %v543 = vsel %vm31, 1.0, 0
    %v546 = vsel %vm31, %v540, 0
    %v549 = vsel %vm31, %v541, 0
    %551 = vmatprep.subr.mxu0 0.0
    %v552 = vand.u32 %v546, 4294901760
    %553 = vmatpush1.xpose.msra.mxu0 %v552
    %554 = vmatprep.subr.mxu0 0.0
    %v555 = vand.u32 %v549, 4294901760
    %556 = vmatpush1.xpose.msra.mxu0 %v555
    %557 = vmatprep.subr.mxu0 0.0
    %558 = vmatpush1.xpose.msra.mxu0 0.0
    %559 = vmatprep.subr.mxu0 0.0
    %560 = vmatpush1.xpose.msra.mxu0 0.0
    %561 = vmatprep.subr.mxu0 0.0
    %562 = vmatpush1.xpose.msra.mxu0 0.0
    %563 = vmatprep.subr.mxu0 0.0
    %564 = vmatpush1.xpose.msra.mxu0 0.0
    %565 = vmatprep.subr.mxu0 0.0
    %566 = vmatpush1.xpose.msra.mxu0 0.0
    %567 = vmatprep.subr.mxu0 0.0
    %568 = vmatpush1.xpose.msra.mxu0 0.0
    %569 = vmatprep.subr.mxu0 0.0
    %570 = vmatpush1.xpose.msra.mxu0 0.0
    %571 = vmatprep.subr.mxu0 0.0
    %572 = vmatpush1.xpose.msra.mxu0 0.0
    %573 = vmatprep.subr.mxu0 0.0
    %574 = vmatpush1.xpose.msra.mxu0 0.0
    %575 = vmatprep.subr.mxu0 0.0
    %576 = vmatpush1.xpose.msra.mxu0 0.0
    %577 = vmatprep.subr.mxu0 0.0
    %578 = vmatpush1.xpose.msra.mxu0 0.0
    %579 = vmatprep.subr.mxu0 0.0
    %580 = vmatpush1.xpose.msra.mxu0 0.0
    %581 = vmatprep.subr.mxu0 0.0
    %582 = vmatpush1.xpose.msra.mxu0 0.0
    %583 = vmatprep.subr.mxu0 0.0
    %584 = vmatpush1.xpose.msra.mxu0 0.0
    %585 = vmatprep.subr.mxu0 0.0
    %586 = vmatpush1.xpose.msra.mxu0 0.0
    %587 = vmatprep.subr.mxu0 0.0
    %588 = vmatpush1.xpose.msra.mxu0 0.0
    %589 = vmatprep.subr.mxu0 0.0
    %590 = vmatpush1.xpose.msra.mxu0 0.0
    %591 = vmatprep.subr.mxu0 0.0
    %592 = vmatpush1.xpose.msra.mxu0 0.0
    %593 = vmatprep.subr.mxu0 0.0
    %594 = vmatpush1.xpose.msra.mxu0 0.0
    %595 = vmatprep.subr.mxu0 0.0
    %596 = vmatpush1.xpose.msra.mxu0 0.0
    %597 = vmatprep.subr.mxu0 0.0
    %598 = vmatpush1.xpose.msra.mxu0 0.0
    %599 = vmatprep.subr.mxu0 0.0
    %600 = vmatpush1.xpose.msra.mxu0 0.0
    %601 = vmatprep.subr.mxu0 0.0
    %602 = vmatpush1.xpose.msra.mxu0 0.0
    %603 = vmatprep.subr.mxu0 0.0
    %604 = vmatpush1.xpose.msra.mxu0 0.0
    %605 = vmatprep.subr.mxu0 0.0
    %606 = vmatpush1.xpose.msra.mxu0 0.0
    %607 = vmatprep.subr.mxu0 0.0
    %608 = vmatpush1.xpose.msra.mxu0 0.0
    %609 = vmatprep.subr.mxu0 0.0
    %610 = vmatpush1.xpose.msra.mxu0 0.0
    %611 = vmatprep.subr.mxu0 0.0
    %612 = vmatpush1.xpose.msra.mxu0 0.0
    %613 = vmatprep.subr.mxu0 0.0
    %614 = vmatpush1.xpose.msra.mxu0 0.0
    %615 = vmatprep.subr.mxu0 0.0
    %616 = vmatpush1.xpose.msra.mxu0 0.0
    %617 = vmatprep.mubr.f32.mxu0 0.0
    %v618 = vand.u32 %v543, 4294901760
    %v619 = vsub.f32 %v543, %v618
    %v620 = vand.u32 %v619, 4294901760
    %v621 = vsub.f32 %v619, %v620
    %v622 = vand.u32 %v621, 4294901760
    %623 = vmatmul.mubr.f32.gmra.mrb[0].mxu0 %v622
    %v624 = vpop.f32.mrb[0].mxu0
    %v625 = vadd.f32 0.0, %v624
    %v626 = vpop.f32.mrb[0].mxu0
    %627 = vdwg.mxu0
    %628 = vmatprep.subr.mxu0 0.0
    %v629 = vand.u32 %v546, 4294901760
    %v630 = vsub.f32 %v546, %v629
    %v631 = vand.u32 %v630, 4294901760
    %v632 = vsub.f32 %v630, %v631
    %v633 = vand.u32 %v632, 4294901760
    %634 = vmatpush1.xpose.msra.mxu0 %v633
    %635 = vmatprep.subr.mxu0 0.0
    %v636 = vand.u32 %v549, 4294901760
    %v637 = vsub.f32 %v549, %v636
    %v638 = vand.u32 %v637, 4294901760
    %v639 = vsub.f32 %v637, %v638
    %v640 = vand.u32 %v639, 4294901760
    %641 = vmatpush1.xpose.msra.mxu0 %v640
    %642 = vmatprep.subr.mxu0 0.0
    %643 = vmatpush1.xpose.msra.mxu0 0.0
    %644 = vmatprep.subr.mxu0 0.0
    %645 = vmatpush1.xpose.msra.mxu0 0.0
    %646 = vmatprep.subr.mxu0 0.0
    %647 = vmatpush1.xpose.msra.mxu0 0.0
    %648 = vmatprep.subr.mxu0 0.0
    %649 = vmatpush1.xpose.msra.mxu0 0.0
    %650 = vmatprep.subr.mxu0 0.0
    %651 = vmatpush1.xpose.msra.mxu0 0.0
    %652 = vmatprep.subr.mxu0 0.0
    %653 = vmatpush1.xpose.msra.mxu0 0.0
    %654 = vmatprep.subr.mxu0 0.0
    %655 = vmatpush1.xpose.msra.mxu0 0.0
    %656 = vmatprep.subr.mxu0 0.0
    %657 = vmatpush1.xpose.msra.mxu0 0.0
    %658 = vmatprep.subr.mxu0 0.0
    %659 = vmatpush1.xpose.msra.mxu0 0.0
    %660 = vmatprep.subr.mxu0 0.0
    %661 = vmatpush1.xpose.msra.mxu0 0.0
    %662 = vmatprep.subr.mxu0 0.0
    %663 = vmatpush1.xpose.msra.mxu0 0.0
    %664 = vmatprep.subr.mxu0 0.0
    %665 = vmatpush1.xpose.msra.mxu0 0.0
    %666 = vmatprep.subr.mxu0 0.0
    %667 = vmatpush1.xpose.msra.mxu0 0.0
    %668 = vmatprep.subr.mxu0 0.0
    %669 = vmatpush1.xpose.msra.mxu0 0.0
    %670 = vmatprep.subr.mxu0 0.0
    %671 = vmatpush1.xpose.msra.mxu0 0.0
    %672 = vmatprep.subr.mxu0 0.0
    %673 = vmatpush1.xpose.msra.mxu0 0.0
    %674 = vmatprep.subr.mxu0 0.0
    %675 = vmatpush1.xpose.msra.mxu0 0.0
    %676 = vmatprep.subr.mxu0 0.0
    %677 = vmatpush1.xpose.msra.mxu0 0.0
    %678 = vmatprep.subr.mxu0 0.0
    %679 = vmatpush1.xpose.msra.mxu0 0.0
    %680 = vmatprep.subr.mxu0 0.0
    %681 = vmatpush1.xpose.msra.mxu0 0.0
    %682 = vmatprep.subr.mxu0 0.0
    %683 = vmatpush1.xpose.msra.mxu0 0.0
    %684 = vmatprep.subr.mxu0 0.0
    %685 = vmatpush1.xpose.msra.mxu0 0.0
    %686 = vmatprep.subr.mxu0 0.0
    %687 = vmatpush1.xpose.msra.mxu0 0.0
    %688 = vmatprep.subr.mxu0 0.0
    %689 = vmatpush1.xpose.msra.mxu0 0.0
    %690 = vmatprep.subr.mxu0 0.0
    %691 = vmatpush1.xpose.msra.mxu0 0.0
    %692 = vmatprep.subr.mxu0 0.0
    %693 = vmatpush1.xpose.msra.mxu0 0.0
    %694 = vmatprep.subr.mxu0 0.0
    %695 = vmatpush1.xpose.msra.mxu0 0.0
    %696 = vmatprep.subr.mxu0 0.0
    %697 = vmatpush1.xpose.msra.mxu0 0.0
    %698 = vmatprep.subr.mxu0 0.0
    %699 = vmatpush1.xpose.msra.mxu0 0.0
    %700 = vmatprep.subr.mxu0 0.0
    %701 = vmatpush1.xpose.msra.mxu0 0.0
    %702 = vmatprep.mubr.f32.mxu0 0.0
    %v703 = vand.u32 %v543, 4294901760
    %704 = vmatmul.mubr.f32.gmra.mrb[0].mxu0 %v703
    %v705 = vpop.f32.mrb[0].mxu0
    %v706 = vadd.f32 %v625, %v705
    %v707 = vpop.f32.mrb[0].mxu0
    %708 = vdwg.mxu0
    %709 = vmatprep.subr.mxu0 0.0
    %v710 = vand.u32 %v546, 4294901760
    %v711 = vsub.f32 %v546, %v710
    %712 = vmatpush1.xpose.msra.mxu0 %v711
    %713 = vmatprep.subr.mxu0 0.0
    %v714 = vand.u32 %v549, 4294901760
    %v715 = vsub.f32 %v549, %v714
    %716 = vmatpush1.xpose.msra.mxu0 %v715
    %717 = vmatprep.subr.mxu0 0.0
    %718 = vmatpush1.xpose.msra.mxu0 0.0
    %719 = vmatprep.subr.mxu0 0.0
    %720 = vmatpush1.xpose.msra.mxu0 0.0
    %721 = vmatprep.subr.mxu0 0.0
    %722 = vmatpush1.xpose.msra.mxu0 0.0
    %723 = vmatprep.subr.mxu0 0.0
    %724 = vmatpush1.xpose.msra.mxu0 0.0
    %725 = vmatprep.subr.mxu0 0.0
    %726 = vmatpush1.xpose.msra.mxu0 0.0
    %727 = vmatprep.subr.mxu0 0.0
    %728 = vmatpush1.xpose.msra.mxu0 0.0
    %729 = vmatprep.subr.mxu0 0.0
    %730 = vmatpush1.xpose.msra.mxu0 0.0
    %731 = vmatprep.subr.mxu0 0.0
    %732 = vmatpush1.xpose.msra.mxu0 0.0
    %733 = vmatprep.subr.mxu0 0.0
    %734 = vmatpush1.xpose.msra.mxu0 0.0
    %735 = vmatprep.subr.mxu0 0.0
    %736 = vmatpush1.xpose.msra.mxu0 0.0
    %737 = vmatprep.subr.mxu0 0.0
    %738 = vmatpush1.xpose.msra.mxu0 0.0
    %739 = vmatprep.subr.mxu0 0.0
    %740 = vmatpush1.xpose.msra.mxu0 0.0
    %741 = vmatprep.subr.mxu0 0.0
    %742 = vmatpush1.xpose.msra.mxu0 0.0
    %743 = vmatprep.subr.mxu0 0.0
    %744 = vmatpush1.xpose.msra.mxu0 0.0
    %745 = vmatprep.subr.mxu0 0.0
    %746 = vmatpush1.xpose.msra.mxu0 0.0
    %747 = vmatprep.subr.mxu0 0.0
    %748 = vmatpush1.xpose.msra.mxu0 0.0
    %749 = vmatprep.subr.mxu0 0.0
    %750 = vmatpush1.xpose.msra.mxu0 0.0
    %751 = vmatprep.subr.mxu0 0.0
    %752 = vmatpush1.xpose.msra.mxu0 0.0
    %753 = vmatprep.subr.mxu0 0.0
    %754 = vmatpush1.xpose.msra.mxu0 0.0
    %755 = vmatprep.subr.mxu0 0.0
    %756 = vmatpush1.xpose.msra.mxu0 0.0
    %757 = vmatprep.subr.mxu0 0.0
    %758 = vmatpush1.xpose.msra.mxu0 0.0
    %759 = vmatprep.subr.mxu0 0.0
    %760 = vmatpush1.xpose.msra.mxu0 0.0
    %761 = vmatprep.subr.mxu0 0.0
    %762 = vmatpush1.xpose.msra.mxu0 0.0
    %763 = vmatprep.subr.mxu0 0.0
    %764 = vmatpush1.xpose.msra.mxu0 0.0
    %765 = vmatprep.subr.mxu0 0.0
    %766 = vmatpush1.xpose.msra.mxu0 0.0
    %767 = vmatprep.subr.mxu0 0.0
    %768 = vmatpush1.xpose.msra.mxu0 0.0
    %769 = vmatprep.subr.mxu0 0.0
    %770 = vmatpush1.xpose.msra.mxu0 0.0
    %771 = vmatprep.subr.mxu0 0.0
    %772 = vmatpush1.xpose.msra.mxu0 0.0
    %773 = vmatprep.subr.mxu0 0.0
    %774 = vmatpush1.xpose.msra.mxu0 0.0
    %775 = vmatprep.subr.mxu0 0.0
    %776 = vmatpush1.xpose.msra.mxu0 0.0
    %777 = vmatprep.mubr.f32.mxu0 0.0
    %v778 = vand.u32 %v543, 4294901760
    %v779 = vsub.f32 %v543, %v778
    %780 = vmatmul.mubr.f32.gmra.mrb[0].mxu0 %v779
    %v781 = vpop.f32.mrb[0].mxu0
    %v782 = vadd.f32 %v706, %v781
    %v783 = vpop.f32.mrb[0].mxu0
    %784 = vdwg.mxu0
    %785 = vmatprep.subr.mxu0 0.0
    %v786 = vand.u32 %v546, 4294901760
    %787 = vmatpush1.xpose.msra.mxu0 %v786
    %788 = vmatprep.subr.mxu0 0.0
    %v789 = vand.u32 %v549, 4294901760
    %790 = vmatpush1.xpose.msra.mxu0 %v789
    %791 = vmatprep.subr.mxu0 0.0
    %792 = vmatpush1.xpose.msra.mxu0 0.0
    %793 = vmatprep.subr.mxu0 0.0
    %794 = vmatpush1.xpose.msra.mxu0 0.0
    %795 = vmatprep.subr.mxu0 0.0
    %796 = vmatpush1.xpose.msra.mxu0 0.0
    %797 = vmatprep.subr.mxu0 0.0
    %798 = vmatpush1.xpose.msra.mxu0 0.0
    %799 = vmatprep.subr.mxu0 0.0
    %800 = vmatpush1.xpose.msra.mxu0 0.0
    %801 = vmatprep.subr.mxu0 0.0
    %802 = vmatpush1.xpose.msra.mxu0 0.0
    %803 = vmatprep.subr.mxu0 0.0
    %804 = vmatpush1.xpose.msra.mxu0 0.0
    %805 = vmatprep.subr.mxu0 0.0
    %806 = vmatpush1.xpose.msra.mxu0 0.0
    %807 = vmatprep.subr.mxu0 0.0
    %808 = vmatpush1.xpose.msra.mxu0 0.0
    %809 = vmatprep.subr.mxu0 0.0
    %810 = vmatpush1.xpose.msra.mxu0 0.0
    %811 = vmatprep.subr.mxu0 0.0
    %812 = vmatpush1.xpose.msra.mxu0 0.0
    %813 = vmatprep.subr.mxu0 0.0
    %814 = vmatpush1.xpose.msra.mxu0 0.0
    %815 = vmatprep.subr.mxu0 0.0
    %816 = vmatpush1.xpose.msra.mxu0 0.0
    %817 = vmatprep.subr.mxu0 0.0
    %818 = vmatpush1.xpose.msra.mxu0 0.0
    %819 = vmatprep.subr.mxu0 0.0
    %820 = vmatpush1.xpose.msra.mxu0 0.0
    %821 = vmatprep.subr.mxu0 0.0
    %822 = vmatpush1.xpose.msra.mxu0 0.0
    %823 = vmatprep.subr.mxu0 0.0
    %824 = vmatpush1.xpose.msra.mxu0 0.0
    %825 = vmatprep.subr.mxu0 0.0
    %826 = vmatpush1.xpose.msra.mxu0 0.0
    %827 = vmatprep.subr.mxu0 0.0
    %828 = vmatpush1.xpose.msra.mxu0 0.0
    %829 = vmatprep.subr.mxu0 0.0
    %830 = vmatpush1.xpose.msra.mxu0 0.0
    %831 = vmatprep.subr.mxu0 0.0
    %832 = vmatpush1.xpose.msra.mxu0 0.0
    %833 = vmatprep.subr.mxu0 0.0
    %834 = vmatpush1.xpose.msra.mxu0 0.0
    %835 = vmatprep.subr.mxu0 0.0
    %836 = vmatpush1.xpose.msra.mxu0 0.0
    %837 = vmatprep.subr.mxu0 0.0
    %838 = vmatpush1.xpose.msra.mxu0 0.0
    %839 = vmatprep.subr.mxu0 0.0
    %840 = vmatpush1.xpose.msra.mxu0 0.0
    %841 = vmatprep.subr.mxu0 0.0
    %842 = vmatpush1.xpose.msra.mxu0 0.0
    %843 = vmatprep.subr.mxu0 0.0
    %844 = vmatpush1.xpose.msra.mxu0 0.0
    %845 = vmatprep.subr.mxu0 0.0
    %846 = vmatpush1.xpose.msra.mxu0 0.0
    %847 = vmatprep.subr.mxu0 0.0
    %848 = vmatpush1.xpose.msra.mxu0 0.0
    %849 = vmatprep.subr.mxu0 0.0
    %850 = vmatpush1.xpose.msra.mxu0 0.0
    %851 = vmatprep.mubr.f32.mxu0 0.0
    %v852 = vand.u32 %v543, 4294901760
    %v853 = vsub.f32 %v543, %v852
    %v854 = vand.u32 %v853, 4294901760
    %855 = vmatmul.mubr.f32.gmra.mrb[0].mxu0 %v854
    %v856 = vpop.f32.mrb[0].mxu0
    %v857 = vadd.f32 %v782, %v856
    %v858 = vpop.f32.mrb[0].mxu0
    %859 = vdwg.mxu0
    %860 = vmatprep.subr.mxu0 0.0
    %v861 = vand.u32 %v546, 4294901760
    %v862 = vsub.f32 %v546, %v861
    %v863 = vand.u32 %v862, 4294901760
    %864 = vmatpush1.xpose.msra.mxu0 %v863
    %865 = vmatprep.subr.mxu0 0.0
    %v866 = vand.u32 %v549, 4294901760
    %v867 = vsub.f32 %v549, %v866
    %v868 = vand.u32 %v867, 4294901760
    %869 = vmatpush1.xpose.msra.mxu0 %v868
    %870 = vmatprep.subr.mxu0 0.0
    %871 = vmatpush1.xpose.msra.mxu0 0.0
    %872 = vmatprep.subr.mxu0 0.0
    %873 = vmatpush1.xpose.msra.mxu0 0.0
    %874 = vmatprep.subr.mxu0 0.0
    %875 = vmatpush1.xpose.msra.mxu0 0.0
    %876 = vmatprep.subr.mxu0 0.0
    %877 = vmatpush1.xpose.msra.mxu0 0.0
    %878 = vmatprep.subr.mxu0 0.0
    %879 = vmatpush1.xpose.msra.mxu0 0.0
    %880 = vmatprep.subr.mxu0 0.0
    %881 = vmatpush1.xpose.msra.mxu0 0.0
    %882 = vmatprep.subr.mxu0 0.0
    %883 = vmatpush1.xpose.msra.mxu0 0.0
    %884 = vmatprep.subr.mxu0 0.0
    %885 = vmatpush1.xpose.msra.mxu0 0.0
    %886 = vmatprep.subr.mxu0 0.0
    %887 = vmatpush1.xpose.msra.mxu0 0.0
    %888 = vmatprep.subr.mxu0 0.0
    %889 = vmatpush1.xpose.msra.mxu0 0.0
    %890 = vmatprep.subr.mxu0 0.0
    %891 = vmatpush1.xpose.msra.mxu0 0.0
    %892 = vmatprep.subr.mxu0 0.0
    %893 = vmatpush1.xpose.msra.mxu0 0.0
    %894 = vmatprep.subr.mxu0 0.0
    %895 = vmatpush1.xpose.msra.mxu0 0.0
    %896 = vmatprep.subr.mxu0 0.0
    %897 = vmatpush1.xpose.msra.mxu0 0.0
    %898 = vmatprep.subr.mxu0 0.0
    %899 = vmatpush1.xpose.msra.mxu0 0.0
    %900 = vmatprep.subr.mxu0 0.0
    %901 = vmatpush1.xpose.msra.mxu0 0.0
    %902 = vmatprep.subr.mxu0 0.0
    %903 = vmatpush1.xpose.msra.mxu0 0.0
    %904 = vmatprep.subr.mxu0 0.0
    %905 = vmatpush1.xpose.msra.mxu0 0.0
    %906 = vmatprep.subr.mxu0 0.0
    %907 = vmatpush1.xpose.msra.mxu0 0.0
    %908 = vmatprep.subr.mxu0 0.0
    %909 = vmatpush1.xpose.msra.mxu0 0.0
    %910 = vmatprep.subr.mxu0 0.0
    %911 = vmatpush1.xpose.msra.mxu0 0.0
    %912 = vmatprep.subr.mxu0 0.0
    %913 = vmatpush1.xpose.msra.mxu0 0.0
    %914 = vmatprep.subr.mxu0 0.0
    %915 = vmatpush1.xpose.msra.mxu0 0.0
    %916 = vmatprep.subr.mxu0 0.0
    %917 = vmatpush1.xpose.msra.mxu0 0.0
    %918 = vmatprep.subr.mxu0 0.0
    %919 = vmatpush1.xpose.msra.mxu0 0.0
    %920 = vmatprep.subr.mxu0 0.0
    %921 = vmatpush1.xpose.msra.mxu0 0.0
    %922 = vmatprep.subr.mxu0 0.0
    %923 = vmatpush1.xpose.msra.mxu0 0.0
    %924 = vmatprep.subr.mxu0 0.0
    %925 = vmatpush1.xpose.msra.mxu0 0.0
    %926 = vmatprep.subr.mxu0 0.0
    %927 = vmatpush1.xpose.msra.mxu0 0.0
    %928 = vmatprep.subr.mxu0 0.0
    %929 = vmatpush1.xpose.msra.mxu0 0.0
    %930 = vmatprep.mubr.f32.mxu0 0.0
    %v931 = vand.u32 %v543, 4294901760
    %932 = vmatmul.mubr.f32.gmra.mrb[0].mxu0 %v931
    %v933 = vpop.f32.mrb[0].mxu0
    %v934 = vadd.f32 %v857, %v933
    %v935 = vpop.f32.mrb[0].mxu0
    %936 = vdwg.mxu0
    %937 = vmatprep.subr.mxu0 0.0
    %v938 = vand.u32 %v546, 4294901760
    %939 = vmatpush1.xpose.msra.mxu0 %v938
    %940 = vmatprep.subr.mxu0 0.0
    %v941 = vand.u32 %v549, 4294901760
    %942 = vmatpush1.xpose.msra.mxu0 %v941
    %943 = vmatprep.subr.mxu0 0.0
    %944 = vmatpush1.xpose.msra.mxu0 0.0
    %945 = vmatprep.subr.mxu0 0.0
    %946 = vmatpush1.xpose.msra.mxu0 0.0
    %947 = vmatprep.subr.mxu0 0.0
    %948 = vmatpush1.xpose.msra.mxu0 0.0
    %949 = vmatprep.subr.mxu0 0.0
    %950 = vmatpush1.xpose.msra.mxu0 0.0
    %951 = vmatprep.subr.mxu0 0.0
    %952 = vmatpush1.xpose.msra.mxu0 0.0
    %953 = vmatprep.subr.mxu0 0.0
    %954 = vmatpush1.xpose.msra.mxu0 0.0
    %955 = vmatprep.subr.mxu0 0.0
    %956 = vmatpush1.xpose.msra.mxu0 0.0
    %957 = vmatprep.subr.mxu0 0.0
    %958 = vmatpush1.xpose.msra.mxu0 0.0
    %959 = vmatprep.subr.mxu0 0.0
    %960 = vmatpush1.xpose.msra.mxu0 0.0
    %961 = vmatprep.subr.mxu0 0.0
    %962 = vmatpush1.xpose.msra.mxu0 0.0
    %963 = vmatprep.subr.mxu0 0.0
    %964 = vmatpush1.xpose.msra.mxu0 0.0
    %965 = vmatprep.subr.mxu0 0.0
    %966 = vmatpush1.xpose.msra.mxu0 0.0
    %967 = vmatprep.subr.mxu0 0.0
    %968 = vmatpush1.xpose.msra.mxu0 0.0
    %969 = vmatprep.subr.mxu0 0.0
    %970 = vmatpush1.xpose.msra.mxu0 0.0
    %971 = vmatprep.subr.mxu0 0.0
    %972 = vmatpush1.xpose.msra.mxu0 0.0
    %973 = vmatprep.subr.mxu0 0.0
    %974 = vmatpush1.xpose.msra.mxu0 0.0
    %975 = vmatprep.subr.mxu0 0.0
    %976 = vmatpush1.xpose.msra.mxu0 0.0
    %977 = vmatprep.subr.mxu0 0.0
    %978 = vmatpush1.xpose.msra.mxu0 0.0
    %979 = vmatprep.subr.mxu0 0.0
    %980 = vmatpush1.xpose.msra.mxu0 0.0
    %981 = vmatprep.subr.mxu0 0.0
    %982 = vmatpush1.xpose.msra.mxu0 0.0
    %983 = vmatprep.subr.mxu0 0.0
    %984 = vmatpush1.xpose.msra.mxu0 0.0
    %985 = vmatprep.subr.mxu0 0.0
    %986 = vmatpush1.xpose.msra.mxu0 0.0
    %987 = vmatprep.subr.mxu0 0.0
    %988 = vmatpush1.xpose.msra.mxu0 0.0
    %989 = vmatprep.subr.mxu0 0.0
    %990 = vmatpush1.xpose.msra.mxu0 0.0
    %991 = vmatprep.subr.mxu0 0.0
    %992 = vmatpush1.xpose.msra.mxu0 0.0
    %993 = vmatprep.subr.mxu0 0.0
    %994 = vmatpush1.xpose.msra.mxu0 0.0
    %995 = vmatprep.subr.mxu0 0.0
    %996 = vmatpush1.xpose.msra.mxu0 0.0
    %997 = vmatprep.subr.mxu0 0.0
    %998 = vmatpush1.xpose.msra.mxu0 0.0
    %999 = vmatprep.subr.mxu0 0.0
    %1000 = vmatpush1.xpose.msra.mxu0 0.0
    %1001 = vmatprep.subr.mxu0 0.0
    %1002 = vmatpush1.xpose.msra.mxu0 0.0
    %1003 = vmatprep.mubr.f32.mxu0 0.0
    %v1004 = vand.u32 %v543, 4294901760
    %1005 = vmatmul.mubr.f32.gmra.mrb[0].mxu0 %v1004
    %v1006 = vpop.f32.mrb[0].mxu0
    %v1007 = vadd.f32 %v934, %v1006
    %v1008 = vpop.f32.mrb[0].mxu0
    %1009 = vdwg.mxu0
    %v1010 = vmul.f32 %v531, 2.0
    %v1011 = vmul.f32 %v537, 2.0
    %v1012 = vlaneseq
    %v1013 = vshrl.u32 %v1012, 7
    %v1014 = vsub.s32 0, %v1013
    %v1015 = vrot.slane %v1007, %v1014
    %v1016 = vsub.f32 %v1015, %v1010
    %v1017 = vsub.f32 %v1015, %v1011
    %v1018 = vld [vmem:[#allocation2] sm:$0xf]
    %vm1019 = vcmask 1043456
    %v1021 = vsel %vm1019, %v1018, 0
    %1023 = vmatprep.subr.mxu0 0.0
    %v1024 = vand.u32 %v1021, 4294901760
    %1025 = vmatpush1.msra.mxu0 %v1024
    %1026 = vmatprep.subr.mxu0 0.0
    %1027 = vmatpush1.msra.mxu0 0.0
    %1028 = vmatprep.subr.mxu0 0.0
    %1029 = vmatpush1.msra.mxu0 0.0
    %1030 = vmatprep.subr.mxu0 0.0
    %1031 = vmatpush1.msra.mxu0 0.0
    %1032 = vmatprep.subr.mxu0 0.0
    %1033 = vmatpush1.msra.mxu0 0.0
    %1034 = vmatprep.subr.mxu0 0.0
    %1035 = vmatpush1.msra.mxu0 0.0
    %1036 = vmatprep.subr.mxu0 0.0
    %1037 = vmatpush1.msra.mxu0 0.0
    %1038 = vmatprep.subr.mxu0 0.0
    %1039 = vmatpush1.msra.mxu0 0.0
    %1040 = vmatprep.subr.mxu0 0.0
    %1041 = vmatpush1.msra.mxu0 0.0
    %1042 = vmatprep.subr.mxu0 0.0
    %1043 = vmatpush1.msra.mxu0 0.0
    %1044 = vmatprep.subr.mxu0 0.0
    %1045 = vmatpush1.msra.mxu0 0.0
    %1046 = vmatprep.subr.mxu0 0.0
    %1047 = vmatpush1.msra.mxu0 0.0
    %1048 = vmatprep.subr.mxu0 0.0
    %1049 = vmatpush1.msra.mxu0 0.0
    %1050 = vmatprep.subr.mxu0 0.0
    %1051 = vmatpush1.msra.mxu0 0.0
    %1052 = vmatprep.subr.mxu0 0.0
    %1053 = vmatpush1.msra.mxu0 0.0
    %1054 = vmatprep.subr.mxu0 0.0
    %1055 = vmatpush1.msra.mxu0 0.0
    %1056 = vmatprep.subr.mxu0 0.0
    %1057 = vmatpush1.msra.mxu0 0.0
    %1058 = vmatprep.subr.mxu0 0.0
    %1059 = vmatpush1.msra.mxu0 0.0
    %1060 = vmatprep.subr.mxu0 0.0
    %1061 = vmatpush1.msra.mxu0 0.0
    %1062 = vmatprep.subr.mxu0 0.0
    %1063 = vmatpush1.msra.mxu0 0.0
    %1064 = vmatprep.subr.mxu0 0.0
    %1065 = vmatpush1.msra.mxu0 0.0
    %1066 = vmatprep.subr.mxu0 0.0
    %1067 = vmatpush1.msra.mxu0 0.0
    %1068 = vmatprep.subr.mxu0 0.0
    %1069 = vmatpush1.msra.mxu0 0.0
    %1070 = vmatprep.subr.mxu0 0.0
    %1071 = vmatpush1.msra.mxu0 0.0
    %1072 = vmatprep.subr.mxu0 0.0
    %1073 = vmatpush1.msra.mxu0 0.0
    %1074 = vmatprep.subr.mxu0 0.0
    %1075 = vmatpush1.msra.mxu0 0.0
    %1076 = vmatprep.subr.mxu0 0.0
    %1077 = vmatpush1.msra.mxu0 0.0
    %1078 = vmatprep.subr.mxu0 0.0
    %1079 = vmatpush1.msra.mxu0 0.0
    %1080 = vmatprep.subr.mxu0 0.0
    %1081 = vmatpush1.msra.mxu0 0.0
    %1082 = vmatprep.subr.mxu0 0.0
    %1083 = vmatpush1.msra.mxu0 0.0
    %1084 = vmatprep.subr.mxu0 0.0
    %1085 = vmatpush1.msra.mxu0 0.0
    %1086 = vmatprep.subr.mxu0 0.0
    %1087 = vmatpush1.msra.mxu0 0.0
    %1088 = vmatprep.mubr.f32.mxu0 0.0
    %v1089 = vand.u32 %v33, 4294901760
    %v1090 = vsub.f32 %v33, %v1089
    %v1091 = vand.u32 %v1090, 4294901760
    %v1092 = vsub.f32 %v1090, %v1091
    %v1093 = vand.u32 %v1092, 4294901760
    %1094 = vmatmul.mubr.f32.gmra.mrb[0].mxu0 %v1093
    %v1095 = vpop.f32.mrb[0].mxu0
    %v1096 = vadd.f32 0.0, %v1095
    %v1097 = vpop.f32.mrb[0].mxu0
    %1098 = vmatprep.mubr.f32.mxu0 0.0
    %v1099 = vand.u32 %v36, 4294901760
    %v1100 = vsub.f32 %v36, %v1099
    %v1101 = vand.u32 %v1100, 4294901760
    %v1102 = vsub.f32 %v1100, %v1101
    %v1103 = vand.u32 %v1102, 4294901760
    %1104 = vmatmul.mubr.f32.gmra.mrb[0].mxu0 %v1103
    %v1105 = vpop.f32.mrb[0].mxu0
    %v1106 = vadd.f32 0.0, %v1105
    %v1107 = vpop.f32.mrb[0].mxu0
    %1108 = vdwg.mxu0
    %1109 = vmatprep.subr.mxu0 0.0
    %v1110 = vand.u32 %v1021, 4294901760
    %v1111 = vsub.f32 %v1021, %v1110
    %v1112 = vand.u32 %v1111, 4294901760
    %v1113 = vsub.f32 %v1111, %v1112
    %v1114 = vand.u32 %v1113, 4294901760
    %1115 = vmatpush1.msra.mxu0 %v1114
    %1116 = vmatprep.subr.mxu0 0.0
    %1117 = vmatpush1.msra.mxu0 0.0
    %1118 = vmatprep.subr.mxu0 0.0
    %1119 = vmatpush1.msra.mxu0 0.0
    %1120 = vmatprep.subr.mxu0 0.0
    %1121 = vmatpush1.msra.mxu0 0.0
    %1122 = vmatprep.subr.mxu0 0.0
    %1123 = vmatpush1.msra.mxu0 0.0
    %1124 = vmatprep.subr.mxu0 0.0
    %1125 = vmatpush1.msra.mxu0 0.0
    %1126 = vmatprep.subr.mxu0 0.0
    %1127 = vmatpush1.msra.mxu0 0.0
    %1128 = vmatprep.subr.mxu0 0.0
    %1129 = vmatpush1.msra.mxu0 0.0
    %1130 = vmatprep.subr.mxu0 0.0
    %1131 = vmatpush1.msra.mxu0 0.0
    %1132 = vmatprep.subr.mxu0 0.0
    %1133 = vmatpush1.msra.mxu0 0.0
    %1134 = vmatprep.subr.mxu0 0.0
    %1135 = vmatpush1.msra.mxu0 0.0
    %1136 = vmatprep.subr.mxu0 0.0
    %1137 = vmatpush1.msra.mxu0 0.0
    %1138 = vmatprep.subr.mxu0 0.0
    %1139 = vmatpush1.msra.mxu0 0.0
    %1140 = vmatprep.subr.mxu0 0.0
    %1141 = vmatpush1.msra.mxu0 0.0
    %1142 = vmatprep.subr.mxu0 0.0
    %1143 = vmatpush1.msra.mxu0 0.0
    %1144 = vmatprep.subr.mxu0 0.0
    %1145 = vmatpush1.msra.mxu0 0.0
    %1146 = vmatprep.subr.mxu0 0.0
    %1147 = vmatpush1.msra.mxu0 0.0
    %1148 = vmatprep.subr.mxu0 0.0
    %1149 = vmatpush1.msra.mxu0 0.0
    %1150 = vmatprep.subr.mxu0 0.0
    %1151 = vmatpush1.msra.mxu0 0.0
    %1152 = vmatprep.subr.mxu0 0.0
    %1153 = vmatpush1.msra.mxu0 0.0
    %1154 = vmatprep.subr.mxu0 0.0
    %1155 = vmatpush1.msra.mxu0 0.0
    %1156 = vmatprep.subr.mxu0 0.0
    %1157 = vmatpush1.msra.mxu0 0.0
    %1158 = vmatprep.subr.mxu0 0.0
    %1159 = vmatpush1.msra.mxu0 0.0
    %1160 = vmatprep.subr.mxu0 0.0
    %1161 = vmatpush1.msra.mxu0 0.0
    %1162 = vmatprep.subr.mxu0 0.0
    %1163 = vmatpush1.msra.mxu0 0.0
    %1164 = vmatprep.subr.mxu0 0.0
    %1165 = vmatpush1.msra.mxu0 0.0
    %1166 = vmatprep.subr.mxu0 0.0
    %1167 = vmatpush1.msra.mxu0 0.0
    %1168 = vmatprep.subr.mxu0 0.0
    %1169 = vmatpush1.msra.mxu0 0.0
    %1170 = vmatprep.subr.mxu0 0.0
    %1171 = vmatpush1.msra.mxu0 0.0
    %1172 = vmatprep.subr.mxu0 0.0
    %1173 = vmatpush1.msra.mxu0 0.0
    %1174 = vmatprep.subr.mxu0 0.0
    %1175 = vmatpush1.msra.mxu0 0.0
    %1176 = vmatprep.subr.mxu0 0.0
    %1177 = vmatpush1.msra.mxu0 0.0
    %1178 = vmatprep.mubr.f32.mxu0 0.0
    %v1179 = vand.u32 %v33, 4294901760
    %1180 = vmatmul.mubr.f32.gmra.mrb[0].mxu0 %v1179
    %v1181 = vpop.f32.mrb[0].mxu0
    %v1182 = vadd.f32 %v1096, %v1181
    %v1183 = vpop.f32.mrb[0].mxu0
    %1184 = vmatprep.mubr.f32.mxu0 0.0
    %v1185 = vand.u32 %v36, 4294901760
    %1186 = vmatmul.mubr.f32.gmra.mrb[0].mxu0 %v1185
    %v1187 = vpop.f32.mrb[0].mxu0
    %v1188 = vadd.f32 %v1106, %v1187
    %v1189 = vpop.f32.mrb[0].mxu0
    %1190 = vdwg.mxu0
    %1191 = vmatprep.subr.mxu0 0.0
    %v1192 = vand.u32 %v1021, 4294901760
    %v1193 = vsub.f32 %v1021, %v1192
    %1194 = vmatpush1.msra.mxu0 %v1193
    %1195 = vmatprep.subr.mxu0 0.0
    %1196 = vmatpush1.msra.mxu0 0.0
    %1197 = vmatprep.subr.mxu0 0.0
    %1198 = vmatpush1.msra.mxu0 0.0
    %1199 = vmatprep.subr.mxu0 0.0
    %1200 = vmatpush1.msra.mxu0 0.0
    %1201 = vmatprep.subr.mxu0 0.0
    %1202 = vmatpush1.msra.mxu0 0.0
    %1203 = vmatprep.subr.mxu0 0.0
    %1204 = vmatpush1.msra.mxu0 0.0
    %1205 = vmatprep.subr.mxu0 0.0
    %1206 = vmatpush1.msra.mxu0 0.0
    %1207 = vmatprep.subr.mxu0 0.0
    %1208 = vmatpush1.msra.mxu0 0.0
    %1209 = vmatprep.subr.mxu0 0.0
    %1210 = vmatpush1.msra.mxu0 0.0
    %1211 = vmatprep.subr.mxu0 0.0
    %1212 = vmatpush1.msra.mxu0 0.0
    %1213 = vmatprep.subr.mxu0 0.0
    %1214 = vmatpush1.msra.mxu0 0.0
    %1215 = vmatprep.subr.mxu0 0.0
    %1216 = vmatpush1.msra.mxu0 0.0
    %1217 = vmatprep.subr.mxu0 0.0
    %1218 = vmatpush1.msra.mxu0 0.0
    %1219 = vmatprep.subr.mxu0 0.0
    %1220 = vmatpush1.msra.mxu0 0.0
    %1221 = vmatprep.subr.mxu0 0.0
    %1222 = vmatpush1.msra.mxu0 0.0
    %1223 = vmatprep.subr.mxu0 0.0
    %1224 = vmatpush1.msra.mxu0 0.0
    %1225 = vmatprep.subr.mxu0 0.0
    %1226 = vmatpush1.msra.mxu0 0.0
    %1227 = vmatprep.subr.mxu0 0.0
    %1228 = vmatpush1.msra.mxu0 0.0
    %1229 = vmatprep.subr.mxu0 0.0
    %1230 = vmatpush1.msra.mxu0 0.0
    %1231 = vmatprep.subr.mxu0 0.0
    %1232 = vmatpush1.msra.mxu0 0.0
    %1233 = vmatprep.subr.mxu0 0.0
    %1234 = vmatpush1.msra.mxu0 0.0
    %1235 = vmatprep.subr.mxu0 0.0
    %1236 = vmatpush1.msra.mxu0 0.0
    %1237 = vmatprep.subr.mxu0 0.0
    %1238 = vmatpush1.msra.mxu0 0.0
    %1239 = vmatprep.subr.mxu0 0.0
    %1240 = vmatpush1.msra.mxu0 0.0
    %1241 = vmatprep.subr.mxu0 0.0
    %1242 = vmatpush1.msra.mxu0 0.0
    %1243 = vmatprep.subr.mxu0 0.0
    %1244 = vmatpush1.msra.mxu0 0.0
    %1245 = vmatprep.subr.mxu0 0.0
    %1246 = vmatpush1.msra.mxu0 0.0
    %1247 = vmatprep.subr.mxu0 0.0
    %1248 = vmatpush1.msra.mxu0 0.0
    %1249 = vmatprep.subr.mxu0 0.0
    %1250 = vmatpush1.msra.mxu0 0.0
    %1251 = vmatprep.subr.mxu0 0.0
    %1252 = vmatpush1.msra.mxu0 0.0
    %1253 = vmatprep.subr.mxu0 0.0
    %1254 = vmatpush1.msra.mxu0 0.0
    %1255 = vmatprep.subr.mxu0 0.0
    %1256 = vmatpush1.msra.mxu0 0.0
    %1257 = vmatprep.mubr.f32.mxu0 0.0
    %v1258 = vand.u32 %v33, 4294901760
    %v1259 = vsub.f32 %v33, %v1258
    %1260 = vmatmul.mubr.f32.gmra.mrb[0].mxu0 %v1259
    %v1261 = vpop.f32.mrb[0].mxu0
    %v1262 = vadd.f32 %v1182, %v1261
    %v1263 = vpop.f32.mrb[0].mxu0
    %1264 = vmatprep.mubr.f32.mxu0 0.0
    %v1265 = vand.u32 %v36, 4294901760
    %v1266 = vsub.f32 %v36, %v1265
    %1267 = vmatmul.mubr.f32.gmra.mrb[0].mxu0 %v1266
    %v1268 = vpop.f32.mrb[0].mxu0
    %v1269 = vadd.f32 %v1188, %v1268
    %v1270 = vpop.f32.mrb[0].mxu0
    %1271 = vdwg.mxu0
    %1272 = vmatprep.subr.mxu0 0.0
    %v1273 = vand.u32 %v1021, 4294901760
    %1274 = vmatpush1.msra.mxu0 %v1273
    %1275 = vmatprep.subr.mxu0 0.0
    %1276 = vmatpush1.msra.mxu0 0.0
    %1277 = vmatprep.subr.mxu0 0.0
    %1278 = vmatpush1.msra.mxu0 0.0
    %1279 = vmatprep.subr.mxu0 0.0
    %1280 = vmatpush1.msra.mxu0 0.0
    %1281 = vmatprep.subr.mxu0 0.0
    %1282 = vmatpush1.msra.mxu0 0.0
    %1283 = vmatprep.subr.mxu0 0.0
    %1284 = vmatpush1.msra.mxu0 0.0
    %1285 = vmatprep.subr.mxu0 0.0
    %1286 = vmatpush1.msra.mxu0 0.0
    %1287 = vmatprep.subr.mxu0 0.0
    %1288 = vmatpush1.msra.mxu0 0.0
    %1289 = vmatprep.subr.mxu0 0.0
    %1290 = vmatpush1.msra.mxu0 0.0
    %1291 = vmatprep.subr.mxu0 0.0
    %1292 = vmatpush1.msra.mxu0 0.0
    %1293 = vmatprep.subr.mxu0 0.0
    %1294 = vmatpush1.msra.mxu0 0.0
    %1295 = vmatprep.subr.mxu0 0.0
    %1296 = vmatpush1.msra.mxu0 0.0
    %1297 = vmatprep.subr.mxu0 0.0
    %1298 = vmatpush1.msra.mxu0 0.0
    %1299 = vmatprep.subr.mxu0 0.0
    %1300 = vmatpush1.msra.mxu0 0.0
    %1301 = vmatprep.subr.mxu0 0.0
    %1302 = vmatpush1.msra.mxu0 0.0
    %1303 = vmatprep.subr.mxu0 0.0
    %1304 = vmatpush1.msra.mxu0 0.0
    %1305 = vmatprep.subr.mxu0 0.0
    %1306 = vmatpush1.msra.mxu0 0.0
    %1307 = vmatprep.subr.mxu0 0.0
    %1308 = vmatpush1.msra.mxu0 0.0
    %1309 = vmatprep.subr.mxu0 0.0
    %1310 = vmatpush1.msra.mxu0 0.0
    %1311 = vmatprep.subr.mxu0 0.0
    %1312 = vmatpush1.msra.mxu0 0.0
    %1313 = vmatprep.subr.mxu0 0.0
    %1314 = vmatpush1.msra.mxu0 0.0
    %1315 = vmatprep.subr.mxu0 0.0
    %1316 = vmatpush1.msra.mxu0 0.0
    %1317 = vmatprep.subr.mxu0 0.0
    %1318 = vmatpush1.msra.mxu0 0.0
    %1319 = vmatprep.subr.mxu0 0.0
    %1320 = vmatpush1.msra.mxu0 0.0
    %1321 = vmatprep.subr.mxu0 0.0
    %1322 = vmatpush1.msra.mxu0 0.0
    %1323 = vmatprep.subr.mxu0 0.0
    %1324 = vmatpush1.msra.mxu0 0.0
    %1325 = vmatprep.subr.mxu0 0.0
    %1326 = vmatpush1.msra.mxu0 0.0
    %1327 = vmatprep.subr.mxu0 0.0
    %1328 = vmatpush1.msra.mxu0 0.0
    %1329 = vmatprep.subr.mxu0 0.0
    %1330 = vmatpush1.msra.mxu0 0.0
    %1331 = vmatprep.subr.mxu0 0.0
    %1332 = vmatpush1.msra.mxu0 0.0
    %1333 = vmatprep.subr.mxu0 0.0
    %1334 = vmatpush1.msra.mxu0 0.0
    %1335 = vmatprep.subr.mxu0 0.0
    %1336 = vmatpush1.msra.mxu0 0.0
    %1337 = vmatprep.mubr.f32.mxu0 0.0
    %v1338 = vand.u32 %v33, 4294901760
    %v1339 = vsub.f32 %v33, %v1338
    %v1340 = vand.u32 %v1339, 4294901760
    %1341 = vmatmul.mubr.f32.gmra.mrb[0].mxu0 %v1340
    %v1342 = vpop.f32.mrb[0].mxu0
    %v1343 = vadd.f32 %v1262, %v1342
    %v1344 = vpop.f32.mrb[0].mxu0
    %1345 = vmatprep.mubr.f32.mxu0 0.0
    %v1346 = vand.u32 %v36, 4294901760
    %v1347 = vsub.f32 %v36, %v1346
    %v1348 = vand.u32 %v1347, 4294901760
    %1349 = vmatmul.mubr.f32.gmra.mrb[0].mxu0 %v1348
    %v1350 = vpop.f32.mrb[0].mxu0
    %v1351 = vadd.f32 %v1269, %v1350
    %v1352 = vpop.f32.mrb[0].mxu0
    %1353 = vdwg.mxu0
    %1354 = vmatprep.subr.mxu0 0.0
    %v1355 = vand.u32 %v1021, 4294901760
    %v1356 = vsub.f32 %v1021, %v1355
    %v1357 = vand.u32 %v1356, 4294901760
    %1358 = vmatpush1.msra.mxu0 %v1357
    %1359 = vmatprep.subr.mxu0 0.0
    %1360 = vmatpush1.msra.mxu0 0.0
    %1361 = vmatprep.subr.mxu0 0.0
    %1362 = vmatpush1.msra.mxu0 0.0
    %1363 = vmatprep.subr.mxu0 0.0
    %1364 = vmatpush1.msra.mxu0 0.0
    %1365 = vmatprep.subr.mxu0 0.0
    %1366 = vmatpush1.msra.mxu0 0.0
    %1367 = vmatprep.subr.mxu0 0.0
    %1368 = vmatpush1.msra.mxu0 0.0
    %1369 = vmatprep.subr.mxu0 0.0
    %1370 = vmatpush1.msra.mxu0 0.0
    %1371 = vmatprep.subr.mxu0 0.0
    %1372 = vmatpush1.msra.mxu0 0.0
    %1373 = vmatprep.subr.mxu0 0.0
    %1374 = vmatpush1.msra.mxu0 0.0
    %1375 = vmatprep.subr.mxu0 0.0
    %1376 = vmatpush1.msra.mxu0 0.0
    %1377 = vmatprep.subr.mxu0 0.0
    %1378 = vmatpush1.msra.mxu0 0.0
    %1379 = vmatprep.subr.mxu0 0.0
    %1380 = vmatpush1.msra.mxu0 0.0
    %1381 = vmatprep.subr.mxu0 0.0
    %1382 = vmatpush1.msra.mxu0 0.0
    %1383 = vmatprep.subr.mxu0 0.0
    %1384 = vmatpush1.msra.mxu0 0.0
    %1385 = vmatprep.subr.mxu0 0.0
    %1386 = vmatpush1.msra.mxu0 0.0
    %1387 = vmatprep.subr.mxu0 0.0
    %1388 = vmatpush1.msra.mxu0 0.0
    %1389 = vmatprep.subr.mxu0 0.0
    %1390 = vmatpush1.msra.mxu0 0.0
    %1391 = vmatprep.subr.mxu0 0.0
    %1392 = vmatpush1.msra.mxu0 0.0
    %1393 = vmatprep.subr.mxu0 0.0
    %1394 = vmatpush1.msra.mxu0 0.0
    %1395 = vmatprep.subr.mxu0 0.0
    %1396 = vmatpush1.msra.mxu0 0.0
    %1397 = vmatprep.subr.mxu0 0.0
    %1398 = vmatpush1.msra.mxu0 0.0
    %1399 = vmatprep.subr.mxu0 0.0
    %1400 = vmatpush1.msra.mxu0 0.0
    %1401 = vmatprep.subr.mxu0 0.0
    %1402 = vmatpush1.msra.mxu0 0.0
    %1403 = vmatprep.subr.mxu0 0.0
    %1404 = vmatpush1.msra.mxu0 0.0
    %1405 = vmatprep.subr.mxu0 0.0
    %1406 = vmatpush1.msra.mxu0 0.0
    %1407 = vmatprep.subr.mxu0 0.0
    %1408 = vmatpush1.msra.mxu0 0.0
    %1409 = vmatprep.subr.mxu0 0.0
    %1410 = vmatpush1.msra.mxu0 0.0
    %1411 = vmatprep.subr.mxu0 0.0
    %1412 = vmatpush1.msra.mxu0 0.0
    %1413 = vmatprep.subr.mxu0 0.0
    %1414 = vmatpush1.msra.mxu0 0.0
    %1415 = vmatprep.subr.mxu0 0.0
    %1416 = vmatpush1.msra.mxu0 0.0
    %1417 = vmatprep.subr.mxu0 0.0
    %1418 = vmatpush1.msra.mxu0 0.0
    %1419 = vmatprep.subr.mxu0 0.0
    %1420 = vmatpush1.msra.mxu0 0.0
    %1421 = vmatprep.mubr.f32.mxu0 0.0
    %v1422 = vand.u32 %v33, 4294901760
    %1423 = vmatmul.mubr.f32.gmra.mrb[0].mxu0 %v1422
    %v1424 = vpop.f32.mrb[0].mxu0
    %v1425 = vadd.f32 %v1343, %v1424
    %v1426 = vpop.f32.mrb[0].mxu0
    %1427 = vmatprep.mubr.f32.mxu0 0.0
    %v1428 = vand.u32 %v36, 4294901760
    %1429 = vmatmul.mubr.f32.gmra.mrb[0].mxu0 %v1428
    %v1430 = vpop.f32.mrb[0].mxu0
    %v1431 = vadd.f32 %v1351, %v1430
    %v1432 = vpop.f32.mrb[0].mxu0
    %1433 = vdwg.mxu0
    %1434 = vmatprep.subr.mxu0 0.0
    %v1435 = vand.u32 %v1021, 4294901760
    %1436 = vmatpush1.msra.mxu0 %v1435
    %1437 = vmatprep.subr.mxu0 0.0
    %1438 = vmatpush1.msra.mxu0 0.0
    %1439 = vmatprep.subr.mxu0 0.0
    %1440 = vmatpush1.msra.mxu0 0.0
    %1441 = vmatprep.subr.mxu0 0.0
    %1442 = vmatpush1.msra.mxu0 0.0
    %1443 = vmatprep.subr.mxu0 0.0
    %1444 = vmatpush1.msra.mxu0 0.0
    %1445 = vmatprep.subr.mxu0 0.0
    %1446 = vmatpush1.msra.mxu0 0.0
    %1447 = vmatprep.subr.mxu0 0.0
    %1448 = vmatpush1.msra.mxu0 0.0
    %1449 = vmatprep.subr.mxu0 0.0
    %1450 = vmatpush1.msra.mxu0 0.0
    %1451 = vmatprep.subr.mxu0 0.0
    %1452 = vmatpush1.msra.mxu0 0.0
    %1453 = vmatprep.subr.mxu0 0.0
    %1454 = vmatpush1.msra.mxu0 0.0
    %1455 = vmatprep.subr.mxu0 0.0
    %1456 = vmatpush1.msra.mxu0 0.0
    %1457 = vmatprep.subr.mxu0 0.0
    %1458 = vmatpush1.msra.mxu0 0.0
    %1459 = vmatprep.subr.mxu0 0.0
    %1460 = vmatpush1.msra.mxu0 0.0
    %1461 = vmatprep.subr.mxu0 0.0
    %1462 = vmatpush1.msra.mxu0 0.0
    %1463 = vmatprep.subr.mxu0 0.0
    %1464 = vmatpush1.msra.mxu0 0.0
    %1465 = vmatprep.subr.mxu0 0.0
    %1466 = vmatpush1.msra.mxu0 0.0
    %1467 = vmatprep.subr.mxu0 0.0
    %1468 = vmatpush1.msra.mxu0 0.0
    %1469 = vmatprep.subr.mxu0 0.0
    %1470 = vmatpush1.msra.mxu0 0.0
    %1471 = vmatprep.subr.mxu0 0.0
    %1472 = vmatpush1.msra.mxu0 0.0
    %1473 = vmatprep.subr.mxu0 0.0
    %1474 = vmatpush1.msra.mxu0 0.0
    %1475 = vmatprep.subr.mxu0 0.0
    %1476 = vmatpush1.msra.mxu0 0.0
    %1477 = vmatprep.subr.mxu0 0.0
    %1478 = vmatpush1.msra.mxu0 0.0
    %1479 = vmatprep.subr.mxu0 0.0
    %1480 = vmatpush1.msra.mxu0 0.0
    %1481 = vmatprep.subr.mxu0 0.0
    %1482 = vmatpush1.msra.mxu0 0.0
    %1483 = vmatprep.subr.mxu0 0.0
    %1484 = vmatpush1.msra.mxu0 0.0
    %1485 = vmatprep.subr.mxu0 0.0
    %1486 = vmatpush1.msra.mxu0 0.0
    %1487 = vmatprep.subr.mxu0 0.0
    %1488 = vmatpush1.msra.mxu0 0.0
    %1489 = vmatprep.subr.mxu0 0.0
    %1490 = vmatpush1.msra.mxu0 0.0
    %1491 = vmatprep.subr.mxu0 0.0
    %1492 = vmatpush1.msra.mxu0 0.0
    %1493 = vmatprep.subr.mxu0 0.0
    %1494 = vmatpush1.msra.mxu0 0.0
    %1495 = vmatprep.subr.mxu0 0.0
    %1496 = vmatpush1.msra.mxu0 0.0
    %1497 = vmatprep.subr.mxu0 0.0
    %1498 = vmatpush1.msra.mxu0 0.0
    %1499 = vmatprep.mubr.f32.mxu0 0.0
    %v1500 = vand.u32 %v33, 4294901760
    %1501 = vmatmul.mubr.f32.gmra.mrb[0].mxu0 %v1500
    %v1502 = vpop.f32.mrb[0].mxu0
    %v1503 = vadd.f32 %v1425, %v1502
    %v1504 = vpop.f32.mrb[0].mxu0
    %1505 = vmatprep.mubr.f32.mxu0 0.0
    %v1506 = vand.u32 %v36, 4294901760
    %1507 = vmatmul.mubr.f32.gmra.mrb[0].mxu0 %v1506
    %v1508 = vpop.f32.mrb[0].mxu0
    %v1509 = vadd.f32 %v1431, %v1508
    %v1510 = vpop.f32.mrb[0].mxu0
    %1511 = vdwg.mxu0
    %v1512 = vld [vmem:[#allocation2 + $0x8] sm:$0x1]
    %v1513 = vlaneseq
    %v1514 = vshrl.u32 %v1513, 7
    %v1515 = vsub.s32 0, %v1514
    %v1516 = vrot.slane %v1512, %v1515
    %v1517 = vadd.f32 %v1503, %v1516
    %v1518 = vadd.f32 %v1509, %v1516
    %v1519 = vld [vmem:[#allocation2 + $0x10] sm:$0xff]
    %v1520 = vld [vmem:[#allocation2 + $0x18] sm:$0xff]
    %v1521 = vld [vmem:[#allocation2 + $0x20] sm:$0xff]
    %v1522 = vld [vmem:[#allocation2 + $0x28] sm:$0xff]
    %v1523 = vld [vmem:[#allocation2 + $0x30] sm:$0x1]
    %v1524 = vld [vmem:[#allocation2 + $0x38] sm:$0x1]
    %vm1525 = vcmask 130048
    %v1526 = vsel %vm1525, %v1016, inf
    %1527 = vmin.xlane.f32.xlu0 %v1526
    %v1528 = vpop.xlane.xlu0 %1527
    %v1529 = vsel %vm1525, %v1017, inf
    %1530 = vmin.xlane.f32.xlu0 %v1529
    %v1531 = vpop.xlane.xlu0 %1530
    %vm1532 = vcmp.le.f32.partialorder %v1016, %v1528
    %vm1533 = vcmp.le.f32.partialorder %v1017, %v1531
    %v1534 = vsel %vm1532, %v30, 16.0
    %v1535 = vsel %vm1533, %v30, 16.0
    %v1536 = vsel %vm1525, %v1534, inf
    %1537 = vmin.xlane.f32.xlu0 %v1536
    %v1538 = vpop.xlane.xlu0 %1537
    %v1539 = vsel %vm1525, %v1535, inf
    %1540 = vmin.xlane.f32.xlu0 %v1539
    %v1541 = vpop.xlane.xlu0 %1540
    %vm1542 = vcmp.eq.f32.partialorder %v30, %v1538
    %vm1543 = vcmp.eq.f32.partialorder %v30, %v1541
    %v1544 = vsel %vm1542, 1.0, 0.0
    %v1545 = vsel %vm1543, 1.0, 0.0
    %1548 = vrot.lane.b32.xlu0 %v1503, 96
    %v1549 = vpop.permute.xlu0 %1548
    %1550 = vrot.lane.b32.xlu0 %v1509, 96
    %v1551 = vpop.permute.xlu0 %1550
    %v1555 = vsel %vm1525, %v1544, 0
    %v1558 = vsel %vm1525, %v1545, 0
    %1560 = vmatprep.subr.mxu0 0.0
    %v1561 = vand.u32 %v1549, 4294901760
    %1562 = vmatpush1.msra.mxu0 %v1561
    %1563 = vmatprep.subr.mxu0 0.0
    %v1564 = vand.u32 %v1551, 4294901760
    %1565 = vmatpush1.msra.mxu0 %v1564
    %1566 = vmatprep.subr.mxu0 0.0
    %1567 = vmatpush1.msra.mxu0 0.0
    %1568 = vmatprep.subr.mxu0 0.0
    %1569 = vmatpush1.msra.mxu0 0.0
    %1570 = vmatprep.subr.mxu0 0.0
    %1571 = vmatpush1.msra.mxu0 0.0
    %1572 = vmatprep.subr.mxu0 0.0
    %1573 = vmatpush1.msra.mxu0 0.0
    %1574 = vmatprep.subr.mxu0 0.0
    %1575 = vmatpush1.msra.mxu0 0.0
    %1576 = vmatprep.subr.mxu0 0.0
    %1577 = vmatpush1.msra.mxu0 0.0
    %1578 = vmatprep.subr.mxu0 0.0
    %1579 = vmatpush1.msra.mxu0 0.0
    %1580 = vmatprep.subr.mxu0 0.0
    %1581 = vmatpush1.msra.mxu0 0.0
    %1582 = vmatprep.subr.mxu0 0.0
    %1583 = vmatpush1.msra.mxu0 0.0
    %1584 = vmatprep.subr.mxu0 0.0
    %1585 = vmatpush1.msra.mxu0 0.0
    %1586 = vmatprep.subr.mxu0 0.0
    %1587 = vmatpush1.msra.mxu0 0.0
    %1588 = vmatprep.subr.mxu0 0.0
    %1589 = vmatpush1.msra.mxu0 0.0
    %1590 = vmatprep.subr.mxu0 0.0
    %1591 = vmatpush1.msra.mxu0 0.0
    %1592 = vmatprep.subr.mxu0 0.0
    %1593 = vmatpush1.msra.mxu0 0.0
    %1594 = vmatprep.subr.mxu0 0.0
    %1595 = vmatpush1.msra.mxu0 0.0
    %1596 = vmatprep.subr.mxu0 0.0
    %1597 = vmatpush1.msra.mxu0 0.0
    %1598 = vmatprep.subr.mxu0 0.0
    %1599 = vmatpush1.msra.mxu0 0.0
    %1600 = vmatprep.subr.mxu0 0.0
    %1601 = vmatpush1.msra.mxu0 0.0
    %1602 = vmatprep.subr.mxu0 0.0
    %1603 = vmatpush1.msra.mxu0 0.0
    %1604 = vmatprep.subr.mxu0 0.0
    %1605 = vmatpush1.msra.mxu0 0.0
    %1606 = vmatprep.subr.mxu0 0.0
    %1607 = vmatpush1.msra.mxu0 0.0
    %1608 = vmatprep.subr.mxu0 0.0
    %1609 = vmatpush1.msra.mxu0 0.0
    %1610 = vmatprep.subr.mxu0 0.0
    %1611 = vmatpush1.msra.mxu0 0.0
    %1612 = vmatprep.subr.mxu0 0.0
    %1613 = vmatpush1.msra.mxu0 0.0
    %1614 = vmatprep.subr.mxu0 0.0
    %1615 = vmatpush1.msra.mxu0 0.0
    %1616 = vmatprep.subr.mxu0 0.0
    %1617 = vmatpush1.msra.mxu0 0.0
    %1618 = vmatprep.subr.mxu0 0.0
    %1619 = vmatpush1.msra.mxu0 0.0
    %1620 = vmatprep.subr.mxu0 0.0
    %1621 = vmatpush1.msra.mxu0 0.0
    %1622 = vmatprep.subr.mxu0 0.0
    %1623 = vmatpush1.msra.mxu0 0.0
    %1624 = vmatprep.subr.mxu0 0.0
    %1625 = vmatpush1.msra.mxu0 0.0
    %1626 = vmatprep.mubr.f32.mxu0 0.0
    %v1627 = vand.u32 %v1555, 4294901760
    %v1628 = vsub.f32 %v1555, %v1627
    %v1629 = vand.u32 %v1628, 4294901760
    %v1630 = vsub.f32 %v1628, %v1629
    %v1631 = vand.u32 %v1630, 4294901760
    %1632 = vmatmul.mubr.f32.gmra.mrb[0].mxu0 %v1631
    %v1633 = vpop.f32.mrb[0].mxu0
    %v1634 = vadd.f32 0.0, %v1633
    %v1635 = vpop.f32.mrb[0].mxu0
    %1636 = vmatprep.mubr.f32.mxu0 0.0
    %v1637 = vand.u32 %v1558, 4294901760
    %v1638 = vsub.f32 %v1558, %v1637
    %v1639 = vand.u32 %v1638, 4294901760
    %v1640 = vsub.f32 %v1638, %v1639
    %v1641 = vand.u32 %v1640, 4294901760
    %1642 = vmatmul.mubr.f32.gmra.mrb[0].mxu0 %v1641
    %v1643 = vpop.f32.mrb[0].mxu0
    %v1644 = vadd.f32 0.0, %v1643
    %v1645 = vpop.f32.mrb[0].mxu0
    %1646 = vdwg.mxu0
    %1647 = vmatprep.subr.mxu0 0.0
    %v1648 = vand.u32 %v1549, 4294901760
    %v1649 = vsub.f32 %v1549, %v1648
    %v1650 = vand.u32 %v1649, 4294901760
    %v1651 = vsub.f32 %v1649, %v1650
    %v1652 = vand.u32 %v1651, 4294901760
    %1653 = vmatpush1.msra.mxu0 %v1652
    %1654 = vmatprep.subr.mxu0 0.0
    %v1655 = vand.u32 %v1551, 4294901760
    %v1656 = vsub.f32 %v1551, %v1655
    %v1657 = vand.u32 %v1656, 4294901760
    %v1658 = vsub.f32 %v1656, %v1657
    %v1659 = vand.u32 %v1658, 4294901760
    %1660 = vmatpush1.msra.mxu0 %v1659
    %1661 = vmatprep.subr.mxu0 0.0
    %1662 = vmatpush1.msra.mxu0 0.0
    %1663 = vmatprep.subr.mxu0 0.0
    %1664 = vmatpush1.msra.mxu0 0.0
    %1665 = vmatprep.subr.mxu0 0.0
    %1666 = vmatpush1.msra.mxu0 0.0
    %1667 = vmatprep.subr.mxu0 0.0
    %1668 = vmatpush1.msra.mxu0 0.0
    %1669 = vmatprep.subr.mxu0 0.0
    %1670 = vmatpush1.msra.mxu0 0.0
    %1671 = vmatprep.subr.mxu0 0.0
    %1672 = vmatpush1.msra.mxu0 0.0
    %1673 = vmatprep.subr.mxu0 0.0
    %1674 = vmatpush1.msra.mxu0 0.0
    %1675 = vmatprep.subr.mxu0 0.0
    %1676 = vmatpush1.msra.mxu0 0.0
    %1677 = vmatprep.subr.mxu0 0.0
    %1678 = vmatpush1.msra.mxu0 0.0
    %1679 = vmatprep.subr.mxu0 0.0
    %1680 = vmatpush1.msra.mxu0 0.0
    %1681 = vmatprep.subr.mxu0 0.0
    %1682 = vmatpush1.msra.mxu0 0.0
    %1683 = vmatprep.subr.mxu0 0.0
    %1684 = vmatpush1.msra.mxu0 0.0
    %1685 = vmatprep.subr.mxu0 0.0
    %1686 = vmatpush1.msra.mxu0 0.0
    %1687 = vmatprep.subr.mxu0 0.0
    %1688 = vmatpush1.msra.mxu0 0.0
    %1689 = vmatprep.subr.mxu0 0.0
    %1690 = vmatpush1.msra.mxu0 0.0
    %1691 = vmatprep.subr.mxu0 0.0
    %1692 = vmatpush1.msra.mxu0 0.0
    %1693 = vmatprep.subr.mxu0 0.0
    %1694 = vmatpush1.msra.mxu0 0.0
    %1695 = vmatprep.subr.mxu0 0.0
    %1696 = vmatpush1.msra.mxu0 0.0
    %1697 = vmatprep.subr.mxu0 0.0
    %1698 = vmatpush1.msra.mxu0 0.0
    %1699 = vmatprep.subr.mxu0 0.0
    %1700 = vmatpush1.msra.mxu0 0.0
    %1701 = vmatprep.subr.mxu0 0.0
    %1702 = vmatpush1.msra.mxu0 0.0
    %1703 = vmatprep.subr.mxu0 0.0
    %1704 = vmatpush1.msra.mxu0 0.0
    %1705 = vmatprep.subr.mxu0 0.0
    %1706 = vmatpush1.msra.mxu0 0.0
    %1707 = vmatprep.subr.mxu0 0.0
    %1708 = vmatpush1.msra.mxu0 0.0
    %1709 = vmatprep.subr.mxu0 0.0
    %1710 = vmatpush1.msra.mxu0 0.0
    %1711 = vmatprep.subr.mxu0 0.0
    %1712 = vmatpush1.msra.mxu0 0.0
    %1713 = vmatprep.subr.mxu0 0.0
    %1714 = vmatpush1.msra.mxu0 0.0
    %1715 = vmatprep.subr.mxu0 0.0
    %1716 = vmatpush1.msra.mxu0 0.0
    %1717 = vmatprep.subr.mxu0 0.0
    %1718 = vmatpush1.msra.mxu0 0.0
    %1719 = vmatprep.subr.mxu0 0.0
    %1720 = vmatpush1.msra.mxu0 0.0
    %1721 = vmatprep.mubr.f32.mxu0 0.0
    %v1722 = vand.u32 %v1555, 4294901760
    %1723 = vmatmul.mubr.f32.gmra.mrb[0].mxu0 %v1722
    %v1724 = vpop.f32.mrb[0].mxu0
    %v1725 = vadd.f32 %v1634, %v1724
    %v1726 = vpop.f32.mrb[0].mxu0
    %1727 = vmatprep.mubr.f32.mxu0 0.0
    %v1728 = vand.u32 %v1558, 4294901760
    %1729 = vmatmul.mubr.f32.gmra.mrb[0].mxu0 %v1728
    %v1730 = vpop.f32.mrb[0].mxu0
    %v1731 = vadd.f32 %v1644, %v1730
    %v1732 = vpop.f32.mrb[0].mxu0
    %1733 = vdwg.mxu0
    %1734 = vmatprep.subr.mxu0 0.0
    %v1735 = vand.u32 %v1549, 4294901760
    %v1736 = vsub.f32 %v1549, %v1735
    %1737 = vmatpush1.msra.mxu0 %v1736
    %1738 = vmatprep.subr.mxu0 0.0
    %v1739 = vand.u32 %v1551, 4294901760
    %v1740 = vsub.f32 %v1551, %v1739
    %1741 = vmatpush1.msra.mxu0 %v1740
    %1742 = vmatprep.subr.mxu0 0.0
    %1743 = vmatpush1.msra.mxu0 0.0
    %1744 = vmatprep.subr.mxu0 0.0
    %1745 = vmatpush1.msra.mxu0 0.0
    %1746 = vmatprep.subr.mxu0 0.0
    %1747 = vmatpush1.msra.mxu0 0.0
    %1748 = vmatprep.subr.mxu0 0.0
    %1749 = vmatpush1.msra.mxu0 0.0
    %1750 = vmatprep.subr.mxu0 0.0
    %1751 = vmatpush1.msra.mxu0 0.0
    %1752 = vmatprep.subr.mxu0 0.0
    %1753 = vmatpush1.msra.mxu0 0.0
    %1754 = vmatprep.subr.mxu0 0.0
    %1755 = vmatpush1.msra.mxu0 0.0
    %1756 = vmatprep.subr.mxu0 0.0
    %1757 = vmatpush1.msra.mxu0 0.0
    %1758 = vmatprep.subr.mxu0 0.0
    %1759 = vmatpush1.msra.mxu0 0.0
    %1760 = vmatprep.subr.mxu0 0.0
    %1761 = vmatpush1.msra.mxu0 0.0
    %1762 = vmatprep.subr.mxu0 0.0
    %1763 = vmatpush1.msra.mxu0 0.0
    %1764 = vmatprep.subr.mxu0 0.0
    %1765 = vmatpush1.msra.mxu0 0.0
    %1766 = vmatprep.subr.mxu0 0.0
    %1767 = vmatpush1.msra.mxu0 0.0
    %1768 = vmatprep.subr.mxu0 0.0
    %1769 = vmatpush1.msra.mxu0 0.0
    %1770 = vmatprep.subr.mxu0 0.0
    %1771 = vmatpush1.msra.mxu0 0.0
    %1772 = vmatprep.subr.mxu0 0.0
    %1773 = vmatpush1.msra.mxu0 0.0
    %1774 = vmatprep.subr.mxu0 0.0
    %1775 = vmatpush1.msra.mxu0 0.0
    %1776 = vmatprep.subr.mxu0 0.0
    %1777 = vmatpush1.msra.mxu0 0.0
    %1778 = vmatprep.subr.mxu0 0.0
    %1779 = vmatpush1.msra.mxu0 0.0
    %1780 = vmatprep.subr.mxu0 0.0
    %1781 = vmatpush1.msra.mxu0 0.0
    %1782 = vmatprep.subr.mxu0 0.0
    %1783 = vmatpush1.msra.mxu0 0.0
    %1784 = vmatprep.subr.mxu0 0.0
    %1785 = vmatpush1.msra.mxu0 0.0
    %1786 = vmatprep.subr.mxu0 0.0
    %1787 = vmatpush1.msra.mxu0 0.0
    %1788 = vmatprep.subr.mxu0 0.0
    %1789 = vmatpush1.msra.mxu0 0.0
    %1790 = vmatprep.subr.mxu0 0.0
    %1791 = vmatpush1.msra.mxu0 0.0
    %1792 = vmatprep.subr.mxu0 0.0
    %1793 = vmatpush1.msra.mxu0 0.0
    %1794 = vmatprep.subr.mxu0 0.0
    %1795 = vmatpush1.msra.mxu0 0.0
    %1796 = vmatprep.subr.mxu0 0.0
    %1797 = vmatpush1.msra.mxu0 0.0
    %1798 = vmatprep.subr.mxu0 0.0
    %1799 = vmatpush1.msra.mxu0 0.0
    %1800 = vmatprep.subr.mxu0 0.0
    %1801 = vmatpush1.msra.mxu0 0.0
    %1802 = vmatprep.mubr.f32.mxu0 0.0
    %v1803 = vand.u32 %v1555, 4294901760
    %v1804 = vsub.f32 %v1555, %v1803
    %1805 = vmatmul.mubr.f32.gmra.mrb[0].mxu0 %v1804
    %v1806 = vpop.f32.mrb[0].mxu0
    %v1807 = vadd.f32 %v1725, %v1806
    %v1808 = vpop.f32.mrb[0].mxu0
    %1809 = vmatprep.mubr.f32.mxu0 0.0
    %v1810 = vand.u32 %v1558, 4294901760
    %v1811 = vsub.f32 %v1558, %v1810
    %1812 = vmatmul.mubr.f32.gmra.mrb[0].mxu0 %v1811
    %v1813 = vpop.f32.mrb[0].mxu0
    %v1814 = vadd.f32 %v1731, %v1813
    %v1815 = vpop.f32.mrb[0].mxu0
    %1816 = vdwg.mxu0
    %1817 = vmatprep.subr.mxu0 0.0
    %v1818 = vand.u32 %v1549, 4294901760
    %1819 = vmatpush1.msra.mxu0 %v1818
    %1820 = vmatprep.subr.mxu0 0.0
    %v1821 = vand.u32 %v1551, 4294901760
    %1822 = vmatpush1.msra.mxu0 %v1821
    %1823 = vmatprep.subr.mxu0 0.0
    %1824 = vmatpush1.msra.mxu0 0.0
    %1825 = vmatprep.subr.mxu0 0.0
    %1826 = vmatpush1.msra.mxu0 0.0
    %1827 = vmatprep.subr.mxu0 0.0
    %1828 = vmatpush1.msra.mxu0 0.0
    %1829 = vmatprep.subr.mxu0 0.0
    %1830 = vmatpush1.msra.mxu0 0.0
    %1831 = vmatprep.subr.mxu0 0.0
    %1832 = vmatpush1.msra.mxu0 0.0
    %1833 = vmatprep.subr.mxu0 0.0
    %1834 = vmatpush1.msra.mxu0 0.0
    %1835 = vmatprep.subr.mxu0 0.0
    %1836 = vmatpush1.msra.mxu0 0.0
    %1837 = vmatprep.subr.mxu0 0.0
    %1838 = vmatpush1.msra.mxu0 0.0
    %1839 = vmatprep.subr.mxu0 0.0
    %1840 = vmatpush1.msra.mxu0 0.0
    %1841 = vmatprep.subr.mxu0 0.0
    %1842 = vmatpush1.msra.mxu0 0.0
    %1843 = vmatprep.subr.mxu0 0.0
    %1844 = vmatpush1.msra.mxu0 0.0
    %1845 = vmatprep.subr.mxu0 0.0
    %1846 = vmatpush1.msra.mxu0 0.0
    %1847 = vmatprep.subr.mxu0 0.0
    %1848 = vmatpush1.msra.mxu0 0.0
    %1849 = vmatprep.subr.mxu0 0.0
    %1850 = vmatpush1.msra.mxu0 0.0
    %1851 = vmatprep.subr.mxu0 0.0
    %1852 = vmatpush1.msra.mxu0 0.0
    %1853 = vmatprep.subr.mxu0 0.0
    %1854 = vmatpush1.msra.mxu0 0.0
    %1855 = vmatprep.subr.mxu0 0.0
    %1856 = vmatpush1.msra.mxu0 0.0
    %1857 = vmatprep.subr.mxu0 0.0
    %1858 = vmatpush1.msra.mxu0 0.0
    %1859 = vmatprep.subr.mxu0 0.0
    %1860 = vmatpush1.msra.mxu0 0.0
    %1861 = vmatprep.subr.mxu0 0.0
    %1862 = vmatpush1.msra.mxu0 0.0
    %1863 = vmatprep.subr.mxu0 0.0
    %1864 = vmatpush1.msra.mxu0 0.0
    %1865 = vmatprep.subr.mxu0 0.0
    %1866 = vmatpush1.msra.mxu0 0.0
    %1867 = vmatprep.subr.mxu0 0.0
    %1868 = vmatpush1.msra.mxu0 0.0
    %1869 = vmatprep.subr.mxu0 0.0
    %1870 = vmatpush1.msra.mxu0 0.0
    %1871 = vmatprep.subr.mxu0 0.0
    %1872 = vmatpush1.msra.mxu0 0.0
    %1873 = vmatprep.subr.mxu0 0.0
    %1874 = vmatpush1.msra.mxu0 0.0
    %1875 = vmatprep.subr.mxu0 0.0
    %1876 = vmatpush1.msra.mxu0 0.0
    %1877 = vmatprep.subr.mxu0 0.0
    %1878 = vmatpush1.msra.mxu0 0.0
    %1879 = vmatprep.subr.mxu0 0.0
    %1880 = vmatpush1.msra.mxu0 0.0
    %1881 = vmatprep.subr.mxu0 0.0
    %1882 = vmatpush1.msra.mxu0 0.0
    %1883 = vmatprep.mubr.f32.mxu0 0.0
    %v1884 = vand.u32 %v1555, 4294901760
    %v1885 = vsub.f32 %v1555, %v1884
    %v1886 = vand.u32 %v1885, 4294901760
    %1887 = vmatmul.mubr.f32.gmra.mrb[0].mxu0 %v1886
    %v1888 = vpop.f32.mrb[0].mxu0
    %v1889 = vadd.f32 %v1807, %v1888
    %v1890 = vpop.f32.mrb[0].mxu0
    %1891 = vmatprep.mubr.f32.mxu0 0.0
    %v1892 = vand.u32 %v1558, 4294901760
    %v1893 = vsub.f32 %v1558, %v1892
    %v1894 = vand.u32 %v1893, 4294901760
    %1895 = vmatmul.mubr.f32.gmra.mrb[0].mxu0 %v1894
    %v1896 = vpop.f32.mrb[0].mxu0
    %v1897 = vadd.f32 %v1814, %v1896
    %v1898 = vpop.f32.mrb[0].mxu0
    %1899 = vdwg.mxu0
    %1900 = vmatprep.subr.mxu0 0.0
    %v1901 = vand.u32 %v1549, 4294901760
    %v1902 = vsub.f32 %v1549, %v1901
    %v1903 = vand.u32 %v1902, 4294901760
    %1904 = vmatpush1.msra.mxu0 %v1903
    %1905 = vmatprep.subr.mxu0 0.0
    %v1906 = vand.u32 %v1551, 4294901760
    %v1907 = vsub.f32 %v1551, %v1906
    %v1908 = vand.u32 %v1907, 4294901760
    %1909 = vmatpush1.msra.mxu0 %v1908
    %1910 = vmatprep.subr.mxu0 0.0
    %1911 = vmatpush1.msra.mxu0 0.0
    %1912 = vmatprep.subr.mxu0 0.0
    %1913 = vmatpush1.msra.mxu0 0.0
    %1914 = vmatprep.subr.mxu0 0.0
    %1915 = vmatpush1.msra.mxu0 0.0
    %1916 = vmatprep.subr.mxu0 0.0
    %1917 = vmatpush1.msra.mxu0 0.0
    %1918 = vmatprep.subr.mxu0 0.0
    %1919 = vmatpush1.msra.mxu0 0.0
    %1920 = vmatprep.subr.mxu0 0.0
    %1921 = vmatpush1.msra.mxu0 0.0
    %1922 = vmatprep.subr.mxu0 0.0
    %1923 = vmatpush1.msra.mxu0 0.0
    %1924 = vmatprep.subr.mxu0 0.0
    %1925 = vmatpush1.msra.mxu0 0.0
    %1926 = vmatprep.subr.mxu0 0.0
    %1927 = vmatpush1.msra.mxu0 0.0
    %1928 = vmatprep.subr.mxu0 0.0
    %1929 = vmatpush1.msra.mxu0 0.0
    %1930 = vmatprep.subr.mxu0 0.0
    %1931 = vmatpush1.msra.mxu0 0.0
    %1932 = vmatprep.subr.mxu0 0.0
    %1933 = vmatpush1.msra.mxu0 0.0
    %1934 = vmatprep.subr.mxu0 0.0
    %1935 = vmatpush1.msra.mxu0 0.0
    %1936 = vmatprep.subr.mxu0 0.0
    %1937 = vmatpush1.msra.mxu0 0.0
    %1938 = vmatprep.subr.mxu0 0.0
    %1939 = vmatpush1.msra.mxu0 0.0
    %1940 = vmatprep.subr.mxu0 0.0
    %1941 = vmatpush1.msra.mxu0 0.0
    %1942 = vmatprep.subr.mxu0 0.0
    %1943 = vmatpush1.msra.mxu0 0.0
    %1944 = vmatprep.subr.mxu0 0.0
    %1945 = vmatpush1.msra.mxu0 0.0
    %1946 = vmatprep.subr.mxu0 0.0
    %1947 = vmatpush1.msra.mxu0 0.0
    %1948 = vmatprep.subr.mxu0 0.0
    %1949 = vmatpush1.msra.mxu0 0.0
    %1950 = vmatprep.subr.mxu0 0.0
    %1951 = vmatpush1.msra.mxu0 0.0
    %1952 = vmatprep.subr.mxu0 0.0
    %1953 = vmatpush1.msra.mxu0 0.0
    %1954 = vmatprep.subr.mxu0 0.0
    %1955 = vmatpush1.msra.mxu0 0.0
    %1956 = vmatprep.subr.mxu0 0.0
    %1957 = vmatpush1.msra.mxu0 0.0
    %1958 = vmatprep.subr.mxu0 0.0
    %1959 = vmatpush1.msra.mxu0 0.0
    %1960 = vmatprep.subr.mxu0 0.0
    %1961 = vmatpush1.msra.mxu0 0.0
    %1962 = vmatprep.subr.mxu0 0.0
    %1963 = vmatpush1.msra.mxu0 0.0
    %1964 = vmatprep.subr.mxu0 0.0
    %1965 = vmatpush1.msra.mxu0 0.0
    %1966 = vmatprep.subr.mxu0 0.0
    %1967 = vmatpush1.msra.mxu0 0.0
    %1968 = vmatprep.subr.mxu0 0.0
    %1969 = vmatpush1.msra.mxu0 0.0
    %1970 = vmatprep.mubr.f32.mxu0 0.0
    %v1971 = vand.u32 %v1555, 4294901760
    %1972 = vmatmul.mubr.f32.gmra.mrb[0].mxu0 %v1971
    %v1973 = vpop.f32.mrb[0].mxu0
    %v1974 = vadd.f32 %v1889, %v1973
    %v1975 = vpop.f32.mrb[0].mxu0
    %1976 = vmatprep.mubr.f32.mxu0 0.0
    %v1977 = vand.u32 %v1558, 4294901760
    %1978 = vmatmul.mubr.f32.gmra.mrb[0].mxu0 %v1977
    %v1979 = vpop.f32.mrb[0].mxu0
    %v1980 = vadd.f32 %v1897, %v1979
    %v1981 = vpop.f32.mrb[0].mxu0
    %1982 = vdwg.mxu0
    %1983 = vmatprep.subr.mxu0 0.0
    %v1984 = vand.u32 %v1549, 4294901760
    %1985 = vmatpush1.msra.mxu0 %v1984
    %1986 = vmatprep.subr.mxu0 0.0
    %v1987 = vand.u32 %v1551, 4294901760
    %1988 = vmatpush1.msra.mxu0 %v1987
    %1989 = vmatprep.subr.mxu0 0.0
    %1990 = vmatpush1.msra.mxu0 0.0
    %1991 = vmatprep.subr.mxu0 0.0
    %1992 = vmatpush1.msra.mxu0 0.0
    %1993 = vmatprep.subr.mxu0 0.0
    %1994 = vmatpush1.msra.mxu0 0.0
    %1995 = vmatprep.subr.mxu0 0.0
    %1996 = vmatpush1.msra.mxu0 0.0
    %1997 = vmatprep.subr.mxu0 0.0
    %1998 = vmatpush1.msra.mxu0 0.0
    %1999 = vmatprep.subr.mxu0 0.0
    %2000 = vmatpush1.msra.mxu0 0.0
    %2001 = vmatprep.subr.mxu0 0.0
    %2002 = vmatpush1.msra.mxu0 0.0
    %2003 = vmatprep.subr.mxu0 0.0
    %2004 = vmatpush1.msra.mxu0 0.0
    %2005 = vmatprep.subr.mxu0 0.0
    %2006 = vmatpush1.msra.mxu0 0.0
    %2007 = vmatprep.subr.mxu0 0.0
    %2008 = vmatpush1.msra.mxu0 0.0
    %2009 = vmatprep.subr.mxu0 0.0
    %2010 = vmatpush1.msra.mxu0 0.0
    %2011 = vmatprep.subr.mxu0 0.0
    %2012 = vmatpush1.msra.mxu0 0.0
    %2013 = vmatprep.subr.mxu0 0.0
    %2014 = vmatpush1.msra.mxu0 0.0
    %2015 = vmatprep.subr.mxu0 0.0
    %2016 = vmatpush1.msra.mxu0 0.0
    %2017 = vmatprep.subr.mxu0 0.0
    %2018 = vmatpush1.msra.mxu0 0.0
    %2019 = vmatprep.subr.mxu0 0.0
    %2020 = vmatpush1.msra.mxu0 0.0
    %2021 = vmatprep.subr.mxu0 0.0
    %2022 = vmatpush1.msra.mxu0 0.0
    %2023 = vmatprep.subr.mxu0 0.0
    %2024 = vmatpush1.msra.mxu0 0.0
    %2025 = vmatprep.subr.mxu0 0.0
    %2026 = vmatpush1.msra.mxu0 0.0
    %2027 = vmatprep.subr.mxu0 0.0
    %2028 = vmatpush1.msra.mxu0 0.0
    %2029 = vmatprep.subr.mxu0 0.0
    %2030 = vmatpush1.msra.mxu0 0.0
    %2031 = vmatprep.subr.mxu0 0.0
    %2032 = vmatpush1.msra.mxu0 0.0
    %2033 = vmatprep.subr.mxu0 0.0
    %2034 = vmatpush1.msra.mxu0 0.0
    %2035 = vmatprep.subr.mxu0 0.0
    %2036 = vmatpush1.msra.mxu0 0.0
    %2037 = vmatprep.subr.mxu0 0.0
    %2038 = vmatpush1.msra.mxu0 0.0
    %2039 = vmatprep.subr.mxu0 0.0
    %2040 = vmatpush1.msra.mxu0 0.0
    %2041 = vmatprep.subr.mxu0 0.0
    %2042 = vmatpush1.msra.mxu0 0.0
    %2043 = vmatprep.subr.mxu0 0.0
    %2044 = vmatpush1.msra.mxu0 0.0
    %2045 = vmatprep.subr.mxu0 0.0
    %2046 = vmatpush1.msra.mxu0 0.0
    %2047 = vmatprep.subr.mxu0 0.0
    %2048 = vmatpush1.msra.mxu0 0.0
    %2049 = vmatprep.mubr.f32.mxu0 0.0
    %v2050 = vand.u32 %v1555, 4294901760
    %2051 = vmatmul.mubr.f32.gmra.mrb[0].mxu0 %v2050
    %v2052 = vpop.f32.mrb[0].mxu0
    %v2053 = vadd.f32 %v1974, %v2052
    %v2054 = vpop.f32.mrb[0].mxu0
    %2055 = vmatprep.mubr.f32.mxu0 0.0
    %v2056 = vand.u32 %v1558, 4294901760
    %2057 = vmatmul.mubr.f32.gmra.mrb[0].mxu0 %v2056
    %v2058 = vpop.f32.mrb[0].mxu0
    %v2059 = vadd.f32 %v1980, %v2058
    %v2060 = vpop.f32.mrb[0].mxu0
    %2061 = vdwg.mxu0
    %v2062 = vadd.f32 %v1517, %v2053
    %v2063 = vadd.f32 %v1518, %v2059
    %v2064 = vmax.f32 %v2062, 0.0
    %v2065 = vmax.f32 %v2063, 0.0
    %v2066 = vlaneseq
    %v2067 = vshrl.u32 %v2066, 7
    %v2068 = vsub.s32 0, %v2067
    %v2069 = vrot.slane %v1523, %v2068
    %vm2070 = vcmask 261120
    %v2072 = vsel %vm2070, %v2064, 0
    %v2075 = vsel %vm2070, %v2065, 0
    %2077 = vmatprep.subr.mxu0 0.0
    %v2078 = vand.u32 %v1519, 4294901760
    %2079 = vmatpush1.msra.mxu0 %v2078
    %2080 = vmatprep.subr.mxu0 0.0
    %v2081 = vand.u32 %v1520, 4294901760
    %2082 = vmatpush1.msra.mxu0 %v2081
    %2083 = vmatprep.subr.mxu0 0.0
    %v2084 = vand.u32 %v1521, 4294901760
    %2085 = vmatpush1.msra.mxu0 %v2084
    %2086 = vmatprep.subr.mxu0 0.0
    %v2087 = vand.u32 %v1522, 4294901760
    %2088 = vmatpush1.msra.mxu0 %v2087
    %2089 = vmatprep.subr.mxu0 0.0
    %2090 = vmatpush1.msra.mxu0 0.0
    %2091 = vmatprep.subr.mxu0 0.0
    %2092 = vmatpush1.msra.mxu0 0.0
    %2093 = vmatprep.subr.mxu0 0.0
    %2094 = vmatpush1.msra.mxu0 0.0
    %2095 = vmatprep.subr.mxu0 0.0
    %2096 = vmatpush1.msra.mxu0 0.0
    %2097 = vmatprep.subr.mxu0 0.0
    %2098 = vmatpush1.msra.mxu0 0.0
    %2099 = vmatprep.subr.mxu0 0.0
    %2100 = vmatpush1.msra.mxu0 0.0
    %2101 = vmatprep.subr.mxu0 0.0
    %2102 = vmatpush1.msra.mxu0 0.0
    %2103 = vmatprep.subr.mxu0 0.0
    %2104 = vmatpush1.msra.mxu0 0.0
    %2105 = vmatprep.subr.mxu0 0.0
    %2106 = vmatpush1.msra.mxu0 0.0
    %2107 = vmatprep.subr.mxu0 0.0
    %2108 = vmatpush1.msra.mxu0 0.0
    %2109 = vmatprep.subr.mxu0 0.0
    %2110 = vmatpush1.msra.mxu0 0.0
    %2111 = vmatprep.subr.mxu0 0.0
    %2112 = vmatpush1.msra.mxu0 0.0
    %2113 = vmatprep.subr.mxu0 0.0
    %2114 = vmatpush1.msra.mxu0 0.0
    %2115 = vmatprep.subr.mxu0 0.0
    %2116 = vmatpush1.msra.mxu0 0.0
    %2117 = vmatprep.subr.mxu0 0.0
    %2118 = vmatpush1.msra.mxu0 0.0
    %2119 = vmatprep.subr.mxu0 0.0
    %2120 = vmatpush1.msra.mxu0 0.0
    %2121 = vmatprep.subr.mxu0 0.0
    %2122 = vmatpush1.msra.mxu0 0.0
    %2123 = vmatprep.subr.mxu0 0.0
    %2124 = vmatpush1.msra.mxu0 0.0
    %2125 = vmatprep.subr.mxu0 0.0
    %2126 = vmatpush1.msra.mxu0 0.0
    %2127 = vmatprep.subr.mxu0 0.0
    %2128 = vmatpush1.msra.mxu0 0.0
    %2129 = vmatprep.subr.mxu0 0.0
    %2130 = vmatpush1.msra.mxu0 0.0
    %2131 = vmatprep.subr.mxu0 0.0
    %2132 = vmatpush1.msra.mxu0 0.0
    %2133 = vmatprep.subr.mxu0 0.0
    %2134 = vmatpush1.msra.mxu0 0.0
    %2135 = vmatprep.subr.mxu0 0.0
    %2136 = vmatpush1.msra.mxu0 0.0
    %2137 = vmatprep.subr.mxu0 0.0
    %2138 = vmatpush1.msra.mxu0 0.0
    %2139 = vmatprep.subr.mxu0 0.0
    %2140 = vmatpush1.msra.mxu0 0.0
    %2141 = vmatprep.subr.mxu0 0.0
    %2142 = vmatpush1.msra.mxu0 0.0
    %2143 = vmatprep.subr.mxu0 0.0
    %2144 = vmatpush1.msra.mxu0 0.0
    %2145 = vmatprep.mubr.f32.mxu0 0.0
    %v2146 = vand.u32 %v2072, 4294901760
    %v2147 = vsub.f32 %v2072, %v2146
    %v2148 = vand.u32 %v2147, 4294901760
    %v2149 = vsub.f32 %v2147, %v2148
    %v2150 = vand.u32 %v2149, 4294901760
    %2151 = vmatmul.mubr.f32.gmra.mrb[0].mxu0 %v2150
    %v2152 = vpop.f32.mrb[0].mxu0
    %v2153 = vadd.f32 %v2069, %v2152
    %v2154 = vpop.f32.mrb[0].mxu0
    %2155 = vmatprep.mubr.f32.mxu0 0.0
    %v2156 = vand.u32 %v2075, 4294901760
    %v2157 = vsub.f32 %v2075, %v2156
    %v2158 = vand.u32 %v2157, 4294901760
    %v2159 = vsub.f32 %v2157, %v2158
    %v2160 = vand.u32 %v2159, 4294901760
    %2161 = vmatmul.mubr.f32.gmra.mrb[0].mxu0 %v2160
    %v2162 = vpop.f32.mrb[0].mxu0
    %v2163 = vadd.f32 %v2069, %v2162
    %v2164 = vpop.f32.mrb[0].mxu0
    %2165 = vdwg.mxu0
    %2166 = vmatprep.subr.mxu0 0.0
    %v2167 = vand.u32 %v1519, 4294901760
    %v2168 = vsub.f32 %v1519, %v2167
    %v2169 = vand.u32 %v2168, 4294901760
    %v2170 = vsub.f32 %v2168, %v2169
    %v2171 = vand.u32 %v2170, 4294901760
    %2172 = vmatpush1.msra.mxu0 %v2171
    %2173 = vmatprep.subr.mxu0 0.0
    %v2174 = vand.u32 %v1520, 4294901760
    %v2175 = vsub.f32 %v1520, %v2174
    %v2176 = vand.u32 %v2175, 4294901760
    %v2177 = vsub.f32 %v2175, %v2176
    %v2178 = vand.u32 %v2177, 4294901760
    %2179 = vmatpush1.msra.mxu0 %v2178
    %2180 = vmatprep.subr.mxu0 0.0
    %v2181 = vand.u32 %v1521, 4294901760
    %v2182 = vsub.f32 %v1521, %v2181
    %v2183 = vand.u32 %v2182, 4294901760
    %v2184 = vsub.f32 %v2182, %v2183
    %v2185 = vand.u32 %v2184, 4294901760
    %2186 = vmatpush1.msra.mxu0 %v2185
    %2187 = vmatprep.subr.mxu0 0.0
    %v2188 = vand.u32 %v1522, 4294901760
    %v2189 = vsub.f32 %v1522, %v2188
    %v2190 = vand.u32 %v2189, 4294901760
    %v2191 = vsub.f32 %v2189, %v2190
    %v2192 = vand.u32 %v2191, 4294901760
    %2193 = vmatpush1.msra.mxu0 %v2192
    %2194 = vmatprep.subr.mxu0 0.0
    %2195 = vmatpush1.msra.mxu0 0.0
    %2196 = vmatprep.subr.mxu0 0.0
    %2197 = vmatpush1.msra.mxu0 0.0
    %2198 = vmatprep.subr.mxu0 0.0
    %2199 = vmatpush1.msra.mxu0 0.0
    %2200 = vmatprep.subr.mxu0 0.0
    %2201 = vmatpush1.msra.mxu0 0.0
    %2202 = vmatprep.subr.mxu0 0.0
    %2203 = vmatpush1.msra.mxu0 0.0
    %2204 = vmatprep.subr.mxu0 0.0
    %2205 = vmatpush1.msra.mxu0 0.0
    %2206 = vmatprep.subr.mxu0 0.0
    %2207 = vmatpush1.msra.mxu0 0.0
    %2208 = vmatprep.subr.mxu0 0.0
    %2209 = vmatpush1.msra.mxu0 0.0
    %2210 = vmatprep.subr.mxu0 0.0
    %2211 = vmatpush1.msra.mxu0 0.0
    %2212 = vmatprep.subr.mxu0 0.0
    %2213 = vmatpush1.msra.mxu0 0.0
    %2214 = vmatprep.subr.mxu0 0.0
    %2215 = vmatpush1.msra.mxu0 0.0
    %2216 = vmatprep.subr.mxu0 0.0
    %2217 = vmatpush1.msra.mxu0 0.0
    %2218 = vmatprep.subr.mxu0 0.0
    %2219 = vmatpush1.msra.mxu0 0.0
    %2220 = vmatprep.subr.mxu0 0.0
    %2221 = vmatpush1.msra.mxu0 0.0
    %2222 = vmatprep.subr.mxu0 0.0
    %2223 = vmatpush1.msra.mxu0 0.0
    %2224 = vmatprep.subr.mxu0 0.0
    %2225 = vmatpush1.msra.mxu0 0.0
    %2226 = vmatprep.subr.mxu0 0.0
    %2227 = vmatpush1.msra.mxu0 0.0
    %2228 = vmatprep.subr.mxu0 0.0
    %2229 = vmatpush1.msra.mxu0 0.0
    %2230 = vmatprep.subr.mxu0 0.0
    %2231 = vmatpush1.msra.mxu0 0.0
    %2232 = vmatprep.subr.mxu0 0.0
    %2233 = vmatpush1.msra.mxu0 0.0
    %2234 = vmatprep.subr.mxu0 0.0
    %2235 = vmatpush1.msra.mxu0 0.0
    %2236 = vmatprep.subr.mxu0 0.0
    %2237 = vmatpush1.msra.mxu0 0.0
    %2238 = vmatprep.subr.mxu0 0.0
    %2239 = vmatpush1.msra.mxu0 0.0
    %2240 = vmatprep.subr.mxu0 0.0
    %2241 = vmatpush1.msra.mxu0 0.0
    %2242 = vmatprep.subr.mxu0 0.0
    %2243 = vmatpush1.msra.mxu0 0.0
    %2244 = vmatprep.subr.mxu0 0.0
    %2245 = vmatpush1.msra.mxu0 0.0
    %2246 = vmatprep.subr.mxu0 0.0
    %2247 = vmatpush1.msra.mxu0 0.0
    %2248 = vmatprep.subr.mxu0 0.0
    %2249 = vmatpush1.msra.mxu0 0.0
    %2250 = vmatprep.mubr.f32.mxu0 0.0
    %v2251 = vand.u32 %v2072, 4294901760
    %2252 = vmatmul.mubr.f32.gmra.mrb[0].mxu0 %v2251
    %v2253 = vpop.f32.mrb[0].mxu0
    %v2254 = vadd.f32 %v2153, %v2253
    %v2255 = vpop.f32.mrb[0].mxu0
    %2256 = vmatprep.mubr.f32.mxu0 0.0
    %v2257 = vand.u32 %v2075, 4294901760
    %2258 = vmatmul.mubr.f32.gmra.mrb[0].mxu0 %v2257
    %v2259 = vpop.f32.mrb[0].mxu0
    %v2260 = vadd.f32 %v2163, %v2259
    %v2261 = vpop.f32.mrb[0].mxu0
    %2262 = vdwg.mxu0
    %2263 = vmatprep.subr.mxu0 0.0
    %v2264 = vand.u32 %v1519, 4294901760
    %v2265 = vsub.f32 %v1519, %v2264
    %2266 = vmatpush1.msra.mxu0 %v2265
    %2267 = vmatprep.subr.mxu0 0.0
    %v2268 = vand.u32 %v1520, 4294901760
    %v2269 = vsub.f32 %v1520, %v2268
    %2270 = vmatpush1.msra.mxu0 %v2269
    %2271 = vmatprep.subr.mxu0 0.0
    %v2272 = vand.u32 %v1521, 4294901760
    %v2273 = vsub.f32 %v1521, %v2272
    %2274 = vmatpush1.msra.mxu0 %v2273
    %2275 = vmatprep.subr.mxu0 0.0
    %v2276 = vand.u32 %v1522, 4294901760
    %v2277 = vsub.f32 %v1522, %v2276
    %2278 = vmatpush1.msra.mxu0 %v2277
    %2279 = vmatprep.subr.mxu0 0.0
    %2280 = vmatpush1.msra.mxu0 0.0
    %2281 = vmatprep.subr.mxu0 0.0
    %2282 = vmatpush1.msra.mxu0 0.0
    %2283 = vmatprep.subr.mxu0 0.0
    %2284 = vmatpush1.msra.mxu0 0.0
    %2285 = vmatprep.subr.mxu0 0.0
    %2286 = vmatpush1.msra.mxu0 0.0
    %2287 = vmatprep.subr.mxu0 0.0
    %2288 = vmatpush1.msra.mxu0 0.0
    %2289 = vmatprep.subr.mxu0 0.0
    %2290 = vmatpush1.msra.mxu0 0.0
    %2291 = vmatprep.subr.mxu0 0.0
    %2292 = vmatpush1.msra.mxu0 0.0
    %2293 = vmatprep.subr.mxu0 0.0
    %2294 = vmatpush1.msra.mxu0 0.0
    %2295 = vmatprep.subr.mxu0 0.0
    %2296 = vmatpush1.msra.mxu0 0.0
    %2297 = vmatprep.subr.mxu0 0.0
    %2298 = vmatpush1.msra.mxu0 0.0
    %2299 = vmatprep.subr.mxu0 0.0
    %2300 = vmatpush1.msra.mxu0 0.0
    %2301 = vmatprep.subr.mxu0 0.0
    %2302 = vmatpush1.msra.mxu0 0.0
    %2303 = vmatprep.subr.mxu0 0.0
    %2304 = vmatpush1.msra.mxu0 0.0
    %2305 = vmatprep.subr.mxu0 0.0
    %2306 = vmatpush1.msra.mxu0 0.0
    %2307 = vmatprep.subr.mxu0 0.0
    %2308 = vmatpush1.msra.mxu0 0.0
    %2309 = vmatprep.subr.mxu0 0.0
    %2310 = vmatpush1.msra.mxu0 0.0
    %2311 = vmatprep.subr.mxu0 0.0
    %2312 = vmatpush1.msra.mxu0 0.0
    %2313 = vmatprep.subr.mxu0 0.0
    %2314 = vmatpush1.msra.mxu0 0.0
    %2315 = vmatprep.subr.mxu0 0.0
    %2316 = vmatpush1.msra.mxu0 0.0
    %2317 = vmatprep.subr.mxu0 0.0
    %2318 = vmatpush1.msra.mxu0 0.0
    %2319 = vmatprep.subr.mxu0 0.0
    %2320 = vmatpush1.msra.mxu0 0.0
    %2321 = vmatprep.subr.mxu0 0.0
    %2322 = vmatpush1.msra.mxu0 0.0
    %2323 = vmatprep.subr.mxu0 0.0
    %2324 = vmatpush1.msra.mxu0 0.0
    %2325 = vmatprep.subr.mxu0 0.0
    %2326 = vmatpush1.msra.mxu0 0.0
    %2327 = vmatprep.subr.mxu0 0.0
    %2328 = vmatpush1.msra.mxu0 0.0
    %2329 = vmatprep.subr.mxu0 0.0
    %2330 = vmatpush1.msra.mxu0 0.0
    %2331 = vmatprep.subr.mxu0 0.0
    %2332 = vmatpush1.msra.mxu0 0.0
    %2333 = vmatprep.subr.mxu0 0.0
    %2334 = vmatpush1.msra.mxu0 0.0
    %2335 = vmatprep.mubr.f32.mxu0 0.0
    %v2336 = vand.u32 %v2072, 4294901760
    %v2337 = vsub.f32 %v2072, %v2336
    %2338 = vmatmul.mubr.f32.gmra.mrb[0].mxu0 %v2337
    %v2339 = vpop.f32.mrb[0].mxu0
    %v2340 = vadd.f32 %v2254, %v2339
    %v2341 = vpop.f32.mrb[0].mxu0
    %2342 = vmatprep.mubr.f32.mxu0 0.0
    %v2343 = vand.u32 %v2075, 4294901760
    %v2344 = vsub.f32 %v2075, %v2343
    %2345 = vmatmul.mubr.f32.gmra.mrb[0].mxu0 %v2344
    %v2346 = vpop.f32.mrb[0].mxu0
    %v2347 = vadd.f32 %v2260, %v2346
    %v2348 = vpop.f32.mrb[0].mxu0
    %2349 = vdwg.mxu0
    %2350 = vmatprep.subr.mxu0 0.0
    %v2351 = vand.u32 %v1519, 4294901760
    %2352 = vmatpush1.msra.mxu0 %v2351
    %2353 = vmatprep.subr.mxu0 0.0
    %v2354 = vand.u32 %v1520, 4294901760
    %2355 = vmatpush1.msra.mxu0 %v2354
    %2356 = vmatprep.subr.mxu0 0.0
    %v2357 = vand.u32 %v1521, 4294901760
    %2358 = vmatpush1.msra.mxu0 %v2357
    %2359 = vmatprep.subr.mxu0 0.0
    %v2360 = vand.u32 %v1522, 4294901760
    %2361 = vmatpush1.msra.mxu0 %v2360
    %2362 = vmatprep.subr.mxu0 0.0
    %2363 = vmatpush1.msra.mxu0 0.0
    %2364 = vmatprep.subr.mxu0 0.0
    %2365 = vmatpush1.msra.mxu0 0.0
    %2366 = vmatprep.subr.mxu0 0.0
    %2367 = vmatpush1.msra.mxu0 0.0
    %2368 = vmatprep.subr.mxu0 0.0
    %2369 = vmatpush1.msra.mxu0 0.0
    %2370 = vmatprep.subr.mxu0 0.0
    %2371 = vmatpush1.msra.mxu0 0.0
    %2372 = vmatprep.subr.mxu0 0.0
    %2373 = vmatpush1.msra.mxu0 0.0
    %2374 = vmatprep.subr.mxu0 0.0
    %2375 = vmatpush1.msra.mxu0 0.0
    %2376 = vmatprep.subr.mxu0 0.0
    %2377 = vmatpush1.msra.mxu0 0.0
    %2378 = vmatprep.subr.mxu0 0.0
    %2379 = vmatpush1.msra.mxu0 0.0
    %2380 = vmatprep.subr.mxu0 0.0
    %2381 = vmatpush1.msra.mxu0 0.0
    %2382 = vmatprep.subr.mxu0 0.0
    %2383 = vmatpush1.msra.mxu0 0.0
    %2384 = vmatprep.subr.mxu0 0.0
    %2385 = vmatpush1.msra.mxu0 0.0
    %2386 = vmatprep.subr.mxu0 0.0
    %2387 = vmatpush1.msra.mxu0 0.0
    %2388 = vmatprep.subr.mxu0 0.0
    %2389 = vmatpush1.msra.mxu0 0.0
    %2390 = vmatprep.subr.mxu0 0.0
    %2391 = vmatpush1.msra.mxu0 0.0
    %2392 = vmatprep.subr.mxu0 0.0
    %2393 = vmatpush1.msra.mxu0 0.0
    %2394 = vmatprep.subr.mxu0 0.0
    %2395 = vmatpush1.msra.mxu0 0.0
    %2396 = vmatprep.subr.mxu0 0.0
    %2397 = vmatpush1.msra.mxu0 0.0
    %2398 = vmatprep.subr.mxu0 0.0
    %2399 = vmatpush1.msra.mxu0 0.0
    %2400 = vmatprep.subr.mxu0 0.0
    %2401 = vmatpush1.msra.mxu0 0.0
    %2402 = vmatprep.subr.mxu0 0.0
    %2403 = vmatpush1.msra.mxu0 0.0
    %2404 = vmatprep.subr.mxu0 0.0
    %2405 = vmatpush1.msra.mxu0 0.0
    %2406 = vmatprep.subr.mxu0 0.0
    %2407 = vmatpush1.msra.mxu0 0.0
    %2408 = vmatprep.subr.mxu0 0.0
    %2409 = vmatpush1.msra.mxu0 0.0
    %2410 = vmatprep.subr.mxu0 0.0
    %2411 = vmatpush1.msra.mxu0 0.0
    %2412 = vmatprep.subr.mxu0 0.0
    %2413 = vmatpush1.msra.mxu0 0.0
    %2414 = vmatprep.subr.mxu0 0.0
    %2415 = vmatpush1.msra.mxu0 0.0
    %2416 = vmatprep.subr.mxu0 0.0
    %2417 = vmatpush1.msra.mxu0 0.0
    %2418 = vmatprep.mubr.f32.mxu0 0.0
    %v2419 = vand.u32 %v2072, 4294901760
    %v2420 = vsub.f32 %v2072, %v2419
    %v2421 = vand.u32 %v2420, 4294901760
    %2422 = vmatmul.mubr.f32.gmra.mrb[0].mxu0 %v2421
    %v2423 = vpop.f32.mrb[0].mxu0
    %v2424 = vadd.f32 %v2340, %v2423
    %v2425 = vpop.f32.mrb[0].mxu0
    %2426 = vmatprep.mubr.f32.mxu0 0.0
    %v2427 = vand.u32 %v2075, 4294901760
    %v2428 = vsub.f32 %v2075, %v2427
    %v2429 = vand.u32 %v2428, 4294901760
    %2430 = vmatmul.mubr.f32.gmra.mrb[0].mxu0 %v2429
    %v2431 = vpop.f32.mrb[0].mxu0
    %v2432 = vadd.f32 %v2347, %v2431
    %v2433 = vpop.f32.mrb[0].mxu0
    %2434 = vdwg.mxu0
    %2435 = vmatprep.subr.mxu0 0.0
    %v2436 = vand.u32 %v1519, 4294901760
    %v2437 = vsub.f32 %v1519, %v2436
    %v2438 = vand.u32 %v2437, 4294901760
    %2439 = vmatpush1.msra.mxu0 %v2438
    %2440 = vmatprep.subr.mxu0 0.0
    %v2441 = vand.u32 %v1520, 4294901760
    %v2442 = vsub.f32 %v1520, %v2441
    %v2443 = vand.u32 %v2442, 4294901760
    %2444 = vmatpush1.msra.mxu0 %v2443
    %2445 = vmatprep.subr.mxu0 0.0
    %v2446 = vand.u32 %v1521, 4294901760
    %v2447 = vsub.f32 %v1521, %v2446
    %v2448 = vand.u32 %v2447, 4294901760
    %2449 = vmatpush1.msra.mxu0 %v2448
    %2450 = vmatprep.subr.mxu0 0.0
    %v2451 = vand.u32 %v1522, 4294901760
    %v2452 = vsub.f32 %v1522, %v2451
    %v2453 = vand.u32 %v2452, 4294901760
    %2454 = vmatpush1.msra.mxu0 %v2453
    %2455 = vmatprep.subr.mxu0 0.0
    %2456 = vmatpush1.msra.mxu0 0.0
    %2457 = vmatprep.subr.mxu0 0.0
    %2458 = vmatpush1.msra.mxu0 0.0
    %2459 = vmatprep.subr.mxu0 0.0
    %2460 = vmatpush1.msra.mxu0 0.0
    %2461 = vmatprep.subr.mxu0 0.0
    %2462 = vmatpush1.msra.mxu0 0.0
    %2463 = vmatprep.subr.mxu0 0.0
    %2464 = vmatpush1.msra.mxu0 0.0
    %2465 = vmatprep.subr.mxu0 0.0
    %2466 = vmatpush1.msra.mxu0 0.0
    %2467 = vmatprep.subr.mxu0 0.0
    %2468 = vmatpush1.msra.mxu0 0.0
    %2469 = vmatprep.subr.mxu0 0.0
    %2470 = vmatpush1.msra.mxu0 0.0
    %2471 = vmatprep.subr.mxu0 0.0
    %2472 = vmatpush1.msra.mxu0 0.0
    %2473 = vmatprep.subr.mxu0 0.0
    %2474 = vmatpush1.msra.mxu0 0.0
    %2475 = vmatprep.subr.mxu0 0.0
    %2476 = vmatpush1.msra.mxu0 0.0
    %2477 = vmatprep.subr.mxu0 0.0
    %2478 = vmatpush1.msra.mxu0 0.0
    %2479 = vmatprep.subr.mxu0 0.0
    %2480 = vmatpush1.msra.mxu0 0.0
    %2481 = vmatprep.subr.mxu0 0.0
    %2482 = vmatpush1.msra.mxu0 0.0
    %2483 = vmatprep.subr.mxu0 0.0
    %2484 = vmatpush1.msra.mxu0 0.0
    %2485 = vmatprep.subr.mxu0 0.0
    %2486 = vmatpush1.msra.mxu0 0.0
    %2487 = vmatprep.subr.mxu0 0.0
    %2488 = vmatpush1.msra.mxu0 0.0
    %2489 = vmatprep.subr.mxu0 0.0
    %2490 = vmatpush1.msra.mxu0 0.0
    %2491 = vmatprep.subr.mxu0 0.0
    %2492 = vmatpush1.msra.mxu0 0.0
    %2493 = vmatprep.subr.mxu0 0.0
    %2494 = vmatpush1.msra.mxu0 0.0
    %2495 = vmatprep.subr.mxu0 0.0
    %2496 = vmatpush1.msra.mxu0 0.0
    %2497 = vmatprep.subr.mxu0 0.0
    %2498 = vmatpush1.msra.mxu0 0.0
    %2499 = vmatprep.subr.mxu0 0.0
    %2500 = vmatpush1.msra.mxu0 0.0
    %2501 = vmatprep.subr.mxu0 0.0
    %2502 = vmatpush1.msra.mxu0 0.0
    %2503 = vmatprep.subr.mxu0 0.0
    %2504 = vmatpush1.msra.mxu0 0.0
    %2505 = vmatprep.subr.mxu0 0.0
    %2506 = vmatpush1.msra.mxu0 0.0
    %2507 = vmatprep.subr.mxu0 0.0
    %2508 = vmatpush1.msra.mxu0 0.0
    %2509 = vmatprep.subr.mxu0 0.0
    %2510 = vmatpush1.msra.mxu0 0.0
    %2511 = vmatprep.mubr.f32.mxu0 0.0
    %v2512 = vand.u32 %v2072, 4294901760
    %2513 = vmatmul.mubr.f32.gmra.mrb[0].mxu0 %v2512
    %v2514 = vpop.f32.mrb[0].mxu0
    %v2515 = vadd.f32 %v2424, %v2514
    %v2516 = vpop.f32.mrb[0].mxu0
    %2517 = vmatprep.mubr.f32.mxu0 0.0
    %v2518 = vand.u32 %v2075, 4294901760
    %2519 = vmatmul.mubr.f32.gmra.mrb[0].mxu0 %v2518
    %v2520 = vpop.f32.mrb[0].mxu0
    %v2521 = vadd.f32 %v2432, %v2520
    %v2522 = vpop.f32.mrb[0].mxu0
    %2523 = vdwg.mxu0
    %2524 = vmatprep.subr.mxu0 0.0
    %v2525 = vand.u32 %v1519, 4294901760
    %2526 = vmatpush1.msra.mxu0 %v2525
    %2527 = vmatprep.subr.mxu0 0.0
    %v2528 = vand.u32 %v1520, 4294901760
    %2529 = vmatpush1.msra.mxu0 %v2528
    %2530 = vmatprep.subr.mxu0 0.0
    %v2531 = vand.u32 %v1521, 4294901760
    %2532 = vmatpush1.msra.mxu0 %v2531
    %2533 = vmatprep.subr.mxu0 0.0
    %v2534 = vand.u32 %v1522, 4294901760
    %2535 = vmatpush1.msra.mxu0 %v2534
    %2536 = vmatprep.subr.mxu0 0.0
    %2537 = vmatpush1.msra.mxu0 0.0
    %2538 = vmatprep.subr.mxu0 0.0
    %2539 = vmatpush1.msra.mxu0 0.0
    %2540 = vmatprep.subr.mxu0 0.0
    %2541 = vmatpush1.msra.mxu0 0.0
    %2542 = vmatprep.subr.mxu0 0.0
    %2543 = vmatpush1.msra.mxu0 0.0
    %2544 = vmatprep.subr.mxu0 0.0
    %2545 = vmatpush1.msra.mxu0 0.0
    %2546 = vmatprep.subr.mxu0 0.0
    %2547 = vmatpush1.msra.mxu0 0.0
    %2548 = vmatprep.subr.mxu0 0.0
    %2549 = vmatpush1.msra.mxu0 0.0
    %2550 = vmatprep.subr.mxu0 0.0
    %2551 = vmatpush1.msra.mxu0 0.0
    %2552 = vmatprep.subr.mxu0 0.0
    %2553 = vmatpush1.msra.mxu0 0.0
    %2554 = vmatprep.subr.mxu0 0.0
    %2555 = vmatpush1.msra.mxu0 0.0
    %2556 = vmatprep.subr.mxu0 0.0
    %2557 = vmatpush1.msra.mxu0 0.0
    %2558 = vmatprep.subr.mxu0 0.0
    %2559 = vmatpush1.msra.mxu0 0.0
    %2560 = vmatprep.subr.mxu0 0.0
    %2561 = vmatpush1.msra.mxu0 0.0
    %2562 = vmatprep.subr.mxu0 0.0
    %2563 = vmatpush1.msra.mxu0 0.0
    %2564 = vmatprep.subr.mxu0 0.0
    %2565 = vmatpush1.msra.mxu0 0.0
    %2566 = vmatprep.subr.mxu0 0.0
    %2567 = vmatpush1.msra.mxu0 0.0
    %2568 = vmatprep.subr.mxu0 0.0
    %2569 = vmatpush1.msra.mxu0 0.0
    %2570 = vmatprep.subr.mxu0 0.0
    %2571 = vmatpush1.msra.mxu0 0.0
    %2572 = vmatprep.subr.mxu0 0.0
    %2573 = vmatpush1.msra.mxu0 0.0
    %2574 = vmatprep.subr.mxu0 0.0
    %2575 = vmatpush1.msra.mxu0 0.0
    %2576 = vmatprep.subr.mxu0 0.0
    %2577 = vmatpush1.msra.mxu0 0.0
    %2578 = vmatprep.subr.mxu0 0.0
    %2579 = vmatpush1.msra.mxu0 0.0
    %2580 = vmatprep.subr.mxu0 0.0
    %2581 = vmatpush1.msra.mxu0 0.0
    %2582 = vmatprep.subr.mxu0 0.0
    %2583 = vmatpush1.msra.mxu0 0.0
    %2584 = vmatprep.subr.mxu0 0.0
    %2585 = vmatpush1.msra.mxu0 0.0
    %2586 = vmatprep.subr.mxu0 0.0
    %2587 = vmatpush1.msra.mxu0 0.0
    %2588 = vmatprep.subr.mxu0 0.0
    %2589 = vmatpush1.msra.mxu0 0.0
    %2590 = vmatprep.subr.mxu0 0.0
    %2591 = vmatpush1.msra.mxu0 0.0
    %2592 = vmatprep.mubr.f32.mxu0 0.0
    %v2593 = vand.u32 %v2072, 4294901760
    %2594 = vmatmul.mubr.f32.gmra.mrb[0].mxu0 %v2593
    %v2595 = vpop.f32.mrb[0].mxu0
    %v2596 = vadd.f32 %v2515, %v2595
    %v2597 = vpop.f32.mrb[0].mxu0
    %2598 = vmatprep.mubr.f32.mxu0 0.0
    %v2599 = vand.u32 %v2075, 4294901760
    %2600 = vmatmul.mubr.f32.gmra.mrb[0].mxu0 %v2599
    %v2601 = vpop.f32.mrb[0].mxu0
    %v2602 = vadd.f32 %v2521, %v2601
    %v2603 = vpop.f32.mrb[0].mxu0
    %2604 = vdwg.mxu0
    %v2605 = vmax.f32 %v2596, 0.0
    %v2606 = vmax.f32 %v2602, 0.0
    %v2607 = vlaneseq
    %v2608 = vshrl.u32 %v2607, 7
    %v2609 = vsub.s32 0, %v2608
    %v2610 = vrot.slane %v1524, %v2609
    %v2611 = vmul.f32 %v2605, %v2610
    %v2612 = vmul.f32 %v2606, %v2610
    %v2613 = vsel %vm1542, 1e+30, %v1016
    %v2614 = vsel %vm1543, 1e+30, %v1017
    %v2615 = vsel %vm1525, %v2613, inf
    %2616 = vmin.xlane.f32.xlu0 %v2615
    %v2617 = vpop.xlane.xlu0 %2616
    %v2618 = vsel %vm1525, %v2614, inf
    %2619 = vmin.xlane.f32.xlu0 %v2618
    %v2620 = vpop.xlane.xlu0 %2619
    %vm2621 = vcmp.le.f32.partialorder %v2613, %v2617
    %vm2622 = vcmp.le.f32.partialorder %v2614, %v2620
    %v2623 = vsel %vm2621, %v30, 16.0
    %v2624 = vsel %vm2622, %v30, 16.0
    %v2625 = vsel %vm1525, %v2623, inf
    %2626 = vmin.xlane.f32.xlu0 %v2625
    %v2627 = vpop.xlane.xlu0 %2626
    %v2628 = vsel %vm1525, %v2624, inf
    %2629 = vmin.xlane.f32.xlu0 %v2628
    %v2630 = vpop.xlane.xlu0 %2629
    %vm2631 = vcmp.eq.f32.partialorder %v30, %v2627
    %vm2632 = vcmp.eq.f32.partialorder %v30, %v2630
    %v2633 = vsel %vm2631, 1.0, 0.0
    %v2634 = vsel %vm2632, 1.0, 0.0
    %v2636 = vsel %vm1525, %v2633, 0
    %v2639 = vsel %vm1525, %v2634, 0
    %2641 = vmatprep.subr.mxu0 0.0
    %v2642 = vand.u32 %v1549, 4294901760
    %2643 = vmatpush1.msra.mxu0 %v2642
    %2644 = vmatprep.subr.mxu0 0.0
    %v2645 = vand.u32 %v1551, 4294901760
    %2646 = vmatpush1.msra.mxu0 %v2645
    %2647 = vmatprep.subr.mxu0 0.0
    %2648 = vmatpush1.msra.mxu0 0.0
    %2649 = vmatprep.subr.mxu0 0.0
    %2650 = vmatpush1.msra.mxu0 0.0
    %2651 = vmatprep.subr.mxu0 0.0
    %2652 = vmatpush1.msra.mxu0 0.0
    %2653 = vmatprep.subr.mxu0 0.0
    %2654 = vmatpush1.msra.mxu0 0.0
    %2655 = vmatprep.subr.mxu0 0.0
    %2656 = vmatpush1.msra.mxu0 0.0
    %2657 = vmatprep.subr.mxu0 0.0
    %2658 = vmatpush1.msra.mxu0 0.0
    %2659 = vmatprep.subr.mxu0 0.0
    %2660 = vmatpush1.msra.mxu0 0.0
    %2661 = vmatprep.subr.mxu0 0.0
    %2662 = vmatpush1.msra.mxu0 0.0
    %2663 = vmatprep.subr.mxu0 0.0
    %2664 = vmatpush1.msra.mxu0 0.0
    %2665 = vmatprep.subr.mxu0 0.0
    %2666 = vmatpush1.msra.mxu0 0.0
    %2667 = vmatprep.subr.mxu0 0.0
    %2668 = vmatpush1.msra.mxu0 0.0
    %2669 = vmatprep.subr.mxu0 0.0
    %2670 = vmatpush1.msra.mxu0 0.0
    %2671 = vmatprep.subr.mxu0 0.0
    %2672 = vmatpush1.msra.mxu0 0.0
    %2673 = vmatprep.subr.mxu0 0.0
    %2674 = vmatpush1.msra.mxu0 0.0
    %2675 = vmatprep.subr.mxu0 0.0
    %2676 = vmatpush1.msra.mxu0 0.0
    %2677 = vmatprep.subr.mxu0 0.0
    %2678 = vmatpush1.msra.mxu0 0.0
    %2679 = vmatprep.subr.mxu0 0.0
    %2680 = vmatpush1.msra.mxu0 0.0
    %2681 = vmatprep.subr.mxu0 0.0
    %2682 = vmatpush1.msra.mxu0 0.0
    %2683 = vmatprep.subr.mxu0 0.0
    %2684 = vmatpush1.msra.mxu0 0.0
    %2685 = vmatprep.subr.mxu0 0.0
    %2686 = vmatpush1.msra.mxu0 0.0
    %2687 = vmatprep.subr.mxu0 0.0
    %2688 = vmatpush1.msra.mxu0 0.0
    %2689 = vmatprep.subr.mxu0 0.0
    %2690 = vmatpush1.msra.mxu0 0.0
    %2691 = vmatprep.subr.mxu0 0.0
    %2692 = vmatpush1.msra.mxu0 0.0
    %2693 = vmatprep.subr.mxu0 0.0
    %2694 = vmatpush1.msra.mxu0 0.0
    %2695 = vmatprep.subr.mxu0 0.0
    %2696 = vmatpush1.msra.mxu0 0.0
    %2697 = vmatprep.subr.mxu0 0.0
    %2698 = vmatpush1.msra.mxu0 0.0
    %2699 = vmatprep.subr.mxu0 0.0
    %2700 = vmatpush1.msra.mxu0 0.0
    %2701 = vmatprep.subr.mxu0 0.0
    %2702 = vmatpush1.msra.mxu0 0.0
    %2703 = vmatprep.subr.mxu0 0.0
    %2704 = vmatpush1.msra.mxu0 0.0
    %2705 = vmatprep.subr.mxu0 0.0
    %2706 = vmatpush1.msra.mxu0 0.0
    %2707 = vmatprep.mubr.f32.mxu0 0.0
    %v2708 = vand.u32 %v2636, 4294901760
    %v2709 = vsub.f32 %v2636, %v2708
    %v2710 = vand.u32 %v2709, 4294901760
    %v2711 = vsub.f32 %v2709, %v2710
    %v2712 = vand.u32 %v2711, 4294901760
    %2713 = vmatmul.mubr.f32.gmra.mrb[0].mxu0 %v2712
    %v2714 = vpop.f32.mrb[0].mxu0
    %v2715 = vadd.f32 0.0, %v2714
    %v2716 = vpop.f32.mrb[0].mxu0
    %2717 = vmatprep.mubr.f32.mxu0 0.0
    %v2718 = vand.u32 %v2639, 4294901760
    %v2719 = vsub.f32 %v2639, %v2718
    %v2720 = vand.u32 %v2719, 4294901760
    %v2721 = vsub.f32 %v2719, %v2720
    %v2722 = vand.u32 %v2721, 4294901760
    %2723 = vmatmul.mubr.f32.gmra.mrb[0].mxu0 %v2722
    %v2724 = vpop.f32.mrb[0].mxu0
    %v2725 = vadd.f32 0.0, %v2724
    %v2726 = vpop.f32.mrb[0].mxu0
    %2727 = vdwg.mxu0
    %2728 = vmatprep.subr.mxu0 0.0
    %v2729 = vand.u32 %v1549, 4294901760
    %v2730 = vsub.f32 %v1549, %v2729
    %v2731 = vand.u32 %v2730, 4294901760
    %v2732 = vsub.f32 %v2730, %v2731
    %v2733 = vand.u32 %v2732, 4294901760
    %2734 = vmatpush1.msra.mxu0 %v2733
    %2735 = vmatprep.subr.mxu0 0.0
    %v2736 = vand.u32 %v1551, 4294901760
    %v2737 = vsub.f32 %v1551, %v2736
    %v2738 = vand.u32 %v2737, 4294901760
    %v2739 = vsub.f32 %v2737, %v2738
    %v2740 = vand.u32 %v2739, 4294901760
    %2741 = vmatpush1.msra.mxu0 %v2740
    %2742 = vmatprep.subr.mxu0 0.0
    %2743 = vmatpush1.msra.mxu0 0.0
    %2744 = vmatprep.subr.mxu0 0.0
    %2745 = vmatpush1.msra.mxu0 0.0
    %2746 = vmatprep.subr.mxu0 0.0
    %2747 = vmatpush1.msra.mxu0 0.0
    %2748 = vmatprep.subr.mxu0 0.0
    %2749 = vmatpush1.msra.mxu0 0.0
    %2750 = vmatprep.subr.mxu0 0.0
    %2751 = vmatpush1.msra.mxu0 0.0
    %2752 = vmatprep.subr.mxu0 0.0
    %2753 = vmatpush1.msra.mxu0 0.0
    %2754 = vmatprep.subr.mxu0 0.0
    %2755 = vmatpush1.msra.mxu0 0.0
    %2756 = vmatprep.subr.mxu0 0.0
    %2757 = vmatpush1.msra.mxu0 0.0
    %2758 = vmatprep.subr.mxu0 0.0
    %2759 = vmatpush1.msra.mxu0 0.0
    %2760 = vmatprep.subr.mxu0 0.0
    %2761 = vmatpush1.msra.mxu0 0.0
    %2762 = vmatprep.subr.mxu0 0.0
    %2763 = vmatpush1.msra.mxu0 0.0
    %2764 = vmatprep.subr.mxu0 0.0
    %2765 = vmatpush1.msra.mxu0 0.0
    %2766 = vmatprep.subr.mxu0 0.0
    %2767 = vmatpush1.msra.mxu0 0.0
    %2768 = vmatprep.subr.mxu0 0.0
    %2769 = vmatpush1.msra.mxu0 0.0
    %2770 = vmatprep.subr.mxu0 0.0
    %2771 = vmatpush1.msra.mxu0 0.0
    %2772 = vmatprep.subr.mxu0 0.0
    %2773 = vmatpush1.msra.mxu0 0.0
    %2774 = vmatprep.subr.mxu0 0.0
    %2775 = vmatpush1.msra.mxu0 0.0
    %2776 = vmatprep.subr.mxu0 0.0
    %2777 = vmatpush1.msra.mxu0 0.0
    %2778 = vmatprep.subr.mxu0 0.0
    %2779 = vmatpush1.msra.mxu0 0.0
    %2780 = vmatprep.subr.mxu0 0.0
    %2781 = vmatpush1.msra.mxu0 0.0
    %2782 = vmatprep.subr.mxu0 0.0
    %2783 = vmatpush1.msra.mxu0 0.0
    %2784 = vmatprep.subr.mxu0 0.0
    %2785 = vmatpush1.msra.mxu0 0.0
    %2786 = vmatprep.subr.mxu0 0.0
    %2787 = vmatpush1.msra.mxu0 0.0
    %2788 = vmatprep.subr.mxu0 0.0
    %2789 = vmatpush1.msra.mxu0 0.0
    %2790 = vmatprep.subr.mxu0 0.0
    %2791 = vmatpush1.msra.mxu0 0.0
    %2792 = vmatprep.subr.mxu0 0.0
    %2793 = vmatpush1.msra.mxu0 0.0
    %2794 = vmatprep.subr.mxu0 0.0
    %2795 = vmatpush1.msra.mxu0 0.0
    %2796 = vmatprep.subr.mxu0 0.0
    %2797 = vmatpush1.msra.mxu0 0.0
    %2798 = vmatprep.subr.mxu0 0.0
    %2799 = vmatpush1.msra.mxu0 0.0
    %2800 = vmatprep.subr.mxu0 0.0
    %2801 = vmatpush1.msra.mxu0 0.0
    %2802 = vmatprep.mubr.f32.mxu0 0.0
    %v2803 = vand.u32 %v2636, 4294901760
    %2804 = vmatmul.mubr.f32.gmra.mrb[0].mxu0 %v2803
    %v2805 = vpop.f32.mrb[0].mxu0
    %v2806 = vadd.f32 %v2715, %v2805
    %v2807 = vpop.f32.mrb[0].mxu0
    %2808 = vmatprep.mubr.f32.mxu0 0.0
    %v2809 = vand.u32 %v2639, 4294901760
    %2810 = vmatmul.mubr.f32.gmra.mrb[0].mxu0 %v2809
    %v2811 = vpop.f32.mrb[0].mxu0
    %v2812 = vadd.f32 %v2725, %v2811
    %v2813 = vpop.f32.mrb[0].mxu0
    %2814 = vdwg.mxu0
    %2815 = vmatprep.subr.mxu0 0.0
    %v2816 = vand.u32 %v1549, 4294901760
    %v2817 = vsub.f32 %v1549, %v2816
    %2818 = vmatpush1.msra.mxu0 %v2817
    %2819 = vmatprep.subr.mxu0 0.0
    %v2820 = vand.u32 %v1551, 4294901760
    %v2821 = vsub.f32 %v1551, %v2820
    %2822 = vmatpush1.msra.mxu0 %v2821
    %2823 = vmatprep.subr.mxu0 0.0
    %2824 = vmatpush1.msra.mxu0 0.0
    %2825 = vmatprep.subr.mxu0 0.0
    %2826 = vmatpush1.msra.mxu0 0.0
    %2827 = vmatprep.subr.mxu0 0.0
    %2828 = vmatpush1.msra.mxu0 0.0
    %2829 = vmatprep.subr.mxu0 0.0
    %2830 = vmatpush1.msra.mxu0 0.0
    %2831 = vmatprep.subr.mxu0 0.0
    %2832 = vmatpush1.msra.mxu0 0.0
    %2833 = vmatprep.subr.mxu0 0.0
    %2834 = vmatpush1.msra.mxu0 0.0
    %2835 = vmatprep.subr.mxu0 0.0
    %2836 = vmatpush1.msra.mxu0 0.0
    %2837 = vmatprep.subr.mxu0 0.0
    %2838 = vmatpush1.msra.mxu0 0.0
    %2839 = vmatprep.subr.mxu0 0.0
    %2840 = vmatpush1.msra.mxu0 0.0
    %2841 = vmatprep.subr.mxu0 0.0
    %2842 = vmatpush1.msra.mxu0 0.0
    %2843 = vmatprep.subr.mxu0 0.0
    %2844 = vmatpush1.msra.mxu0 0.0
    %2845 = vmatprep.subr.mxu0 0.0
    %2846 = vmatpush1.msra.mxu0 0.0
    %2847 = vmatprep.subr.mxu0 0.0
    %2848 = vmatpush1.msra.mxu0 0.0
    %2849 = vmatprep.subr.mxu0 0.0
    %2850 = vmatpush1.msra.mxu0 0.0
    %2851 = vmatprep.subr.mxu0 0.0
    %2852 = vmatpush1.msra.mxu0 0.0
    %2853 = vmatprep.subr.mxu0 0.0
    %2854 = vmatpush1.msra.mxu0 0.0
    %2855 = vmatprep.subr.mxu0 0.0
    %2856 = vmatpush1.msra.mxu0 0.0
    %2857 = vmatprep.subr.mxu0 0.0
    %2858 = vmatpush1.msra.mxu0 0.0
    %2859 = vmatprep.subr.mxu0 0.0
    %2860 = vmatpush1.msra.mxu0 0.0
    %2861 = vmatprep.subr.mxu0 0.0
    %2862 = vmatpush1.msra.mxu0 0.0
    %2863 = vmatprep.subr.mxu0 0.0
    %2864 = vmatpush1.msra.mxu0 0.0
    %2865 = vmatprep.subr.mxu0 0.0
    %2866 = vmatpush1.msra.mxu0 0.0
    %2867 = vmatprep.subr.mxu0 0.0
    %2868 = vmatpush1.msra.mxu0 0.0
    %2869 = vmatprep.subr.mxu0 0.0
    %2870 = vmatpush1.msra.mxu0 0.0
    %2871 = vmatprep.subr.mxu0 0.0
    %2872 = vmatpush1.msra.mxu0 0.0
    %2873 = vmatprep.subr.mxu0 0.0
    %2874 = vmatpush1.msra.mxu0 0.0
    %2875 = vmatprep.subr.mxu0 0.0
    %2876 = vmatpush1.msra.mxu0 0.0
    %2877 = vmatprep.subr.mxu0 0.0
    %2878 = vmatpush1.msra.mxu0 0.0
    %2879 = vmatprep.subr.mxu0 0.0
    %2880 = vmatpush1.msra.mxu0 0.0
    %2881 = vmatprep.subr.mxu0 0.0
    %2882 = vmatpush1.msra.mxu0 0.0
    %2883 = vmatprep.mubr.f32.mxu0 0.0
    %v2884 = vand.u32 %v2636, 4294901760
    %v2885 = vsub.f32 %v2636, %v2884
    %2886 = vmatmul.mubr.f32.gmra.mrb[0].mxu0 %v2885
    %v2887 = vpop.f32.mrb[0].mxu0
    %v2888 = vadd.f32 %v2806, %v2887
    %v2889 = vpop.f32.mrb[0].mxu0
    %2890 = vmatprep.mubr.f32.mxu0 0.0
    %v2891 = vand.u32 %v2639, 4294901760
    %v2892 = vsub.f32 %v2639, %v2891
    %2893 = vmatmul.mubr.f32.gmra.mrb[0].mxu0 %v2892
    %v2894 = vpop.f32.mrb[0].mxu0
    %v2895 = vadd.f32 %v2812, %v2894
    %v2896 = vpop.f32.mrb[0].mxu0
    %2897 = vdwg.mxu0
    %2898 = vmatprep.subr.mxu0 0.0
    %v2899 = vand.u32 %v1549, 4294901760
    %2900 = vmatpush1.msra.mxu0 %v2899
    %2901 = vmatprep.subr.mxu0 0.0
    %v2902 = vand.u32 %v1551, 4294901760
    %2903 = vmatpush1.msra.mxu0 %v2902
    %2904 = vmatprep.subr.mxu0 0.0
    %2905 = vmatpush1.msra.mxu0 0.0
    %2906 = vmatprep.subr.mxu0 0.0
    %2907 = vmatpush1.msra.mxu0 0.0
    %2908 = vmatprep.subr.mxu0 0.0
    %2909 = vmatpush1.msra.mxu0 0.0
    %2910 = vmatprep.subr.mxu0 0.0
    %2911 = vmatpush1.msra.mxu0 0.0
    %2912 = vmatprep.subr.mxu0 0.0
    %2913 = vmatpush1.msra.mxu0 0.0
    %2914 = vmatprep.subr.mxu0 0.0
    %2915 = vmatpush1.msra.mxu0 0.0
    %2916 = vmatprep.subr.mxu0 0.0
    %2917 = vmatpush1.msra.mxu0 0.0
    %2918 = vmatprep.subr.mxu0 0.0
    %2919 = vmatpush1.msra.mxu0 0.0
    %2920 = vmatprep.subr.mxu0 0.0
    %2921 = vmatpush1.msra.mxu0 0.0
    %2922 = vmatprep.subr.mxu0 0.0
    %2923 = vmatpush1.msra.mxu0 0.0
    %2924 = vmatprep.subr.mxu0 0.0
    %2925 = vmatpush1.msra.mxu0 0.0
    %2926 = vmatprep.subr.mxu0 0.0
    %2927 = vmatpush1.msra.mxu0 0.0
    %2928 = vmatprep.subr.mxu0 0.0
    %2929 = vmatpush1.msra.mxu0 0.0
    %2930 = vmatprep.subr.mxu0 0.0
    %2931 = vmatpush1.msra.mxu0 0.0
    %2932 = vmatprep.subr.mxu0 0.0
    %2933 = vmatpush1.msra.mxu0 0.0
    %2934 = vmatprep.subr.mxu0 0.0
    %2935 = vmatpush1.msra.mxu0 0.0
    %2936 = vmatprep.subr.mxu0 0.0
    %2937 = vmatpush1.msra.mxu0 0.0
    %2938 = vmatprep.subr.mxu0 0.0
    %2939 = vmatpush1.msra.mxu0 0.0
    %2940 = vmatprep.subr.mxu0 0.0
    %2941 = vmatpush1.msra.mxu0 0.0
    %2942 = vmatprep.subr.mxu0 0.0
    %2943 = vmatpush1.msra.mxu0 0.0
    %2944 = vmatprep.subr.mxu0 0.0
    %2945 = vmatpush1.msra.mxu0 0.0
    %2946 = vmatprep.subr.mxu0 0.0
    %2947 = vmatpush1.msra.mxu0 0.0
    %2948 = vmatprep.subr.mxu0 0.0
    %2949 = vmatpush1.msra.mxu0 0.0
    %2950 = vmatprep.subr.mxu0 0.0
    %2951 = vmatpush1.msra.mxu0 0.0
    %2952 = vmatprep.subr.mxu0 0.0
    %2953 = vmatpush1.msra.mxu0 0.0
    %2954 = vmatprep.subr.mxu0 0.0
    %2955 = vmatpush1.msra.mxu0 0.0
    %2956 = vmatprep.subr.mxu0 0.0
    %2957 = vmatpush1.msra.mxu0 0.0
    %2958 = vmatprep.subr.mxu0 0.0
    %2959 = vmatpush1.msra.mxu0 0.0
    %2960 = vmatprep.subr.mxu0 0.0
    %2961 = vmatpush1.msra.mxu0 0.0
    %2962 = vmatprep.subr.mxu0 0.0
    %2963 = vmatpush1.msra.mxu0 0.0
    %2964 = vmatprep.mubr.f32.mxu0 0.0
    %v2965 = vand.u32 %v2636, 4294901760
    %v2966 = vsub.f32 %v2636, %v2965
    %v2967 = vand.u32 %v2966, 4294901760
    %2968 = vmatmul.mubr.f32.gmra.mrb[0].mxu0 %v2967
    %v2969 = vpop.f32.mrb[0].mxu0
    %v2970 = vadd.f32 %v2888, %v2969
    %v2971 = vpop.f32.mrb[0].mxu0
    %2972 = vmatprep.mubr.f32.mxu0 0.0
    %v2973 = vand.u32 %v2639, 4294901760
    %v2974 = vsub.f32 %v2639, %v2973
    %v2975 = vand.u32 %v2974, 4294901760
    %2976 = vmatmul.mubr.f32.gmra.mrb[0].mxu0 %v2975
    %v2977 = vpop.f32.mrb[0].mxu0
    %v2978 = vadd.f32 %v2895, %v2977
    %v2979 = vpop.f32.mrb[0].mxu0
    %2980 = vdwg.mxu0
    %2981 = vmatprep.subr.mxu0 0.0
    %v2982 = vand.u32 %v1549, 4294901760
    %v2983 = vsub.f32 %v1549, %v2982
    %v2984 = vand.u32 %v2983, 4294901760
    %2985 = vmatpush1.msra.mxu0 %v2984
    %2986 = vmatprep.subr.mxu0 0.0
    %v2987 = vand.u32 %v1551, 4294901760
    %v2988 = vsub.f32 %v1551, %v2987
    %v2989 = vand.u32 %v2988, 4294901760
    %2990 = vmatpush1.msra.mxu0 %v2989
    %2991 = vmatprep.subr.mxu0 0.0
    %2992 = vmatpush1.msra.mxu0 0.0
    %2993 = vmatprep.subr.mxu0 0.0
    %2994 = vmatpush1.msra.mxu0 0.0
    %2995 = vmatprep.subr.mxu0 0.0
    %2996 = vmatpush1.msra.mxu0 0.0
    %2997 = vmatprep.subr.mxu0 0.0
    %2998 = vmatpush1.msra.mxu0 0.0
    %2999 = vmatprep.subr.mxu0 0.0
    %3000 = vmatpush1.msra.mxu0 0.0
    %3001 = vmatprep.subr.mxu0 0.0
    %3002 = vmatpush1.msra.mxu0 0.0
    %3003 = vmatprep.subr.mxu0 0.0
    %3004 = vmatpush1.msra.mxu0 0.0
    %3005 = vmatprep.subr.mxu0 0.0
    %3006 = vmatpush1.msra.mxu0 0.0
    %3007 = vmatprep.subr.mxu0 0.0
    %3008 = vmatpush1.msra.mxu0 0.0
    %3009 = vmatprep.subr.mxu0 0.0
    %3010 = vmatpush1.msra.mxu0 0.0
    %3011 = vmatprep.subr.mxu0 0.0
    %3012 = vmatpush1.msra.mxu0 0.0
    %3013 = vmatprep.subr.mxu0 0.0
    %3014 = vmatpush1.msra.mxu0 0.0
    %3015 = vmatprep.subr.mxu0 0.0
    %3016 = vmatpush1.msra.mxu0 0.0
    %3017 = vmatprep.subr.mxu0 0.0
    %3018 = vmatpush1.msra.mxu0 0.0
    %3019 = vmatprep.subr.mxu0 0.0
    %3020 = vmatpush1.msra.mxu0 0.0
    %3021 = vmatprep.subr.mxu0 0.0
    %3022 = vmatpush1.msra.mxu0 0.0
    %3023 = vmatprep.subr.mxu0 0.0
    %3024 = vmatpush1.msra.mxu0 0.0
    %3025 = vmatprep.subr.mxu0 0.0
    %3026 = vmatpush1.msra.mxu0 0.0
    %3027 = vmatprep.subr.mxu0 0.0
    %3028 = vmatpush1.msra.mxu0 0.0
    %3029 = vmatprep.subr.mxu0 0.0
    %3030 = vmatpush1.msra.mxu0 0.0
    %3031 = vmatprep.subr.mxu0 0.0
    %3032 = vmatpush1.msra.mxu0 0.0
    %3033 = vmatprep.subr.mxu0 0.0
    %3034 = vmatpush1.msra.mxu0 0.0
    %3035 = vmatprep.subr.mxu0 0.0
    %3036 = vmatpush1.msra.mxu0 0.0
    %3037 = vmatprep.subr.mxu0 0.0
    %3038 = vmatpush1.msra.mxu0 0.0
    %3039 = vmatprep.subr.mxu0 0.0
    %3040 = vmatpush1.msra.mxu0 0.0
    %3041 = vmatprep.subr.mxu0 0.0
    %3042 = vmatpush1.msra.mxu0 0.0
    %3043 = vmatprep.subr.mxu0 0.0
    %3044 = vmatpush1.msra.mxu0 0.0
    %3045 = vmatprep.subr.mxu0 0.0
    %3046 = vmatpush1.msra.mxu0 0.0
    %3047 = vmatprep.subr.mxu0 0.0
    %3048 = vmatpush1.msra.mxu0 0.0
    %3049 = vmatprep.subr.mxu0 0.0
    %3050 = vmatpush1.msra.mxu0 0.0
    %3051 = vmatprep.mubr.f32.mxu0 0.0
    %v3052 = vand.u32 %v2636, 4294901760
    %3053 = vmatmul.mubr.f32.gmra.mrb[0].mxu0 %v3052
    %v3054 = vpop.f32.mrb[0].mxu0
    %v3055 = vadd.f32 %v2970, %v3054
    %v3056 = vpop.f32.mrb[0].mxu0
    %3057 = vmatprep.mubr.f32.mxu0 0.0
    %v3058 = vand.u32 %v2639, 4294901760
    %3059 = vmatmul.mubr.f32.gmra.mrb[0].mxu0 %v3058
    %v3060 = vpop.f32.mrb[0].mxu0
    %v3061 = vadd.f32 %v2978, %v3060
    %v3062 = vpop.f32.mrb[0].mxu0
    %3063 = vdwg.mxu0
    %3064 = vmatprep.subr.mxu0 0.0
    %v3065 = vand.u32 %v1549, 4294901760
    %3066 = vmatpush1.msra.mxu0 %v3065
    %3067 = vmatprep.subr.mxu0 0.0
    %v3068 = vand.u32 %v1551, 4294901760
    %3069 = vmatpush1.msra.mxu0 %v3068
    %3070 = vmatprep.subr.mxu0 0.0
    %3071 = vmatpush1.msra.mxu0 0.0
    %3072 = vmatprep.subr.mxu0 0.0
    %3073 = vmatpush1.msra.mxu0 0.0
    %3074 = vmatprep.subr.mxu0 0.0
    %3075 = vmatpush1.msra.mxu0 0.0
    %3076 = vmatprep.subr.mxu0 0.0
    %3077 = vmatpush1.msra.mxu0 0.0
    %3078 = vmatprep.subr.mxu0 0.0
    %3079 = vmatpush1.msra.mxu0 0.0
    %3080 = vmatprep.subr.mxu0 0.0
    %3081 = vmatpush1.msra.mxu0 0.0
    %3082 = vmatprep.subr.mxu0 0.0
    %3083 = vmatpush1.msra.mxu0 0.0
    %3084 = vmatprep.subr.mxu0 0.0
    %3085 = vmatpush1.msra.mxu0 0.0
    %3086 = vmatprep.subr.mxu0 0.0
    %3087 = vmatpush1.msra.mxu0 0.0
    %3088 = vmatprep.subr.mxu0 0.0
    %3089 = vmatpush1.msra.mxu0 0.0
    %3090 = vmatprep.subr.mxu0 0.0
    %3091 = vmatpush1.msra.mxu0 0.0
    %3092 = vmatprep.subr.mxu0 0.0
    %3093 = vmatpush1.msra.mxu0 0.0
    %3094 = vmatprep.subr.mxu0 0.0
    %3095 = vmatpush1.msra.mxu0 0.0
    %3096 = vmatprep.subr.mxu0 0.0
    %3097 = vmatpush1.msra.mxu0 0.0
    %3098 = vmatprep.subr.mxu0 0.0
    %3099 = vmatpush1.msra.mxu0 0.0
    %3100 = vmatprep.subr.mxu0 0.0
    %3101 = vmatpush1.msra.mxu0 0.0
    %3102 = vmatprep.subr.mxu0 0.0
    %3103 = vmatpush1.msra.mxu0 0.0
    %3104 = vmatprep.subr.mxu0 0.0
    %3105 = vmatpush1.msra.mxu0 0.0
    %3106 = vmatprep.subr.mxu0 0.0
    %3107 = vmatpush1.msra.mxu0 0.0
    %3108 = vmatprep.subr.mxu0 0.0
    %3109 = vmatpush1.msra.mxu0 0.0
    %3110 = vmatprep.subr.mxu0 0.0
    %3111 = vmatpush1.msra.mxu0 0.0
    %3112 = vmatprep.subr.mxu0 0.0
    %3113 = vmatpush1.msra.mxu0 0.0
    %3114 = vmatprep.subr.mxu0 0.0
    %3115 = vmatpush1.msra.mxu0 0.0
    %3116 = vmatprep.subr.mxu0 0.0
    %3117 = vmatpush1.msra.mxu0 0.0
    %3118 = vmatprep.subr.mxu0 0.0
    %3119 = vmatpush1.msra.mxu0 0.0
    %3120 = vmatprep.subr.mxu0 0.0
    %3121 = vmatpush1.msra.mxu0 0.0
    %3122 = vmatprep.subr.mxu0 0.0
    %3123 = vmatpush1.msra.mxu0 0.0
    %3124 = vmatprep.subr.mxu0 0.0
    %3125 = vmatpush1.msra.mxu0 0.0
    %3126 = vmatprep.subr.mxu0 0.0
    %3127 = vmatpush1.msra.mxu0 0.0
    %3128 = vmatprep.subr.mxu0 0.0
    %3129 = vmatpush1.msra.mxu0 0.0
    %3130 = vmatprep.mubr.f32.mxu0 0.0
    %v3131 = vand.u32 %v2636, 4294901760
    %3132 = vmatmul.mubr.f32.gmra.mrb[0].mxu0 %v3131
    %v3133 = vpop.f32.mrb[0].mxu0
    %v3134 = vadd.f32 %v3055, %v3133
    %v3135 = vpop.f32.mrb[0].mxu0
    %3136 = vmatprep.mubr.f32.mxu0 0.0
    %v3137 = vand.u32 %v2639, 4294901760
    %3138 = vmatmul.mubr.f32.gmra.mrb[0].mxu0 %v3137
    %v3139 = vpop.f32.mrb[0].mxu0
    %v3140 = vadd.f32 %v3061, %v3139
    %v3141 = vpop.f32.mrb[0].mxu0
    %3142 = vdwg.mxu0
    %v3143 = vadd.f32 %v1517, %v3134
    %v3144 = vadd.f32 %v1518, %v3140
    %v3145 = vmax.f32 %v3143, 0.0
    %v3146 = vmax.f32 %v3144, 0.0
    %v3148 = vsel %vm2070, %v3145, 0
    %v3151 = vsel %vm2070, %v3146, 0
    %3153 = vmatprep.subr.mxu0 0.0
    %v3154 = vand.u32 %v1519, 4294901760
    %3155 = vmatpush1.msra.mxu0 %v3154
    %3156 = vmatprep.subr.mxu0 0.0
    %v3157 = vand.u32 %v1520, 4294901760
    %3158 = vmatpush1.msra.mxu0 %v3157
    %3159 = vmatprep.subr.mxu0 0.0
    %v3160 = vand.u32 %v1521, 4294901760
    %3161 = vmatpush1.msra.mxu0 %v3160
    %3162 = vmatprep.subr.mxu0 0.0
    %v3163 = vand.u32 %v1522, 4294901760
    %3164 = vmatpush1.msra.mxu0 %v3163
    %3165 = vmatprep.subr.mxu0 0.0
    %3166 = vmatpush1.msra.mxu0 0.0
    %3167 = vmatprep.subr.mxu0 0.0
    %3168 = vmatpush1.msra.mxu0 0.0
    %3169 = vmatprep.subr.mxu0 0.0
    %3170 = vmatpush1.msra.mxu0 0.0
    %3171 = vmatprep.subr.mxu0 0.0
    %3172 = vmatpush1.msra.mxu0 0.0
    %3173 = vmatprep.subr.mxu0 0.0
    %3174 = vmatpush1.msra.mxu0 0.0
    %3175 = vmatprep.subr.mxu0 0.0
    %3176 = vmatpush1.msra.mxu0 0.0
    %3177 = vmatprep.subr.mxu0 0.0
    %3178 = vmatpush1.msra.mxu0 0.0
    %3179 = vmatprep.subr.mxu0 0.0
    %3180 = vmatpush1.msra.mxu0 0.0
    %3181 = vmatprep.subr.mxu0 0.0
    %3182 = vmatpush1.msra.mxu0 0.0
    %3183 = vmatprep.subr.mxu0 0.0
    %3184 = vmatpush1.msra.mxu0 0.0
    %3185 = vmatprep.subr.mxu0 0.0
    %3186 = vmatpush1.msra.mxu0 0.0
    %3187 = vmatprep.subr.mxu0 0.0
    %3188 = vmatpush1.msra.mxu0 0.0
    %3189 = vmatprep.subr.mxu0 0.0
    %3190 = vmatpush1.msra.mxu0 0.0
    %3191 = vmatprep.subr.mxu0 0.0
    %3192 = vmatpush1.msra.mxu0 0.0
    %3193 = vmatprep.subr.mxu0 0.0
    %3194 = vmatpush1.msra.mxu0 0.0
    %3195 = vmatprep.subr.mxu0 0.0
    %3196 = vmatpush1.msra.mxu0 0.0
    %3197 = vmatprep.subr.mxu0 0.0
    %3198 = vmatpush1.msra.mxu0 0.0
    %3199 = vmatprep.subr.mxu0 0.0
    %3200 = vmatpush1.msra.mxu0 0.0
    %3201 = vmatprep.subr.mxu0 0.0
    %3202 = vmatpush1.msra.mxu0 0.0
    %3203 = vmatprep.subr.mxu0 0.0
    %3204 = vmatpush1.msra.mxu0 0.0
    %3205 = vmatprep.subr.mxu0 0.0
    %3206 = vmatpush1.msra.mxu0 0.0
    %3207 = vmatprep.subr.mxu0 0.0
    %3208 = vmatpush1.msra.mxu0 0.0
    %3209 = vmatprep.subr.mxu0 0.0
    %3210 = vmatpush1.msra.mxu0 0.0
    %3211 = vmatprep.subr.mxu0 0.0
    %3212 = vmatpush1.msra.mxu0 0.0
    %3213 = vmatprep.subr.mxu0 0.0
    %3214 = vmatpush1.msra.mxu0 0.0
    %3215 = vmatprep.subr.mxu0 0.0
    %3216 = vmatpush1.msra.mxu0 0.0
    %3217 = vmatprep.subr.mxu0 0.0
    %3218 = vmatpush1.msra.mxu0 0.0
    %3219 = vmatprep.subr.mxu0 0.0
    %3220 = vmatpush1.msra.mxu0 0.0
    %3221 = vmatprep.mubr.f32.mxu0 0.0
    %v3222 = vand.u32 %v3148, 4294901760
    %v3223 = vsub.f32 %v3148, %v3222
    %v3224 = vand.u32 %v3223, 4294901760
    %v3225 = vsub.f32 %v3223, %v3224
    %v3226 = vand.u32 %v3225, 4294901760
    %3227 = vmatmul.mubr.f32.gmra.mrb[0].mxu0 %v3226
    %v3228 = vpop.f32.mrb[0].mxu0
    %v3229 = vadd.f32 %v2069, %v3228
    %v3230 = vpop.f32.mrb[0].mxu0
    %3231 = vmatprep.mubr.f32.mxu0 0.0
    %v3232 = vand.u32 %v3151, 4294901760
    %v3233 = vsub.f32 %v3151, %v3232
    %v3234 = vand.u32 %v3233, 4294901760
    %v3235 = vsub.f32 %v3233, %v3234
    %v3236 = vand.u32 %v3235, 4294901760
    %3237 = vmatmul.mubr.f32.gmra.mrb[0].mxu0 %v3236
    %v3238 = vpop.f32.mrb[0].mxu0
    %v3239 = vadd.f32 %v2069, %v3238
    %v3240 = vpop.f32.mrb[0].mxu0
    %3241 = vdwg.mxu0
    %3242 = vmatprep.subr.mxu0 0.0
    %v3243 = vand.u32 %v1519, 4294901760
    %v3244 = vsub.f32 %v1519, %v3243
    %v3245 = vand.u32 %v3244, 4294901760
    %v3246 = vsub.f32 %v3244, %v3245
    %v3247 = vand.u32 %v3246, 4294901760
    %3248 = vmatpush1.msra.mxu0 %v3247
    %3249 = vmatprep.subr.mxu0 0.0
    %v3250 = vand.u32 %v1520, 4294901760
    %v3251 = vsub.f32 %v1520, %v3250
    %v3252 = vand.u32 %v3251, 4294901760
    %v3253 = vsub.f32 %v3251, %v3252
    %v3254 = vand.u32 %v3253, 4294901760
    %3255 = vmatpush1.msra.mxu0 %v3254
    %3256 = vmatprep.subr.mxu0 0.0
    %v3257 = vand.u32 %v1521, 4294901760
    %v3258 = vsub.f32 %v1521, %v3257
    %v3259 = vand.u32 %v3258, 4294901760
    %v3260 = vsub.f32 %v3258, %v3259
    %v3261 = vand.u32 %v3260, 4294901760
    %3262 = vmatpush1.msra.mxu0 %v3261
    %3263 = vmatprep.subr.mxu0 0.0
    %v3264 = vand.u32 %v1522, 4294901760
    %v3265 = vsub.f32 %v1522, %v3264
    %v3266 = vand.u32 %v3265, 4294901760
    %v3267 = vsub.f32 %v3265, %v3266
    %v3268 = vand.u32 %v3267, 4294901760
    %3269 = vmatpush1.msra.mxu0 %v3268
    %3270 = vmatprep.subr.mxu0 0.0
    %3271 = vmatpush1.msra.mxu0 0.0
    %3272 = vmatprep.subr.mxu0 0.0
    %3273 = vmatpush1.msra.mxu0 0.0
    %3274 = vmatprep.subr.mxu0 0.0
    %3275 = vmatpush1.msra.mxu0 0.0
    %3276 = vmatprep.subr.mxu0 0.0
    %3277 = vmatpush1.msra.mxu0 0.0
    %3278 = vmatprep.subr.mxu0 0.0
    %3279 = vmatpush1.msra.mxu0 0.0
    %3280 = vmatprep.subr.mxu0 0.0
    %3281 = vmatpush1.msra.mxu0 0.0
    %3282 = vmatprep.subr.mxu0 0.0
    %3283 = vmatpush1.msra.mxu0 0.0
    %3284 = vmatprep.subr.mxu0 0.0
    %3285 = vmatpush1.msra.mxu0 0.0
    %3286 = vmatprep.subr.mxu0 0.0
    %3287 = vmatpush1.msra.mxu0 0.0
    %3288 = vmatprep.subr.mxu0 0.0
    %3289 = vmatpush1.msra.mxu0 0.0
    %3290 = vmatprep.subr.mxu0 0.0
    %3291 = vmatpush1.msra.mxu0 0.0
    %3292 = vmatprep.subr.mxu0 0.0
    %3293 = vmatpush1.msra.mxu0 0.0
    %3294 = vmatprep.subr.mxu0 0.0
    %3295 = vmatpush1.msra.mxu0 0.0
    %3296 = vmatprep.subr.mxu0 0.0
    %3297 = vmatpush1.msra.mxu0 0.0
    %3298 = vmatprep.subr.mxu0 0.0
    %3299 = vmatpush1.msra.mxu0 0.0
    %3300 = vmatprep.subr.mxu0 0.0
    %3301 = vmatpush1.msra.mxu0 0.0
    %3302 = vmatprep.subr.mxu0 0.0
    %3303 = vmatpush1.msra.mxu0 0.0
    %3304 = vmatprep.subr.mxu0 0.0
    %3305 = vmatpush1.msra.mxu0 0.0
    %3306 = vmatprep.subr.mxu0 0.0
    %3307 = vmatpush1.msra.mxu0 0.0
    %3308 = vmatprep.subr.mxu0 0.0
    %3309 = vmatpush1.msra.mxu0 0.0
    %3310 = vmatprep.subr.mxu0 0.0
    %3311 = vmatpush1.msra.mxu0 0.0
    %3312 = vmatprep.subr.mxu0 0.0
    %3313 = vmatpush1.msra.mxu0 0.0
    %3314 = vmatprep.subr.mxu0 0.0
    %3315 = vmatpush1.msra.mxu0 0.0
    %3316 = vmatprep.subr.mxu0 0.0
    %3317 = vmatpush1.msra.mxu0 0.0
    %3318 = vmatprep.subr.mxu0 0.0
    %3319 = vmatpush1.msra.mxu0 0.0
    %3320 = vmatprep.subr.mxu0 0.0
    %3321 = vmatpush1.msra.mxu0 0.0
    %3322 = vmatprep.subr.mxu0 0.0
    %3323 = vmatpush1.msra.mxu0 0.0
    %3324 = vmatprep.subr.mxu0 0.0
    %3325 = vmatpush1.msra.mxu0 0.0
    %3326 = vmatprep.mubr.f32.mxu0 0.0
    %v3327 = vand.u32 %v3148, 4294901760
    %3328 = vmatmul.mubr.f32.gmra.mrb[0].mxu0 %v3327
    %v3329 = vpop.f32.mrb[0].mxu0
    %v3330 = vadd.f32 %v3229, %v3329
    %v3331 = vpop.f32.mrb[0].mxu0
    %3332 = vmatprep.mubr.f32.mxu0 0.0
    %v3333 = vand.u32 %v3151, 4294901760
    %3334 = vmatmul.mubr.f32.gmra.mrb[0].mxu0 %v3333
    %v3335 = vpop.f32.mrb[0].mxu0
    %v3336 = vadd.f32 %v3239, %v3335
    %v3337 = vpop.f32.mrb[0].mxu0
    %3338 = vdwg.mxu0
    %3339 = vmatprep.subr.mxu0 0.0
    %v3340 = vand.u32 %v1519, 4294901760
    %v3341 = vsub.f32 %v1519, %v3340
    %3342 = vmatpush1.msra.mxu0 %v3341
    %3343 = vmatprep.subr.mxu0 0.0
    %v3344 = vand.u32 %v1520, 4294901760
    %v3345 = vsub.f32 %v1520, %v3344
    %3346 = vmatpush1.msra.mxu0 %v3345
    %3347 = vmatprep.subr.mxu0 0.0
    %v3348 = vand.u32 %v1521, 4294901760
    %v3349 = vsub.f32 %v1521, %v3348
    %3350 = vmatpush1.msra.mxu0 %v3349
    %3351 = vmatprep.subr.mxu0 0.0
    %v3352 = vand.u32 %v1522, 4294901760
    %v3353 = vsub.f32 %v1522, %v3352
    %3354 = vmatpush1.msra.mxu0 %v3353
    %3355 = vmatprep.subr.mxu0 0.0
    %3356 = vmatpush1.msra.mxu0 0.0
    %3357 = vmatprep.subr.mxu0 0.0
    %3358 = vmatpush1.msra.mxu0 0.0
    %3359 = vmatprep.subr.mxu0 0.0
    %3360 = vmatpush1.msra.mxu0 0.0
    %3361 = vmatprep.subr.mxu0 0.0
    %3362 = vmatpush1.msra.mxu0 0.0
    %3363 = vmatprep.subr.mxu0 0.0
    %3364 = vmatpush1.msra.mxu0 0.0
    %3365 = vmatprep.subr.mxu0 0.0
    %3366 = vmatpush1.msra.mxu0 0.0
    %3367 = vmatprep.subr.mxu0 0.0
    %3368 = vmatpush1.msra.mxu0 0.0
    %3369 = vmatprep.subr.mxu0 0.0
    %3370 = vmatpush1.msra.mxu0 0.0
    %3371 = vmatprep.subr.mxu0 0.0
    %3372 = vmatpush1.msra.mxu0 0.0
    %3373 = vmatprep.subr.mxu0 0.0
    %3374 = vmatpush1.msra.mxu0 0.0
    %3375 = vmatprep.subr.mxu0 0.0
    %3376 = vmatpush1.msra.mxu0 0.0
    %3377 = vmatprep.subr.mxu0 0.0
    %3378 = vmatpush1.msra.mxu0 0.0
    %3379 = vmatprep.subr.mxu0 0.0
    %3380 = vmatpush1.msra.mxu0 0.0
    %3381 = vmatprep.subr.mxu0 0.0
    %3382 = vmatpush1.msra.mxu0 0.0
    %3383 = vmatprep.subr.mxu0 0.0
    %3384 = vmatpush1.msra.mxu0 0.0
    %3385 = vmatprep.subr.mxu0 0.0
    %3386 = vmatpush1.msra.mxu0 0.0
    %3387 = vmatprep.subr.mxu0 0.0
    %3388 = vmatpush1.msra.mxu0 0.0
    %3389 = vmatprep.subr.mxu0 0.0
    %3390 = vmatpush1.msra.mxu0 0.0
    %3391 = vmatprep.subr.mxu0 0.0
    %3392 = vmatpush1.msra.mxu0 0.0
    %3393 = vmatprep.subr.mxu0 0.0
    %3394 = vmatpush1.msra.mxu0 0.0
    %3395 = vmatprep.subr.mxu0 0.0
    %3396 = vmatpush1.msra.mxu0 0.0
    %3397 = vmatprep.subr.mxu0 0.0
    %3398 = vmatpush1.msra.mxu0 0.0
    %3399 = vmatprep.subr.mxu0 0.0
    %3400 = vmatpush1.msra.mxu0 0.0
    %3401 = vmatprep.subr.mxu0 0.0
    %3402 = vmatpush1.msra.mxu0 0.0
    %3403 = vmatprep.subr.mxu0 0.0
    %3404 = vmatpush1.msra.mxu0 0.0
    %3405 = vmatprep.subr.mxu0 0.0
    %3406 = vmatpush1.msra.mxu0 0.0
    %3407 = vmatprep.subr.mxu0 0.0
    %3408 = vmatpush1.msra.mxu0 0.0
    %3409 = vmatprep.subr.mxu0 0.0
    %3410 = vmatpush1.msra.mxu0 0.0
    %3411 = vmatprep.mubr.f32.mxu0 0.0
    %v3412 = vand.u32 %v3148, 4294901760
    %v3413 = vsub.f32 %v3148, %v3412
    %3414 = vmatmul.mubr.f32.gmra.mrb[0].mxu0 %v3413
    %v3415 = vpop.f32.mrb[0].mxu0
    %v3416 = vadd.f32 %v3330, %v3415
    %v3417 = vpop.f32.mrb[0].mxu0
    %3418 = vmatprep.mubr.f32.mxu0 0.0
    %v3419 = vand.u32 %v3151, 4294901760
    %v3420 = vsub.f32 %v3151, %v3419
    %3421 = vmatmul.mubr.f32.gmra.mrb[0].mxu0 %v3420
    %v3422 = vpop.f32.mrb[0].mxu0
    %v3423 = vadd.f32 %v3336, %v3422
    %v3424 = vpop.f32.mrb[0].mxu0
    %3425 = vdwg.mxu0
    %3426 = vmatprep.subr.mxu0 0.0
    %v3427 = vand.u32 %v1519, 4294901760
    %3428 = vmatpush1.msra.mxu0 %v3427
    %3429 = vmatprep.subr.mxu0 0.0
    %v3430 = vand.u32 %v1520, 4294901760
    %3431 = vmatpush1.msra.mxu0 %v3430
    %3432 = vmatprep.subr.mxu0 0.0
    %v3433 = vand.u32 %v1521, 4294901760
    %3434 = vmatpush1.msra.mxu0 %v3433
    %3435 = vmatprep.subr.mxu0 0.0
    %v3436 = vand.u32 %v1522, 4294901760
    %3437 = vmatpush1.msra.mxu0 %v3436
    %3438 = vmatprep.subr.mxu0 0.0
    %3439 = vmatpush1.msra.mxu0 0.0
    %3440 = vmatprep.subr.mxu0 0.0
    %3441 = vmatpush1.msra.mxu0 0.0
    %3442 = vmatprep.subr.mxu0 0.0
    %3443 = vmatpush1.msra.mxu0 0.0
    %3444 = vmatprep.subr.mxu0 0.0
    %3445 = vmatpush1.msra.mxu0 0.0
    %3446 = vmatprep.subr.mxu0 0.0
    %3447 = vmatpush1.msra.mxu0 0.0
    %3448 = vmatprep.subr.mxu0 0.0
    %3449 = vmatpush1.msra.mxu0 0.0
    %3450 = vmatprep.subr.mxu0 0.0
    %3451 = vmatpush1.msra.mxu0 0.0
    %3452 = vmatprep.subr.mxu0 0.0
    %3453 = vmatpush1.msra.mxu0 0.0
    %3454 = vmatprep.subr.mxu0 0.0
    %3455 = vmatpush1.msra.mxu0 0.0
    %3456 = vmatprep.subr.mxu0 0.0
    %3457 = vmatpush1.msra.mxu0 0.0
    %3458 = vmatprep.subr.mxu0 0.0
    %3459 = vmatpush1.msra.mxu0 0.0
    %3460 = vmatprep.subr.mxu0 0.0
    %3461 = vmatpush1.msra.mxu0 0.0
    %3462 = vmatprep.subr.mxu0 0.0
    %3463 = vmatpush1.msra.mxu0 0.0
    %3464 = vmatprep.subr.mxu0 0.0
    %3465 = vmatpush1.msra.mxu0 0.0
    %3466 = vmatprep.subr.mxu0 0.0
    %3467 = vmatpush1.msra.mxu0 0.0
    %3468 = vmatprep.subr.mxu0 0.0
    %3469 = vmatpush1.msra.mxu0 0.0
    %3470 = vmatprep.subr.mxu0 0.0
    %3471 = vmatpush1.msra.mxu0 0.0
    %3472 = vmatprep.subr.mxu0 0.0
    %3473 = vmatpush1.msra.mxu0 0.0
    %3474 = vmatprep.subr.mxu0 0.0
    %3475 = vmatpush1.msra.mxu0 0.0
    %3476 = vmatprep.subr.mxu0 0.0
    %3477 = vmatpush1.msra.mxu0 0.0
    %3478 = vmatprep.subr.mxu0 0.0
    %3479 = vmatpush1.msra.mxu0 0.0
    %3480 = vmatprep.subr.mxu0 0.0
    %3481 = vmatpush1.msra.mxu0 0.0
    %3482 = vmatprep.subr.mxu0 0.0
    %3483 = vmatpush1.msra.mxu0 0.0
    %3484 = vmatprep.subr.mxu0 0.0
    %3485 = vmatpush1.msra.mxu0 0.0
    %3486 = vmatprep.subr.mxu0 0.0
    %3487 = vmatpush1.msra.mxu0 0.0
    %3488 = vmatprep.subr.mxu0 0.0
    %3489 = vmatpush1.msra.mxu0 0.0
    %3490 = vmatprep.subr.mxu0 0.0
    %3491 = vmatpush1.msra.mxu0 0.0
    %3492 = vmatprep.subr.mxu0 0.0
    %3493 = vmatpush1.msra.mxu0 0.0
    %3494 = vmatprep.mubr.f32.mxu0 0.0
    %v3495 = vand.u32 %v3148, 4294901760
    %v3496 = vsub.f32 %v3148, %v3495
    %v3497 = vand.u32 %v3496, 4294901760
    %3498 = vmatmul.mubr.f32.gmra.mrb[0].mxu0 %v3497
    %v3499 = vpop.f32.mrb[0].mxu0
    %v3500 = vadd.f32 %v3416, %v3499
    %v3501 = vpop.f32.mrb[0].mxu0
    %3502 = vmatprep.mubr.f32.mxu0 0.0
    %v3503 = vand.u32 %v3151, 4294901760
    %v3504 = vsub.f32 %v3151, %v3503
    %v3505 = vand.u32 %v3504, 4294901760
    %3506 = vmatmul.mubr.f32.gmra.mrb[0].mxu0 %v3505
    %v3507 = vpop.f32.mrb[0].mxu0
    %v3508 = vadd.f32 %v3423, %v3507
    %v3509 = vpop.f32.mrb[0].mxu0
    %3510 = vdwg.mxu0
    %3511 = vmatprep.subr.mxu0 0.0
    %v3512 = vand.u32 %v1519, 4294901760
    %v3513 = vsub.f32 %v1519, %v3512
    %v3514 = vand.u32 %v3513, 4294901760
    %3515 = vmatpush1.msra.mxu0 %v3514
    %3516 = vmatprep.subr.mxu0 0.0
    %v3517 = vand.u32 %v1520, 4294901760
    %v3518 = vsub.f32 %v1520, %v3517
    %v3519 = vand.u32 %v3518, 4294901760
    %3520 = vmatpush1.msra.mxu0 %v3519
    %3521 = vmatprep.subr.mxu0 0.0
    %v3522 = vand.u32 %v1521, 4294901760
    %v3523 = vsub.f32 %v1521, %v3522
    %v3524 = vand.u32 %v3523, 4294901760
    %3525 = vmatpush1.msra.mxu0 %v3524
    %3526 = vmatprep.subr.mxu0 0.0
    %v3527 = vand.u32 %v1522, 4294901760
    %v3528 = vsub.f32 %v1522, %v3527
    %v3529 = vand.u32 %v3528, 4294901760
    %3530 = vmatpush1.msra.mxu0 %v3529
    %3531 = vmatprep.subr.mxu0 0.0
    %3532 = vmatpush1.msra.mxu0 0.0
    %3533 = vmatprep.subr.mxu0 0.0
    %3534 = vmatpush1.msra.mxu0 0.0
    %3535 = vmatprep.subr.mxu0 0.0
    %3536 = vmatpush1.msra.mxu0 0.0
    %3537 = vmatprep.subr.mxu0 0.0
    %3538 = vmatpush1.msra.mxu0 0.0
    %3539 = vmatprep.subr.mxu0 0.0
    %3540 = vmatpush1.msra.mxu0 0.0
    %3541 = vmatprep.subr.mxu0 0.0
    %3542 = vmatpush1.msra.mxu0 0.0
    %3543 = vmatprep.subr.mxu0 0.0
    %3544 = vmatpush1.msra.mxu0 0.0
    %3545 = vmatprep.subr.mxu0 0.0
    %3546 = vmatpush1.msra.mxu0 0.0
    %3547 = vmatprep.subr.mxu0 0.0
    %3548 = vmatpush1.msra.mxu0 0.0
    %3549 = vmatprep.subr.mxu0 0.0
    %3550 = vmatpush1.msra.mxu0 0.0
    %3551 = vmatprep.subr.mxu0 0.0
    %3552 = vmatpush1.msra.mxu0 0.0
    %3553 = vmatprep.subr.mxu0 0.0
    %3554 = vmatpush1.msra.mxu0 0.0
    %3555 = vmatprep.subr.mxu0 0.0
    %3556 = vmatpush1.msra.mxu0 0.0
    %3557 = vmatprep.subr.mxu0 0.0
    %3558 = vmatpush1.msra.mxu0 0.0
    %3559 = vmatprep.subr.mxu0 0.0
    %3560 = vmatpush1.msra.mxu0 0.0
    %3561 = vmatprep.subr.mxu0 0.0
    %3562 = vmatpush1.msra.mxu0 0.0
    %3563 = vmatprep.subr.mxu0 0.0
    %3564 = vmatpush1.msra.mxu0 0.0
    %3565 = vmatprep.subr.mxu0 0.0
    %3566 = vmatpush1.msra.mxu0 0.0
    %3567 = vmatprep.subr.mxu0 0.0
    %3568 = vmatpush1.msra.mxu0 0.0
    %3569 = vmatprep.subr.mxu0 0.0
    %3570 = vmatpush1.msra.mxu0 0.0
    %3571 = vmatprep.subr.mxu0 0.0
    %3572 = vmatpush1.msra.mxu0 0.0
    %3573 = vmatprep.subr.mxu0 0.0
    %3574 = vmatpush1.msra.mxu0 0.0
    %3575 = vmatprep.subr.mxu0 0.0
    %3576 = vmatpush1.msra.mxu0 0.0
    %3577 = vmatprep.subr.mxu0 0.0
    %3578 = vmatpush1.msra.mxu0 0.0
    %3579 = vmatprep.subr.mxu0 0.0
    %3580 = vmatpush1.msra.mxu0 0.0
    %3581 = vmatprep.subr.mxu0 0.0
    %3582 = vmatpush1.msra.mxu0 0.0
    %3583 = vmatprep.subr.mxu0 0.0
    %3584 = vmatpush1.msra.mxu0 0.0
    %3585 = vmatprep.subr.mxu0 0.0
    %3586 = vmatpush1.msra.mxu0 0.0
    %3587 = vmatprep.mubr.f32.mxu0 0.0
    %v3588 = vand.u32 %v3148, 4294901760
    %3589 = vmatmul.mubr.f32.gmra.mrb[0].mxu0 %v3588
    %v3590 = vpop.f32.mrb[0].mxu0
    %v3591 = vadd.f32 %v3500, %v3590
    %v3592 = vpop.f32.mrb[0].mxu0
    %3593 = vmatprep.mubr.f32.mxu0 0.0
    %v3594 = vand.u32 %v3151, 4294901760
    %3595 = vmatmul.mubr.f32.gmra.mrb[0].mxu0 %v3594
    %v3596 = vpop.f32.mrb[0].mxu0
    %v3597 = vadd.f32 %v3508, %v3596
    %v3598 = vpop.f32.mrb[0].mxu0
    %3599 = vdwg.mxu0
    %3600 = vmatprep.subr.mxu0 0.0
    %v3601 = vand.u32 %v1519, 4294901760
    %3602 = vmatpush1.msra.mxu0 %v3601
    %3603 = vmatprep.subr.mxu0 0.0
    %v3604 = vand.u32 %v1520, 4294901760
    %3605 = vmatpush1.msra.mxu0 %v3604
    %3606 = vmatprep.subr.mxu0 0.0
    %v3607 = vand.u32 %v1521, 4294901760
    %3608 = vmatpush1.msra.mxu0 %v3607
    %3609 = vmatprep.subr.mxu0 0.0
    %v3610 = vand.u32 %v1522, 4294901760
    %3611 = vmatpush1.msra.mxu0 %v3610
    %3612 = vmatprep.subr.mxu0 0.0
    %3613 = vmatpush1.msra.mxu0 0.0
    %3614 = vmatprep.subr.mxu0 0.0
    %3615 = vmatpush1.msra.mxu0 0.0
    %3616 = vmatprep.subr.mxu0 0.0
    %3617 = vmatpush1.msra.mxu0 0.0
    %3618 = vmatprep.subr.mxu0 0.0
    %3619 = vmatpush1.msra.mxu0 0.0
    %3620 = vmatprep.subr.mxu0 0.0
    %3621 = vmatpush1.msra.mxu0 0.0
    %3622 = vmatprep.subr.mxu0 0.0
    %3623 = vmatpush1.msra.mxu0 0.0
    %3624 = vmatprep.subr.mxu0 0.0
    %3625 = vmatpush1.msra.mxu0 0.0
    %3626 = vmatprep.subr.mxu0 0.0
    %3627 = vmatpush1.msra.mxu0 0.0
    %3628 = vmatprep.subr.mxu0 0.0
    %3629 = vmatpush1.msra.mxu0 0.0
    %3630 = vmatprep.subr.mxu0 0.0
    %3631 = vmatpush1.msra.mxu0 0.0
    %3632 = vmatprep.subr.mxu0 0.0
    %3633 = vmatpush1.msra.mxu0 0.0
    %3634 = vmatprep.subr.mxu0 0.0
    %3635 = vmatpush1.msra.mxu0 0.0
    %3636 = vmatprep.subr.mxu0 0.0
    %3637 = vmatpush1.msra.mxu0 0.0
    %3638 = vmatprep.subr.mxu0 0.0
    %3639 = vmatpush1.msra.mxu0 0.0
    %3640 = vmatprep.subr.mxu0 0.0
    %3641 = vmatpush1.msra.mxu0 0.0
    %3642 = vmatprep.subr.mxu0 0.0
    %3643 = vmatpush1.msra.mxu0 0.0
    %3644 = vmatprep.subr.mxu0 0.0
    %3645 = vmatpush1.msra.mxu0 0.0
    %3646 = vmatprep.subr.mxu0 0.0
    %3647 = vmatpush1.msra.mxu0 0.0
    %3648 = vmatprep.subr.mxu0 0.0
    %3649 = vmatpush1.msra.mxu0 0.0
    %3650 = vmatprep.subr.mxu0 0.0
    %3651 = vmatpush1.msra.mxu0 0.0
    %3652 = vmatprep.subr.mxu0 0.0
    %3653 = vmatpush1.msra.mxu0 0.0
    %3654 = vmatprep.subr.mxu0 0.0
    %3655 = vmatpush1.msra.mxu0 0.0
    %3656 = vmatprep.subr.mxu0 0.0
    %3657 = vmatpush1.msra.mxu0 0.0
    %3658 = vmatprep.subr.mxu0 0.0
    %3659 = vmatpush1.msra.mxu0 0.0
    %3660 = vmatprep.subr.mxu0 0.0
    %3661 = vmatpush1.msra.mxu0 0.0
    %3662 = vmatprep.subr.mxu0 0.0
    %3663 = vmatpush1.msra.mxu0 0.0
    %3664 = vmatprep.subr.mxu0 0.0
    %3665 = vmatpush1.msra.mxu0 0.0
    %3666 = vmatprep.subr.mxu0 0.0
    %3667 = vmatpush1.msra.mxu0 0.0
    %3668 = vmatprep.mubr.f32.mxu0 0.0
    %v3669 = vand.u32 %v3148, 4294901760
    %3670 = vmatmul.mubr.f32.gmra.mrb[0].mxu0 %v3669
    %v3671 = vpop.f32.mrb[0].mxu0
    %v3672 = vadd.f32 %v3591, %v3671
    %v3673 = vpop.f32.mrb[0].mxu0
    %3674 = vmatprep.mubr.f32.mxu0 0.0
    %v3675 = vand.u32 %v3151, 4294901760
    %3676 = vmatmul.mubr.f32.gmra.mrb[0].mxu0 %v3675
    %v3677 = vpop.f32.mrb[0].mxu0
    %v3678 = vadd.f32 %v3597, %v3677
    %v3679 = vpop.f32.mrb[0].mxu0
    %3680 = vdwg.mxu0
    %v3681 = vmax.f32 %v3672, 0.0
    %v3682 = vmax.f32 %v3678, 0.0
    %v3683 = vmul.f32 %v3681, %v2610
    %v3684 = vmul.f32 %v3682, %v2610
    %v3685 = vmax.f32 %v2611, %v3683
    %v3686 = vmax.f32 %v2612, %v3684
    %v3687 = vsel %vm2631, 1e+30, %v2613
    %v3688 = vsel %vm2632, 1e+30, %v2614
    %v3689 = vsel %vm1525, %v3687, inf
    %3690 = vmin.xlane.f32.xlu0 %v3689
    %v3691 = vpop.xlane.xlu0 %3690
    %v3692 = vsel %vm1525, %v3688, inf
    %3693 = vmin.xlane.f32.xlu0 %v3692
    %v3694 = vpop.xlane.xlu0 %3693
    %vm3695 = vcmp.le.f32.partialorder %v3687, %v3691
    %vm3696 = vcmp.le.f32.partialorder %v3688, %v3694
    %v3697 = vsel %vm3695, %v30, 16.0
    %v3698 = vsel %vm3696, %v30, 16.0
    %v3699 = vsel %vm1525, %v3697, inf
    %3700 = vmin.xlane.f32.xlu0 %v3699
    %v3701 = vpop.xlane.xlu0 %3700
    %v3702 = vsel %vm1525, %v3698, inf
    %3703 = vmin.xlane.f32.xlu0 %v3702
    %v3704 = vpop.xlane.xlu0 %3703
    %vm3705 = vcmp.eq.f32.partialorder %v30, %v3701
    %vm3706 = vcmp.eq.f32.partialorder %v30, %v3704
    %v3707 = vsel %vm3705, 1.0, 0.0
    %v3708 = vsel %vm3706, 1.0, 0.0
    %v3710 = vsel %vm1525, %v3707, 0
    %v3713 = vsel %vm1525, %v3708, 0
    %3715 = vmatprep.subr.mxu0 0.0
    %v3716 = vand.u32 %v1549, 4294901760
    %3717 = vmatpush1.msra.mxu0 %v3716
    %3718 = vmatprep.subr.mxu0 0.0
    %v3719 = vand.u32 %v1551, 4294901760
    %3720 = vmatpush1.msra.mxu0 %v3719
    %3721 = vmatprep.subr.mxu0 0.0
    %3722 = vmatpush1.msra.mxu0 0.0
    %3723 = vmatprep.subr.mxu0 0.0
    %3724 = vmatpush1.msra.mxu0 0.0
    %3725 = vmatprep.subr.mxu0 0.0
    %3726 = vmatpush1.msra.mxu0 0.0
    %3727 = vmatprep.subr.mxu0 0.0
    %3728 = vmatpush1.msra.mxu0 0.0
    %3729 = vmatprep.subr.mxu0 0.0
    %3730 = vmatpush1.msra.mxu0 0.0
    %3731 = vmatprep.subr.mxu0 0.0
    %3732 = vmatpush1.msra.mxu0 0.0
    %3733 = vmatprep.subr.mxu0 0.0
    %3734 = vmatpush1.msra.mxu0 0.0
    %3735 = vmatprep.subr.mxu0 0.0
    %3736 = vmatpush1.msra.mxu0 0.0
    %3737 = vmatprep.subr.mxu0 0.0
    %3738 = vmatpush1.msra.mxu0 0.0
    %3739 = vmatprep.subr.mxu0 0.0
    %3740 = vmatpush1.msra.mxu0 0.0
    %3741 = vmatprep.subr.mxu0 0.0
    %3742 = vmatpush1.msra.mxu0 0.0
    %3743 = vmatprep.subr.mxu0 0.0
    %3744 = vmatpush1.msra.mxu0 0.0
    %3745 = vmatprep.subr.mxu0 0.0
    %3746 = vmatpush1.msra.mxu0 0.0
    %3747 = vmatprep.subr.mxu0 0.0
    %3748 = vmatpush1.msra.mxu0 0.0
    %3749 = vmatprep.subr.mxu0 0.0
    %3750 = vmatpush1.msra.mxu0 0.0
    %3751 = vmatprep.subr.mxu0 0.0
    %3752 = vmatpush1.msra.mxu0 0.0
    %3753 = vmatprep.subr.mxu0 0.0
    %3754 = vmatpush1.msra.mxu0 0.0
    %3755 = vmatprep.subr.mxu0 0.0
    %3756 = vmatpush1.msra.mxu0 0.0
    %3757 = vmatprep.subr.mxu0 0.0
    %3758 = vmatpush1.msra.mxu0 0.0
    %3759 = vmatprep.subr.mxu0 0.0
    %3760 = vmatpush1.msra.mxu0 0.0
    %3761 = vmatprep.subr.mxu0 0.0
    %3762 = vmatpush1.msra.mxu0 0.0
    %3763 = vmatprep.subr.mxu0 0.0
    %3764 = vmatpush1.msra.mxu0 0.0
    %3765 = vmatprep.subr.mxu0 0.0
    %3766 = vmatpush1.msra.mxu0 0.0
    %3767 = vmatprep.subr.mxu0 0.0
    %3768 = vmatpush1.msra.mxu0 0.0
    %3769 = vmatprep.subr.mxu0 0.0
    %3770 = vmatpush1.msra.mxu0 0.0
    %3771 = vmatprep.subr.mxu0 0.0
    %3772 = vmatpush1.msra.mxu0 0.0
    %3773 = vmatprep.subr.mxu0 0.0
    %3774 = vmatpush1.msra.mxu0 0.0
    %3775 = vmatprep.subr.mxu0 0.0
    %3776 = vmatpush1.msra.mxu0 0.0
    %3777 = vmatprep.subr.mxu0 0.0
    %3778 = vmatpush1.msra.mxu0 0.0
    %3779 = vmatprep.subr.mxu0 0.0
    %3780 = vmatpush1.msra.mxu0 0.0
    %3781 = vmatprep.mubr.f32.mxu0 0.0
    %v3782 = vand.u32 %v3710, 4294901760
    %v3783 = vsub.f32 %v3710, %v3782
    %v3784 = vand.u32 %v3783, 4294901760
    %v3785 = vsub.f32 %v3783, %v3784
    %v3786 = vand.u32 %v3785, 4294901760
    %3787 = vmatmul.mubr.f32.gmra.mrb[0].mxu0 %v3786
    %v3788 = vpop.f32.mrb[0].mxu0
    %v3789 = vadd.f32 0.0, %v3788
    %v3790 = vpop.f32.mrb[0].mxu0
    %3791 = vmatprep.mubr.f32.mxu0 0.0
    %v3792 = vand.u32 %v3713, 4294901760
    %v3793 = vsub.f32 %v3713, %v3792
    %v3794 = vand.u32 %v3793, 4294901760
    %v3795 = vsub.f32 %v3793, %v3794
    %v3796 = vand.u32 %v3795, 4294901760
    %3797 = vmatmul.mubr.f32.gmra.mrb[0].mxu0 %v3796
    %v3798 = vpop.f32.mrb[0].mxu0
    %v3799 = vadd.f32 0.0, %v3798
    %v3800 = vpop.f32.mrb[0].mxu0
    %3801 = vdwg.mxu0
    %3802 = vmatprep.subr.mxu0 0.0
    %v3803 = vand.u32 %v1549, 4294901760
    %v3804 = vsub.f32 %v1549, %v3803
    %v3805 = vand.u32 %v3804, 4294901760
    %v3806 = vsub.f32 %v3804, %v3805
    %v3807 = vand.u32 %v3806, 4294901760
    %3808 = vmatpush1.msra.mxu0 %v3807
    %3809 = vmatprep.subr.mxu0 0.0
    %v3810 = vand.u32 %v1551, 4294901760
    %v3811 = vsub.f32 %v1551, %v3810
    %v3812 = vand.u32 %v3811, 4294901760
    %v3813 = vsub.f32 %v3811, %v3812
    %v3814 = vand.u32 %v3813, 4294901760
    %3815 = vmatpush1.msra.mxu0 %v3814
    %3816 = vmatprep.subr.mxu0 0.0
    %3817 = vmatpush1.msra.mxu0 0.0
    %3818 = vmatprep.subr.mxu0 0.0
    %3819 = vmatpush1.msra.mxu0 0.0
    %3820 = vmatprep.subr.mxu0 0.0
    %3821 = vmatpush1.msra.mxu0 0.0
    %3822 = vmatprep.subr.mxu0 0.0
    %3823 = vmatpush1.msra.mxu0 0.0
    %3824 = vmatprep.subr.mxu0 0.0
    %3825 = vmatpush1.msra.mxu0 0.0
    %3826 = vmatprep.subr.mxu0 0.0
    %3827 = vmatpush1.msra.mxu0 0.0
    %3828 = vmatprep.subr.mxu0 0.0
    %3829 = vmatpush1.msra.mxu0 0.0
    %3830 = vmatprep.subr.mxu0 0.0
    %3831 = vmatpush1.msra.mxu0 0.0
    %3832 = vmatprep.subr.mxu0 0.0
    %3833 = vmatpush1.msra.mxu0 0.0
    %3834 = vmatprep.subr.mxu0 0.0
    %3835 = vmatpush1.msra.mxu0 0.0
    %3836 = vmatprep.subr.mxu0 0.0
    %3837 = vmatpush1.msra.mxu0 0.0
    %3838 = vmatprep.subr.mxu0 0.0
    %3839 = vmatpush1.msra.mxu0 0.0
    %3840 = vmatprep.subr.mxu0 0.0
    %3841 = vmatpush1.msra.mxu0 0.0
    %3842 = vmatprep.subr.mxu0 0.0
    %3843 = vmatpush1.msra.mxu0 0.0
    %3844 = vmatprep.subr.mxu0 0.0
    %3845 = vmatpush1.msra.mxu0 0.0
    %3846 = vmatprep.subr.mxu0 0.0
    %3847 = vmatpush1.msra.mxu0 0.0
    %3848 = vmatprep.subr.mxu0 0.0
    %3849 = vmatpush1.msra.mxu0 0.0
    %3850 = vmatprep.subr.mxu0 0.0
    %3851 = vmatpush1.msra.mxu0 0.0
    %3852 = vmatprep.subr.mxu0 0.0
    %3853 = vmatpush1.msra.mxu0 0.0
    %3854 = vmatprep.subr.mxu0 0.0
    %3855 = vmatpush1.msra.mxu0 0.0
    %3856 = vmatprep.subr.mxu0 0.0
    %3857 = vmatpush1.msra.mxu0 0.0
    %3858 = vmatprep.subr.mxu0 0.0
    %3859 = vmatpush1.msra.mxu0 0.0
    %3860 = vmatprep.subr.mxu0 0.0
    %3861 = vmatpush1.msra.mxu0 0.0
    %3862 = vmatprep.subr.mxu0 0.0
    %3863 = vmatpush1.msra.mxu0 0.0
    %3864 = vmatprep.subr.mxu0 0.0
    %3865 = vmatpush1.msra.mxu0 0.0
    %3866 = vmatprep.subr.mxu0 0.0
    %3867 = vmatpush1.msra.mxu0 0.0
    %3868 = vmatprep.subr.mxu0 0.0
    %3869 = vmatpush1.msra.mxu0 0.0
    %3870 = vmatprep.subr.mxu0 0.0
    %3871 = vmatpush1.msra.mxu0 0.0
    %3872 = vmatprep.subr.mxu0 0.0
    %3873 = vmatpush1.msra.mxu0 0.0
    %3874 = vmatprep.subr.mxu0 0.0
    %3875 = vmatpush1.msra.mxu0 0.0
    %3876 = vmatprep.mubr.f32.mxu0 0.0
    %v3877 = vand.u32 %v3710, 4294901760
    %3878 = vmatmul.mubr.f32.gmra.mrb[0].mxu0 %v3877
    %v3879 = vpop.f32.mrb[0].mxu0
    %v3880 = vadd.f32 %v3789, %v3879
    %v3881 = vpop.f32.mrb[0].mxu0
    %3882 = vmatprep.mubr.f32.mxu0 0.0
    %v3883 = vand.u32 %v3713, 4294901760
    %3884 = vmatmul.mubr.f32.gmra.mrb[0].mxu0 %v3883
    %v3885 = vpop.f32.mrb[0].mxu0
    %v3886 = vadd.f32 %v3799, %v3885
    %v3887 = vpop.f32.mrb[0].mxu0
    %3888 = vdwg.mxu0
    %3889 = vmatprep.subr.mxu0 0.0
    %v3890 = vand.u32 %v1549, 4294901760
    %v3891 = vsub.f32 %v1549, %v3890
    %3892 = vmatpush1.msra.mxu0 %v3891
    %3893 = vmatprep.subr.mxu0 0.0
    %v3894 = vand.u32 %v1551, 4294901760
    %v3895 = vsub.f32 %v1551, %v3894
    %3896 = vmatpush1.msra.mxu0 %v3895
    %3897 = vmatprep.subr.mxu0 0.0
    %3898 = vmatpush1.msra.mxu0 0.0
    %3899 = vmatprep.subr.mxu0 0.0
    %3900 = vmatpush1.msra.mxu0 0.0
    %3901 = vmatprep.subr.mxu0 0.0
    %3902 = vmatpush1.msra.mxu0 0.0
    %3903 = vmatprep.subr.mxu0 0.0
    %3904 = vmatpush1.msra.mxu0 0.0
    %3905 = vmatprep.subr.mxu0 0.0
    %3906 = vmatpush1.msra.mxu0 0.0
    %3907 = vmatprep.subr.mxu0 0.0
    %3908 = vmatpush1.msra.mxu0 0.0
    %3909 = vmatprep.subr.mxu0 0.0
    %3910 = vmatpush1.msra.mxu0 0.0
    %3911 = vmatprep.subr.mxu0 0.0
    %3912 = vmatpush1.msra.mxu0 0.0
    %3913 = vmatprep.subr.mxu0 0.0
    %3914 = vmatpush1.msra.mxu0 0.0
    %3915 = vmatprep.subr.mxu0 0.0
    %3916 = vmatpush1.msra.mxu0 0.0
    %3917 = vmatprep.subr.mxu0 0.0
    %3918 = vmatpush1.msra.mxu0 0.0
    %3919 = vmatprep.subr.mxu0 0.0
    %3920 = vmatpush1.msra.mxu0 0.0
    %3921 = vmatprep.subr.mxu0 0.0
    %3922 = vmatpush1.msra.mxu0 0.0
    %3923 = vmatprep.subr.mxu0 0.0
    %3924 = vmatpush1.msra.mxu0 0.0
    %3925 = vmatprep.subr.mxu0 0.0
    %3926 = vmatpush1.msra.mxu0 0.0
    %3927 = vmatprep.subr.mxu0 0.0
    %3928 = vmatpush1.msra.mxu0 0.0
    %3929 = vmatprep.subr.mxu0 0.0
    %3930 = vmatpush1.msra.mxu0 0.0
    %3931 = vmatprep.subr.mxu0 0.0
    %3932 = vmatpush1.msra.mxu0 0.0
    %3933 = vmatprep.subr.mxu0 0.0
    %3934 = vmatpush1.msra.mxu0 0.0
    %3935 = vmatprep.subr.mxu0 0.0
    %3936 = vmatpush1.msra.mxu0 0.0
    %3937 = vmatprep.subr.mxu0 0.0
    %3938 = vmatpush1.msra.mxu0 0.0
    %3939 = vmatprep.subr.mxu0 0.0
    %3940 = vmatpush1.msra.mxu0 0.0
    %3941 = vmatprep.subr.mxu0 0.0
    %3942 = vmatpush1.msra.mxu0 0.0
    %3943 = vmatprep.subr.mxu0 0.0
    %3944 = vmatpush1.msra.mxu0 0.0
    %3945 = vmatprep.subr.mxu0 0.0
    %3946 = vmatpush1.msra.mxu0 0.0
    %3947 = vmatprep.subr.mxu0 0.0
    %3948 = vmatpush1.msra.mxu0 0.0
    %3949 = vmatprep.subr.mxu0 0.0
    %3950 = vmatpush1.msra.mxu0 0.0
    %3951 = vmatprep.subr.mxu0 0.0
    %3952 = vmatpush1.msra.mxu0 0.0
    %3953 = vmatprep.subr.mxu0 0.0
    %3954 = vmatpush1.msra.mxu0 0.0
    %3955 = vmatprep.subr.mxu0 0.0
    %3956 = vmatpush1.msra.mxu0 0.0
    %3957 = vmatprep.mubr.f32.mxu0 0.0
    %v3958 = vand.u32 %v3710, 4294901760
    %v3959 = vsub.f32 %v3710, %v3958
    %3960 = vmatmul.mubr.f32.gmra.mrb[0].mxu0 %v3959
    %v3961 = vpop.f32.mrb[0].mxu0
    %v3962 = vadd.f32 %v3880, %v3961
    %v3963 = vpop.f32.mrb[0].mxu0
    %3964 = vmatprep.mubr.f32.mxu0 0.0
    %v3965 = vand.u32 %v3713, 4294901760
    %v3966 = vsub.f32 %v3713, %v3965
    %3967 = vmatmul.mubr.f32.gmra.mrb[0].mxu0 %v3966
    %v3968 = vpop.f32.mrb[0].mxu0
    %v3969 = vadd.f32 %v3886, %v3968
    %v3970 = vpop.f32.mrb[0].mxu0
    %3971 = vdwg.mxu0
    %3972 = vmatprep.subr.mxu0 0.0
    %v3973 = vand.u32 %v1549, 4294901760
    %3974 = vmatpush1.msra.mxu0 %v3973
    %3975 = vmatprep.subr.mxu0 0.0
    %v3976 = vand.u32 %v1551, 4294901760
    %3977 = vmatpush1.msra.mxu0 %v3976
    %3978 = vmatprep.subr.mxu0 0.0
    %3979 = vmatpush1.msra.mxu0 0.0
    %3980 = vmatprep.subr.mxu0 0.0
    %3981 = vmatpush1.msra.mxu0 0.0
    %3982 = vmatprep.subr.mxu0 0.0
    %3983 = vmatpush1.msra.mxu0 0.0
    %3984 = vmatprep.subr.mxu0 0.0
    %3985 = vmatpush1.msra.mxu0 0.0
    %3986 = vmatprep.subr.mxu0 0.0
    %3987 = vmatpush1.msra.mxu0 0.0
    %3988 = vmatprep.subr.mxu0 0.0
    %3989 = vmatpush1.msra.mxu0 0.0
    %3990 = vmatprep.subr.mxu0 0.0
    %3991 = vmatpush1.msra.mxu0 0.0
    %3992 = vmatprep.subr.mxu0 0.0
    %3993 = vmatpush1.msra.mxu0 0.0
    %3994 = vmatprep.subr.mxu0 0.0
    %3995 = vmatpush1.msra.mxu0 0.0
    %3996 = vmatprep.subr.mxu0 0.0
    %3997 = vmatpush1.msra.mxu0 0.0
    %3998 = vmatprep.subr.mxu0 0.0
    %3999 = vmatpush1.msra.mxu0 0.0
    %4000 = vmatprep.subr.mxu0 0.0
    %4001 = vmatpush1.msra.mxu0 0.0
    %4002 = vmatprep.subr.mxu0 0.0
    %4003 = vmatpush1.msra.mxu0 0.0
    %4004 = vmatprep.subr.mxu0 0.0
    %4005 = vmatpush1.msra.mxu0 0.0
    %4006 = vmatprep.subr.mxu0 0.0
    %4007 = vmatpush1.msra.mxu0 0.0
    %4008 = vmatprep.subr.mxu0 0.0
    %4009 = vmatpush1.msra.mxu0 0.0
    %4010 = vmatprep.subr.mxu0 0.0
    %4011 = vmatpush1.msra.mxu0 0.0
    %4012 = vmatprep.subr.mxu0 0.0
    %4013 = vmatpush1.msra.mxu0 0.0
    %4014 = vmatprep.subr.mxu0 0.0
    %4015 = vmatpush1.msra.mxu0 0.0
    %4016 = vmatprep.subr.mxu0 0.0
    %4017 = vmatpush1.msra.mxu0 0.0
    %4018 = vmatprep.subr.mxu0 0.0
    %4019 = vmatpush1.msra.mxu0 0.0
    %4020 = vmatprep.subr.mxu0 0.0
    %4021 = vmatpush1.msra.mxu0 0.0
    %4022 = vmatprep.subr.mxu0 0.0
    %4023 = vmatpush1.msra.mxu0 0.0
    %4024 = vmatprep.subr.mxu0 0.0
    %4025 = vmatpush1.msra.mxu0 0.0
    %4026 = vmatprep.subr.mxu0 0.0
    %4027 = vmatpush1.msra.mxu0 0.0
    %4028 = vmatprep.subr.mxu0 0.0
    %4029 = vmatpush1.msra.mxu0 0.0
    %4030 = vmatprep.subr.mxu0 0.0
    %4031 = vmatpush1.msra.mxu0 0.0
    %4032 = vmatprep.subr.mxu0 0.0
    %4033 = vmatpush1.msra.mxu0 0.0
    %4034 = vmatprep.subr.mxu0 0.0
    %4035 = vmatpush1.msra.mxu0 0.0
    %4036 = vmatprep.subr.mxu0 0.0
    %4037 = vmatpush1.msra.mxu0 0.0
    %4038 = vmatprep.mubr.f32.mxu0 0.0
    %v4039 = vand.u32 %v3710, 4294901760
    %v4040 = vsub.f32 %v3710, %v4039
    %v4041 = vand.u32 %v4040, 4294901760
    %4042 = vmatmul.mubr.f32.gmra.mrb[0].mxu0 %v4041
    %v4043 = vpop.f32.mrb[0].mxu0
    %v4044 = vadd.f32 %v3962, %v4043
    %v4045 = vpop.f32.mrb[0].mxu0
    %4046 = vmatprep.mubr.f32.mxu0 0.0
    %v4047 = vand.u32 %v3713, 4294901760
    %v4048 = vsub.f32 %v3713, %v4047
    %v4049 = vand.u32 %v4048, 4294901760
    %4050 = vmatmul.mubr.f32.gmra.mrb[0].mxu0 %v4049
    %v4051 = vpop.f32.mrb[0].mxu0
    %v4052 = vadd.f32 %v3969, %v4051
    %v4053 = vpop.f32.mrb[0].mxu0
    %4054 = vdwg.mxu0
    %4055 = vmatprep.subr.mxu0 0.0
    %v4056 = vand.u32 %v1549, 4294901760
    %v4057 = vsub.f32 %v1549, %v4056
    %v4058 = vand.u32 %v4057, 4294901760
    %4059 = vmatpush1.msra.mxu0 %v4058
    %4060 = vmatprep.subr.mxu0 0.0
    %v4061 = vand.u32 %v1551, 4294901760
    %v4062 = vsub.f32 %v1551, %v4061
    %v4063 = vand.u32 %v4062, 4294901760
    %4064 = vmatpush1.msra.mxu0 %v4063
    %4065 = vmatprep.subr.mxu0 0.0
    %4066 = vmatpush1.msra.mxu0 0.0
    %4067 = vmatprep.subr.mxu0 0.0
    %4068 = vmatpush1.msra.mxu0 0.0
    %4069 = vmatprep.subr.mxu0 0.0
    %4070 = vmatpush1.msra.mxu0 0.0
    %4071 = vmatprep.subr.mxu0 0.0
    %4072 = vmatpush1.msra.mxu0 0.0
    %4073 = vmatprep.subr.mxu0 0.0
    %4074 = vmatpush1.msra.mxu0 0.0
    %4075 = vmatprep.subr.mxu0 0.0
    %4076 = vmatpush1.msra.mxu0 0.0
    %4077 = vmatprep.subr.mxu0 0.0
    %4078 = vmatpush1.msra.mxu0 0.0
    %4079 = vmatprep.subr.mxu0 0.0
    %4080 = vmatpush1.msra.mxu0 0.0
    %4081 = vmatprep.subr.mxu0 0.0
    %4082 = vmatpush1.msra.mxu0 0.0
    %4083 = vmatprep.subr.mxu0 0.0
    %4084 = vmatpush1.msra.mxu0 0.0
    %4085 = vmatprep.subr.mxu0 0.0
    %4086 = vmatpush1.msra.mxu0 0.0
    %4087 = vmatprep.subr.mxu0 0.0
    %4088 = vmatpush1.msra.mxu0 0.0
    %4089 = vmatprep.subr.mxu0 0.0
    %4090 = vmatpush1.msra.mxu0 0.0
    %4091 = vmatprep.subr.mxu0 0.0
    %4092 = vmatpush1.msra.mxu0 0.0
    %4093 = vmatprep.subr.mxu0 0.0
    %4094 = vmatpush1.msra.mxu0 0.0
    %4095 = vmatprep.subr.mxu0 0.0
    %4096 = vmatpush1.msra.mxu0 0.0
    %4097 = vmatprep.subr.mxu0 0.0
    %4098 = vmatpush1.msra.mxu0 0.0
    %4099 = vmatprep.subr.mxu0 0.0
    %4100 = vmatpush1.msra.mxu0 0.0
    %4101 = vmatprep.subr.mxu0 0.0
    %4102 = vmatpush1.msra.mxu0 0.0
    %4103 = vmatprep.subr.mxu0 0.0
    %4104 = vmatpush1.msra.mxu0 0.0
    %4105 = vmatprep.subr.mxu0 0.0
    %4106 = vmatpush1.msra.mxu0 0.0
    %4107 = vmatprep.subr.mxu0 0.0
    %4108 = vmatpush1.msra.mxu0 0.0
    %4109 = vmatprep.subr.mxu0 0.0
    %4110 = vmatpush1.msra.mxu0 0.0
    %4111 = vmatprep.subr.mxu0 0.0
    %4112 = vmatpush1.msra.mxu0 0.0
    %4113 = vmatprep.subr.mxu0 0.0
    %4114 = vmatpush1.msra.mxu0 0.0
    %4115 = vmatprep.subr.mxu0 0.0
    %4116 = vmatpush1.msra.mxu0 0.0
    %4117 = vmatprep.subr.mxu0 0.0
    %4118 = vmatpush1.msra.mxu0 0.0
    %4119 = vmatprep.subr.mxu0 0.0
    %4120 = vmatpush1.msra.mxu0 0.0
    %4121 = vmatprep.subr.mxu0 0.0
    %4122 = vmatpush1.msra.mxu0 0.0
    %4123 = vmatprep.subr.mxu0 0.0
    %4124 = vmatpush1.msra.mxu0 0.0
    %4125 = vmatprep.mubr.f32.mxu0 0.0
    %v4126 = vand.u32 %v3710, 4294901760
    %4127 = vmatmul.mubr.f32.gmra.mrb[0].mxu0 %v4126
    %v4128 = vpop.f32.mrb[0].mxu0
    %v4129 = vadd.f32 %v4044, %v4128
    %v4130 = vpop.f32.mrb[0].mxu0
    %4131 = vmatprep.mubr.f32.mxu0 0.0
    %v4132 = vand.u32 %v3713, 4294901760
    %4133 = vmatmul.mubr.f32.gmra.mrb[0].mxu0 %v4132
    %v4134 = vpop.f32.mrb[0].mxu0
    %v4135 = vadd.f32 %v4052, %v4134
    %v4136 = vpop.f32.mrb[0].mxu0
    %4137 = vdwg.mxu0
    %4138 = vmatprep.subr.mxu0 0.0
    %v4139 = vand.u32 %v1549, 4294901760
    %4140 = vmatpush1.msra.mxu0 %v4139
    %4141 = vmatprep.subr.mxu0 0.0
    %v4142 = vand.u32 %v1551, 4294901760
    %4143 = vmatpush1.msra.mxu0 %v4142
    %4144 = vmatprep.subr.mxu0 0.0
    %4145 = vmatpush1.msra.mxu0 0.0
    %4146 = vmatprep.subr.mxu0 0.0
    %4147 = vmatpush1.msra.mxu0 0.0
    %4148 = vmatprep.subr.mxu0 0.0
    %4149 = vmatpush1.msra.mxu0 0.0
    %4150 = vmatprep.subr.mxu0 0.0
    %4151 = vmatpush1.msra.mxu0 0.0
    %4152 = vmatprep.subr.mxu0 0.0
    %4153 = vmatpush1.msra.mxu0 0.0
    %4154 = vmatprep.subr.mxu0 0.0
    %4155 = vmatpush1.msra.mxu0 0.0
    %4156 = vmatprep.subr.mxu0 0.0
    %4157 = vmatpush1.msra.mxu0 0.0
    %4158 = vmatprep.subr.mxu0 0.0
    %4159 = vmatpush1.msra.mxu0 0.0
    %4160 = vmatprep.subr.mxu0 0.0
    %4161 = vmatpush1.msra.mxu0 0.0
    %4162 = vmatprep.subr.mxu0 0.0
    %4163 = vmatpush1.msra.mxu0 0.0
    %4164 = vmatprep.subr.mxu0 0.0
    %4165 = vmatpush1.msra.mxu0 0.0
    %4166 = vmatprep.subr.mxu0 0.0
    %4167 = vmatpush1.msra.mxu0 0.0
    %4168 = vmatprep.subr.mxu0 0.0
    %4169 = vmatpush1.msra.mxu0 0.0
    %4170 = vmatprep.subr.mxu0 0.0
    %4171 = vmatpush1.msra.mxu0 0.0
    %4172 = vmatprep.subr.mxu0 0.0
    %4173 = vmatpush1.msra.mxu0 0.0
    %4174 = vmatprep.subr.mxu0 0.0
    %4175 = vmatpush1.msra.mxu0 0.0
    %4176 = vmatprep.subr.mxu0 0.0
    %4177 = vmatpush1.msra.mxu0 0.0
    %4178 = vmatprep.subr.mxu0 0.0
    %4179 = vmatpush1.msra.mxu0 0.0
    %4180 = vmatprep.subr.mxu0 0.0
    %4181 = vmatpush1.msra.mxu0 0.0
    %4182 = vmatprep.subr.mxu0 0.0
    %4183 = vmatpush1.msra.mxu0 0.0
    %4184 = vmatprep.subr.mxu0 0.0
    %4185 = vmatpush1.msra.mxu0 0.0
    %4186 = vmatprep.subr.mxu0 0.0
    %4187 = vmatpush1.msra.mxu0 0.0
    %4188 = vmatprep.subr.mxu0 0.0
    %4189 = vmatpush1.msra.mxu0 0.0
    %4190 = vmatprep.subr.mxu0 0.0
    %4191 = vmatpush1.msra.mxu0 0.0
    %4192 = vmatprep.subr.mxu0 0.0
    %4193 = vmatpush1.msra.mxu0 0.0
    %4194 = vmatprep.subr.mxu0 0.0
    %4195 = vmatpush1.msra.mxu0 0.0
    %4196 = vmatprep.subr.mxu0 0.0
    %4197 = vmatpush1.msra.mxu0 0.0
    %4198 = vmatprep.subr.mxu0 0.0
    %4199 = vmatpush1.msra.mxu0 0.0
    %4200 = vmatprep.subr.mxu0 0.0
    %4201 = vmatpush1.msra.mxu0 0.0
    %4202 = vmatprep.subr.mxu0 0.0
    %4203 = vmatpush1.msra.mxu0 0.0
    %4204 = vmatprep.mubr.f32.mxu0 0.0
    %v4205 = vand.u32 %v3710, 4294901760
    %4206 = vmatmul.mubr.f32.gmra.mrb[0].mxu0 %v4205
    %v4207 = vpop.f32.mrb[0].mxu0
    %v4208 = vadd.f32 %v4129, %v4207
    %v4209 = vpop.f32.mrb[0].mxu0
    %4210 = vmatprep.mubr.f32.mxu0 0.0
    %v4211 = vand.u32 %v3713, 4294901760
    %4212 = vmatmul.mubr.f32.gmra.mrb[0].mxu0 %v4211
    %v4213 = vpop.f32.mrb[0].mxu0
    %v4214 = vadd.f32 %v4135, %v4213
    %v4215 = vpop.f32.mrb[0].mxu0
    %4216 = vdwg.mxu0
    %v4217 = vadd.f32 %v1517, %v4208
    %v4218 = vadd.f32 %v1518, %v4214
    %v4219 = vmax.f32 %v4217, 0.0
    %v4220 = vmax.f32 %v4218, 0.0
    %v4222 = vsel %vm2070, %v4219, 0
    %v4225 = vsel %vm2070, %v4220, 0
    %4227 = vmatprep.subr.mxu0 0.0
    %v4228 = vand.u32 %v1519, 4294901760
    %4229 = vmatpush1.msra.mxu0 %v4228
    %4230 = vmatprep.subr.mxu0 0.0
    %v4231 = vand.u32 %v1520, 4294901760
    %4232 = vmatpush1.msra.mxu0 %v4231
    %4233 = vmatprep.subr.mxu0 0.0
    %v4234 = vand.u32 %v1521, 4294901760
    %4235 = vmatpush1.msra.mxu0 %v4234
    %4236 = vmatprep.subr.mxu0 0.0
    %v4237 = vand.u32 %v1522, 4294901760
    %4238 = vmatpush1.msra.mxu0 %v4237
    %4239 = vmatprep.subr.mxu0 0.0
    %4240 = vmatpush1.msra.mxu0 0.0
    %4241 = vmatprep.subr.mxu0 0.0
    %4242 = vmatpush1.msra.mxu0 0.0
    %4243 = vmatprep.subr.mxu0 0.0
    %4244 = vmatpush1.msra.mxu0 0.0
    %4245 = vmatprep.subr.mxu0 0.0
    %4246 = vmatpush1.msra.mxu0 0.0
    %4247 = vmatprep.subr.mxu0 0.0
    %4248 = vmatpush1.msra.mxu0 0.0
    %4249 = vmatprep.subr.mxu0 0.0
    %4250 = vmatpush1.msra.mxu0 0.0
    %4251 = vmatprep.subr.mxu0 0.0
    %4252 = vmatpush1.msra.mxu0 0.0
    %4253 = vmatprep.subr.mxu0 0.0
    %4254 = vmatpush1.msra.mxu0 0.0
    %4255 = vmatprep.subr.mxu0 0.0
    %4256 = vmatpush1.msra.mxu0 0.0
    %4257 = vmatprep.subr.mxu0 0.0
    %4258 = vmatpush1.msra.mxu0 0.0
    %4259 = vmatprep.subr.mxu0 0.0
    %4260 = vmatpush1.msra.mxu0 0.0
    %4261 = vmatprep.subr.mxu0 0.0
    %4262 = vmatpush1.msra.mxu0 0.0
    %4263 = vmatprep.subr.mxu0 0.0
    %4264 = vmatpush1.msra.mxu0 0.0
    %4265 = vmatprep.subr.mxu0 0.0
    %4266 = vmatpush1.msra.mxu0 0.0
    %4267 = vmatprep.subr.mxu0 0.0
    %4268 = vmatpush1.msra.mxu0 0.0
    %4269 = vmatprep.subr.mxu0 0.0
    %4270 = vmatpush1.msra.mxu0 0.0
    %4271 = vmatprep.subr.mxu0 0.0
    %4272 = vmatpush1.msra.mxu0 0.0
    %4273 = vmatprep.subr.mxu0 0.0
    %4274 = vmatpush1.msra.mxu0 0.0
    %4275 = vmatprep.subr.mxu0 0.0
    %4276 = vmatpush1.msra.mxu0 0.0
    %4277 = vmatprep.subr.mxu0 0.0
    %4278 = vmatpush1.msra.mxu0 0.0
    %4279 = vmatprep.subr.mxu0 0.0
    %4280 = vmatpush1.msra.mxu0 0.0
    %4281 = vmatprep.subr.mxu0 0.0
    %4282 = vmatpush1.msra.mxu0 0.0
    %4283 = vmatprep.subr.mxu0 0.0
    %4284 = vmatpush1.msra.mxu0 0.0
    %4285 = vmatprep.subr.mxu0 0.0
    %4286 = vmatpush1.msra.mxu0 0.0
    %4287 = vmatprep.subr.mxu0 0.0
    %4288 = vmatpush1.msra.mxu0 0.0
    %4289 = vmatprep.subr.mxu0 0.0
    %4290 = vmatpush1.msra.mxu0 0.0
    %4291 = vmatprep.subr.mxu0 0.0
    %4292 = vmatpush1.msra.mxu0 0.0
    %4293 = vmatprep.subr.mxu0 0.0
    %4294 = vmatpush1.msra.mxu0 0.0
    %4295 = vmatprep.mubr.f32.mxu0 0.0
    %v4296 = vand.u32 %v4222, 4294901760
    %v4297 = vsub.f32 %v4222, %v4296
    %v4298 = vand.u32 %v4297, 4294901760
    %v4299 = vsub.f32 %v4297, %v4298
    %v4300 = vand.u32 %v4299, 4294901760
    %4301 = vmatmul.mubr.f32.gmra.mrb[0].mxu0 %v4300
    %v4302 = vpop.f32.mrb[0].mxu0
    %v4303 = vadd.f32 %v2069, %v4302
    %v4304 = vpop.f32.mrb[0].mxu0
    %4305 = vmatprep.mubr.f32.mxu0 0.0
    %v4306 = vand.u32 %v4225, 4294901760
    %v4307 = vsub.f32 %v4225, %v4306
    %v4308 = vand.u32 %v4307, 4294901760
    %v4309 = vsub.f32 %v4307, %v4308
    %v4310 = vand.u32 %v4309, 4294901760
    %4311 = vmatmul.mubr.f32.gmra.mrb[0].mxu0 %v4310
    %v4312 = vpop.f32.mrb[0].mxu0
    %v4313 = vadd.f32 %v2069, %v4312
    %v4314 = vpop.f32.mrb[0].mxu0
    %4315 = vdwg.mxu0
    %4316 = vmatprep.subr.mxu0 0.0
    %v4317 = vand.u32 %v1519, 4294901760
    %v4318 = vsub.f32 %v1519, %v4317
    %v4319 = vand.u32 %v4318, 4294901760
    %v4320 = vsub.f32 %v4318, %v4319
    %v4321 = vand.u32 %v4320, 4294901760
    %4322 = vmatpush1.msra.mxu0 %v4321
    %4323 = vmatprep.subr.mxu0 0.0
    %v4324 = vand.u32 %v1520, 4294901760
    %v4325 = vsub.f32 %v1520, %v4324
    %v4326 = vand.u32 %v4325, 4294901760
    %v4327 = vsub.f32 %v4325, %v4326
    %v4328 = vand.u32 %v4327, 4294901760
    %4329 = vmatpush1.msra.mxu0 %v4328
    %4330 = vmatprep.subr.mxu0 0.0
    %v4331 = vand.u32 %v1521, 4294901760
    %v4332 = vsub.f32 %v1521, %v4331
    %v4333 = vand.u32 %v4332, 4294901760
    %v4334 = vsub.f32 %v4332, %v4333
    %v4335 = vand.u32 %v4334, 4294901760
    %4336 = vmatpush1.msra.mxu0 %v4335
    %4337 = vmatprep.subr.mxu0 0.0
    %v4338 = vand.u32 %v1522, 4294901760
    %v4339 = vsub.f32 %v1522, %v4338
    %v4340 = vand.u32 %v4339, 4294901760
    %v4341 = vsub.f32 %v4339, %v4340
    %v4342 = vand.u32 %v4341, 4294901760
    %4343 = vmatpush1.msra.mxu0 %v4342
    %4344 = vmatprep.subr.mxu0 0.0
    %4345 = vmatpush1.msra.mxu0 0.0
    %4346 = vmatprep.subr.mxu0 0.0
    %4347 = vmatpush1.msra.mxu0 0.0
    %4348 = vmatprep.subr.mxu0 0.0
    %4349 = vmatpush1.msra.mxu0 0.0
    %4350 = vmatprep.subr.mxu0 0.0
    %4351 = vmatpush1.msra.mxu0 0.0
    %4352 = vmatprep.subr.mxu0 0.0
    %4353 = vmatpush1.msra.mxu0 0.0
    %4354 = vmatprep.subr.mxu0 0.0
    %4355 = vmatpush1.msra.mxu0 0.0
    %4356 = vmatprep.subr.mxu0 0.0
    %4357 = vmatpush1.msra.mxu0 0.0
    %4358 = vmatprep.subr.mxu0 0.0
    %4359 = vmatpush1.msra.mxu0 0.0
    %4360 = vmatprep.subr.mxu0 0.0
    %4361 = vmatpush1.msra.mxu0 0.0
    %4362 = vmatprep.subr.mxu0 0.0
    %4363 = vmatpush1.msra.mxu0 0.0
    %4364 = vmatprep.subr.mxu0 0.0
    %4365 = vmatpush1.msra.mxu0 0.0
    %4366 = vmatprep.subr.mxu0 0.0
    %4367 = vmatpush1.msra.mxu0 0.0
    %4368 = vmatprep.subr.mxu0 0.0
    %4369 = vmatpush1.msra.mxu0 0.0
    %4370 = vmatprep.subr.mxu0 0.0
    %4371 = vmatpush1.msra.mxu0 0.0
    %4372 = vmatprep.subr.mxu0 0.0
    %4373 = vmatpush1.msra.mxu0 0.0
    %4374 = vmatprep.subr.mxu0 0.0
    %4375 = vmatpush1.msra.mxu0 0.0
    %4376 = vmatprep.subr.mxu0 0.0
    %4377 = vmatpush1.msra.mxu0 0.0
    %4378 = vmatprep.subr.mxu0 0.0
    %4379 = vmatpush1.msra.mxu0 0.0
    %4380 = vmatprep.subr.mxu0 0.0
    %4381 = vmatpush1.msra.mxu0 0.0
    %4382 = vmatprep.subr.mxu0 0.0
    %4383 = vmatpush1.msra.mxu0 0.0
    %4384 = vmatprep.subr.mxu0 0.0
    %4385 = vmatpush1.msra.mxu0 0.0
    %4386 = vmatprep.subr.mxu0 0.0
    %4387 = vmatpush1.msra.mxu0 0.0
    %4388 = vmatprep.subr.mxu0 0.0
    %4389 = vmatpush1.msra.mxu0 0.0
    %4390 = vmatprep.subr.mxu0 0.0
    %4391 = vmatpush1.msra.mxu0 0.0
    %4392 = vmatprep.subr.mxu0 0.0
    %4393 = vmatpush1.msra.mxu0 0.0
    %4394 = vmatprep.subr.mxu0 0.0
    %4395 = vmatpush1.msra.mxu0 0.0
    %4396 = vmatprep.subr.mxu0 0.0
    %4397 = vmatpush1.msra.mxu0 0.0
    %4398 = vmatprep.subr.mxu0 0.0
    %4399 = vmatpush1.msra.mxu0 0.0
    %4400 = vmatprep.mubr.f32.mxu0 0.0
    %v4401 = vand.u32 %v4222, 4294901760
    %4402 = vmatmul.mubr.f32.gmra.mrb[0].mxu0 %v4401
    %v4403 = vpop.f32.mrb[0].mxu0
    %v4404 = vadd.f32 %v4303, %v4403
    %v4405 = vpop.f32.mrb[0].mxu0
    %4406 = vmatprep.mubr.f32.mxu0 0.0
    %v4407 = vand.u32 %v4225, 4294901760
    %4408 = vmatmul.mubr.f32.gmra.mrb[0].mxu0 %v4407
    %v4409 = vpop.f32.mrb[0].mxu0
    %v4410 = vadd.f32 %v4313, %v4409
    %v4411 = vpop.f32.mrb[0].mxu0
    %4412 = vdwg.mxu0
    %4413 = vmatprep.subr.mxu0 0.0
    %v4414 = vand.u32 %v1519, 4294901760
    %v4415 = vsub.f32 %v1519, %v4414
    %4416 = vmatpush1.msra.mxu0 %v4415
    %4417 = vmatprep.subr.mxu0 0.0
    %v4418 = vand.u32 %v1520, 4294901760
    %v4419 = vsub.f32 %v1520, %v4418
    %4420 = vmatpush1.msra.mxu0 %v4419
    %4421 = vmatprep.subr.mxu0 0.0
    %v4422 = vand.u32 %v1521, 4294901760
    %v4423 = vsub.f32 %v1521, %v4422
    %4424 = vmatpush1.msra.mxu0 %v4423
    %4425 = vmatprep.subr.mxu0 0.0
    %v4426 = vand.u32 %v1522, 4294901760
    %v4427 = vsub.f32 %v1522, %v4426
    %4428 = vmatpush1.msra.mxu0 %v4427
    %4429 = vmatprep.subr.mxu0 0.0
    %4430 = vmatpush1.msra.mxu0 0.0
    %4431 = vmatprep.subr.mxu0 0.0
    %4432 = vmatpush1.msra.mxu0 0.0
    %4433 = vmatprep.subr.mxu0 0.0
    %4434 = vmatpush1.msra.mxu0 0.0
    %4435 = vmatprep.subr.mxu0 0.0
    %4436 = vmatpush1.msra.mxu0 0.0
    %4437 = vmatprep.subr.mxu0 0.0
    %4438 = vmatpush1.msra.mxu0 0.0
    %4439 = vmatprep.subr.mxu0 0.0
    %4440 = vmatpush1.msra.mxu0 0.0
    %4441 = vmatprep.subr.mxu0 0.0
    %4442 = vmatpush1.msra.mxu0 0.0
    %4443 = vmatprep.subr.mxu0 0.0
    %4444 = vmatpush1.msra.mxu0 0.0
    %4445 = vmatprep.subr.mxu0 0.0
    %4446 = vmatpush1.msra.mxu0 0.0
    %4447 = vmatprep.subr.mxu0 0.0
    %4448 = vmatpush1.msra.mxu0 0.0
    %4449 = vmatprep.subr.mxu0 0.0
    %4450 = vmatpush1.msra.mxu0 0.0
    %4451 = vmatprep.subr.mxu0 0.0
    %4452 = vmatpush1.msra.mxu0 0.0
    %4453 = vmatprep.subr.mxu0 0.0
    %4454 = vmatpush1.msra.mxu0 0.0
    %4455 = vmatprep.subr.mxu0 0.0
    %4456 = vmatpush1.msra.mxu0 0.0
    %4457 = vmatprep.subr.mxu0 0.0
    %4458 = vmatpush1.msra.mxu0 0.0
    %4459 = vmatprep.subr.mxu0 0.0
    %4460 = vmatpush1.msra.mxu0 0.0
    %4461 = vmatprep.subr.mxu0 0.0
    %4462 = vmatpush1.msra.mxu0 0.0
    %4463 = vmatprep.subr.mxu0 0.0
    %4464 = vmatpush1.msra.mxu0 0.0
    %4465 = vmatprep.subr.mxu0 0.0
    %4466 = vmatpush1.msra.mxu0 0.0
    %4467 = vmatprep.subr.mxu0 0.0
    %4468 = vmatpush1.msra.mxu0 0.0
    %4469 = vmatprep.subr.mxu0 0.0
    %4470 = vmatpush1.msra.mxu0 0.0
    %4471 = vmatprep.subr.mxu0 0.0
    %4472 = vmatpush1.msra.mxu0 0.0
    %4473 = vmatprep.subr.mxu0 0.0
    %4474 = vmatpush1.msra.mxu0 0.0
    %4475 = vmatprep.subr.mxu0 0.0
    %4476 = vmatpush1.msra.mxu0 0.0
    %4477 = vmatprep.subr.mxu0 0.0
    %4478 = vmatpush1.msra.mxu0 0.0
    %4479 = vmatprep.subr.mxu0 0.0
    %4480 = vmatpush1.msra.mxu0 0.0
    %4481 = vmatprep.subr.mxu0 0.0
    %4482 = vmatpush1.msra.mxu0 0.0
    %4483 = vmatprep.subr.mxu0 0.0
    %4484 = vmatpush1.msra.mxu0 0.0
    %4485 = vmatprep.mubr.f32.mxu0 0.0
    %v4486 = vand.u32 %v4222, 4294901760
    %v4487 = vsub.f32 %v4222, %v4486
    %4488 = vmatmul.mubr.f32.gmra.mrb[0].mxu0 %v4487
    %v4489 = vpop.f32.mrb[0].mxu0
    %v4490 = vadd.f32 %v4404, %v4489
    %v4491 = vpop.f32.mrb[0].mxu0
    %4492 = vmatprep.mubr.f32.mxu0 0.0
    %v4493 = vand.u32 %v4225, 4294901760
    %v4494 = vsub.f32 %v4225, %v4493
    %4495 = vmatmul.mubr.f32.gmra.mrb[0].mxu0 %v4494
    %v4496 = vpop.f32.mrb[0].mxu0
    %v4497 = vadd.f32 %v4410, %v4496
    %v4498 = vpop.f32.mrb[0].mxu0
    %4499 = vdwg.mxu0
    %4500 = vmatprep.subr.mxu0 0.0
    %v4501 = vand.u32 %v1519, 4294901760
    %4502 = vmatpush1.msra.mxu0 %v4501
    %4503 = vmatprep.subr.mxu0 0.0
    %v4504 = vand.u32 %v1520, 4294901760
    %4505 = vmatpush1.msra.mxu0 %v4504
    %4506 = vmatprep.subr.mxu0 0.0
    %v4507 = vand.u32 %v1521, 4294901760
    %4508 = vmatpush1.msra.mxu0 %v4507
    %4509 = vmatprep.subr.mxu0 0.0
    %v4510 = vand.u32 %v1522, 4294901760
    %4511 = vmatpush1.msra.mxu0 %v4510
    %4512 = vmatprep.subr.mxu0 0.0
    %4513 = vmatpush1.msra.mxu0 0.0
    %4514 = vmatprep.subr.mxu0 0.0
    %4515 = vmatpush1.msra.mxu0 0.0
    %4516 = vmatprep.subr.mxu0 0.0
    %4517 = vmatpush1.msra.mxu0 0.0
    %4518 = vmatprep.subr.mxu0 0.0
    %4519 = vmatpush1.msra.mxu0 0.0
    %4520 = vmatprep.subr.mxu0 0.0
    %4521 = vmatpush1.msra.mxu0 0.0
    %4522 = vmatprep.subr.mxu0 0.0
    %4523 = vmatpush1.msra.mxu0 0.0
    %4524 = vmatprep.subr.mxu0 0.0
    %4525 = vmatpush1.msra.mxu0 0.0
    %4526 = vmatprep.subr.mxu0 0.0
    %4527 = vmatpush1.msra.mxu0 0.0
    %4528 = vmatprep.subr.mxu0 0.0
    %4529 = vmatpush1.msra.mxu0 0.0
    %4530 = vmatprep.subr.mxu0 0.0
    %4531 = vmatpush1.msra.mxu0 0.0
    %4532 = vmatprep.subr.mxu0 0.0
    %4533 = vmatpush1.msra.mxu0 0.0
    %4534 = vmatprep.subr.mxu0 0.0
    %4535 = vmatpush1.msra.mxu0 0.0
    %4536 = vmatprep.subr.mxu0 0.0
    %4537 = vmatpush1.msra.mxu0 0.0
    %4538 = vmatprep.subr.mxu0 0.0
    %4539 = vmatpush1.msra.mxu0 0.0
    %4540 = vmatprep.subr.mxu0 0.0
    %4541 = vmatpush1.msra.mxu0 0.0
    %4542 = vmatprep.subr.mxu0 0.0
    %4543 = vmatpush1.msra.mxu0 0.0
    %4544 = vmatprep.subr.mxu0 0.0
    %4545 = vmatpush1.msra.mxu0 0.0
    %4546 = vmatprep.subr.mxu0 0.0
    %4547 = vmatpush1.msra.mxu0 0.0
    %4548 = vmatprep.subr.mxu0 0.0
    %4549 = vmatpush1.msra.mxu0 0.0
    %4550 = vmatprep.subr.mxu0 0.0
    %4551 = vmatpush1.msra.mxu0 0.0
    %4552 = vmatprep.subr.mxu0 0.0
    %4553 = vmatpush1.msra.mxu0 0.0
    %4554 = vmatprep.subr.mxu0 0.0
    %4555 = vmatpush1.msra.mxu0 0.0
    %4556 = vmatprep.subr.mxu0 0.0
    %4557 = vmatpush1.msra.mxu0 0.0
    %4558 = vmatprep.subr.mxu0 0.0
    %4559 = vmatpush1.msra.mxu0 0.0
    %4560 = vmatprep.subr.mxu0 0.0
    %4561 = vmatpush1.msra.mxu0 0.0
    %4562 = vmatprep.subr.mxu0 0.0
    %4563 = vmatpush1.msra.mxu0 0.0
    %4564 = vmatprep.subr.mxu0 0.0
    %4565 = vmatpush1.msra.mxu0 0.0
    %4566 = vmatprep.subr.mxu0 0.0
    %4567 = vmatpush1.msra.mxu0 0.0
    %4568 = vmatprep.mubr.f32.mxu0 0.0
    %v4569 = vand.u32 %v4222, 4294901760
    %v4570 = vsub.f32 %v4222, %v4569
    %v4571 = vand.u32 %v4570, 4294901760
    %4572 = vmatmul.mubr.f32.gmra.mrb[0].mxu0 %v4571
    %v4573 = vpop.f32.mrb[0].mxu0
    %v4574 = vadd.f32 %v4490, %v4573
    %v4575 = vpop.f32.mrb[0].mxu0
    %4576 = vmatprep.mubr.f32.mxu0 0.0
    %v4577 = vand.u32 %v4225, 4294901760
    %v4578 = vsub.f32 %v4225, %v4577
    %v4579 = vand.u32 %v4578, 4294901760
    %4580 = vmatmul.mubr.f32.gmra.mrb[0].mxu0 %v4579
    %v4581 = vpop.f32.mrb[0].mxu0
    %v4582 = vadd.f32 %v4497, %v4581
    %v4583 = vpop.f32.mrb[0].mxu0
    %4584 = vdwg.mxu0
    %4585 = vmatprep.subr.mxu0 0.0
    %v4586 = vand.u32 %v1519, 4294901760
    %v4587 = vsub.f32 %v1519, %v4586
    %v4588 = vand.u32 %v4587, 4294901760
    %4589 = vmatpush1.msra.mxu0 %v4588
    %4590 = vmatprep.subr.mxu0 0.0
    %v4591 = vand.u32 %v1520, 4294901760
    %v4592 = vsub.f32 %v1520, %v4591
    %v4593 = vand.u32 %v4592, 4294901760
    %4594 = vmatpush1.msra.mxu0 %v4593
    %4595 = vmatprep.subr.mxu0 0.0
    %v4596 = vand.u32 %v1521, 4294901760
    %v4597 = vsub.f32 %v1521, %v4596
    %v4598 = vand.u32 %v4597, 4294901760
    %4599 = vmatpush1.msra.mxu0 %v4598
    %4600 = vmatprep.subr.mxu0 0.0
    %v4601 = vand.u32 %v1522, 4294901760
    %v4602 = vsub.f32 %v1522, %v4601
    %v4603 = vand.u32 %v4602, 4294901760
    %4604 = vmatpush1.msra.mxu0 %v4603
    %4605 = vmatprep.subr.mxu0 0.0
    %4606 = vmatpush1.msra.mxu0 0.0
    %4607 = vmatprep.subr.mxu0 0.0
    %4608 = vmatpush1.msra.mxu0 0.0
    %4609 = vmatprep.subr.mxu0 0.0
    %4610 = vmatpush1.msra.mxu0 0.0
    %4611 = vmatprep.subr.mxu0 0.0
    %4612 = vmatpush1.msra.mxu0 0.0
    %4613 = vmatprep.subr.mxu0 0.0
    %4614 = vmatpush1.msra.mxu0 0.0
    %4615 = vmatprep.subr.mxu0 0.0
    %4616 = vmatpush1.msra.mxu0 0.0
    %4617 = vmatprep.subr.mxu0 0.0
    %4618 = vmatpush1.msra.mxu0 0.0
    %4619 = vmatprep.subr.mxu0 0.0
    %4620 = vmatpush1.msra.mxu0 0.0
    %4621 = vmatprep.subr.mxu0 0.0
    %4622 = vmatpush1.msra.mxu0 0.0
    %4623 = vmatprep.subr.mxu0 0.0
    %4624 = vmatpush1.msra.mxu0 0.0
    %4625 = vmatprep.subr.mxu0 0.0
    %4626 = vmatpush1.msra.mxu0 0.0
    %4627 = vmatprep.subr.mxu0 0.0
    %4628 = vmatpush1.msra.mxu0 0.0
    %4629 = vmatprep.subr.mxu0 0.0
    %4630 = vmatpush1.msra.mxu0 0.0
    %4631 = vmatprep.subr.mxu0 0.0
    %4632 = vmatpush1.msra.mxu0 0.0
    %4633 = vmatprep.subr.mxu0 0.0
    %4634 = vmatpush1.msra.mxu0 0.0
    %4635 = vmatprep.subr.mxu0 0.0
    %4636 = vmatpush1.msra.mxu0 0.0
    %4637 = vmatprep.subr.mxu0 0.0
    %4638 = vmatpush1.msra.mxu0 0.0
    %4639 = vmatprep.subr.mxu0 0.0
    %4640 = vmatpush1.msra.mxu0 0.0
    %4641 = vmatprep.subr.mxu0 0.0
    %4642 = vmatpush1.msra.mxu0 0.0
    %4643 = vmatprep.subr.mxu0 0.0
    %4644 = vmatpush1.msra.mxu0 0.0
    %4645 = vmatprep.subr.mxu0 0.0
    %4646 = vmatpush1.msra.mxu0 0.0
    %4647 = vmatprep.subr.mxu0 0.0
    %4648 = vmatpush1.msra.mxu0 0.0
    %4649 = vmatprep.subr.mxu0 0.0
    %4650 = vmatpush1.msra.mxu0 0.0
    %4651 = vmatprep.subr.mxu0 0.0
    %4652 = vmatpush1.msra.mxu0 0.0
    %4653 = vmatprep.subr.mxu0 0.0
    %4654 = vmatpush1.msra.mxu0 0.0
    %4655 = vmatprep.subr.mxu0 0.0
    %4656 = vmatpush1.msra.mxu0 0.0
    %4657 = vmatprep.subr.mxu0 0.0
    %4658 = vmatpush1.msra.mxu0 0.0
    %4659 = vmatprep.subr.mxu0 0.0
    %4660 = vmatpush1.msra.mxu0 0.0
    %4661 = vmatprep.mubr.f32.mxu0 0.0
    %v4662 = vand.u32 %v4222, 4294901760
    %4663 = vmatmul.mubr.f32.gmra.mrb[0].mxu0 %v4662
    %v4664 = vpop.f32.mrb[0].mxu0
    %v4665 = vadd.f32 %v4574, %v4664
    %v4666 = vpop.f32.mrb[0].mxu0
    %4667 = vmatprep.mubr.f32.mxu0 0.0
    %v4668 = vand.u32 %v4225, 4294901760
    %4669 = vmatmul.mubr.f32.gmra.mrb[0].mxu0 %v4668
    %v4670 = vpop.f32.mrb[0].mxu0
    %v4671 = vadd.f32 %v4582, %v4670
    %v4672 = vpop.f32.mrb[0].mxu0
    %4673 = vdwg.mxu0
    %4674 = vmatprep.subr.mxu0 0.0
    %v4675 = vand.u32 %v1519, 4294901760
    %4676 = vmatpush1.msra.mxu0 %v4675
    %4677 = vmatprep.subr.mxu0 0.0
    %v4678 = vand.u32 %v1520, 4294901760
    %4679 = vmatpush1.msra.mxu0 %v4678
    %4680 = vmatprep.subr.mxu0 0.0
    %v4681 = vand.u32 %v1521, 4294901760
    %4682 = vmatpush1.msra.mxu0 %v4681
    %4683 = vmatprep.subr.mxu0 0.0
    %v4684 = vand.u32 %v1522, 4294901760
    %4685 = vmatpush1.msra.mxu0 %v4684
    %4686 = vmatprep.subr.mxu0 0.0
    %4687 = vmatpush1.msra.mxu0 0.0
    %4688 = vmatprep.subr.mxu0 0.0
    %4689 = vmatpush1.msra.mxu0 0.0
    %4690 = vmatprep.subr.mxu0 0.0
    %4691 = vmatpush1.msra.mxu0 0.0
    %4692 = vmatprep.subr.mxu0 0.0
    %4693 = vmatpush1.msra.mxu0 0.0
    %4694 = vmatprep.subr.mxu0 0.0
    %4695 = vmatpush1.msra.mxu0 0.0
    %4696 = vmatprep.subr.mxu0 0.0
    %4697 = vmatpush1.msra.mxu0 0.0
    %4698 = vmatprep.subr.mxu0 0.0
    %4699 = vmatpush1.msra.mxu0 0.0
    %4700 = vmatprep.subr.mxu0 0.0
    %4701 = vmatpush1.msra.mxu0 0.0
    %4702 = vmatprep.subr.mxu0 0.0
    %4703 = vmatpush1.msra.mxu0 0.0
    %4704 = vmatprep.subr.mxu0 0.0
    %4705 = vmatpush1.msra.mxu0 0.0
    %4706 = vmatprep.subr.mxu0 0.0
    %4707 = vmatpush1.msra.mxu0 0.0
    %4708 = vmatprep.subr.mxu0 0.0
    %4709 = vmatpush1.msra.mxu0 0.0
    %4710 = vmatprep.subr.mxu0 0.0
    %4711 = vmatpush1.msra.mxu0 0.0
    %4712 = vmatprep.subr.mxu0 0.0
    %4713 = vmatpush1.msra.mxu0 0.0
    %4714 = vmatprep.subr.mxu0 0.0
    %4715 = vmatpush1.msra.mxu0 0.0
    %4716 = vmatprep.subr.mxu0 0.0
    %4717 = vmatpush1.msra.mxu0 0.0
    %4718 = vmatprep.subr.mxu0 0.0
    %4719 = vmatpush1.msra.mxu0 0.0
    %4720 = vmatprep.subr.mxu0 0.0
    %4721 = vmatpush1.msra.mxu0 0.0
    %4722 = vmatprep.subr.mxu0 0.0
    %4723 = vmatpush1.msra.mxu0 0.0
    %4724 = vmatprep.subr.mxu0 0.0
    %4725 = vmatpush1.msra.mxu0 0.0
    %4726 = vmatprep.subr.mxu0 0.0
    %4727 = vmatpush1.msra.mxu0 0.0
    %4728 = vmatprep.subr.mxu0 0.0
    %4729 = vmatpush1.msra.mxu0 0.0
    %4730 = vmatprep.subr.mxu0 0.0
    %4731 = vmatpush1.msra.mxu0 0.0
    %4732 = vmatprep.subr.mxu0 0.0
    %4733 = vmatpush1.msra.mxu0 0.0
    %4734 = vmatprep.subr.mxu0 0.0
    %4735 = vmatpush1.msra.mxu0 0.0
    %4736 = vmatprep.subr.mxu0 0.0
    %4737 = vmatpush1.msra.mxu0 0.0
    %4738 = vmatprep.subr.mxu0 0.0
    %4739 = vmatpush1.msra.mxu0 0.0
    %4740 = vmatprep.subr.mxu0 0.0
    %4741 = vmatpush1.msra.mxu0 0.0
    %4742 = vmatprep.mubr.f32.mxu0 0.0
    %v4743 = vand.u32 %v4222, 4294901760
    %4744 = vmatmul.mubr.f32.gmra.mrb[0].mxu0 %v4743
    %v4745 = vpop.f32.mrb[0].mxu0
    %v4746 = vadd.f32 %v4665, %v4745
    %v4747 = vpop.f32.mrb[0].mxu0
    %4748 = vmatprep.mubr.f32.mxu0 0.0
    %v4749 = vand.u32 %v4225, 4294901760
    %4750 = vmatmul.mubr.f32.gmra.mrb[0].mxu0 %v4749
    %v4751 = vpop.f32.mrb[0].mxu0
    %v4752 = vadd.f32 %v4671, %v4751
    %v4753 = vpop.f32.mrb[0].mxu0
    %4754 = vdwg.mxu0
    %v4755 = vmax.f32 %v4746, 0.0
    %v4756 = vmax.f32 %v4752, 0.0
    %v4757 = vmul.f32 %v4755, %v2610
    %v4758 = vmul.f32 %v4756, %v2610
    %v4759 = vmax.f32 %v3685, %v4757
    %v4760 = vmax.f32 %v3686, %v4758
    %v4761 = vsel %vm3705, 1e+30, %v3687
    %v4762 = vsel %vm3706, 1e+30, %v3688
    %v4763 = vsel %vm1525, %v4761, inf
    %4764 = vmin.xlane.f32.xlu0 %v4763
    %v4765 = vpop.xlane.xlu0 %4764
    %v4766 = vsel %vm1525, %v4762, inf
    %4767 = vmin.xlane.f32.xlu0 %v4766
    %v4768 = vpop.xlane.xlu0 %4767
    %vm4769 = vcmp.le.f32.partialorder %v4761, %v4765
    %vm4770 = vcmp.le.f32.partialorder %v4762, %v4768
    %v4771 = vsel %vm4769, %v30, 16.0
    %v4772 = vsel %vm4770, %v30, 16.0
    %v4773 = vsel %vm1525, %v4771, inf
    %4774 = vmin.xlane.f32.xlu0 %v4773
    %v4775 = vpop.xlane.xlu0 %4774
    %v4776 = vsel %vm1525, %v4772, inf
    %4777 = vmin.xlane.f32.xlu0 %v4776
    %v4778 = vpop.xlane.xlu0 %4777
    %vm4779 = vcmp.eq.f32.partialorder %v30, %v4775
    %vm4780 = vcmp.eq.f32.partialorder %v30, %v4778
    %v4781 = vsel %vm4779, 1.0, 0.0
    %v4782 = vsel %vm4780, 1.0, 0.0
    %v4784 = vsel %vm1525, %v4781, 0
    %v4787 = vsel %vm1525, %v4782, 0
    %4789 = vmatprep.subr.mxu0 0.0
    %v4790 = vand.u32 %v1549, 4294901760
    %4791 = vmatpush1.msra.mxu0 %v4790
    %4792 = vmatprep.subr.mxu0 0.0
    %v4793 = vand.u32 %v1551, 4294901760
    %4794 = vmatpush1.msra.mxu0 %v4793
    %4795 = vmatprep.subr.mxu0 0.0
    %4796 = vmatpush1.msra.mxu0 0.0
    %4797 = vmatprep.subr.mxu0 0.0
    %4798 = vmatpush1.msra.mxu0 0.0
    %4799 = vmatprep.subr.mxu0 0.0
    %4800 = vmatpush1.msra.mxu0 0.0
    %4801 = vmatprep.subr.mxu0 0.0
    %4802 = vmatpush1.msra.mxu0 0.0
    %4803 = vmatprep.subr.mxu0 0.0
    %4804 = vmatpush1.msra.mxu0 0.0
    %4805 = vmatprep.subr.mxu0 0.0
    %4806 = vmatpush1.msra.mxu0 0.0
    %4807 = vmatprep.subr.mxu0 0.0
    %4808 = vmatpush1.msra.mxu0 0.0
    %4809 = vmatprep.subr.mxu0 0.0
    %4810 = vmatpush1.msra.mxu0 0.0
    %4811 = vmatprep.subr.mxu0 0.0
    %4812 = vmatpush1.msra.mxu0 0.0
    %4813 = vmatprep.subr.mxu0 0.0
    %4814 = vmatpush1.msra.mxu0 0.0
    %4815 = vmatprep.subr.mxu0 0.0
    %4816 = vmatpush1.msra.mxu0 0.0
    %4817 = vmatprep.subr.mxu0 0.0
    %4818 = vmatpush1.msra.mxu0 0.0
    %4819 = vmatprep.subr.mxu0 0.0
    %4820 = vmatpush1.msra.mxu0 0.0
    %4821 = vmatprep.subr.mxu0 0.0
    %4822 = vmatpush1.msra.mxu0 0.0
    %4823 = vmatprep.subr.mxu0 0.0
    %4824 = vmatpush1.msra.mxu0 0.0
    %4825 = vmatprep.subr.mxu0 0.0
    %4826 = vmatpush1.msra.mxu0 0.0
    %4827 = vmatprep.subr.mxu0 0.0
    %4828 = vmatpush1.msra.mxu0 0.0
    %4829 = vmatprep.subr.mxu0 0.0
    %4830 = vmatpush1.msra.mxu0 0.0
    %4831 = vmatprep.subr.mxu0 0.0
    %4832 = vmatpush1.msra.mxu0 0.0
    %4833 = vmatprep.subr.mxu0 0.0
    %4834 = vmatpush1.msra.mxu0 0.0
    %4835 = vmatprep.subr.mxu0 0.0
    %4836 = vmatpush1.msra.mxu0 0.0
    %4837 = vmatprep.subr.mxu0 0.0
    %4838 = vmatpush1.msra.mxu0 0.0
    %4839 = vmatprep.subr.mxu0 0.0
    %4840 = vmatpush1.msra.mxu0 0.0
    %4841 = vmatprep.subr.mxu0 0.0
    %4842 = vmatpush1.msra.mxu0 0.0
    %4843 = vmatprep.subr.mxu0 0.0
    %4844 = vmatpush1.msra.mxu0 0.0
    %4845 = vmatprep.subr.mxu0 0.0
    %4846 = vmatpush1.msra.mxu0 0.0
    %4847 = vmatprep.subr.mxu0 0.0
    %4848 = vmatpush1.msra.mxu0 0.0
    %4849 = vmatprep.subr.mxu0 0.0
    %4850 = vmatpush1.msra.mxu0 0.0
    %4851 = vmatprep.subr.mxu0 0.0
    %4852 = vmatpush1.msra.mxu0 0.0
    %4853 = vmatprep.subr.mxu0 0.0
    %4854 = vmatpush1.msra.mxu0 0.0
    %4855 = vmatprep.mubr.f32.mxu0 0.0
    %v4856 = vand.u32 %v4784, 4294901760
    %v4857 = vsub.f32 %v4784, %v4856
    %v4858 = vand.u32 %v4857, 4294901760
    %v4859 = vsub.f32 %v4857, %v4858
    %v4860 = vand.u32 %v4859, 4294901760
    %4861 = vmatmul.mubr.f32.gmra.mrb[0].mxu0 %v4860
    %v4862 = vpop.f32.mrb[0].mxu0
    %v4863 = vadd.f32 0.0, %v4862
    %v4864 = vpop.f32.mrb[0].mxu0
    %4865 = vmatprep.mubr.f32.mxu0 0.0
    %v4866 = vand.u32 %v4787, 4294901760
    %v4867 = vsub.f32 %v4787, %v4866
    %v4868 = vand.u32 %v4867, 4294901760
    %v4869 = vsub.f32 %v4867, %v4868
    %v4870 = vand.u32 %v4869, 4294901760
    %4871 = vmatmul.mubr.f32.gmra.mrb[0].mxu0 %v4870
    %v4872 = vpop.f32.mrb[0].mxu0
    %v4873 = vadd.f32 0.0, %v4872
    %v4874 = vpop.f32.mrb[0].mxu0
    %4875 = vdwg.mxu0
    %4876 = vmatprep.subr.mxu0 0.0
    %v4877 = vand.u32 %v1549, 4294901760
    %v4878 = vsub.f32 %v1549, %v4877
    %v4879 = vand.u32 %v4878, 4294901760
    %v4880 = vsub.f32 %v4878, %v4879
    %v4881 = vand.u32 %v4880, 4294901760
    %4882 = vmatpush1.msra.mxu0 %v4881
    %4883 = vmatprep.subr.mxu0 0.0
    %v4884 = vand.u32 %v1551, 4294901760
    %v4885 = vsub.f32 %v1551, %v4884
    %v4886 = vand.u32 %v4885, 4294901760
    %v4887 = vsub.f32 %v4885, %v4886
    %v4888 = vand.u32 %v4887, 4294901760
    %4889 = vmatpush1.msra.mxu0 %v4888
    %4890 = vmatprep.subr.mxu0 0.0
    %4891 = vmatpush1.msra.mxu0 0.0
    %4892 = vmatprep.subr.mxu0 0.0
    %4893 = vmatpush1.msra.mxu0 0.0
    %4894 = vmatprep.subr.mxu0 0.0
    %4895 = vmatpush1.msra.mxu0 0.0
    %4896 = vmatprep.subr.mxu0 0.0
    %4897 = vmatpush1.msra.mxu0 0.0
    %4898 = vmatprep.subr.mxu0 0.0
    %4899 = vmatpush1.msra.mxu0 0.0
    %4900 = vmatprep.subr.mxu0 0.0
    %4901 = vmatpush1.msra.mxu0 0.0
    %4902 = vmatprep.subr.mxu0 0.0
    %4903 = vmatpush1.msra.mxu0 0.0
    %4904 = vmatprep.subr.mxu0 0.0
    %4905 = vmatpush1.msra.mxu0 0.0
    %4906 = vmatprep.subr.mxu0 0.0
    %4907 = vmatpush1.msra.mxu0 0.0
    %4908 = vmatprep.subr.mxu0 0.0
    %4909 = vmatpush1.msra.mxu0 0.0
    %4910 = vmatprep.subr.mxu0 0.0
    %4911 = vmatpush1.msra.mxu0 0.0
    %4912 = vmatprep.subr.mxu0 0.0
    %4913 = vmatpush1.msra.mxu0 0.0
    %4914 = vmatprep.subr.mxu0 0.0
    %4915 = vmatpush1.msra.mxu0 0.0
    %4916 = vmatprep.subr.mxu0 0.0
    %4917 = vmatpush1.msra.mxu0 0.0
    %4918 = vmatprep.subr.mxu0 0.0
    %4919 = vmatpush1.msra.mxu0 0.0
    %4920 = vmatprep.subr.mxu0 0.0
    %4921 = vmatpush1.msra.mxu0 0.0
    %4922 = vmatprep.subr.mxu0 0.0
    %4923 = vmatpush1.msra.mxu0 0.0
    %4924 = vmatprep.subr.mxu0 0.0
    %4925 = vmatpush1.msra.mxu0 0.0
    %4926 = vmatprep.subr.mxu0 0.0
    %4927 = vmatpush1.msra.mxu0 0.0
    %4928 = vmatprep.subr.mxu0 0.0
    %4929 = vmatpush1.msra.mxu0 0.0
    %4930 = vmatprep.subr.mxu0 0.0
    %4931 = vmatpush1.msra.mxu0 0.0
    %4932 = vmatprep.subr.mxu0 0.0
    %4933 = vmatpush1.msra.mxu0 0.0
    %4934 = vmatprep.subr.mxu0 0.0
    %4935 = vmatpush1.msra.mxu0 0.0
    %4936 = vmatprep.subr.mxu0 0.0
    %4937 = vmatpush1.msra.mxu0 0.0
    %4938 = vmatprep.subr.mxu0 0.0
    %4939 = vmatpush1.msra.mxu0 0.0
    %4940 = vmatprep.subr.mxu0 0.0
    %4941 = vmatpush1.msra.mxu0 0.0
    %4942 = vmatprep.subr.mxu0 0.0
    %4943 = vmatpush1.msra.mxu0 0.0
    %4944 = vmatprep.subr.mxu0 0.0
    %4945 = vmatpush1.msra.mxu0 0.0
    %4946 = vmatprep.subr.mxu0 0.0
    %4947 = vmatpush1.msra.mxu0 0.0
    %4948 = vmatprep.subr.mxu0 0.0
    %4949 = vmatpush1.msra.mxu0 0.0
    %4950 = vmatprep.mubr.f32.mxu0 0.0
    %v4951 = vand.u32 %v4784, 4294901760
    %4952 = vmatmul.mubr.f32.gmra.mrb[0].mxu0 %v4951
    %v4953 = vpop.f32.mrb[0].mxu0
    %v4954 = vadd.f32 %v4863, %v4953
    %v4955 = vpop.f32.mrb[0].mxu0
    %4956 = vmatprep.mubr.f32.mxu0 0.0
    %v4957 = vand.u32 %v4787, 4294901760
    %4958 = vmatmul.mubr.f32.gmra.mrb[0].mxu0 %v4957
    %v4959 = vpop.f32.mrb[0].mxu0
    %v4960 = vadd.f32 %v4873, %v4959
    %v4961 = vpop.f32.mrb[0].mxu0
    %4962 = vdwg.mxu0
    %4963 = vmatprep.subr.mxu0 0.0
    %v4964 = vand.u32 %v1549, 4294901760
    %v4965 = vsub.f32 %v1549, %v4964
    %4966 = vmatpush1.msra.mxu0 %v4965
    %4967 = vmatprep.subr.mxu0 0.0
    %v4968 = vand.u32 %v1551, 4294901760
    %v4969 = vsub.f32 %v1551, %v4968
    %4970 = vmatpush1.msra.mxu0 %v4969
    %4971 = vmatprep.subr.mxu0 0.0
    %4972 = vmatpush1.msra.mxu0 0.0
    %4973 = vmatprep.subr.mxu0 0.0
    %4974 = vmatpush1.msra.mxu0 0.0
    %4975 = vmatprep.subr.mxu0 0.0
    %4976 = vmatpush1.msra.mxu0 0.0
    %4977 = vmatprep.subr.mxu0 0.0
    %4978 = vmatpush1.msra.mxu0 0.0
    %4979 = vmatprep.subr.mxu0 0.0
    %4980 = vmatpush1.msra.mxu0 0.0
    %4981 = vmatprep.subr.mxu0 0.0
    %4982 = vmatpush1.msra.mxu0 0.0
    %4983 = vmatprep.subr.mxu0 0.0
    %4984 = vmatpush1.msra.mxu0 0.0
    %4985 = vmatprep.subr.mxu0 0.0
    %4986 = vmatpush1.msra.mxu0 0.0
    %4987 = vmatprep.subr.mxu0 0.0
    %4988 = vmatpush1.msra.mxu0 0.0
    %4989 = vmatprep.subr.mxu0 0.0
    %4990 = vmatpush1.msra.mxu0 0.0
    %4991 = vmatprep.subr.mxu0 0.0
    %4992 = vmatpush1.msra.mxu0 0.0
    %4993 = vmatprep.subr.mxu0 0.0
    %4994 = vmatpush1.msra.mxu0 0.0
    %4995 = vmatprep.subr.mxu0 0.0
    %4996 = vmatpush1.msra.mxu0 0.0
    %4997 = vmatprep.subr.mxu0 0.0
    %4998 = vmatpush1.msra.mxu0 0.0
    %4999 = vmatprep.subr.mxu0 0.0
    %5000 = vmatpush1.msra.mxu0 0.0
    %5001 = vmatprep.subr.mxu0 0.0
    %5002 = vmatpush1.msra.mxu0 0.0
    %5003 = vmatprep.subr.mxu0 0.0
    %5004 = vmatpush1.msra.mxu0 0.0
    %5005 = vmatprep.subr.mxu0 0.0
    %5006 = vmatpush1.msra.mxu0 0.0
    %5007 = vmatprep.subr.mxu0 0.0
    %5008 = vmatpush1.msra.mxu0 0.0
    %5009 = vmatprep.subr.mxu0 0.0
    %5010 = vmatpush1.msra.mxu0 0.0
    %5011 = vmatprep.subr.mxu0 0.0
    %5012 = vmatpush1.msra.mxu0 0.0
    %5013 = vmatprep.subr.mxu0 0.0
    %5014 = vmatpush1.msra.mxu0 0.0
    %5015 = vmatprep.subr.mxu0 0.0
    %5016 = vmatpush1.msra.mxu0 0.0
    %5017 = vmatprep.subr.mxu0 0.0
    %5018 = vmatpush1.msra.mxu0 0.0
    %5019 = vmatprep.subr.mxu0 0.0
    %5020 = vmatpush1.msra.mxu0 0.0
    %5021 = vmatprep.subr.mxu0 0.0
    %5022 = vmatpush1.msra.mxu0 0.0
    %5023 = vmatprep.subr.mxu0 0.0
    %5024 = vmatpush1.msra.mxu0 0.0
    %5025 = vmatprep.subr.mxu0 0.0
    %5026 = vmatpush1.msra.mxu0 0.0
    %5027 = vmatprep.subr.mxu0 0.0
    %5028 = vmatpush1.msra.mxu0 0.0
    %5029 = vmatprep.subr.mxu0 0.0
    %5030 = vmatpush1.msra.mxu0 0.0
    %5031 = vmatprep.mubr.f32.mxu0 0.0
    %v5032 = vand.u32 %v4784, 4294901760
    %v5033 = vsub.f32 %v4784, %v5032
    %5034 = vmatmul.mubr.f32.gmra.mrb[0].mxu0 %v5033
    %v5035 = vpop.f32.mrb[0].mxu0
    %v5036 = vadd.f32 %v4954, %v5035
    %v5037 = vpop.f32.mrb[0].mxu0
    %5038 = vmatprep.mubr.f32.mxu0 0.0
    %v5039 = vand.u32 %v4787, 4294901760
    %v5040 = vsub.f32 %v4787, %v5039
    %5041 = vmatmul.mubr.f32.gmra.mrb[0].mxu0 %v5040
    %v5042 = vpop.f32.mrb[0].mxu0
    %v5043 = vadd.f32 %v4960, %v5042
    %v5044 = vpop.f32.mrb[0].mxu0
    %5045 = vdwg.mxu0
    %5046 = vmatprep.subr.mxu0 0.0
    %v5047 = vand.u32 %v1549, 4294901760
    %5048 = vmatpush1.msra.mxu0 %v5047
    %5049 = vmatprep.subr.mxu0 0.0
    %v5050 = vand.u32 %v1551, 4294901760
    %5051 = vmatpush1.msra.mxu0 %v5050
    %5052 = vmatprep.subr.mxu0 0.0
    %5053 = vmatpush1.msra.mxu0 0.0
    %5054 = vmatprep.subr.mxu0 0.0
    %5055 = vmatpush1.msra.mxu0 0.0
    %5056 = vmatprep.subr.mxu0 0.0
    %5057 = vmatpush1.msra.mxu0 0.0
    %5058 = vmatprep.subr.mxu0 0.0
    %5059 = vmatpush1.msra.mxu0 0.0
    %5060 = vmatprep.subr.mxu0 0.0
    %5061 = vmatpush1.msra.mxu0 0.0
    %5062 = vmatprep.subr.mxu0 0.0
    %5063 = vmatpush1.msra.mxu0 0.0
    %5064 = vmatprep.subr.mxu0 0.0
    %5065 = vmatpush1.msra.mxu0 0.0
    %5066 = vmatprep.subr.mxu0 0.0
    %5067 = vmatpush1.msra.mxu0 0.0
    %5068 = vmatprep.subr.mxu0 0.0
    %5069 = vmatpush1.msra.mxu0 0.0
    %5070 = vmatprep.subr.mxu0 0.0
    %5071 = vmatpush1.msra.mxu0 0.0
    %5072 = vmatprep.subr.mxu0 0.0
    %5073 = vmatpush1.msra.mxu0 0.0
    %5074 = vmatprep.subr.mxu0 0.0
    %5075 = vmatpush1.msra.mxu0 0.0
    %5076 = vmatprep.subr.mxu0 0.0
    %5077 = vmatpush1.msra.mxu0 0.0
    %5078 = vmatprep.subr.mxu0 0.0
    %5079 = vmatpush1.msra.mxu0 0.0
    %5080 = vmatprep.subr.mxu0 0.0
    %5081 = vmatpush1.msra.mxu0 0.0
    %5082 = vmatprep.subr.mxu0 0.0
    %5083 = vmatpush1.msra.mxu0 0.0
    %5084 = vmatprep.subr.mxu0 0.0
    %5085 = vmatpush1.msra.mxu0 0.0
    %5086 = vmatprep.subr.mxu0 0.0
    %5087 = vmatpush1.msra.mxu0 0.0
    %5088 = vmatprep.subr.mxu0 0.0
    %5089 = vmatpush1.msra.mxu0 0.0
    %5090 = vmatprep.subr.mxu0 0.0
    %5091 = vmatpush1.msra.mxu0 0.0
    %5092 = vmatprep.subr.mxu0 0.0
    %5093 = vmatpush1.msra.mxu0 0.0
    %5094 = vmatprep.subr.mxu0 0.0
    %5095 = vmatpush1.msra.mxu0 0.0
    %5096 = vmatprep.subr.mxu0 0.0
    %5097 = vmatpush1.msra.mxu0 0.0
    %5098 = vmatprep.subr.mxu0 0.0
    %5099 = vmatpush1.msra.mxu0 0.0
    %5100 = vmatprep.subr.mxu0 0.0
    %5101 = vmatpush1.msra.mxu0 0.0
    %5102 = vmatprep.subr.mxu0 0.0
    %5103 = vmatpush1.msra.mxu0 0.0
    %5104 = vmatprep.subr.mxu0 0.0
    %5105 = vmatpush1.msra.mxu0 0.0
    %5106 = vmatprep.subr.mxu0 0.0
    %5107 = vmatpush1.msra.mxu0 0.0
    %5108 = vmatprep.subr.mxu0 0.0
    %5109 = vmatpush1.msra.mxu0 0.0
    %5110 = vmatprep.subr.mxu0 0.0
    %5111 = vmatpush1.msra.mxu0 0.0
    %5112 = vmatprep.mubr.f32.mxu0 0.0
    %v5113 = vand.u32 %v4784, 4294901760
    %v5114 = vsub.f32 %v4784, %v5113
    %v5115 = vand.u32 %v5114, 4294901760
    %5116 = vmatmul.mubr.f32.gmra.mrb[0].mxu0 %v5115
    %v5117 = vpop.f32.mrb[0].mxu0
    %v5118 = vadd.f32 %v5036, %v5117
    %v5119 = vpop.f32.mrb[0].mxu0
    %5120 = vmatprep.mubr.f32.mxu0 0.0
    %v5121 = vand.u32 %v4787, 4294901760
    %v5122 = vsub.f32 %v4787, %v5121
    %v5123 = vand.u32 %v5122, 4294901760
    %5124 = vmatmul.mubr.f32.gmra.mrb[0].mxu0 %v5123
    %v5125 = vpop.f32.mrb[0].mxu0
    %v5126 = vadd.f32 %v5043, %v5125
    %v5127 = vpop.f32.mrb[0].mxu0
    %5128 = vdwg.mxu0
    %5129 = vmatprep.subr.mxu0 0.0
    %v5130 = vand.u32 %v1549, 4294901760
    %v5131 = vsub.f32 %v1549, %v5130
    %v5132 = vand.u32 %v5131, 4294901760
    %5133 = vmatpush1.msra.mxu0 %v5132
    %5134 = vmatprep.subr.mxu0 0.0
    %v5135 = vand.u32 %v1551, 4294901760
    %v5136 = vsub.f32 %v1551, %v5135
    %v5137 = vand.u32 %v5136, 4294901760
    %5138 = vmatpush1.msra.mxu0 %v5137
    %5139 = vmatprep.subr.mxu0 0.0
    %5140 = vmatpush1.msra.mxu0 0.0
    %5141 = vmatprep.subr.mxu0 0.0
    %5142 = vmatpush1.msra.mxu0 0.0
    %5143 = vmatprep.subr.mxu0 0.0
    %5144 = vmatpush1.msra.mxu0 0.0
    %5145 = vmatprep.subr.mxu0 0.0
    %5146 = vmatpush1.msra.mxu0 0.0
    %5147 = vmatprep.subr.mxu0 0.0
    %5148 = vmatpush1.msra.mxu0 0.0
    %5149 = vmatprep.subr.mxu0 0.0
    %5150 = vmatpush1.msra.mxu0 0.0
    %5151 = vmatprep.subr.mxu0 0.0
    %5152 = vmatpush1.msra.mxu0 0.0
    %5153 = vmatprep.subr.mxu0 0.0
    %5154 = vmatpush1.msra.mxu0 0.0
    %5155 = vmatprep.subr.mxu0 0.0
    %5156 = vmatpush1.msra.mxu0 0.0
    %5157 = vmatprep.subr.mxu0 0.0
    %5158 = vmatpush1.msra.mxu0 0.0
    %5159 = vmatprep.subr.mxu0 0.0
    %5160 = vmatpush1.msra.mxu0 0.0
    %5161 = vmatprep.subr.mxu0 0.0
    %5162 = vmatpush1.msra.mxu0 0.0
    %5163 = vmatprep.subr.mxu0 0.0
    %5164 = vmatpush1.msra.mxu0 0.0
    %5165 = vmatprep.subr.mxu0 0.0
    %5166 = vmatpush1.msra.mxu0 0.0
    %5167 = vmatprep.subr.mxu0 0.0
    %5168 = vmatpush1.msra.mxu0 0.0
    %5169 = vmatprep.subr.mxu0 0.0
    %5170 = vmatpush1.msra.mxu0 0.0
    %5171 = vmatprep.subr.mxu0 0.0
    %5172 = vmatpush1.msra.mxu0 0.0
    %5173 = vmatprep.subr.mxu0 0.0
    %5174 = vmatpush1.msra.mxu0 0.0
    %5175 = vmatprep.subr.mxu0 0.0
    %5176 = vmatpush1.msra.mxu0 0.0
    %5177 = vmatprep.subr.mxu0 0.0
    %5178 = vmatpush1.msra.mxu0 0.0
    %5179 = vmatprep.subr.mxu0 0.0
    %5180 = vmatpush1.msra.mxu0 0.0
    %5181 = vmatprep.subr.mxu0 0.0
    %5182 = vmatpush1.msra.mxu0 0.0
    %5183 = vmatprep.subr.mxu0 0.0
    %5184 = vmatpush1.msra.mxu0 0.0
    %5185 = vmatprep.subr.mxu0 0.0
    %5186 = vmatpush1.msra.mxu0 0.0
    %5187 = vmatprep.subr.mxu0 0.0
    %5188 = vmatpush1.msra.mxu0 0.0
    %5189 = vmatprep.subr.mxu0 0.0
    %5190 = vmatpush1.msra.mxu0 0.0
    %5191 = vmatprep.subr.mxu0 0.0
    %5192 = vmatpush1.msra.mxu0 0.0
    %5193 = vmatprep.subr.mxu0 0.0
    %5194 = vmatpush1.msra.mxu0 0.0
    %5195 = vmatprep.subr.mxu0 0.0
    %5196 = vmatpush1.msra.mxu0 0.0
    %5197 = vmatprep.subr.mxu0 0.0
    %5198 = vmatpush1.msra.mxu0 0.0
    %5199 = vmatprep.mubr.f32.mxu0 0.0
    %v5200 = vand.u32 %v4784, 4294901760
    %5201 = vmatmul.mubr.f32.gmra.mrb[0].mxu0 %v5200
    %v5202 = vpop.f32.mrb[0].mxu0
    %v5203 = vadd.f32 %v5118, %v5202
    %v5204 = vpop.f32.mrb[0].mxu0
    %5205 = vmatprep.mubr.f32.mxu0 0.0
    %v5206 = vand.u32 %v4787, 4294901760
    %5207 = vmatmul.mubr.f32.gmra.mrb[0].mxu0 %v5206
    %v5208 = vpop.f32.mrb[0].mxu0
    %v5209 = vadd.f32 %v5126, %v5208
    %v5210 = vpop.f32.mrb[0].mxu0
    %5211 = vdwg.mxu0
    %5212 = vmatprep.subr.mxu0 0.0
    %v5213 = vand.u32 %v1549, 4294901760
    %5214 = vmatpush1.msra.mxu0 %v5213
    %5215 = vmatprep.subr.mxu0 0.0
    %v5216 = vand.u32 %v1551, 4294901760
    %5217 = vmatpush1.msra.mxu0 %v5216
    %5218 = vmatprep.subr.mxu0 0.0
    %5219 = vmatpush1.msra.mxu0 0.0
    %5220 = vmatprep.subr.mxu0 0.0
    %5221 = vmatpush1.msra.mxu0 0.0
    %5222 = vmatprep.subr.mxu0 0.0
    %5223 = vmatpush1.msra.mxu0 0.0
    %5224 = vmatprep.subr.mxu0 0.0
    %5225 = vmatpush1.msra.mxu0 0.0
    %5226 = vmatprep.subr.mxu0 0.0
    %5227 = vmatpush1.msra.mxu0 0.0
    %5228 = vmatprep.subr.mxu0 0.0
    %5229 = vmatpush1.msra.mxu0 0.0
    %5230 = vmatprep.subr.mxu0 0.0
    %5231 = vmatpush1.msra.mxu0 0.0
    %5232 = vmatprep.subr.mxu0 0.0
    %5233 = vmatpush1.msra.mxu0 0.0
    %5234 = vmatprep.subr.mxu0 0.0
    %5235 = vmatpush1.msra.mxu0 0.0
    %5236 = vmatprep.subr.mxu0 0.0
    %5237 = vmatpush1.msra.mxu0 0.0
    %5238 = vmatprep.subr.mxu0 0.0
    %5239 = vmatpush1.msra.mxu0 0.0
    %5240 = vmatprep.subr.mxu0 0.0
    %5241 = vmatpush1.msra.mxu0 0.0
    %5242 = vmatprep.subr.mxu0 0.0
    %5243 = vmatpush1.msra.mxu0 0.0
    %5244 = vmatprep.subr.mxu0 0.0
    %5245 = vmatpush1.msra.mxu0 0.0
    %5246 = vmatprep.subr.mxu0 0.0
    %5247 = vmatpush1.msra.mxu0 0.0
    %5248 = vmatprep.subr.mxu0 0.0
    %5249 = vmatpush1.msra.mxu0 0.0
    %5250 = vmatprep.subr.mxu0 0.0
    %5251 = vmatpush1.msra.mxu0 0.0
    %5252 = vmatprep.subr.mxu0 0.0
    %5253 = vmatpush1.msra.mxu0 0.0
    %5254 = vmatprep.subr.mxu0 0.0
    %5255 = vmatpush1.msra.mxu0 0.0
    %5256 = vmatprep.subr.mxu0 0.0
    %5257 = vmatpush1.msra.mxu0 0.0
    %5258 = vmatprep.subr.mxu0 0.0
    %5259 = vmatpush1.msra.mxu0 0.0
    %5260 = vmatprep.subr.mxu0 0.0
    %5261 = vmatpush1.msra.mxu0 0.0
    %5262 = vmatprep.subr.mxu0 0.0
    %5263 = vmatpush1.msra.mxu0 0.0
    %5264 = vmatprep.subr.mxu0 0.0
    %5265 = vmatpush1.msra.mxu0 0.0
    %5266 = vmatprep.subr.mxu0 0.0
    %5267 = vmatpush1.msra.mxu0 0.0
    %5268 = vmatprep.subr.mxu0 0.0
    %5269 = vmatpush1.msra.mxu0 0.0
    %5270 = vmatprep.subr.mxu0 0.0
    %5271 = vmatpush1.msra.mxu0 0.0
    %5272 = vmatprep.subr.mxu0 0.0
    %5273 = vmatpush1.msra.mxu0 0.0
    %5274 = vmatprep.subr.mxu0 0.0
    %5275 = vmatpush1.msra.mxu0 0.0
    %5276 = vmatprep.subr.mxu0 0.0
    %5277 = vmatpush1.msra.mxu0 0.0
    %5278 = vmatprep.mubr.f32.mxu0 0.0
    %v5279 = vand.u32 %v4784, 4294901760
    %5280 = vmatmul.mubr.f32.gmra.mrb[0].mxu0 %v5279
    %v5281 = vpop.f32.mrb[0].mxu0
    %v5282 = vadd.f32 %v5203, %v5281
    %v5283 = vpop.f32.mrb[0].mxu0
    %5284 = vmatprep.mubr.f32.mxu0 0.0
    %v5285 = vand.u32 %v4787, 4294901760
    %5286 = vmatmul.mubr.f32.gmra.mrb[0].mxu0 %v5285
    %v5287 = vpop.f32.mrb[0].mxu0
    %v5288 = vadd.f32 %v5209, %v5287
    %v5289 = vpop.f32.mrb[0].mxu0
    %5290 = vdwg.mxu0
    %v5291 = vadd.f32 %v1517, %v5282
    %v5292 = vadd.f32 %v1518, %v5288
    %v5293 = vmax.f32 %v5291, 0.0
    %v5294 = vmax.f32 %v5292, 0.0
    %v5296 = vsel %vm2070, %v5293, 0
    %v5299 = vsel %vm2070, %v5294, 0
    %5301 = vmatprep.subr.mxu0 0.0
    %v5302 = vand.u32 %v1519, 4294901760
    %5303 = vmatpush1.msra.mxu0 %v5302
    %5304 = vmatprep.subr.mxu0 0.0
    %v5305 = vand.u32 %v1520, 4294901760
    %5306 = vmatpush1.msra.mxu0 %v5305
    %5307 = vmatprep.subr.mxu0 0.0
    %v5308 = vand.u32 %v1521, 4294901760
    %5309 = vmatpush1.msra.mxu0 %v5308
    %5310 = vmatprep.subr.mxu0 0.0
    %v5311 = vand.u32 %v1522, 4294901760
    %5312 = vmatpush1.msra.mxu0 %v5311
    %5313 = vmatprep.subr.mxu0 0.0
    %5314 = vmatpush1.msra.mxu0 0.0
    %5315 = vmatprep.subr.mxu0 0.0
    %5316 = vmatpush1.msra.mxu0 0.0
    %5317 = vmatprep.subr.mxu0 0.0
    %5318 = vmatpush1.msra.mxu0 0.0
    %5319 = vmatprep.subr.mxu0 0.0
    %5320 = vmatpush1.msra.mxu0 0.0
    %5321 = vmatprep.subr.mxu0 0.0
    %5322 = vmatpush1.msra.mxu0 0.0
    %5323 = vmatprep.subr.mxu0 0.0
    %5324 = vmatpush1.msra.mxu0 0.0
    %5325 = vmatprep.subr.mxu0 0.0
    %5326 = vmatpush1.msra.mxu0 0.0
    %5327 = vmatprep.subr.mxu0 0.0
    %5328 = vmatpush1.msra.mxu0 0.0
    %5329 = vmatprep.subr.mxu0 0.0
    %5330 = vmatpush1.msra.mxu0 0.0
    %5331 = vmatprep.subr.mxu0 0.0
    %5332 = vmatpush1.msra.mxu0 0.0
    %5333 = vmatprep.subr.mxu0 0.0
    %5334 = vmatpush1.msra.mxu0 0.0
    %5335 = vmatprep.subr.mxu0 0.0
    %5336 = vmatpush1.msra.mxu0 0.0
    %5337 = vmatprep.subr.mxu0 0.0
    %5338 = vmatpush1.msra.mxu0 0.0
    %5339 = vmatprep.subr.mxu0 0.0
    %5340 = vmatpush1.msra.mxu0 0.0
    %5341 = vmatprep.subr.mxu0 0.0
    %5342 = vmatpush1.msra.mxu0 0.0
    %5343 = vmatprep.subr.mxu0 0.0
    %5344 = vmatpush1.msra.mxu0 0.0
    %5345 = vmatprep.subr.mxu0 0.0
    %5346 = vmatpush1.msra.mxu0 0.0
    %5347 = vmatprep.subr.mxu0 0.0
    %5348 = vmatpush1.msra.mxu0 0.0
    %5349 = vmatprep.subr.mxu0 0.0
    %5350 = vmatpush1.msra.mxu0 0.0
    %5351 = vmatprep.subr.mxu0 0.0
    %5352 = vmatpush1.msra.mxu0 0.0
    %5353 = vmatprep.subr.mxu0 0.0
    %5354 = vmatpush1.msra.mxu0 0.0
    %5355 = vmatprep.subr.mxu0 0.0
    %5356 = vmatpush1.msra.mxu0 0.0
    %5357 = vmatprep.subr.mxu0 0.0
    %5358 = vmatpush1.msra.mxu0 0.0
    %5359 = vmatprep.subr.mxu0 0.0
    %5360 = vmatpush1.msra.mxu0 0.0
    %5361 = vmatprep.subr.mxu0 0.0
    %5362 = vmatpush1.msra.mxu0 0.0
    %5363 = vmatprep.subr.mxu0 0.0
    %5364 = vmatpush1.msra.mxu0 0.0
    %5365 = vmatprep.subr.mxu0 0.0
    %5366 = vmatpush1.msra.mxu0 0.0
    %5367 = vmatprep.subr.mxu0 0.0
    %5368 = vmatpush1.msra.mxu0 0.0
    %5369 = vmatprep.mubr.f32.mxu0 0.0
    %v5370 = vand.u32 %v5296, 4294901760
    %v5371 = vsub.f32 %v5296, %v5370
    %v5372 = vand.u32 %v5371, 4294901760
    %v5373 = vsub.f32 %v5371, %v5372
    %v5374 = vand.u32 %v5373, 4294901760
    %5375 = vmatmul.mubr.f32.gmra.mrb[0].mxu0 %v5374
    %v5376 = vpop.f32.mrb[0].mxu0
    %v5377 = vadd.f32 %v2069, %v5376
    %v5378 = vpop.f32.mrb[0].mxu0
    %5379 = vmatprep.mubr.f32.mxu0 0.0
    %v5380 = vand.u32 %v5299, 4294901760
    %v5381 = vsub.f32 %v5299, %v5380
    %v5382 = vand.u32 %v5381, 4294901760
    %v5383 = vsub.f32 %v5381, %v5382
    %v5384 = vand.u32 %v5383, 4294901760
    %5385 = vmatmul.mubr.f32.gmra.mrb[0].mxu0 %v5384
    %v5386 = vpop.f32.mrb[0].mxu0
    %v5387 = vadd.f32 %v2069, %v5386
    %v5388 = vpop.f32.mrb[0].mxu0
    %5389 = vdwg.mxu0
    %5390 = vmatprep.subr.mxu0 0.0
    %v5391 = vand.u32 %v1519, 4294901760
    %v5392 = vsub.f32 %v1519, %v5391
    %v5393 = vand.u32 %v5392, 4294901760
    %v5394 = vsub.f32 %v5392, %v5393
    %v5395 = vand.u32 %v5394, 4294901760
    %5396 = vmatpush1.msra.mxu0 %v5395
    %5397 = vmatprep.subr.mxu0 0.0
    %v5398 = vand.u32 %v1520, 4294901760
    %v5399 = vsub.f32 %v1520, %v5398
    %v5400 = vand.u32 %v5399, 4294901760
    %v5401 = vsub.f32 %v5399, %v5400
    %v5402 = vand.u32 %v5401, 4294901760
    %5403 = vmatpush1.msra.mxu0 %v5402
    %5404 = vmatprep.subr.mxu0 0.0
    %v5405 = vand.u32 %v1521, 4294901760
    %v5406 = vsub.f32 %v1521, %v5405
    %v5407 = vand.u32 %v5406, 4294901760
    %v5408 = vsub.f32 %v5406, %v5407
    %v5409 = vand.u32 %v5408, 4294901760
    %5410 = vmatpush1.msra.mxu0 %v5409
    %5411 = vmatprep.subr.mxu0 0.0
    %v5412 = vand.u32 %v1522, 4294901760
    %v5413 = vsub.f32 %v1522, %v5412
    %v5414 = vand.u32 %v5413, 4294901760
    %v5415 = vsub.f32 %v5413, %v5414
    %v5416 = vand.u32 %v5415, 4294901760
    %5417 = vmatpush1.msra.mxu0 %v5416
    %5418 = vmatprep.subr.mxu0 0.0
    %5419 = vmatpush1.msra.mxu0 0.0
    %5420 = vmatprep.subr.mxu0 0.0
    %5421 = vmatpush1.msra.mxu0 0.0
    %5422 = vmatprep.subr.mxu0 0.0
    %5423 = vmatpush1.msra.mxu0 0.0
    %5424 = vmatprep.subr.mxu0 0.0
    %5425 = vmatpush1.msra.mxu0 0.0
    %5426 = vmatprep.subr.mxu0 0.0
    %5427 = vmatpush1.msra.mxu0 0.0
    %5428 = vmatprep.subr.mxu0 0.0
    %5429 = vmatpush1.msra.mxu0 0.0
    %5430 = vmatprep.subr.mxu0 0.0
    %5431 = vmatpush1.msra.mxu0 0.0
    %5432 = vmatprep.subr.mxu0 0.0
    %5433 = vmatpush1.msra.mxu0 0.0
    %5434 = vmatprep.subr.mxu0 0.0
    %5435 = vmatpush1.msra.mxu0 0.0
    %5436 = vmatprep.subr.mxu0 0.0
    %5437 = vmatpush1.msra.mxu0 0.0
    %5438 = vmatprep.subr.mxu0 0.0
    %5439 = vmatpush1.msra.mxu0 0.0
    %5440 = vmatprep.subr.mxu0 0.0
    %5441 = vmatpush1.msra.mxu0 0.0
    %5442 = vmatprep.subr.mxu0 0.0
    %5443 = vmatpush1.msra.mxu0 0.0
    %5444 = vmatprep.subr.mxu0 0.0
    %5445 = vmatpush1.msra.mxu0 0.0
    %5446 = vmatprep.subr.mxu0 0.0
    %5447 = vmatpush1.msra.mxu0 0.0
    %5448 = vmatprep.subr.mxu0 0.0
    %5449 = vmatpush1.msra.mxu0 0.0
    %5450 = vmatprep.subr.mxu0 0.0
    %5451 = vmatpush1.msra.mxu0 0.0
    %5452 = vmatprep.subr.mxu0 0.0
    %5453 = vmatpush1.msra.mxu0 0.0
    %5454 = vmatprep.subr.mxu0 0.0
    %5455 = vmatpush1.msra.mxu0 0.0
    %5456 = vmatprep.subr.mxu0 0.0
    %5457 = vmatpush1.msra.mxu0 0.0
    %5458 = vmatprep.subr.mxu0 0.0
    %5459 = vmatpush1.msra.mxu0 0.0
    %5460 = vmatprep.subr.mxu0 0.0
    %5461 = vmatpush1.msra.mxu0 0.0
    %5462 = vmatprep.subr.mxu0 0.0
    %5463 = vmatpush1.msra.mxu0 0.0
    %5464 = vmatprep.subr.mxu0 0.0
    %5465 = vmatpush1.msra.mxu0 0.0
    %5466 = vmatprep.subr.mxu0 0.0
    %5467 = vmatpush1.msra.mxu0 0.0
    %5468 = vmatprep.subr.mxu0 0.0
    %5469 = vmatpush1.msra.mxu0 0.0
    %5470 = vmatprep.subr.mxu0 0.0
    %5471 = vmatpush1.msra.mxu0 0.0
    %5472 = vmatprep.subr.mxu0 0.0
    %5473 = vmatpush1.msra.mxu0 0.0
    %5474 = vmatprep.mubr.f32.mxu0 0.0
    %v5475 = vand.u32 %v5296, 4294901760
    %5476 = vmatmul.mubr.f32.gmra.mrb[0].mxu0 %v5475
    %v5477 = vpop.f32.mrb[0].mxu0
    %v5478 = vadd.f32 %v5377, %v5477
    %v5479 = vpop.f32.mrb[0].mxu0
    %5480 = vmatprep.mubr.f32.mxu0 0.0
    %v5481 = vand.u32 %v5299, 4294901760
    %5482 = vmatmul.mubr.f32.gmra.mrb[0].mxu0 %v5481
    %v5483 = vpop.f32.mrb[0].mxu0
    %v5484 = vadd.f32 %v5387, %v5483
    %v5485 = vpop.f32.mrb[0].mxu0
    %5486 = vdwg.mxu0
    %5487 = vmatprep.subr.mxu0 0.0
    %v5488 = vand.u32 %v1519, 4294901760
    %v5489 = vsub.f32 %v1519, %v5488
    %5490 = vmatpush1.msra.mxu0 %v5489
    %5491 = vmatprep.subr.mxu0 0.0
    %v5492 = vand.u32 %v1520, 4294901760
    %v5493 = vsub.f32 %v1520, %v5492
    %5494 = vmatpush1.msra.mxu0 %v5493
    %5495 = vmatprep.subr.mxu0 0.0
    %v5496 = vand.u32 %v1521, 4294901760
    %v5497 = vsub.f32 %v1521, %v5496
    %5498 = vmatpush1.msra.mxu0 %v5497
    %5499 = vmatprep.subr.mxu0 0.0
    %v5500 = vand.u32 %v1522, 4294901760
    %v5501 = vsub.f32 %v1522, %v5500
    %5502 = vmatpush1.msra.mxu0 %v5501
    %5503 = vmatprep.subr.mxu0 0.0
    %5504 = vmatpush1.msra.mxu0 0.0
    %5505 = vmatprep.subr.mxu0 0.0
    %5506 = vmatpush1.msra.mxu0 0.0
    %5507 = vmatprep.subr.mxu0 0.0
    %5508 = vmatpush1.msra.mxu0 0.0
    %5509 = vmatprep.subr.mxu0 0.0
    %5510 = vmatpush1.msra.mxu0 0.0
    %5511 = vmatprep.subr.mxu0 0.0
    %5512 = vmatpush1.msra.mxu0 0.0
    %5513 = vmatprep.subr.mxu0 0.0
    %5514 = vmatpush1.msra.mxu0 0.0
    %5515 = vmatprep.subr.mxu0 0.0
    %5516 = vmatpush1.msra.mxu0 0.0
    %5517 = vmatprep.subr.mxu0 0.0
    %5518 = vmatpush1.msra.mxu0 0.0
    %5519 = vmatprep.subr.mxu0 0.0
    %5520 = vmatpush1.msra.mxu0 0.0
    %5521 = vmatprep.subr.mxu0 0.0
    %5522 = vmatpush1.msra.mxu0 0.0
    %5523 = vmatprep.subr.mxu0 0.0
    %5524 = vmatpush1.msra.mxu0 0.0
    %5525 = vmatprep.subr.mxu0 0.0
    %5526 = vmatpush1.msra.mxu0 0.0
    %5527 = vmatprep.subr.mxu0 0.0
    %5528 = vmatpush1.msra.mxu0 0.0
    %5529 = vmatprep.subr.mxu0 0.0
    %5530 = vmatpush1.msra.mxu0 0.0
    %5531 = vmatprep.subr.mxu0 0.0
    %5532 = vmatpush1.msra.mxu0 0.0
    %5533 = vmatprep.subr.mxu0 0.0
    %5534 = vmatpush1.msra.mxu0 0.0
    %5535 = vmatprep.subr.mxu0 0.0
    %5536 = vmatpush1.msra.mxu0 0.0
    %5537 = vmatprep.subr.mxu0 0.0
    %5538 = vmatpush1.msra.mxu0 0.0
    %5539 = vmatprep.subr.mxu0 0.0
    %5540 = vmatpush1.msra.mxu0 0.0
    %5541 = vmatprep.subr.mxu0 0.0
    %5542 = vmatpush1.msra.mxu0 0.0
    %5543 = vmatprep.subr.mxu0 0.0
    %5544 = vmatpush1.msra.mxu0 0.0
    %5545 = vmatprep.subr.mxu0 0.0
    %5546 = vmatpush1.msra.mxu0 0.0
    %5547 = vmatprep.subr.mxu0 0.0
    %5548 = vmatpush1.msra.mxu0 0.0
    %5549 = vmatprep.subr.mxu0 0.0
    %5550 = vmatpush1.msra.mxu0 0.0
    %5551 = vmatprep.subr.mxu0 0.0
    %5552 = vmatpush1.msra.mxu0 0.0
    %5553 = vmatprep.subr.mxu0 0.0
    %5554 = vmatpush1.msra.mxu0 0.0
    %5555 = vmatprep.subr.mxu0 0.0
    %5556 = vmatpush1.msra.mxu0 0.0
    %5557 = vmatprep.subr.mxu0 0.0
    %5558 = vmatpush1.msra.mxu0 0.0
    %5559 = vmatprep.mubr.f32.mxu0 0.0
    %v5560 = vand.u32 %v5296, 4294901760
    %v5561 = vsub.f32 %v5296, %v5560
    %5562 = vmatmul.mubr.f32.gmra.mrb[0].mxu0 %v5561
    %v5563 = vpop.f32.mrb[0].mxu0
    %v5564 = vadd.f32 %v5478, %v5563
    %v5565 = vpop.f32.mrb[0].mxu0
    %5566 = vmatprep.mubr.f32.mxu0 0.0
    %v5567 = vand.u32 %v5299, 4294901760
    %v5568 = vsub.f32 %v5299, %v5567
    %5569 = vmatmul.mubr.f32.gmra.mrb[0].mxu0 %v5568
    %v5570 = vpop.f32.mrb[0].mxu0
    %v5571 = vadd.f32 %v5484, %v5570
    %v5572 = vpop.f32.mrb[0].mxu0
    %5573 = vdwg.mxu0
    %5574 = vmatprep.subr.mxu0 0.0
    %v5575 = vand.u32 %v1519, 4294901760
    %5576 = vmatpush1.msra.mxu0 %v5575
    %5577 = vmatprep.subr.mxu0 0.0
    %v5578 = vand.u32 %v1520, 4294901760
    %5579 = vmatpush1.msra.mxu0 %v5578
    %5580 = vmatprep.subr.mxu0 0.0
    %v5581 = vand.u32 %v1521, 4294901760
    %5582 = vmatpush1.msra.mxu0 %v5581
    %5583 = vmatprep.subr.mxu0 0.0
    %v5584 = vand.u32 %v1522, 4294901760
    %5585 = vmatpush1.msra.mxu0 %v5584
    %5586 = vmatprep.subr.mxu0 0.0
    %5587 = vmatpush1.msra.mxu0 0.0
    %5588 = vmatprep.subr.mxu0 0.0
    %5589 = vmatpush1.msra.mxu0 0.0
    %5590 = vmatprep.subr.mxu0 0.0
    %5591 = vmatpush1.msra.mxu0 0.0
    %5592 = vmatprep.subr.mxu0 0.0
    %5593 = vmatpush1.msra.mxu0 0.0
    %5594 = vmatprep.subr.mxu0 0.0
    %5595 = vmatpush1.msra.mxu0 0.0
    %5596 = vmatprep.subr.mxu0 0.0
    %5597 = vmatpush1.msra.mxu0 0.0
    %5598 = vmatprep.subr.mxu0 0.0
    %5599 = vmatpush1.msra.mxu0 0.0
    %5600 = vmatprep.subr.mxu0 0.0
    %5601 = vmatpush1.msra.mxu0 0.0
    %5602 = vmatprep.subr.mxu0 0.0
    %5603 = vmatpush1.msra.mxu0 0.0
    %5604 = vmatprep.subr.mxu0 0.0
    %5605 = vmatpush1.msra.mxu0 0.0
    %5606 = vmatprep.subr.mxu0 0.0
    %5607 = vmatpush1.msra.mxu0 0.0
    %5608 = vmatprep.subr.mxu0 0.0
    %5609 = vmatpush1.msra.mxu0 0.0
    %5610 = vmatprep.subr.mxu0 0.0
    %5611 = vmatpush1.msra.mxu0 0.0
    %5612 = vmatprep.subr.mxu0 0.0
    %5613 = vmatpush1.msra.mxu0 0.0
    %5614 = vmatprep.subr.mxu0 0.0
    %5615 = vmatpush1.msra.mxu0 0.0
    %5616 = vmatprep.subr.mxu0 0.0
    %5617 = vmatpush1.msra.mxu0 0.0
    %5618 = vmatprep.subr.mxu0 0.0
    %5619 = vmatpush1.msra.mxu0 0.0
    %5620 = vmatprep.subr.mxu0 0.0
    %5621 = vmatpush1.msra.mxu0 0.0
    %5622 = vmatprep.subr.mxu0 0.0
    %5623 = vmatpush1.msra.mxu0 0.0
    %5624 = vmatprep.subr.mxu0 0.0
    %5625 = vmatpush1.msra.mxu0 0.0
    %5626 = vmatprep.subr.mxu0 0.0
    %5627 = vmatpush1.msra.mxu0 0.0
    %5628 = vmatprep.subr.mxu0 0.0
    %5629 = vmatpush1.msra.mxu0 0.0
    %5630 = vmatprep.subr.mxu0 0.0
    %5631 = vmatpush1.msra.mxu0 0.0
    %5632 = vmatprep.subr.mxu0 0.0
    %5633 = vmatpush1.msra.mxu0 0.0
    %5634 = vmatprep.subr.mxu0 0.0
    %5635 = vmatpush1.msra.mxu0 0.0
    %5636 = vmatprep.subr.mxu0 0.0
    %5637 = vmatpush1.msra.mxu0 0.0
    %5638 = vmatprep.subr.mxu0 0.0
    %5639 = vmatpush1.msra.mxu0 0.0
    %5640 = vmatprep.subr.mxu0 0.0
    %5641 = vmatpush1.msra.mxu0 0.0
    %5642 = vmatprep.mubr.f32.mxu0 0.0
    %v5643 = vand.u32 %v5296, 4294901760
    %v5644 = vsub.f32 %v5296, %v5643
    %v5645 = vand.u32 %v5644, 4294901760
    %5646 = vmatmul.mubr.f32.gmra.mrb[0].mxu0 %v5645
    %v5647 = vpop.f32.mrb[0].mxu0
    %v5648 = vadd.f32 %v5564, %v5647
    %v5649 = vpop.f32.mrb[0].mxu0
    %5650 = vmatprep.mubr.f32.mxu0 0.0
    %v5651 = vand.u32 %v5299, 4294901760
    %v5652 = vsub.f32 %v5299, %v5651
    %v5653 = vand.u32 %v5652, 4294901760
    %5654 = vmatmul.mubr.f32.gmra.mrb[0].mxu0 %v5653
    %v5655 = vpop.f32.mrb[0].mxu0
    %v5656 = vadd.f32 %v5571, %v5655
    %v5657 = vpop.f32.mrb[0].mxu0
    %5658 = vdwg.mxu0
    %5659 = vmatprep.subr.mxu0 0.0
    %v5660 = vand.u32 %v1519, 4294901760
    %v5661 = vsub.f32 %v1519, %v5660
    %v5662 = vand.u32 %v5661, 4294901760
    %5663 = vmatpush1.msra.mxu0 %v5662
    %5664 = vmatprep.subr.mxu0 0.0
    %v5665 = vand.u32 %v1520, 4294901760
    %v5666 = vsub.f32 %v1520, %v5665
    %v5667 = vand.u32 %v5666, 4294901760
    %5668 = vmatpush1.msra.mxu0 %v5667
    %5669 = vmatprep.subr.mxu0 0.0
    %v5670 = vand.u32 %v1521, 4294901760
    %v5671 = vsub.f32 %v1521, %v5670
    %v5672 = vand.u32 %v5671, 4294901760
    %5673 = vmatpush1.msra.mxu0 %v5672
    %5674 = vmatprep.subr.mxu0 0.0
    %v5675 = vand.u32 %v1522, 4294901760
    %v5676 = vsub.f32 %v1522, %v5675
    %v5677 = vand.u32 %v5676, 4294901760
    %5678 = vmatpush1.msra.mxu0 %v5677
    %5679 = vmatprep.subr.mxu0 0.0
    %5680 = vmatpush1.msra.mxu0 0.0
    %5681 = vmatprep.subr.mxu0 0.0
    %5682 = vmatpush1.msra.mxu0 0.0
    %5683 = vmatprep.subr.mxu0 0.0
    %5684 = vmatpush1.msra.mxu0 0.0
    %5685 = vmatprep.subr.mxu0 0.0
    %5686 = vmatpush1.msra.mxu0 0.0
    %5687 = vmatprep.subr.mxu0 0.0
    %5688 = vmatpush1.msra.mxu0 0.0
    %5689 = vmatprep.subr.mxu0 0.0
    %5690 = vmatpush1.msra.mxu0 0.0
    %5691 = vmatprep.subr.mxu0 0.0
    %5692 = vmatpush1.msra.mxu0 0.0
    %5693 = vmatprep.subr.mxu0 0.0
    %5694 = vmatpush1.msra.mxu0 0.0
    %5695 = vmatprep.subr.mxu0 0.0
    %5696 = vmatpush1.msra.mxu0 0.0
    %5697 = vmatprep.subr.mxu0 0.0
    %5698 = vmatpush1.msra.mxu0 0.0
    %5699 = vmatprep.subr.mxu0 0.0
    %5700 = vmatpush1.msra.mxu0 0.0
    %5701 = vmatprep.subr.mxu0 0.0
    %5702 = vmatpush1.msra.mxu0 0.0
    %5703 = vmatprep.subr.mxu0 0.0
    %5704 = vmatpush1.msra.mxu0 0.0
    %5705 = vmatprep.subr.mxu0 0.0
    %5706 = vmatpush1.msra.mxu0 0.0
    %5707 = vmatprep.subr.mxu0 0.0
    %5708 = vmatpush1.msra.mxu0 0.0
    %5709 = vmatprep.subr.mxu0 0.0
    %5710 = vmatpush1.msra.mxu0 0.0
    %5711 = vmatprep.subr.mxu0 0.0
    %5712 = vmatpush1.msra.mxu0 0.0
    %5713 = vmatprep.subr.mxu0 0.0
    %5714 = vmatpush1.msra.mxu0 0.0
    %5715 = vmatprep.subr.mxu0 0.0
    %5716 = vmatpush1.msra.mxu0 0.0
    %5717 = vmatprep.subr.mxu0 0.0
    %5718 = vmatpush1.msra.mxu0 0.0
    %5719 = vmatprep.subr.mxu0 0.0
    %5720 = vmatpush1.msra.mxu0 0.0
    %5721 = vmatprep.subr.mxu0 0.0
    %5722 = vmatpush1.msra.mxu0 0.0
    %5723 = vmatprep.subr.mxu0 0.0
    %5724 = vmatpush1.msra.mxu0 0.0
    %5725 = vmatprep.subr.mxu0 0.0
    %5726 = vmatpush1.msra.mxu0 0.0
    %5727 = vmatprep.subr.mxu0 0.0
    %5728 = vmatpush1.msra.mxu0 0.0
    %5729 = vmatprep.subr.mxu0 0.0
    %5730 = vmatpush1.msra.mxu0 0.0
    %5731 = vmatprep.subr.mxu0 0.0
    %5732 = vmatpush1.msra.mxu0 0.0
    %5733 = vmatprep.subr.mxu0 0.0
    %5734 = vmatpush1.msra.mxu0 0.0
    %5735 = vmatprep.mubr.f32.mxu0 0.0
    %v5736 = vand.u32 %v5296, 4294901760
    %5737 = vmatmul.mubr.f32.gmra.mrb[0].mxu0 %v5736
    %v5738 = vpop.f32.mrb[0].mxu0
    %v5739 = vadd.f32 %v5648, %v5738
    %v5740 = vpop.f32.mrb[0].mxu0
    %5741 = vmatprep.mubr.f32.mxu0 0.0
    %v5742 = vand.u32 %v5299, 4294901760
    %5743 = vmatmul.mubr.f32.gmra.mrb[0].mxu0 %v5742
    %v5744 = vpop.f32.mrb[0].mxu0
    %v5745 = vadd.f32 %v5656, %v5744
    %v5746 = vpop.f32.mrb[0].mxu0
    %5747 = vdwg.mxu0
    %5748 = vmatprep.subr.mxu0 0.0
    %v5749 = vand.u32 %v1519, 4294901760
    %5750 = vmatpush1.msra.mxu0 %v5749
    %5751 = vmatprep.subr.mxu0 0.0
    %v5752 = vand.u32 %v1520, 4294901760
    %5753 = vmatpush1.msra.mxu0 %v5752
    %5754 = vmatprep.subr.mxu0 0.0
    %v5755 = vand.u32 %v1521, 4294901760
    %5756 = vmatpush1.msra.mxu0 %v5755
    %5757 = vmatprep.subr.mxu0 0.0
    %v5758 = vand.u32 %v1522, 4294901760
    %5759 = vmatpush1.msra.mxu0 %v5758
    %5760 = vmatprep.subr.mxu0 0.0
    %5761 = vmatpush1.msra.mxu0 0.0
    %5762 = vmatprep.subr.mxu0 0.0
    %5763 = vmatpush1.msra.mxu0 0.0
    %5764 = vmatprep.subr.mxu0 0.0
    %5765 = vmatpush1.msra.mxu0 0.0
    %5766 = vmatprep.subr.mxu0 0.0
    %5767 = vmatpush1.msra.mxu0 0.0
    %5768 = vmatprep.subr.mxu0 0.0
    %5769 = vmatpush1.msra.mxu0 0.0
    %5770 = vmatprep.subr.mxu0 0.0
    %5771 = vmatpush1.msra.mxu0 0.0
    %5772 = vmatprep.subr.mxu0 0.0
    %5773 = vmatpush1.msra.mxu0 0.0
    %5774 = vmatprep.subr.mxu0 0.0
    %5775 = vmatpush1.msra.mxu0 0.0
    %5776 = vmatprep.subr.mxu0 0.0
    %5777 = vmatpush1.msra.mxu0 0.0
    %5778 = vmatprep.subr.mxu0 0.0
    %5779 = vmatpush1.msra.mxu0 0.0
    %5780 = vmatprep.subr.mxu0 0.0
    %5781 = vmatpush1.msra.mxu0 0.0
    %5782 = vmatprep.subr.mxu0 0.0
    %5783 = vmatpush1.msra.mxu0 0.0
    %5784 = vmatprep.subr.mxu0 0.0
    %5785 = vmatpush1.msra.mxu0 0.0
    %5786 = vmatprep.subr.mxu0 0.0
    %5787 = vmatpush1.msra.mxu0 0.0
    %5788 = vmatprep.subr.mxu0 0.0
    %5789 = vmatpush1.msra.mxu0 0.0
    %5790 = vmatprep.subr.mxu0 0.0
    %5791 = vmatpush1.msra.mxu0 0.0
    %5792 = vmatprep.subr.mxu0 0.0
    %5793 = vmatpush1.msra.mxu0 0.0
    %5794 = vmatprep.subr.mxu0 0.0
    %5795 = vmatpush1.msra.mxu0 0.0
    %5796 = vmatprep.subr.mxu0 0.0
    %5797 = vmatpush1.msra.mxu0 0.0
    %5798 = vmatprep.subr.mxu0 0.0
    %5799 = vmatpush1.msra.mxu0 0.0
    %5800 = vmatprep.subr.mxu0 0.0
    %5801 = vmatpush1.msra.mxu0 0.0
    %5802 = vmatprep.subr.mxu0 0.0
    %5803 = vmatpush1.msra.mxu0 0.0
    %5804 = vmatprep.subr.mxu0 0.0
    %5805 = vmatpush1.msra.mxu0 0.0
    %5806 = vmatprep.subr.mxu0 0.0
    %5807 = vmatpush1.msra.mxu0 0.0
    %5808 = vmatprep.subr.mxu0 0.0
    %5809 = vmatpush1.msra.mxu0 0.0
    %5810 = vmatprep.subr.mxu0 0.0
    %5811 = vmatpush1.msra.mxu0 0.0
    %5812 = vmatprep.subr.mxu0 0.0
    %5813 = vmatpush1.msra.mxu0 0.0
    %5814 = vmatprep.subr.mxu0 0.0
    %5815 = vmatpush1.msra.mxu0 0.0
    %5816 = vmatprep.mubr.f32.mxu0 0.0
    %v5817 = vand.u32 %v5296, 4294901760
    %5818 = vmatmul.mubr.f32.gmra.mrb[0].mxu0 %v5817
    %v5819 = vpop.f32.mrb[0].mxu0
    %v5820 = vadd.f32 %v5739, %v5819
    %v5821 = vpop.f32.mrb[0].mxu0
    %5822 = vmatprep.mubr.f32.mxu0 0.0
    %v5823 = vand.u32 %v5299, 4294901760
    %5824 = vmatmul.mubr.f32.gmra.mrb[0].mxu0 %v5823
    %v5825 = vpop.f32.mrb[0].mxu0
    %v5826 = vadd.f32 %v5745, %v5825
    %v5827 = vpop.f32.mrb[0].mxu0
    %5828 = vdwg.mxu0
    %v5829 = vmax.f32 %v5820, 0.0
    %v5830 = vmax.f32 %v5826, 0.0
    %v5831 = vmul.f32 %v5829, %v2610
    %v5832 = vmul.f32 %v5830, %v2610
    %v5833 = vmax.f32 %v4759, %v5831
    %v5834 = vmax.f32 %v4760, %v5832
    %v5835 = vld [vmem:[#allocation2 + $0x40] sm:$0x1]
    %v5836 = vlaneseq
    %v5837 = vshrl.u32 %v5836, 7
    %v5838 = vsub.s32 0, %v5837
    %v5839 = vrot.slane %v5835, %v5838
    %v5840 = vadd.f32 %v5833, %v5839
    %v5841 = vadd.f32 %v5834, %v5839
    %v5843 = vsel %vm2070, %v5840, 0
    %v5846 = vsel %vm2070, %v5841, 0
    %5848 = vmatprep.subr.mxu0 0.0
    %v5849 = vand.u32 %v5843, 4294901760
    %5850 = vmatpush1.xpose.msra.mxu0 %v5849
    %5851 = vmatprep.subr.mxu0 0.0
    %v5852 = vand.u32 %v5846, 4294901760
    %5853 = vmatpush1.xpose.msra.mxu0 %v5852
    %5854 = vmatprep.subr.mxu0 0.0
    %5855 = vmatpush1.xpose.msra.mxu0 0.0
    %5856 = vmatprep.subr.mxu0 0.0
    %5857 = vmatpush1.xpose.msra.mxu0 0.0
    %5858 = vmatprep.subr.mxu0 0.0
    %5859 = vmatpush1.xpose.msra.mxu0 0.0
    %5860 = vmatprep.subr.mxu0 0.0
    %5861 = vmatpush1.xpose.msra.mxu0 0.0
    %5862 = vmatprep.subr.mxu0 0.0
    %5863 = vmatpush1.xpose.msra.mxu0 0.0
    %5864 = vmatprep.subr.mxu0 0.0
    %5865 = vmatpush1.xpose.msra.mxu0 0.0
    %5866 = vmatprep.subr.mxu0 0.0
    %5867 = vmatpush1.xpose.msra.mxu0 0.0
    %5868 = vmatprep.subr.mxu0 0.0
    %5869 = vmatpush1.xpose.msra.mxu0 0.0
    %5870 = vmatprep.subr.mxu0 0.0
    %5871 = vmatpush1.xpose.msra.mxu0 0.0
    %5872 = vmatprep.subr.mxu0 0.0
    %5873 = vmatpush1.xpose.msra.mxu0 0.0
    %5874 = vmatprep.subr.mxu0 0.0
    %5875 = vmatpush1.xpose.msra.mxu0 0.0
    %5876 = vmatprep.subr.mxu0 0.0
    %5877 = vmatpush1.xpose.msra.mxu0 0.0
    %5878 = vmatprep.subr.mxu0 0.0
    %5879 = vmatpush1.xpose.msra.mxu0 0.0
    %5880 = vmatprep.subr.mxu0 0.0
    %5881 = vmatpush1.xpose.msra.mxu0 0.0
    %5882 = vmatprep.subr.mxu0 0.0
    %5883 = vmatpush1.xpose.msra.mxu0 0.0
    %5884 = vmatprep.subr.mxu0 0.0
    %5885 = vmatpush1.xpose.msra.mxu0 0.0
    %5886 = vmatprep.subr.mxu0 0.0
    %5887 = vmatpush1.xpose.msra.mxu0 0.0
    %5888 = vmatprep.subr.mxu0 0.0
    %5889 = vmatpush1.xpose.msra.mxu0 0.0
    %5890 = vmatprep.subr.mxu0 0.0
    %5891 = vmatpush1.xpose.msra.mxu0 0.0
    %5892 = vmatprep.subr.mxu0 0.0
    %5893 = vmatpush1.xpose.msra.mxu0 0.0
    %5894 = vmatprep.subr.mxu0 0.0
    %5895 = vmatpush1.xpose.msra.mxu0 0.0
    %5896 = vmatprep.subr.mxu0 0.0
    %5897 = vmatpush1.xpose.msra.mxu0 0.0
    %5898 = vmatprep.subr.mxu0 0.0
    %5899 = vmatpush1.xpose.msra.mxu0 0.0
    %5900 = vmatprep.subr.mxu0 0.0
    %5901 = vmatpush1.xpose.msra.mxu0 0.0
    %5902 = vmatprep.subr.mxu0 0.0
    %5903 = vmatpush1.xpose.msra.mxu0 0.0
    %5904 = vmatprep.subr.mxu0 0.0
    %5905 = vmatpush1.xpose.msra.mxu0 0.0
    %5906 = vmatprep.subr.mxu0 0.0
    %5907 = vmatpush1.xpose.msra.mxu0 0.0
    %5908 = vmatprep.subr.mxu0 0.0
    %5909 = vmatpush1.xpose.msra.mxu0 0.0
    %5910 = vmatprep.subr.mxu0 0.0
    %5911 = vmatpush1.xpose.msra.mxu0 0.0
    %5912 = vmatprep.subr.mxu0 0.0
    %5913 = vmatpush1.xpose.msra.mxu0 0.0
    %5914 = vmatprep.mubr.f32.mxu0 0.0
    %v5915 = vand.u32 %v5843, 4294901760
    %v5916 = vsub.f32 %v5843, %v5915
    %v5917 = vand.u32 %v5916, 4294901760
    %v5918 = vsub.f32 %v5916, %v5917
    %v5919 = vand.u32 %v5918, 4294901760
    %5920 = vmatmul.mubr.f32.gmra.mrb[0].mxu0 %v5919
    %v5921 = vpop.f32.mrb[0].mxu0
    %v5922 = vadd.f32 0.0, %v5921
    %v5923 = vpop.f32.mrb[0].mxu0
    %5924 = vmatprep.mubr.f32.mxu0 0.0
    %v5925 = vand.u32 %v5846, 4294901760
    %v5926 = vsub.f32 %v5846, %v5925
    %v5927 = vand.u32 %v5926, 4294901760
    %v5928 = vsub.f32 %v5926, %v5927
    %v5929 = vand.u32 %v5928, 4294901760
    %5930 = vmatmul.mubr.f32.gmra.mrb[0].mxu0 %v5929
    %v5931 = vpop.f32.mrb[0].mxu0
    %v5932 = vadd.f32 0.0, %v5931
    %v5933 = vpop.f32.mrb[0].mxu0
    %5934 = vdwg.mxu0
    %5935 = vmatprep.subr.mxu0 0.0
    %v5936 = vand.u32 %v5843, 4294901760
    %v5937 = vsub.f32 %v5843, %v5936
    %v5938 = vand.u32 %v5937, 4294901760
    %v5939 = vsub.f32 %v5937, %v5938
    %v5940 = vand.u32 %v5939, 4294901760
    %5941 = vmatpush1.xpose.msra.mxu0 %v5940
    %5942 = vmatprep.subr.mxu0 0.0
    %v5943 = vand.u32 %v5846, 4294901760
    %v5944 = vsub.f32 %v5846, %v5943
    %v5945 = vand.u32 %v5944, 4294901760
    %v5946 = vsub.f32 %v5944, %v5945
    %v5947 = vand.u32 %v5946, 4294901760
    %5948 = vmatpush1.xpose.msra.mxu0 %v5947
    %5949 = vmatprep.subr.mxu0 0.0
    %5950 = vmatpush1.xpose.msra.mxu0 0.0
    %5951 = vmatprep.subr.mxu0 0.0
    %5952 = vmatpush1.xpose.msra.mxu0 0.0
    %5953 = vmatprep.subr.mxu0 0.0
    %5954 = vmatpush1.xpose.msra.mxu0 0.0
    %5955 = vmatprep.subr.mxu0 0.0
    %5956 = vmatpush1.xpose.msra.mxu0 0.0
    %5957 = vmatprep.subr.mxu0 0.0
    %5958 = vmatpush1.xpose.msra.mxu0 0.0
    %5959 = vmatprep.subr.mxu0 0.0
    %5960 = vmatpush1.xpose.msra.mxu0 0.0
    %5961 = vmatprep.subr.mxu0 0.0
    %5962 = vmatpush1.xpose.msra.mxu0 0.0
    %5963 = vmatprep.subr.mxu0 0.0
    %5964 = vmatpush1.xpose.msra.mxu0 0.0
    %5965 = vmatprep.subr.mxu0 0.0
    %5966 = vmatpush1.xpose.msra.mxu0 0.0
    %5967 = vmatprep.subr.mxu0 0.0
    %5968 = vmatpush1.xpose.msra.mxu0 0.0
    %5969 = vmatprep.subr.mxu0 0.0
    %5970 = vmatpush1.xpose.msra.mxu0 0.0
    %5971 = vmatprep.subr.mxu0 0.0
    %5972 = vmatpush1.xpose.msra.mxu0 0.0
    %5973 = vmatprep.subr.mxu0 0.0
    %5974 = vmatpush1.xpose.msra.mxu0 0.0
    %5975 = vmatprep.subr.mxu0 0.0
    %5976 = vmatpush1.xpose.msra.mxu0 0.0
    %5977 = vmatprep.subr.mxu0 0.0
    %5978 = vmatpush1.xpose.msra.mxu0 0.0
    %5979 = vmatprep.subr.mxu0 0.0
    %5980 = vmatpush1.xpose.msra.mxu0 0.0
    %5981 = vmatprep.subr.mxu0 0.0
    %5982 = vmatpush1.xpose.msra.mxu0 0.0
    %5983 = vmatprep.subr.mxu0 0.0
    %5984 = vmatpush1.xpose.msra.mxu0 0.0
    %5985 = vmatprep.subr.mxu0 0.0
    %5986 = vmatpush1.xpose.msra.mxu0 0.0
    %5987 = vmatprep.subr.mxu0 0.0
    %5988 = vmatpush1.xpose.msra.mxu0 0.0
    %5989 = vmatprep.subr.mxu0 0.0
    %5990 = vmatpush1.xpose.msra.mxu0 0.0
    %5991 = vmatprep.subr.mxu0 0.0
    %5992 = vmatpush1.xpose.msra.mxu0 0.0
    %5993 = vmatprep.subr.mxu0 0.0
    %5994 = vmatpush1.xpose.msra.mxu0 0.0
    %5995 = vmatprep.subr.mxu0 0.0
    %5996 = vmatpush1.xpose.msra.mxu0 0.0
    %5997 = vmatprep.subr.mxu0 0.0
    %5998 = vmatpush1.xpose.msra.mxu0 0.0
    %5999 = vmatprep.subr.mxu0 0.0
    %6000 = vmatpush1.xpose.msra.mxu0 0.0
    %6001 = vmatprep.subr.mxu0 0.0
    %6002 = vmatpush1.xpose.msra.mxu0 0.0
    %6003 = vmatprep.subr.mxu0 0.0
    %6004 = vmatpush1.xpose.msra.mxu0 0.0
    %6005 = vmatprep.subr.mxu0 0.0
    %6006 = vmatpush1.xpose.msra.mxu0 0.0
    %6007 = vmatprep.subr.mxu0 0.0
    %6008 = vmatpush1.xpose.msra.mxu0 0.0
    %6009 = vmatprep.mubr.f32.mxu0 0.0
    %v6010 = vand.u32 %v5843, 4294901760
    %6011 = vmatmul.mubr.f32.gmra.mrb[0].mxu0 %v6010
    %v6012 = vpop.f32.mrb[0].mxu0
    %v6013 = vadd.f32 %v5922, %v6012
    %v6014 = vpop.f32.mrb[0].mxu0
    %6015 = vmatprep.mubr.f32.mxu0 0.0
    %v6016 = vand.u32 %v5846, 4294901760
    %6017 = vmatmul.mubr.f32.gmra.mrb[0].mxu0 %v6016
    %v6018 = vpop.f32.mrb[0].mxu0
    %v6019 = vadd.f32 %v5932, %v6018
    %v6020 = vpop.f32.mrb[0].mxu0
    %6021 = vdwg.mxu0
    %6022 = vmatprep.subr.mxu0 0.0
    %v6023 = vand.u32 %v5843, 4294901760
    %v6024 = vsub.f32 %v5843, %v6023
    %6025 = vmatpush1.xpose.msra.mxu0 %v6024
    %6026 = vmatprep.subr.mxu0 0.0
    %v6027 = vand.u32 %v5846, 4294901760
    %v6028 = vsub.f32 %v5846, %v6027
    %6029 = vmatpush1.xpose.msra.mxu0 %v6028
    %6030 = vmatprep.subr.mxu0 0.0
    %6031 = vmatpush1.xpose.msra.mxu0 0.0
    %6032 = vmatprep.subr.mxu0 0.0
    %6033 = vmatpush1.xpose.msra.mxu0 0.0
    %6034 = vmatprep.subr.mxu0 0.0
    %6035 = vmatpush1.xpose.msra.mxu0 0.0
    %6036 = vmatprep.subr.mxu0 0.0
    %6037 = vmatpush1.xpose.msra.mxu0 0.0
    %6038 = vmatprep.subr.mxu0 0.0
    %6039 = vmatpush1.xpose.msra.mxu0 0.0
    %6040 = vmatprep.subr.mxu0 0.0
    %6041 = vmatpush1.xpose.msra.mxu0 0.0
    %6042 = vmatprep.subr.mxu0 0.0
    %6043 = vmatpush1.xpose.msra.mxu0 0.0
    %6044 = vmatprep.subr.mxu0 0.0
    %6045 = vmatpush1.xpose.msra.mxu0 0.0
    %6046 = vmatprep.subr.mxu0 0.0
    %6047 = vmatpush1.xpose.msra.mxu0 0.0
    %6048 = vmatprep.subr.mxu0 0.0
    %6049 = vmatpush1.xpose.msra.mxu0 0.0
    %6050 = vmatprep.subr.mxu0 0.0
    %6051 = vmatpush1.xpose.msra.mxu0 0.0
    %6052 = vmatprep.subr.mxu0 0.0
    %6053 = vmatpush1.xpose.msra.mxu0 0.0
    %6054 = vmatprep.subr.mxu0 0.0
    %6055 = vmatpush1.xpose.msra.mxu0 0.0
    %6056 = vmatprep.subr.mxu0 0.0
    %6057 = vmatpush1.xpose.msra.mxu0 0.0
    %6058 = vmatprep.subr.mxu0 0.0
    %6059 = vmatpush1.xpose.msra.mxu0 0.0
    %6060 = vmatprep.subr.mxu0 0.0
    %6061 = vmatpush1.xpose.msra.mxu0 0.0
    %6062 = vmatprep.subr.mxu0 0.0
    %6063 = vmatpush1.xpose.msra.mxu0 0.0
    %6064 = vmatprep.subr.mxu0 0.0
    %6065 = vmatpush1.xpose.msra.mxu0 0.0
    %6066 = vmatprep.subr.mxu0 0.0
    %6067 = vmatpush1.xpose.msra.mxu0 0.0
    %6068 = vmatprep.subr.mxu0 0.0
    %6069 = vmatpush1.xpose.msra.mxu0 0.0
    %6070 = vmatprep.subr.mxu0 0.0
    %6071 = vmatpush1.xpose.msra.mxu0 0.0
    %6072 = vmatprep.subr.mxu0 0.0
    %6073 = vmatpush1.xpose.msra.mxu0 0.0
    %6074 = vmatprep.subr.mxu0 0.0
    %6075 = vmatpush1.xpose.msra.mxu0 0.0
    %6076 = vmatprep.subr.mxu0 0.0
    %6077 = vmatpush1.xpose.msra.mxu0 0.0
    %6078 = vmatprep.subr.mxu0 0.0
    %6079 = vmatpush1.xpose.msra.mxu0 0.0
    %6080 = vmatprep.subr.mxu0 0.0
    %6081 = vmatpush1.xpose.msra.mxu0 0.0
    %6082 = vmatprep.subr.mxu0 0.0
    %6083 = vmatpush1.xpose.msra.mxu0 0.0
    %6084 = vmatprep.subr.mxu0 0.0
    %6085 = vmatpush1.xpose.msra.mxu0 0.0
    %6086 = vmatprep.subr.mxu0 0.0
    %6087 = vmatpush1.xpose.msra.mxu0 0.0
    %6088 = vmatprep.subr.mxu0 0.0
    %6089 = vmatpush1.xpose.msra.mxu0 0.0
    %6090 = vmatprep.mubr.f32.mxu0 0.0
    %v6091 = vand.u32 %v5843, 4294901760
    %v6092 = vsub.f32 %v5843, %v6091
    %6093 = vmatmul.mubr.f32.gmra.mrb[0].mxu0 %v6092
    %v6094 = vpop.f32.mrb[0].mxu0
    %v6095 = vadd.f32 %v6013, %v6094
    %v6096 = vpop.f32.mrb[0].mxu0
    %6097 = vmatprep.mubr.f32.mxu0 0.0
    %v6098 = vand.u32 %v5846, 4294901760
    %v6099 = vsub.f32 %v5846, %v6098
    %6100 = vmatmul.mubr.f32.gmra.mrb[0].mxu0 %v6099
    %v6101 = vpop.f32.mrb[0].mxu0
    %v6102 = vadd.f32 %v6019, %v6101
    %v6103 = vpop.f32.mrb[0].mxu0
    %6104 = vdwg.mxu0
    %6105 = vmatprep.subr.mxu0 0.0
    %v6106 = vand.u32 %v5843, 4294901760
    %6107 = vmatpush1.xpose.msra.mxu0 %v6106
    %6108 = vmatprep.subr.mxu0 0.0
    %v6109 = vand.u32 %v5846, 4294901760
    %6110 = vmatpush1.xpose.msra.mxu0 %v6109
    %6111 = vmatprep.subr.mxu0 0.0
    %6112 = vmatpush1.xpose.msra.mxu0 0.0
    %6113 = vmatprep.subr.mxu0 0.0
    %6114 = vmatpush1.xpose.msra.mxu0 0.0
    %6115 = vmatprep.subr.mxu0 0.0
    %6116 = vmatpush1.xpose.msra.mxu0 0.0
    %6117 = vmatprep.subr.mxu0 0.0
    %6118 = vmatpush1.xpose.msra.mxu0 0.0
    %6119 = vmatprep.subr.mxu0 0.0
    %6120 = vmatpush1.xpose.msra.mxu0 0.0
    %6121 = vmatprep.subr.mxu0 0.0
    %6122 = vmatpush1.xpose.msra.mxu0 0.0
    %6123 = vmatprep.subr.mxu0 0.0
    %6124 = vmatpush1.xpose.msra.mxu0 0.0
    %6125 = vmatprep.subr.mxu0 0.0
    %6126 = vmatpush1.xpose.msra.mxu0 0.0
    %6127 = vmatprep.subr.mxu0 0.0
    %6128 = vmatpush1.xpose.msra.mxu0 0.0
    %6129 = vmatprep.subr.mxu0 0.0
    %6130 = vmatpush1.xpose.msra.mxu0 0.0
    %6131 = vmatprep.subr.mxu0 0.0
    %6132 = vmatpush1.xpose.msra.mxu0 0.0
    %6133 = vmatprep.subr.mxu0 0.0
    %6134 = vmatpush1.xpose.msra.mxu0 0.0
    %6135 = vmatprep.subr.mxu0 0.0
    %6136 = vmatpush1.xpose.msra.mxu0 0.0
    %6137 = vmatprep.subr.mxu0 0.0
    %6138 = vmatpush1.xpose.msra.mxu0 0.0
    %6139 = vmatprep.subr.mxu0 0.0
    %6140 = vmatpush1.xpose.msra.mxu0 0.0
    %6141 = vmatprep.subr.mxu0 0.0
    %6142 = vmatpush1.xpose.msra.mxu0 0.0
    %6143 = vmatprep.subr.mxu0 0.0
    %6144 = vmatpush1.xpose.msra.mxu0 0.0
    %6145 = vmatprep.subr.mxu0 0.0
    %6146 = vmatpush1.xpose.msra.mxu0 0.0
    %6147 = vmatprep.subr.mxu0 0.0
    %6148 = vmatpush1.xpose.msra.mxu0 0.0
    %6149 = vmatprep.subr.mxu0 0.0
    %6150 = vmatpush1.xpose.msra.mxu0 0.0
    %6151 = vmatprep.subr.mxu0 0.0
    %6152 = vmatpush1.xpose.msra.mxu0 0.0
    %6153 = vmatprep.subr.mxu0 0.0
    %6154 = vmatpush1.xpose.msra.mxu0 0.0
    %6155 = vmatprep.subr.mxu0 0.0
    %6156 = vmatpush1.xpose.msra.mxu0 0.0
    %6157 = vmatprep.subr.mxu0 0.0
    %6158 = vmatpush1.xpose.msra.mxu0 0.0
    %6159 = vmatprep.subr.mxu0 0.0
    %6160 = vmatpush1.xpose.msra.mxu0 0.0
    %6161 = vmatprep.subr.mxu0 0.0
    %6162 = vmatpush1.xpose.msra.mxu0 0.0
    %6163 = vmatprep.subr.mxu0 0.0
    %6164 = vmatpush1.xpose.msra.mxu0 0.0
    %6165 = vmatprep.subr.mxu0 0.0
    %6166 = vmatpush1.xpose.msra.mxu0 0.0
    %6167 = vmatprep.subr.mxu0 0.0
    %6168 = vmatpush1.xpose.msra.mxu0 0.0
    %6169 = vmatprep.subr.mxu0 0.0
    %6170 = vmatpush1.xpose.msra.mxu0 0.0
    %6171 = vmatprep.mubr.f32.mxu0 0.0
    %v6172 = vand.u32 %v5843, 4294901760
    %v6173 = vsub.f32 %v5843, %v6172
    %v6174 = vand.u32 %v6173, 4294901760
    %6175 = vmatmul.mubr.f32.gmra.mrb[0].mxu0 %v6174
    %v6176 = vpop.f32.mrb[0].mxu0
    %v6177 = vadd.f32 %v6095, %v6176
    %v6178 = vpop.f32.mrb[0].mxu0
    %6179 = vmatprep.mubr.f32.mxu0 0.0
    %v6180 = vand.u32 %v5846, 4294901760
    %v6181 = vsub.f32 %v5846, %v6180
    %v6182 = vand.u32 %v6181, 4294901760
    %6183 = vmatmul.mubr.f32.gmra.mrb[0].mxu0 %v6182
    %v6184 = vpop.f32.mrb[0].mxu0
    %v6185 = vadd.f32 %v6102, %v6184
    %v6186 = vpop.f32.mrb[0].mxu0
    %6187 = vdwg.mxu0
    %6188 = vmatprep.subr.mxu0 0.0
    %v6189 = vand.u32 %v5843, 4294901760
    %v6190 = vsub.f32 %v5843, %v6189
    %v6191 = vand.u32 %v6190, 4294901760
    %6192 = vmatpush1.xpose.msra.mxu0 %v6191
    %6193 = vmatprep.subr.mxu0 0.0
    %v6194 = vand.u32 %v5846, 4294901760
    %v6195 = vsub.f32 %v5846, %v6194
    %v6196 = vand.u32 %v6195, 4294901760
    %6197 = vmatpush1.xpose.msra.mxu0 %v6196
    %6198 = vmatprep.subr.mxu0 0.0
    %6199 = vmatpush1.xpose.msra.mxu0 0.0
    %6200 = vmatprep.subr.mxu0 0.0
    %6201 = vmatpush1.xpose.msra.mxu0 0.0
    %6202 = vmatprep.subr.mxu0 0.0
    %6203 = vmatpush1.xpose.msra.mxu0 0.0
    %6204 = vmatprep.subr.mxu0 0.0
    %6205 = vmatpush1.xpose.msra.mxu0 0.0
    %6206 = vmatprep.subr.mxu0 0.0
    %6207 = vmatpush1.xpose.msra.mxu0 0.0
    %6208 = vmatprep.subr.mxu0 0.0
    %6209 = vmatpush1.xpose.msra.mxu0 0.0
    %6210 = vmatprep.subr.mxu0 0.0
    %6211 = vmatpush1.xpose.msra.mxu0 0.0
    %6212 = vmatprep.subr.mxu0 0.0
    %6213 = vmatpush1.xpose.msra.mxu0 0.0
    %6214 = vmatprep.subr.mxu0 0.0
    %6215 = vmatpush1.xpose.msra.mxu0 0.0
    %6216 = vmatprep.subr.mxu0 0.0
    %6217 = vmatpush1.xpose.msra.mxu0 0.0
    %6218 = vmatprep.subr.mxu0 0.0
    %6219 = vmatpush1.xpose.msra.mxu0 0.0
    %6220 = vmatprep.subr.mxu0 0.0
    %6221 = vmatpush1.xpose.msra.mxu0 0.0
    %6222 = vmatprep.subr.mxu0 0.0
    %6223 = vmatpush1.xpose.msra.mxu0 0.0
    %6224 = vmatprep.subr.mxu0 0.0
    %6225 = vmatpush1.xpose.msra.mxu0 0.0
    %6226 = vmatprep.subr.mxu0 0.0
    %6227 = vmatpush1.xpose.msra.mxu0 0.0
    %6228 = vmatprep.subr.mxu0 0.0
    %6229 = vmatpush1.xpose.msra.mxu0 0.0
    %6230 = vmatprep.subr.mxu0 0.0
    %6231 = vmatpush1.xpose.msra.mxu0 0.0
    %6232 = vmatprep.subr.mxu0 0.0
    %6233 = vmatpush1.xpose.msra.mxu0 0.0
    %6234 = vmatprep.subr.mxu0 0.0
    %6235 = vmatpush1.xpose.msra.mxu0 0.0
    %6236 = vmatprep.subr.mxu0 0.0
    %6237 = vmatpush1.xpose.msra.mxu0 0.0
    %6238 = vmatprep.subr.mxu0 0.0
    %6239 = vmatpush1.xpose.msra.mxu0 0.0
    %6240 = vmatprep.subr.mxu0 0.0
    %6241 = vmatpush1.xpose.msra.mxu0 0.0
    %6242 = vmatprep.subr.mxu0 0.0
    %6243 = vmatpush1.xpose.msra.mxu0 0.0
    %6244 = vmatprep.subr.mxu0 0.0
    %6245 = vmatpush1.xpose.msra.mxu0 0.0
    %6246 = vmatprep.subr.mxu0 0.0
    %6247 = vmatpush1.xpose.msra.mxu0 0.0
    %6248 = vmatprep.subr.mxu0 0.0
    %6249 = vmatpush1.xpose.msra.mxu0 0.0
    %6250 = vmatprep.subr.mxu0 0.0
    %6251 = vmatpush1.xpose.msra.mxu0 0.0
    %6252 = vmatprep.subr.mxu0 0.0
    %6253 = vmatpush1.xpose.msra.mxu0 0.0
    %6254 = vmatprep.subr.mxu0 0.0
    %6255 = vmatpush1.xpose.msra.mxu0 0.0
    %6256 = vmatprep.subr.mxu0 0.0
    %6257 = vmatpush1.xpose.msra.mxu0 0.0
    %6258 = vmatprep.mubr.f32.mxu0 0.0
    %v6259 = vand.u32 %v5843, 4294901760
    %6260 = vmatmul.mubr.f32.gmra.mrb[0].mxu0 %v6259
    %v6261 = vpop.f32.mrb[0].mxu0
    %v6262 = vadd.f32 %v6177, %v6261
    %v6263 = vpop.f32.mrb[0].mxu0
    %6264 = vmatprep.mubr.f32.mxu0 0.0
    %v6265 = vand.u32 %v5846, 4294901760
    %6266 = vmatmul.mubr.f32.gmra.mrb[0].mxu0 %v6265
    %v6267 = vpop.f32.mrb[0].mxu0
    %v6268 = vadd.f32 %v6185, %v6267
    %v6269 = vpop.f32.mrb[0].mxu0
    %6270 = vdwg.mxu0
    %6271 = vmatprep.subr.mxu0 0.0
    %v6272 = vand.u32 %v5843, 4294901760
    %6273 = vmatpush1.xpose.msra.mxu0 %v6272
    %6274 = vmatprep.subr.mxu0 0.0
    %v6275 = vand.u32 %v5846, 4294901760
    %6276 = vmatpush1.xpose.msra.mxu0 %v6275
    %6277 = vmatprep.subr.mxu0 0.0
    %6278 = vmatpush1.xpose.msra.mxu0 0.0
    %6279 = vmatprep.subr.mxu0 0.0
    %6280 = vmatpush1.xpose.msra.mxu0 0.0
    %6281 = vmatprep.subr.mxu0 0.0
    %6282 = vmatpush1.xpose.msra.mxu0 0.0
    %6283 = vmatprep.subr.mxu0 0.0
    %6284 = vmatpush1.xpose.msra.mxu0 0.0
    %6285 = vmatprep.subr.mxu0 0.0
    %6286 = vmatpush1.xpose.msra.mxu0 0.0
    %6287 = vmatprep.subr.mxu0 0.0
    %6288 = vmatpush1.xpose.msra.mxu0 0.0
    %6289 = vmatprep.subr.mxu0 0.0
    %6290 = vmatpush1.xpose.msra.mxu0 0.0
    %6291 = vmatprep.subr.mxu0 0.0
    %6292 = vmatpush1.xpose.msra.mxu0 0.0
    %6293 = vmatprep.subr.mxu0 0.0
    %6294 = vmatpush1.xpose.msra.mxu0 0.0
    %6295 = vmatprep.subr.mxu0 0.0
    %6296 = vmatpush1.xpose.msra.mxu0 0.0
    %6297 = vmatprep.subr.mxu0 0.0
    %6298 = vmatpush1.xpose.msra.mxu0 0.0
    %6299 = vmatprep.subr.mxu0 0.0
    %6300 = vmatpush1.xpose.msra.mxu0 0.0
    %6301 = vmatprep.subr.mxu0 0.0
    %6302 = vmatpush1.xpose.msra.mxu0 0.0
    %6303 = vmatprep.subr.mxu0 0.0
    %6304 = vmatpush1.xpose.msra.mxu0 0.0
    %6305 = vmatprep.subr.mxu0 0.0
    %6306 = vmatpush1.xpose.msra.mxu0 0.0
    %6307 = vmatprep.subr.mxu0 0.0
    %6308 = vmatpush1.xpose.msra.mxu0 0.0
    %6309 = vmatprep.subr.mxu0 0.0
    %6310 = vmatpush1.xpose.msra.mxu0 0.0
    %6311 = vmatprep.subr.mxu0 0.0
    %6312 = vmatpush1.xpose.msra.mxu0 0.0
    %6313 = vmatprep.subr.mxu0 0.0
    %6314 = vmatpush1.xpose.msra.mxu0 0.0
    %6315 = vmatprep.subr.mxu0 0.0
    %6316 = vmatpush1.xpose.msra.mxu0 0.0
    %6317 = vmatprep.subr.mxu0 0.0
    %6318 = vmatpush1.xpose.msra.mxu0 0.0
    %6319 = vmatprep.subr.mxu0 0.0
    %6320 = vmatpush1.xpose.msra.mxu0 0.0
    %6321 = vmatprep.subr.mxu0 0.0
    %6322 = vmatpush1.xpose.msra.mxu0 0.0
    %6323 = vmatprep.subr.mxu0 0.0
    %6324 = vmatpush1.xpose.msra.mxu0 0.0
    %6325 = vmatprep.subr.mxu0 0.0
    %6326 = vmatpush1.xpose.msra.mxu0 0.0
    %6327 = vmatprep.subr.mxu0 0.0
    %6328 = vmatpush1.xpose.msra.mxu0 0.0
    %6329 = vmatprep.subr.mxu0 0.0
    %6330 = vmatpush1.xpose.msra.mxu0 0.0
    %6331 = vmatprep.subr.mxu0 0.0
    %6332 = vmatpush1.xpose.msra.mxu0 0.0
    %6333 = vmatprep.subr.mxu0 0.0
    %6334 = vmatpush1.xpose.msra.mxu0 0.0
    %6335 = vmatprep.subr.mxu0 0.0
    %6336 = vmatpush1.xpose.msra.mxu0 0.0
    %6337 = vmatprep.mubr.f32.mxu0 0.0
    %v6338 = vand.u32 %v5843, 4294901760
    %6339 = vmatmul.mubr.f32.gmra.mrb[0].mxu0 %v6338
    %v6340 = vpop.f32.mrb[0].mxu0
    %v6341 = vadd.f32 %v6262, %v6340
    %v6342 = vpop.f32.mrb[0].mxu0
    %6343 = vmatprep.mubr.f32.mxu0 0.0
    %v6344 = vand.u32 %v5846, 4294901760
    %6345 = vmatmul.mubr.f32.gmra.mrb[0].mxu0 %v6344
    %v6346 = vpop.f32.mrb[0].mxu0
    %v6347 = vadd.f32 %v6268, %v6346
    %v6348 = vpop.f32.mrb[0].mxu0
    %6349 = vdwg.mxu0
    %v6350 = vmul.f32 %v5840, %v5840
    %v6351 = vmul.f32 %v5841, %v5841
    %v6352 = vsel %vm2070, 1.0, 0
    %v6355 = vsel %vm2070, %v6350, 0
    %v6358 = vsel %vm2070, %v6351, 0
    %6360 = vmatprep.subr.mxu0 0.0
    %v6361 = vand.u32 %v6355, 4294901760
    %6362 = vmatpush1.xpose.msra.mxu0 %v6361
    %6363 = vmatprep.subr.mxu0 0.0
    %v6364 = vand.u32 %v6358, 4294901760
    %6365 = vmatpush1.xpose.msra.mxu0 %v6364
    %6366 = vmatprep.subr.mxu0 0.0
    %6367 = vmatpush1.xpose.msra.mxu0 0.0
    %6368 = vmatprep.subr.mxu0 0.0
    %6369 = vmatpush1.xpose.msra.mxu0 0.0
    %6370 = vmatprep.subr.mxu0 0.0
    %6371 = vmatpush1.xpose.msra.mxu0 0.0
    %6372 = vmatprep.subr.mxu0 0.0
    %6373 = vmatpush1.xpose.msra.mxu0 0.0
    %6374 = vmatprep.subr.mxu0 0.0
    %6375 = vmatpush1.xpose.msra.mxu0 0.0
    %6376 = vmatprep.subr.mxu0 0.0
    %6377 = vmatpush1.xpose.msra.mxu0 0.0
    %6378 = vmatprep.subr.mxu0 0.0
    %6379 = vmatpush1.xpose.msra.mxu0 0.0
    %6380 = vmatprep.subr.mxu0 0.0
    %6381 = vmatpush1.xpose.msra.mxu0 0.0
    %6382 = vmatprep.subr.mxu0 0.0
    %6383 = vmatpush1.xpose.msra.mxu0 0.0
    %6384 = vmatprep.subr.mxu0 0.0
    %6385 = vmatpush1.xpose.msra.mxu0 0.0
    %6386 = vmatprep.subr.mxu0 0.0
    %6387 = vmatpush1.xpose.msra.mxu0 0.0
    %6388 = vmatprep.subr.mxu0 0.0
    %6389 = vmatpush1.xpose.msra.mxu0 0.0
    %6390 = vmatprep.subr.mxu0 0.0
    %6391 = vmatpush1.xpose.msra.mxu0 0.0
    %6392 = vmatprep.subr.mxu0 0.0
    %6393 = vmatpush1.xpose.msra.mxu0 0.0
    %6394 = vmatprep.subr.mxu0 0.0
    %6395 = vmatpush1.xpose.msra.mxu0 0.0
    %6396 = vmatprep.subr.mxu0 0.0
    %6397 = vmatpush1.xpose.msra.mxu0 0.0
    %6398 = vmatprep.subr.mxu0 0.0
    %6399 = vmatpush1.xpose.msra.mxu0 0.0
    %6400 = vmatprep.subr.mxu0 0.0
    %6401 = vmatpush1.xpose.msra.mxu0 0.0
    %6402 = vmatprep.subr.mxu0 0.0
    %6403 = vmatpush1.xpose.msra.mxu0 0.0
    %6404 = vmatprep.subr.mxu0 0.0
    %6405 = vmatpush1.xpose.msra.mxu0 0.0
    %6406 = vmatprep.subr.mxu0 0.0
    %6407 = vmatpush1.xpose.msra.mxu0 0.0
    %6408 = vmatprep.subr.mxu0 0.0
    %6409 = vmatpush1.xpose.msra.mxu0 0.0
    %6410 = vmatprep.subr.mxu0 0.0
    %6411 = vmatpush1.xpose.msra.mxu0 0.0
    %6412 = vmatprep.subr.mxu0 0.0
    %6413 = vmatpush1.xpose.msra.mxu0 0.0
    %6414 = vmatprep.subr.mxu0 0.0
    %6415 = vmatpush1.xpose.msra.mxu0 0.0
    %6416 = vmatprep.subr.mxu0 0.0
    %6417 = vmatpush1.xpose.msra.mxu0 0.0
    %6418 = vmatprep.subr.mxu0 0.0
    %6419 = vmatpush1.xpose.msra.mxu0 0.0
    %6420 = vmatprep.subr.mxu0 0.0
    %6421 = vmatpush1.xpose.msra.mxu0 0.0
    %6422 = vmatprep.subr.mxu0 0.0
    %6423 = vmatpush1.xpose.msra.mxu0 0.0
    %6424 = vmatprep.subr.mxu0 0.0
    %6425 = vmatpush1.xpose.msra.mxu0 0.0
    %6426 = vmatprep.mubr.f32.mxu0 0.0
    %v6427 = vand.u32 %v6352, 4294901760
    %v6428 = vsub.f32 %v6352, %v6427
    %v6429 = vand.u32 %v6428, 4294901760
    %v6430 = vsub.f32 %v6428, %v6429
    %v6431 = vand.u32 %v6430, 4294901760
    %6432 = vmatmul.mubr.f32.gmra.mrb[0].mxu0 %v6431
    %v6433 = vpop.f32.mrb[0].mxu0
    %v6434 = vadd.f32 0.0, %v6433
    %v6435 = vpop.f32.mrb[0].mxu0
    %6436 = vdwg.mxu0
    %6437 = vmatprep.subr.mxu0 0.0
    %v6438 = vand.u32 %v6355, 4294901760
    %v6439 = vsub.f32 %v6355, %v6438
    %v6440 = vand.u32 %v6439, 4294901760
    %v6441 = vsub.f32 %v6439, %v6440
    %v6442 = vand.u32 %v6441, 4294901760
    %6443 = vmatpush1.xpose.msra.mxu0 %v6442
    %6444 = vmatprep.subr.mxu0 0.0
    %v6445 = vand.u32 %v6358, 4294901760
    %v6446 = vsub.f32 %v6358, %v6445
    %v6447 = vand.u32 %v6446, 4294901760
    %v6448 = vsub.f32 %v6446, %v6447
    %v6449 = vand.u32 %v6448, 4294901760
    %6450 = vmatpush1.xpose.msra.mxu0 %v6449
    %6451 = vmatprep.subr.mxu0 0.0
    %6452 = vmatpush1.xpose.msra.mxu0 0.0
    %6453 = vmatprep.subr.mxu0 0.0
    %6454 = vmatpush1.xpose.msra.mxu0 0.0
    %6455 = vmatprep.subr.mxu0 0.0
    %6456 = vmatpush1.xpose.msra.mxu0 0.0
    %6457 = vmatprep.subr.mxu0 0.0
    %6458 = vmatpush1.xpose.msra.mxu0 0.0
    %6459 = vmatprep.subr.mxu0 0.0
    %6460 = vmatpush1.xpose.msra.mxu0 0.0
    %6461 = vmatprep.subr.mxu0 0.0
    %6462 = vmatpush1.xpose.msra.mxu0 0.0
    %6463 = vmatprep.subr.mxu0 0.0
    %6464 = vmatpush1.xpose.msra.mxu0 0.0
    %6465 = vmatprep.subr.mxu0 0.0
    %6466 = vmatpush1.xpose.msra.mxu0 0.0
    %6467 = vmatprep.subr.mxu0 0.0
    %6468 = vmatpush1.xpose.msra.mxu0 0.0
    %6469 = vmatprep.subr.mxu0 0.0
    %6470 = vmatpush1.xpose.msra.mxu0 0.0
    %6471 = vmatprep.subr.mxu0 0.0
    %6472 = vmatpush1.xpose.msra.mxu0 0.0
    %6473 = vmatprep.subr.mxu0 0.0
    %6474 = vmatpush1.xpose.msra.mxu0 0.0
    %6475 = vmatprep.subr.mxu0 0.0
    %6476 = vmatpush1.xpose.msra.mxu0 0.0
    %6477 = vmatprep.subr.mxu0 0.0
    %6478 = vmatpush1.xpose.msra.mxu0 0.0
    %6479 = vmatprep.subr.mxu0 0.0
    %6480 = vmatpush1.xpose.msra.mxu0 0.0
    %6481 = vmatprep.subr.mxu0 0.0
    %6482 = vmatpush1.xpose.msra.mxu0 0.0
    %6483 = vmatprep.subr.mxu0 0.0
    %6484 = vmatpush1.xpose.msra.mxu0 0.0
    %6485 = vmatprep.subr.mxu0 0.0
    %6486 = vmatpush1.xpose.msra.mxu0 0.0
    %6487 = vmatprep.subr.mxu0 0.0
    %6488 = vmatpush1.xpose.msra.mxu0 0.0
    %6489 = vmatprep.subr.mxu0 0.0
    %6490 = vmatpush1.xpose.msra.mxu0 0.0
    %6491 = vmatprep.subr.mxu0 0.0
    %6492 = vmatpush1.xpose.msra.mxu0 0.0
    %6493 = vmatprep.subr.mxu0 0.0
    %6494 = vmatpush1.xpose.msra.mxu0 0.0
    %6495 = vmatprep.subr.mxu0 0.0
    %6496 = vmatpush1.xpose.msra.mxu0 0.0
    %6497 = vmatprep.subr.mxu0 0.0
    %6498 = vmatpush1.xpose.msra.mxu0 0.0
    %6499 = vmatprep.subr.mxu0 0.0
    %6500 = vmatpush1.xpose.msra.mxu0 0.0
    %6501 = vmatprep.subr.mxu0 0.0
    %6502 = vmatpush1.xpose.msra.mxu0 0.0
    %6503 = vmatprep.subr.mxu0 0.0
    %6504 = vmatpush1.xpose.msra.mxu0 0.0
    %6505 = vmatprep.subr.mxu0 0.0
    %6506 = vmatpush1.xpose.msra.mxu0 0.0
    %6507 = vmatprep.subr.mxu0 0.0
    %6508 = vmatpush1.xpose.msra.mxu0 0.0
    %6509 = vmatprep.subr.mxu0 0.0
    %6510 = vmatpush1.xpose.msra.mxu0 0.0
    %6511 = vmatprep.mubr.f32.mxu0 0.0
    %v6512 = vand.u32 %v6352, 4294901760
    %6513 = vmatmul.mubr.f32.gmra.mrb[0].mxu0 %v6512
    %v6514 = vpop.f32.mrb[0].mxu0
    %v6515 = vadd.f32 %v6434, %v6514
    %v6516 = vpop.f32.mrb[0].mxu0
    %6517 = vdwg.mxu0
    %6518 = vmatprep.subr.mxu0 0.0
    %v6519 = vand.u32 %v6355, 4294901760
    %v6520 = vsub.f32 %v6355, %v6519
    %6521 = vmatpush1.xpose.msra.mxu0 %v6520
    %6522 = vmatprep.subr.mxu0 0.0
    %v6523 = vand.u32 %v6358, 4294901760
    %v6524 = vsub.f32 %v6358, %v6523
    %6525 = vmatpush1.xpose.msra.mxu0 %v6524
    %6526 = vmatprep.subr.mxu0 0.0
    %6527 = vmatpush1.xpose.msra.mxu0 0.0
    %6528 = vmatprep.subr.mxu0 0.0
    %6529 = vmatpush1.xpose.msra.mxu0 0.0
    %6530 = vmatprep.subr.mxu0 0.0
    %6531 = vmatpush1.xpose.msra.mxu0 0.0
    %6532 = vmatprep.subr.mxu0 0.0
    %6533 = vmatpush1.xpose.msra.mxu0 0.0
    %6534 = vmatprep.subr.mxu0 0.0
    %6535 = vmatpush1.xpose.msra.mxu0 0.0
    %6536 = vmatprep.subr.mxu0 0.0
    %6537 = vmatpush1.xpose.msra.mxu0 0.0
    %6538 = vmatprep.subr.mxu0 0.0
    %6539 = vmatpush1.xpose.msra.mxu0 0.0
    %6540 = vmatprep.subr.mxu0 0.0
    %6541 = vmatpush1.xpose.msra.mxu0 0.0
    %6542 = vmatprep.subr.mxu0 0.0
    %6543 = vmatpush1.xpose.msra.mxu0 0.0
    %6544 = vmatprep.subr.mxu0 0.0
    %6545 = vmatpush1.xpose.msra.mxu0 0.0
    %6546 = vmatprep.subr.mxu0 0.0
    %6547 = vmatpush1.xpose.msra.mxu0 0.0
    %6548 = vmatprep.subr.mxu0 0.0
    %6549 = vmatpush1.xpose.msra.mxu0 0.0
    %6550 = vmatprep.subr.mxu0 0.0
    %6551 = vmatpush1.xpose.msra.mxu0 0.0
    %6552 = vmatprep.subr.mxu0 0.0
    %6553 = vmatpush1.xpose.msra.mxu0 0.0
    %6554 = vmatprep.subr.mxu0 0.0
    %6555 = vmatpush1.xpose.msra.mxu0 0.0
    %6556 = vmatprep.subr.mxu0 0.0
    %6557 = vmatpush1.xpose.msra.mxu0 0.0
    %6558 = vmatprep.subr.mxu0 0.0
    %6559 = vmatpush1.xpose.msra.mxu0 0.0
    %6560 = vmatprep.subr.mxu0 0.0
    %6561 = vmatpush1.xpose.msra.mxu0 0.0
    %6562 = vmatprep.subr.mxu0 0.0
    %6563 = vmatpush1.xpose.msra.mxu0 0.0
    %6564 = vmatprep.subr.mxu0 0.0
    %6565 = vmatpush1.xpose.msra.mxu0 0.0
    %6566 = vmatprep.subr.mxu0 0.0
    %6567 = vmatpush1.xpose.msra.mxu0 0.0
    %6568 = vmatprep.subr.mxu0 0.0
    %6569 = vmatpush1.xpose.msra.mxu0 0.0
    %6570 = vmatprep.subr.mxu0 0.0
    %6571 = vmatpush1.xpose.msra.mxu0 0.0
    %6572 = vmatprep.subr.mxu0 0.0
    %6573 = vmatpush1.xpose.msra.mxu0 0.0
    %6574 = vmatprep.subr.mxu0 0.0
    %6575 = vmatpush1.xpose.msra.mxu0 0.0
    %6576 = vmatprep.subr.mxu0 0.0
    %6577 = vmatpush1.xpose.msra.mxu0 0.0
    %6578 = vmatprep.subr.mxu0 0.0
    %6579 = vmatpush1.xpose.msra.mxu0 0.0
    %6580 = vmatprep.subr.mxu0 0.0
    %6581 = vmatpush1.xpose.msra.mxu0 0.0
    %6582 = vmatprep.subr.mxu0 0.0
    %6583 = vmatpush1.xpose.msra.mxu0 0.0
    %6584 = vmatprep.subr.mxu0 0.0
    %6585 = vmatpush1.xpose.msra.mxu0 0.0
    %6586 = vmatprep.mubr.f32.mxu0 0.0
    %v6587 = vand.u32 %v6352, 4294901760
    %v6588 = vsub.f32 %v6352, %v6587
    %6589 = vmatmul.mubr.f32.gmra.mrb[0].mxu0 %v6588
    %v6590 = vpop.f32.mrb[0].mxu0
    %v6591 = vadd.f32 %v6515, %v6590
    %v6592 = vpop.f32.mrb[0].mxu0
    %6593 = vdwg.mxu0
    %6594 = vmatprep.subr.mxu0 0.0
    %v6595 = vand.u32 %v6355, 4294901760
    %6596 = vmatpush1.xpose.msra.mxu0 %v6595
    %6597 = vmatprep.subr.mxu0 0.0
    %v6598 = vand.u32 %v6358, 4294901760
    %6599 = vmatpush1.xpose.msra.mxu0 %v6598
    %6600 = vmatprep.subr.mxu0 0.0
    %6601 = vmatpush1.xpose.msra.mxu0 0.0
    %6602 = vmatprep.subr.mxu0 0.0
    %6603 = vmatpush1.xpose.msra.mxu0 0.0
    %6604 = vmatprep.subr.mxu0 0.0
    %6605 = vmatpush1.xpose.msra.mxu0 0.0
    %6606 = vmatprep.subr.mxu0 0.0
    %6607 = vmatpush1.xpose.msra.mxu0 0.0
    %6608 = vmatprep.subr.mxu0 0.0
    %6609 = vmatpush1.xpose.msra.mxu0 0.0
    %6610 = vmatprep.subr.mxu0 0.0
    %6611 = vmatpush1.xpose.msra.mxu0 0.0
    %6612 = vmatprep.subr.mxu0 0.0
    %6613 = vmatpush1.xpose.msra.mxu0 0.0
    %6614 = vmatprep.subr.mxu0 0.0
    %6615 = vmatpush1.xpose.msra.mxu0 0.0
    %6616 = vmatprep.subr.mxu0 0.0
    %6617 = vmatpush1.xpose.msra.mxu0 0.0
    %6618 = vmatprep.subr.mxu0 0.0
    %6619 = vmatpush1.xpose.msra.mxu0 0.0
    %6620 = vmatprep.subr.mxu0 0.0
    %6621 = vmatpush1.xpose.msra.mxu0 0.0
    %6622 = vmatprep.subr.mxu0 0.0
    %6623 = vmatpush1.xpose.msra.mxu0 0.0
    %6624 = vmatprep.subr.mxu0 0.0
    %6625 = vmatpush1.xpose.msra.mxu0 0.0
    %6626 = vmatprep.subr.mxu0 0.0
    %6627 = vmatpush1.xpose.msra.mxu0 0.0
    %6628 = vmatprep.subr.mxu0 0.0
    %6629 = vmatpush1.xpose.msra.mxu0 0.0
    %6630 = vmatprep.subr.mxu0 0.0
    %6631 = vmatpush1.xpose.msra.mxu0 0.0
    %6632 = vmatprep.subr.mxu0 0.0
    %6633 = vmatpush1.xpose.msra.mxu0 0.0
    %6634 = vmatprep.subr.mxu0 0.0
    %6635 = vmatpush1.xpose.msra.mxu0 0.0
    %6636 = vmatprep.subr.mxu0 0.0
    %6637 = vmatpush1.xpose.msra.mxu0 0.0
    %6638 = vmatprep.subr.mxu0 0.0
    %6639 = vmatpush1.xpose.msra.mxu0 0.0
    %6640 = vmatprep.subr.mxu0 0.0
    %6641 = vmatpush1.xpose.msra.mxu0 0.0
    %6642 = vmatprep.subr.mxu0 0.0
    %6643 = vmatpush1.xpose.msra.mxu0 0.0
    %6644 = vmatprep.subr.mxu0 0.0
    %6645 = vmatpush1.xpose.msra.mxu0 0.0
    %6646 = vmatprep.subr.mxu0 0.0
    %6647 = vmatpush1.xpose.msra.mxu0 0.0
    %6648 = vmatprep.subr.mxu0 0.0
    %6649 = vmatpush1.xpose.msra.mxu0 0.0
    %6650 = vmatprep.subr.mxu0 0.0
    %6651 = vmatpush1.xpose.msra.mxu0 0.0
    %6652 = vmatprep.subr.mxu0 0.0
    %6653 = vmatpush1.xpose.msra.mxu0 0.0
    %6654 = vmatprep.subr.mxu0 0.0
    %6655 = vmatpush1.xpose.msra.mxu0 0.0
    %6656 = vmatprep.subr.mxu0 0.0
    %6657 = vmatpush1.xpose.msra.mxu0 0.0
    %6658 = vmatprep.subr.mxu0 0.0
    %6659 = vmatpush1.xpose.msra.mxu0 0.0
    %6660 = vmatprep.mubr.f32.mxu0 0.0
    %v6661 = vand.u32 %v6352, 4294901760
    %v6662 = vsub.f32 %v6352, %v6661
    %v6663 = vand.u32 %v6662, 4294901760
    %6664 = vmatmul.mubr.f32.gmra.mrb[0].mxu0 %v6663
    %v6665 = vpop.f32.mrb[0].mxu0
    %v6666 = vadd.f32 %v6591, %v6665
    %v6667 = vpop.f32.mrb[0].mxu0
    %6668 = vdwg.mxu0
    %6669 = vmatprep.subr.mxu0 0.0
    %v6670 = vand.u32 %v6355, 4294901760
    %v6671 = vsub.f32 %v6355, %v6670
    %v6672 = vand.u32 %v6671, 4294901760
    %6673 = vmatpush1.xpose.msra.mxu0 %v6672
    %6674 = vmatprep.subr.mxu0 0.0
    %v6675 = vand.u32 %v6358, 4294901760
    %v6676 = vsub.f32 %v6358, %v6675
    %v6677 = vand.u32 %v6676, 4294901760
    %6678 = vmatpush1.xpose.msra.mxu0 %v6677
    %6679 = vmatprep.subr.mxu0 0.0
    %6680 = vmatpush1.xpose.msra.mxu0 0.0
    %6681 = vmatprep.subr.mxu0 0.0
    %6682 = vmatpush1.xpose.msra.mxu0 0.0
    %6683 = vmatprep.subr.mxu0 0.0
    %6684 = vmatpush1.xpose.msra.mxu0 0.0
    %6685 = vmatprep.subr.mxu0 0.0
    %6686 = vmatpush1.xpose.msra.mxu0 0.0
    %6687 = vmatprep.subr.mxu0 0.0
    %6688 = vmatpush1.xpose.msra.mxu0 0.0
    %6689 = vmatprep.subr.mxu0 0.0
    %6690 = vmatpush1.xpose.msra.mxu0 0.0
    %6691 = vmatprep.subr.mxu0 0.0
    %6692 = vmatpush1.xpose.msra.mxu0 0.0
    %6693 = vmatprep.subr.mxu0 0.0
    %6694 = vmatpush1.xpose.msra.mxu0 0.0
    %6695 = vmatprep.subr.mxu0 0.0
    %6696 = vmatpush1.xpose.msra.mxu0 0.0
    %6697 = vmatprep.subr.mxu0 0.0
    %6698 = vmatpush1.xpose.msra.mxu0 0.0
    %6699 = vmatprep.subr.mxu0 0.0
    %6700 = vmatpush1.xpose.msra.mxu0 0.0
    %6701 = vmatprep.subr.mxu0 0.0
    %6702 = vmatpush1.xpose.msra.mxu0 0.0
    %6703 = vmatprep.subr.mxu0 0.0
    %6704 = vmatpush1.xpose.msra.mxu0 0.0
    %6705 = vmatprep.subr.mxu0 0.0
    %6706 = vmatpush1.xpose.msra.mxu0 0.0
    %6707 = vmatprep.subr.mxu0 0.0
    %6708 = vmatpush1.xpose.msra.mxu0 0.0
    %6709 = vmatprep.subr.mxu0 0.0
    %6710 = vmatpush1.xpose.msra.mxu0 0.0
    %6711 = vmatprep.subr.mxu0 0.0
    %6712 = vmatpush1.xpose.msra.mxu0 0.0
    %6713 = vmatprep.subr.mxu0 0.0
    %6714 = vmatpush1.xpose.msra.mxu0 0.0
    %6715 = vmatprep.subr.mxu0 0.0
    %6716 = vmatpush1.xpose.msra.mxu0 0.0
    %6717 = vmatprep.subr.mxu0 0.0
    %6718 = vmatpush1.xpose.msra.mxu0 0.0
    %6719 = vmatprep.subr.mxu0 0.0
    %6720 = vmatpush1.xpose.msra.mxu0 0.0
    %6721 = vmatprep.subr.mxu0 0.0
    %6722 = vmatpush1.xpose.msra.mxu0 0.0
    %6723 = vmatprep.subr.mxu0 0.0
    %6724 = vmatpush1.xpose.msra.mxu0 0.0
    %6725 = vmatprep.subr.mxu0 0.0
    %6726 = vmatpush1.xpose.msra.mxu0 0.0
    %6727 = vmatprep.subr.mxu0 0.0
    %6728 = vmatpush1.xpose.msra.mxu0 0.0
    %6729 = vmatprep.subr.mxu0 0.0
    %6730 = vmatpush1.xpose.msra.mxu0 0.0
    %6731 = vmatprep.subr.mxu0 0.0
    %6732 = vmatpush1.xpose.msra.mxu0 0.0
    %6733 = vmatprep.subr.mxu0 0.0
    %6734 = vmatpush1.xpose.msra.mxu0 0.0
    %6735 = vmatprep.subr.mxu0 0.0
    %6736 = vmatpush1.xpose.msra.mxu0 0.0
    %6737 = vmatprep.subr.mxu0 0.0
    %6738 = vmatpush1.xpose.msra.mxu0 0.0
    %6739 = vmatprep.mubr.f32.mxu0 0.0
    %v6740 = vand.u32 %v6352, 4294901760
    %6741 = vmatmul.mubr.f32.gmra.mrb[0].mxu0 %v6740
    %v6742 = vpop.f32.mrb[0].mxu0
    %v6743 = vadd.f32 %v6666, %v6742
    %v6744 = vpop.f32.mrb[0].mxu0
    %6745 = vdwg.mxu0
    %6746 = vmatprep.subr.mxu0 0.0
    %v6747 = vand.u32 %v6355, 4294901760
    %6748 = vmatpush1.xpose.msra.mxu0 %v6747
    %6749 = vmatprep.subr.mxu0 0.0
    %v6750 = vand.u32 %v6358, 4294901760
    %6751 = vmatpush1.xpose.msra.mxu0 %v6750
    %6752 = vmatprep.subr.mxu0 0.0
    %6753 = vmatpush1.xpose.msra.mxu0 0.0
    %6754 = vmatprep.subr.mxu0 0.0
    %6755 = vmatpush1.xpose.msra.mxu0 0.0
    %6756 = vmatprep.subr.mxu0 0.0
    %6757 = vmatpush1.xpose.msra.mxu0 0.0
    %6758 = vmatprep.subr.mxu0 0.0
    %6759 = vmatpush1.xpose.msra.mxu0 0.0
    %6760 = vmatprep.subr.mxu0 0.0
    %6761 = vmatpush1.xpose.msra.mxu0 0.0
    %6762 = vmatprep.subr.mxu0 0.0
    %6763 = vmatpush1.xpose.msra.mxu0 0.0
    %6764 = vmatprep.subr.mxu0 0.0
    %6765 = vmatpush1.xpose.msra.mxu0 0.0
    %6766 = vmatprep.subr.mxu0 0.0
    %6767 = vmatpush1.xpose.msra.mxu0 0.0
    %6768 = vmatprep.subr.mxu0 0.0
    %6769 = vmatpush1.xpose.msra.mxu0 0.0
    %6770 = vmatprep.subr.mxu0 0.0
    %6771 = vmatpush1.xpose.msra.mxu0 0.0
    %6772 = vmatprep.subr.mxu0 0.0
    %6773 = vmatpush1.xpose.msra.mxu0 0.0
    %6774 = vmatprep.subr.mxu0 0.0
    %6775 = vmatpush1.xpose.msra.mxu0 0.0
    %6776 = vmatprep.subr.mxu0 0.0
    %6777 = vmatpush1.xpose.msra.mxu0 0.0
    %6778 = vmatprep.subr.mxu0 0.0
    %6779 = vmatpush1.xpose.msra.mxu0 0.0
    %6780 = vmatprep.subr.mxu0 0.0
    %6781 = vmatpush1.xpose.msra.mxu0 0.0
    %6782 = vmatprep.subr.mxu0 0.0
    %6783 = vmatpush1.xpose.msra.mxu0 0.0
    %6784 = vmatprep.subr.mxu0 0.0
    %6785 = vmatpush1.xpose.msra.mxu0 0.0
    %6786 = vmatprep.subr.mxu0 0.0
    %6787 = vmatpush1.xpose.msra.mxu0 0.0
    %6788 = vmatprep.subr.mxu0 0.0
    %6789 = vmatpush1.xpose.msra.mxu0 0.0
    %6790 = vmatprep.subr.mxu0 0.0
    %6791 = vmatpush1.xpose.msra.mxu0 0.0
    %6792 = vmatprep.subr.mxu0 0.0
    %6793 = vmatpush1.xpose.msra.mxu0 0.0
    %6794 = vmatprep.subr.mxu0 0.0
    %6795 = vmatpush1.xpose.msra.mxu0 0.0
    %6796 = vmatprep.subr.mxu0 0.0
    %6797 = vmatpush1.xpose.msra.mxu0 0.0
    %6798 = vmatprep.subr.mxu0 0.0
    %6799 = vmatpush1.xpose.msra.mxu0 0.0
    %6800 = vmatprep.subr.mxu0 0.0
    %6801 = vmatpush1.xpose.msra.mxu0 0.0
    %6802 = vmatprep.subr.mxu0 0.0
    %6803 = vmatpush1.xpose.msra.mxu0 0.0
    %6804 = vmatprep.subr.mxu0 0.0
    %6805 = vmatpush1.xpose.msra.mxu0 0.0
    %6806 = vmatprep.subr.mxu0 0.0
    %6807 = vmatpush1.xpose.msra.mxu0 0.0
    %6808 = vmatprep.subr.mxu0 0.0
    %6809 = vmatpush1.xpose.msra.mxu0 0.0
    %6810 = vmatprep.subr.mxu0 0.0
    %6811 = vmatpush1.xpose.msra.mxu0 0.0
    %6812 = vmatprep.mubr.f32.mxu0 0.0
    %v6813 = vand.u32 %v6352, 4294901760
    %6814 = vmatmul.mubr.f32.gmra.mrb[0].mxu0 %v6813
    %v6815 = vpop.f32.mrb[0].mxu0
    %v6816 = vadd.f32 %v6743, %v6815
    %v6817 = vpop.f32.mrb[0].mxu0
    %6818 = vdwg.mxu0
    %v6819 = vmul.f32 %v6341, 2.0
    %v6820 = vmul.f32 %v6347, 2.0
    %v6821 = vlaneseq
    %v6822 = vshrl.u32 %v6821, 7
    %v6823 = vsub.s32 0, %v6822
    %v6824 = vrot.slane %v6816, %v6823
    %v6825 = vsub.f32 %v6824, %v6819
    %v6826 = vsub.f32 %v6824, %v6820
    %v6827 = vld [vmem:[#allocation2 + $0x48] sm:$0xff]
    %v6828 = vld [vmem:[#allocation2 + $0x50] sm:$0xff]
    %v6829 = vld [vmem:[#allocation2 + $0x58] sm:$0xff]
    %v6830 = vld [vmem:[#allocation2 + $0x60] sm:$0xff]
    %6831 = vmatprep.subr.mxu0 0.0
    %v6832 = vand.u32 %v6827, 4294901760
    %6833 = vmatpush1.msra.mxu0 %v6832
    %6834 = vmatprep.subr.mxu0 0.0
    %v6835 = vand.u32 %v6828, 4294901760
    %6836 = vmatpush1.msra.mxu0 %v6835
    %6837 = vmatprep.subr.mxu0 0.0
    %v6838 = vand.u32 %v6829, 4294901760
    %6839 = vmatpush1.msra.mxu0 %v6838
    %6840 = vmatprep.subr.mxu0 0.0
    %v6841 = vand.u32 %v6830, 4294901760
    %6842 = vmatpush1.msra.mxu0 %v6841
    %6843 = vmatprep.subr.mxu0 0.0
    %6844 = vmatpush1.msra.mxu0 0.0
    %6845 = vmatprep.subr.mxu0 0.0
    %6846 = vmatpush1.msra.mxu0 0.0
    %6847 = vmatprep.subr.mxu0 0.0
    %6848 = vmatpush1.msra.mxu0 0.0
    %6849 = vmatprep.subr.mxu0 0.0
    %6850 = vmatpush1.msra.mxu0 0.0
    %6851 = vmatprep.subr.mxu0 0.0
    %6852 = vmatpush1.msra.mxu0 0.0
    %6853 = vmatprep.subr.mxu0 0.0
    %6854 = vmatpush1.msra.mxu0 0.0
    %6855 = vmatprep.subr.mxu0 0.0
    %6856 = vmatpush1.msra.mxu0 0.0
    %6857 = vmatprep.subr.mxu0 0.0
    %6858 = vmatpush1.msra.mxu0 0.0
    %6859 = vmatprep.subr.mxu0 0.0
    %6860 = vmatpush1.msra.mxu0 0.0
    %6861 = vmatprep.subr.mxu0 0.0
    %6862 = vmatpush1.msra.mxu0 0.0
    %6863 = vmatprep.subr.mxu0 0.0
    %6864 = vmatpush1.msra.mxu0 0.0
    %6865 = vmatprep.subr.mxu0 0.0
    %6866 = vmatpush1.msra.mxu0 0.0
    %6867 = vmatprep.subr.mxu0 0.0
    %6868 = vmatpush1.msra.mxu0 0.0
    %6869 = vmatprep.subr.mxu0 0.0
    %6870 = vmatpush1.msra.mxu0 0.0
    %6871 = vmatprep.subr.mxu0 0.0
    %6872 = vmatpush1.msra.mxu0 0.0
    %6873 = vmatprep.subr.mxu0 0.0
    %6874 = vmatpush1.msra.mxu0 0.0
    %6875 = vmatprep.subr.mxu0 0.0
    %6876 = vmatpush1.msra.mxu0 0.0
    %6877 = vmatprep.subr.mxu0 0.0
    %6878 = vmatpush1.msra.mxu0 0.0
    %6879 = vmatprep.subr.mxu0 0.0
    %6880 = vmatpush1.msra.mxu0 0.0
    %6881 = vmatprep.subr.mxu0 0.0
    %6882 = vmatpush1.msra.mxu0 0.0
    %6883 = vmatprep.subr.mxu0 0.0
    %6884 = vmatpush1.msra.mxu0 0.0
    %6885 = vmatprep.subr.mxu0 0.0
    %6886 = vmatpush1.msra.mxu0 0.0
    %6887 = vmatprep.subr.mxu0 0.0
    %6888 = vmatpush1.msra.mxu0 0.0
    %6889 = vmatprep.subr.mxu0 0.0
    %6890 = vmatpush1.msra.mxu0 0.0
    %6891 = vmatprep.subr.mxu0 0.0
    %6892 = vmatpush1.msra.mxu0 0.0
    %6893 = vmatprep.subr.mxu0 0.0
    %6894 = vmatpush1.msra.mxu0 0.0
    %6895 = vmatprep.subr.mxu0 0.0
    %6896 = vmatpush1.msra.mxu0 0.0
    %6897 = vmatprep.subr.mxu0 0.0
    %6898 = vmatpush1.msra.mxu0 0.0
    %6899 = vmatprep.mubr.f32.mxu0 0.0
    %v6900 = vand.u32 %v5843, 4294901760
    %v6901 = vsub.f32 %v5843, %v6900
    %v6902 = vand.u32 %v6901, 4294901760
    %v6903 = vsub.f32 %v6901, %v6902
    %v6904 = vand.u32 %v6903, 4294901760
    %6905 = vmatmul.mubr.f32.gmra.mrb[0].mxu0 %v6904
    %v6906 = vpop.f32.mrb[0].mxu0
    %v6907 = vadd.f32 0.0, %v6906
    %v6908 = vpop.f32.mrb[0].mxu0
    %6909 = vmatprep.mubr.f32.mxu0 0.0
    %v6910 = vand.u32 %v5846, 4294901760
    %v6911 = vsub.f32 %v5846, %v6910
    %v6912 = vand.u32 %v6911, 4294901760
    %v6913 = vsub.f32 %v6911, %v6912
    %v6914 = vand.u32 %v6913, 4294901760
    %6915 = vmatmul.mubr.f32.gmra.mrb[0].mxu0 %v6914
    %v6916 = vpop.f32.mrb[0].mxu0
    %v6917 = vadd.f32 0.0, %v6916
    %v6918 = vpop.f32.mrb[0].mxu0
    %6919 = vdwg.mxu0
    %6920 = vmatprep.subr.mxu0 0.0
    %v6921 = vand.u32 %v6827, 4294901760
    %v6922 = vsub.f32 %v6827, %v6921
    %v6923 = vand.u32 %v6922, 4294901760
    %v6924 = vsub.f32 %v6922, %v6923
    %v6925 = vand.u32 %v6924, 4294901760
    %6926 = vmatpush1.msra.mxu0 %v6925
    %6927 = vmatprep.subr.mxu0 0.0
    %v6928 = vand.u32 %v6828, 4294901760
    %v6929 = vsub.f32 %v6828, %v6928
    %v6930 = vand.u32 %v6929, 4294901760
    %v6931 = vsub.f32 %v6929, %v6930
    %v6932 = vand.u32 %v6931, 4294901760
    %6933 = vmatpush1.msra.mxu0 %v6932
    %6934 = vmatprep.subr.mxu0 0.0
    %v6935 = vand.u32 %v6829, 4294901760
    %v6936 = vsub.f32 %v6829, %v6935
    %v6937 = vand.u32 %v6936, 4294901760
    %v6938 = vsub.f32 %v6936, %v6937
    %v6939 = vand.u32 %v6938, 4294901760
    %6940 = vmatpush1.msra.mxu0 %v6939
    %6941 = vmatprep.subr.mxu0 0.0
    %v6942 = vand.u32 %v6830, 4294901760
    %v6943 = vsub.f32 %v6830, %v6942
    %v6944 = vand.u32 %v6943, 4294901760
    %v6945 = vsub.f32 %v6943, %v6944
    %v6946 = vand.u32 %v6945, 4294901760
    %6947 = vmatpush1.msra.mxu0 %v6946
    %6948 = vmatprep.subr.mxu0 0.0
    %6949 = vmatpush1.msra.mxu0 0.0
    %6950 = vmatprep.subr.mxu0 0.0
    %6951 = vmatpush1.msra.mxu0 0.0
    %6952 = vmatprep.subr.mxu0 0.0
    %6953 = vmatpush1.msra.mxu0 0.0
    %6954 = vmatprep.subr.mxu0 0.0
    %6955 = vmatpush1.msra.mxu0 0.0
    %6956 = vmatprep.subr.mxu0 0.0
    %6957 = vmatpush1.msra.mxu0 0.0
    %6958 = vmatprep.subr.mxu0 0.0
    %6959 = vmatpush1.msra.mxu0 0.0
    %6960 = vmatprep.subr.mxu0 0.0
    %6961 = vmatpush1.msra.mxu0 0.0
    %6962 = vmatprep.subr.mxu0 0.0
    %6963 = vmatpush1.msra.mxu0 0.0
    %6964 = vmatprep.subr.mxu0 0.0
    %6965 = vmatpush1.msra.mxu0 0.0
    %6966 = vmatprep.subr.mxu0 0.0
    %6967 = vmatpush1.msra.mxu0 0.0
    %6968 = vmatprep.subr.mxu0 0.0
    %6969 = vmatpush1.msra.mxu0 0.0
    %6970 = vmatprep.subr.mxu0 0.0
    %6971 = vmatpush1.msra.mxu0 0.0
    %6972 = vmatprep.subr.mxu0 0.0
    %6973 = vmatpush1.msra.mxu0 0.0
    %6974 = vmatprep.subr.mxu0 0.0
    %6975 = vmatpush1.msra.mxu0 0.0
    %6976 = vmatprep.subr.mxu0 0.0
    %6977 = vmatpush1.msra.mxu0 0.0
    %6978 = vmatprep.subr.mxu0 0.0
    %6979 = vmatpush1.msra.mxu0 0.0
    %6980 = vmatprep.subr.mxu0 0.0
    %6981 = vmatpush1.msra.mxu0 0.0
    %6982 = vmatprep.subr.mxu0 0.0
    %6983 = vmatpush1.msra.mxu0 0.0
    %6984 = vmatprep.subr.mxu0 0.0
    %6985 = vmatpush1.msra.mxu0 0.0
    %6986 = vmatprep.subr.mxu0 0.0
    %6987 = vmatpush1.msra.mxu0 0.0
    %6988 = vmatprep.subr.mxu0 0.0
    %6989 = vmatpush1.msra.mxu0 0.0
    %6990 = vmatprep.subr.mxu0 0.0
    %6991 = vmatpush1.msra.mxu0 0.0
    %6992 = vmatprep.subr.mxu0 0.0
    %6993 = vmatpush1.msra.mxu0 0.0
    %6994 = vmatprep.subr.mxu0 0.0
    %6995 = vmatpush1.msra.mxu0 0.0
    %6996 = vmatprep.subr.mxu0 0.0
    %6997 = vmatpush1.msra.mxu0 0.0
    %6998 = vmatprep.subr.mxu0 0.0
    %6999 = vmatpush1.msra.mxu0 0.0
    %7000 = vmatprep.subr.mxu0 0.0
    %7001 = vmatpush1.msra.mxu0 0.0
    %7002 = vmatprep.subr.mxu0 0.0
    %7003 = vmatpush1.msra.mxu0 0.0
    %7004 = vmatprep.mubr.f32.mxu0 0.0
    %v7005 = vand.u32 %v5843, 4294901760
    %7006 = vmatmul.mubr.f32.gmra.mrb[0].mxu0 %v7005
    %v7007 = vpop.f32.mrb[0].mxu0
    %v7008 = vadd.f32 %v6907, %v7007
    %v7009 = vpop.f32.mrb[0].mxu0
    %7010 = vmatprep.mubr.f32.mxu0 0.0
    %v7011 = vand.u32 %v5846, 4294901760
    %7012 = vmatmul.mubr.f32.gmra.mrb[0].mxu0 %v7011
    %v7013 = vpop.f32.mrb[0].mxu0
    %v7014 = vadd.f32 %v6917, %v7013
    %v7015 = vpop.f32.mrb[0].mxu0
    %7016 = vdwg.mxu0
    %7017 = vmatprep.subr.mxu0 0.0
    %v7018 = vand.u32 %v6827, 4294901760
    %v7019 = vsub.f32 %v6827, %v7018
    %7020 = vmatpush1.msra.mxu0 %v7019
    %7021 = vmatprep.subr.mxu0 0.0
    %v7022 = vand.u32 %v6828, 4294901760
    %v7023 = vsub.f32 %v6828, %v7022
    %7024 = vmatpush1.msra.mxu0 %v7023
    %7025 = vmatprep.subr.mxu0 0.0
    %v7026 = vand.u32 %v6829, 4294901760
    %v7027 = vsub.f32 %v6829, %v7026
    %7028 = vmatpush1.msra.mxu0 %v7027
    %7029 = vmatprep.subr.mxu0 0.0
    %v7030 = vand.u32 %v6830, 4294901760
    %v7031 = vsub.f32 %v6830, %v7030
    %7032 = vmatpush1.msra.mxu0 %v7031
    %7033 = vmatprep.subr.mxu0 0.0
    %7034 = vmatpush1.msra.mxu0 0.0
    %7035 = vmatprep.subr.mxu0 0.0
    %7036 = vmatpush1.msra.mxu0 0.0
    %7037 = vmatprep.subr.mxu0 0.0
    %7038 = vmatpush1.msra.mxu0 0.0
    %7039 = vmatprep.subr.mxu0 0.0
    %7040 = vmatpush1.msra.mxu0 0.0
    %7041 = vmatprep.subr.mxu0 0.0
    %7042 = vmatpush1.msra.mxu0 0.0
    %7043 = vmatprep.subr.mxu0 0.0
    %7044 = vmatpush1.msra.mxu0 0.0
    %7045 = vmatprep.subr.mxu0 0.0
    %7046 = vmatpush1.msra.mxu0 0.0
    %7047 = vmatprep.subr.mxu0 0.0
    %7048 = vmatpush1.msra.mxu0 0.0
    %7049 = vmatprep.subr.mxu0 0.0
    %7050 = vmatpush1.msra.mxu0 0.0
    %7051 = vmatprep.subr.mxu0 0.0
    %7052 = vmatpush1.msra.mxu0 0.0
    %7053 = vmatprep.subr.mxu0 0.0
    %7054 = vmatpush1.msra.mxu0 0.0
    %7055 = vmatprep.subr.mxu0 0.0
    %7056 = vmatpush1.msra.mxu0 0.0
    %7057 = vmatprep.subr.mxu0 0.0
    %7058 = vmatpush1.msra.mxu0 0.0
    %7059 = vmatprep.subr.mxu0 0.0
    %7060 = vmatpush1.msra.mxu0 0.0
    %7061 = vmatprep.subr.mxu0 0.0
    %7062 = vmatpush1.msra.mxu0 0.0
    %7063 = vmatprep.subr.mxu0 0.0
    %7064 = vmatpush1.msra.mxu0 0.0
    %7065 = vmatprep.subr.mxu0 0.0
    %7066 = vmatpush1.msra.mxu0 0.0
    %7067 = vmatprep.subr.mxu0 0.0
    %7068 = vmatpush1.msra.mxu0 0.0
    %7069 = vmatprep.subr.mxu0 0.0
    %7070 = vmatpush1.msra.mxu0 0.0
    %7071 = vmatprep.subr.mxu0 0.0
    %7072 = vmatpush1.msra.mxu0 0.0
    %7073 = vmatprep.subr.mxu0 0.0
    %7074 = vmatpush1.msra.mxu0 0.0
    %7075 = vmatprep.subr.mxu0 0.0
    %7076 = vmatpush1.msra.mxu0 0.0
    %7077 = vmatprep.subr.mxu0 0.0
    %7078 = vmatpush1.msra.mxu0 0.0
    %7079 = vmatprep.subr.mxu0 0.0
    %7080 = vmatpush1.msra.mxu0 0.0
    %7081 = vmatprep.subr.mxu0 0.0
    %7082 = vmatpush1.msra.mxu0 0.0
    %7083 = vmatprep.subr.mxu0 0.0
    %7084 = vmatpush1.msra.mxu0 0.0
    %7085 = vmatprep.subr.mxu0 0.0
    %7086 = vmatpush1.msra.mxu0 0.0
    %7087 = vmatprep.subr.mxu0 0.0
    %7088 = vmatpush1.msra.mxu0 0.0
    %7089 = vmatprep.mubr.f32.mxu0 0.0
    %v7090 = vand.u32 %v5843, 4294901760
    %v7091 = vsub.f32 %v5843, %v7090
    %7092 = vmatmul.mubr.f32.gmra.mrb[0].mxu0 %v7091
    %v7093 = vpop.f32.mrb[0].mxu0
    %v7094 = vadd.f32 %v7008, %v7093
    %v7095 = vpop.f32.mrb[0].mxu0
    %7096 = vmatprep.mubr.f32.mxu0 0.0
    %v7097 = vand.u32 %v5846, 4294901760
    %v7098 = vsub.f32 %v5846, %v7097
    %7099 = vmatmul.mubr.f32.gmra.mrb[0].mxu0 %v7098
    %v7100 = vpop.f32.mrb[0].mxu0
    %v7101 = vadd.f32 %v7014, %v7100
    %v7102 = vpop.f32.mrb[0].mxu0
    %7103 = vdwg.mxu0
    %7104 = vmatprep.subr.mxu0 0.0
    %v7105 = vand.u32 %v6827, 4294901760
    %7106 = vmatpush1.msra.mxu0 %v7105
    %7107 = vmatprep.subr.mxu0 0.0
    %v7108 = vand.u32 %v6828, 4294901760
    %7109 = vmatpush1.msra.mxu0 %v7108
    %7110 = vmatprep.subr.mxu0 0.0
    %v7111 = vand.u32 %v6829, 4294901760
    %7112 = vmatpush1.msra.mxu0 %v7111
    %7113 = vmatprep.subr.mxu0 0.0
    %v7114 = vand.u32 %v6830, 4294901760
    %7115 = vmatpush1.msra.mxu0 %v7114
    %7116 = vmatprep.subr.mxu0 0.0
    %7117 = vmatpush1.msra.mxu0 0.0
    %7118 = vmatprep.subr.mxu0 0.0
    %7119 = vmatpush1.msra.mxu0 0.0
    %7120 = vmatprep.subr.mxu0 0.0
    %7121 = vmatpush1.msra.mxu0 0.0
    %7122 = vmatprep.subr.mxu0 0.0
    %7123 = vmatpush1.msra.mxu0 0.0
    %7124 = vmatprep.subr.mxu0 0.0
    %7125 = vmatpush1.msra.mxu0 0.0
    %7126 = vmatprep.subr.mxu0 0.0
    %7127 = vmatpush1.msra.mxu0 0.0
    %7128 = vmatprep.subr.mxu0 0.0
    %7129 = vmatpush1.msra.mxu0 0.0
    %7130 = vmatprep.subr.mxu0 0.0
    %7131 = vmatpush1.msra.mxu0 0.0
    %7132 = vmatprep.subr.mxu0 0.0
    %7133 = vmatpush1.msra.mxu0 0.0
    %7134 = vmatprep.subr.mxu0 0.0
    %7135 = vmatpush1.msra.mxu0 0.0
    %7136 = vmatprep.subr.mxu0 0.0
    %7137 = vmatpush1.msra.mxu0 0.0
    %7138 = vmatprep.subr.mxu0 0.0
    %7139 = vmatpush1.msra.mxu0 0.0
    %7140 = vmatprep.subr.mxu0 0.0
    %7141 = vmatpush1.msra.mxu0 0.0
    %7142 = vmatprep.subr.mxu0 0.0
    %7143 = vmatpush1.msra.mxu0 0.0
    %7144 = vmatprep.subr.mxu0 0.0
    %7145 = vmatpush1.msra.mxu0 0.0
    %7146 = vmatprep.subr.mxu0 0.0
    %7147 = vmatpush1.msra.mxu0 0.0
    %7148 = vmatprep.subr.mxu0 0.0
    %7149 = vmatpush1.msra.mxu0 0.0
    %7150 = vmatprep.subr.mxu0 0.0
    %7151 = vmatpush1.msra.mxu0 0.0
    %7152 = vmatprep.subr.mxu0 0.0
    %7153 = vmatpush1.msra.mxu0 0.0
    %7154 = vmatprep.subr.mxu0 0.0
    %7155 = vmatpush1.msra.mxu0 0.0
    %7156 = vmatprep.subr.mxu0 0.0
    %7157 = vmatpush1.msra.mxu0 0.0
    %7158 = vmatprep.subr.mxu0 0.0
    %7159 = vmatpush1.msra.mxu0 0.0
    %7160 = vmatprep.subr.mxu0 0.0
    %7161 = vmatpush1.msra.mxu0 0.0
    %7162 = vmatprep.subr.mxu0 0.0
    %7163 = vmatpush1.msra.mxu0 0.0
    %7164 = vmatprep.subr.mxu0 0.0
    %7165 = vmatpush1.msra.mxu0 0.0
    %7166 = vmatprep.subr.mxu0 0.0
    %7167 = vmatpush1.msra.mxu0 0.0
    %7168 = vmatprep.subr.mxu0 0.0
    %7169 = vmatpush1.msra.mxu0 0.0
    %7170 = vmatprep.subr.mxu0 0.0
    %7171 = vmatpush1.msra.mxu0 0.0
    %7172 = vmatprep.mubr.f32.mxu0 0.0
    %v7173 = vand.u32 %v5843, 4294901760
    %v7174 = vsub.f32 %v5843, %v7173
    %v7175 = vand.u32 %v7174, 4294901760
    %7176 = vmatmul.mubr.f32.gmra.mrb[0].mxu0 %v7175
    %v7177 = vpop.f32.mrb[0].mxu0
    %v7178 = vadd.f32 %v7094, %v7177
    %v7179 = vpop.f32.mrb[0].mxu0
    %7180 = vmatprep.mubr.f32.mxu0 0.0
    %v7181 = vand.u32 %v5846, 4294901760
    %v7182 = vsub.f32 %v5846, %v7181
    %v7183 = vand.u32 %v7182, 4294901760
    %7184 = vmatmul.mubr.f32.gmra.mrb[0].mxu0 %v7183
    %v7185 = vpop.f32.mrb[0].mxu0
    %v7186 = vadd.f32 %v7101, %v7185
    %v7187 = vpop.f32.mrb[0].mxu0
    %7188 = vdwg.mxu0
    %7189 = vmatprep.subr.mxu0 0.0
    %v7190 = vand.u32 %v6827, 4294901760
    %v7191 = vsub.f32 %v6827, %v7190
    %v7192 = vand.u32 %v7191, 4294901760
    %7193 = vmatpush1.msra.mxu0 %v7192
    %7194 = vmatprep.subr.mxu0 0.0
    %v7195 = vand.u32 %v6828, 4294901760
    %v7196 = vsub.f32 %v6828, %v7195
    %v7197 = vand.u32 %v7196, 4294901760
    %7198 = vmatpush1.msra.mxu0 %v7197
    %7199 = vmatprep.subr.mxu0 0.0
    %v7200 = vand.u32 %v6829, 4294901760
    %v7201 = vsub.f32 %v6829, %v7200
    %v7202 = vand.u32 %v7201, 4294901760
    %7203 = vmatpush1.msra.mxu0 %v7202
    %7204 = vmatprep.subr.mxu0 0.0
    %v7205 = vand.u32 %v6830, 4294901760
    %v7206 = vsub.f32 %v6830, %v7205
    %v7207 = vand.u32 %v7206, 4294901760
    %7208 = vmatpush1.msra.mxu0 %v7207
    %7209 = vmatprep.subr.mxu0 0.0
    %7210 = vmatpush1.msra.mxu0 0.0
    %7211 = vmatprep.subr.mxu0 0.0
    %7212 = vmatpush1.msra.mxu0 0.0
    %7213 = vmatprep.subr.mxu0 0.0
    %7214 = vmatpush1.msra.mxu0 0.0
    %7215 = vmatprep.subr.mxu0 0.0
    %7216 = vmatpush1.msra.mxu0 0.0
    %7217 = vmatprep.subr.mxu0 0.0
    %7218 = vmatpush1.msra.mxu0 0.0
    %7219 = vmatprep.subr.mxu0 0.0
    %7220 = vmatpush1.msra.mxu0 0.0
    %7221 = vmatprep.subr.mxu0 0.0
    %7222 = vmatpush1.msra.mxu0 0.0
    %7223 = vmatprep.subr.mxu0 0.0
    %7224 = vmatpush1.msra.mxu0 0.0
    %7225 = vmatprep.subr.mxu0 0.0
    %7226 = vmatpush1.msra.mxu0 0.0
    %7227 = vmatprep.subr.mxu0 0.0
    %7228 = vmatpush1.msra.mxu0 0.0
    %7229 = vmatprep.subr.mxu0 0.0
    %7230 = vmatpush1.msra.mxu0 0.0
    %7231 = vmatprep.subr.mxu0 0.0
    %7232 = vmatpush1.msra.mxu0 0.0
    %7233 = vmatprep.subr.mxu0 0.0
    %7234 = vmatpush1.msra.mxu0 0.0
    %7235 = vmatprep.subr.mxu0 0.0
    %7236 = vmatpush1.msra.mxu0 0.0
    %7237 = vmatprep.subr.mxu0 0.0
    %7238 = vmatpush1.msra.mxu0 0.0
    %7239 = vmatprep.subr.mxu0 0.0
    %7240 = vmatpush1.msra.mxu0 0.0
    %7241 = vmatprep.subr.mxu0 0.0
    %7242 = vmatpush1.msra.mxu0 0.0
    %7243 = vmatprep.subr.mxu0 0.0
    %7244 = vmatpush1.msra.mxu0 0.0
    %7245 = vmatprep.subr.mxu0 0.0
    %7246 = vmatpush1.msra.mxu0 0.0
    %7247 = vmatprep.subr.mxu0 0.0
    %7248 = vmatpush1.msra.mxu0 0.0
    %7249 = vmatprep.subr.mxu0 0.0
    %7250 = vmatpush1.msra.mxu0 0.0
    %7251 = vmatprep.subr.mxu0 0.0
    %7252 = vmatpush1.msra.mxu0 0.0
    %7253 = vmatprep.subr.mxu0 0.0
    %7254 = vmatpush1.msra.mxu0 0.0
    %7255 = vmatprep.subr.mxu0 0.0
    %7256 = vmatpush1.msra.mxu0 0.0
    %7257 = vmatprep.subr.mxu0 0.0
    %7258 = vmatpush1.msra.mxu0 0.0
    %7259 = vmatprep.subr.mxu0 0.0
    %7260 = vmatpush1.msra.mxu0 0.0
    %7261 = vmatprep.subr.mxu0 0.0
    %7262 = vmatpush1.msra.mxu0 0.0
    %7263 = vmatprep.subr.mxu0 0.0
    %7264 = vmatpush1.msra.mxu0 0.0
    %7265 = vmatprep.mubr.f32.mxu0 0.0
    %v7266 = vand.u32 %v5843, 4294901760
    %7267 = vmatmul.mubr.f32.gmra.mrb[0].mxu0 %v7266
    %v7268 = vpop.f32.mrb[0].mxu0
    %v7269 = vadd.f32 %v7178, %v7268
    %v7270 = vpop.f32.mrb[0].mxu0
    %7271 = vmatprep.mubr.f32.mxu0 0.0
    %v7272 = vand.u32 %v5846, 4294901760
    %7273 = vmatmul.mubr.f32.gmra.mrb[0].mxu0 %v7272
    %v7274 = vpop.f32.mrb[0].mxu0
    %v7275 = vadd.f32 %v7186, %v7274
    %v7276 = vpop.f32.mrb[0].mxu0
    %7277 = vdwg.mxu0
    %7278 = vmatprep.subr.mxu0 0.0
    %v7279 = vand.u32 %v6827, 4294901760
    %7280 = vmatpush1.msra.mxu0 %v7279
    %7281 = vmatprep.subr.mxu0 0.0
    %v7282 = vand.u32 %v6828, 4294901760
    %7283 = vmatpush1.msra.mxu0 %v7282
    %7284 = vmatprep.subr.mxu0 0.0
    %v7285 = vand.u32 %v6829, 4294901760
    %7286 = vmatpush1.msra.mxu0 %v7285
    %7287 = vmatprep.subr.mxu0 0.0
    %v7288 = vand.u32 %v6830, 4294901760
    %7289 = vmatpush1.msra.mxu0 %v7288
    %7290 = vmatprep.subr.mxu0 0.0
    %7291 = vmatpush1.msra.mxu0 0.0
    %7292 = vmatprep.subr.mxu0 0.0
    %7293 = vmatpush1.msra.mxu0 0.0
    %7294 = vmatprep.subr.mxu0 0.0
    %7295 = vmatpush1.msra.mxu0 0.0
    %7296 = vmatprep.subr.mxu0 0.0
    %7297 = vmatpush1.msra.mxu0 0.0
    %7298 = vmatprep.subr.mxu0 0.0
    %7299 = vmatpush1.msra.mxu0 0.0
    %7300 = vmatprep.subr.mxu0 0.0
    %7301 = vmatpush1.msra.mxu0 0.0
    %7302 = vmatprep.subr.mxu0 0.0
    %7303 = vmatpush1.msra.mxu0 0.0
    %7304 = vmatprep.subr.mxu0 0.0
    %7305 = vmatpush1.msra.mxu0 0.0
    %7306 = vmatprep.subr.mxu0 0.0
    %7307 = vmatpush1.msra.mxu0 0.0
    %7308 = vmatprep.subr.mxu0 0.0
    %7309 = vmatpush1.msra.mxu0 0.0
    %7310 = vmatprep.subr.mxu0 0.0
    %7311 = vmatpush1.msra.mxu0 0.0
    %7312 = vmatprep.subr.mxu0 0.0
    %7313 = vmatpush1.msra.mxu0 0.0
    %7314 = vmatprep.subr.mxu0 0.0
    %7315 = vmatpush1.msra.mxu0 0.0
    %7316 = vmatprep.subr.mxu0 0.0
    %7317 = vmatpush1.msra.mxu0 0.0
    %7318 = vmatprep.subr.mxu0 0.0
    %7319 = vmatpush1.msra.mxu0 0.0
    %7320 = vmatprep.subr.mxu0 0.0
    %7321 = vmatpush1.msra.mxu0 0.0
    %7322 = vmatprep.subr.mxu0 0.0
    %7323 = vmatpush1.msra.mxu0 0.0
    %7324 = vmatprep.subr.mxu0 0.0
    %7325 = vmatpush1.msra.mxu0 0.0
    %7326 = vmatprep.subr.mxu0 0.0
    %7327 = vmatpush1.msra.mxu0 0.0
    %7328 = vmatprep.subr.mxu0 0.0
    %7329 = vmatpush1.msra.mxu0 0.0
    %7330 = vmatprep.subr.mxu0 0.0
    %7331 = vmatpush1.msra.mxu0 0.0
    %7332 = vmatprep.subr.mxu0 0.0
    %7333 = vmatpush1.msra.mxu0 0.0
    %7334 = vmatprep.subr.mxu0 0.0
    %7335 = vmatpush1.msra.mxu0 0.0
    %7336 = vmatprep.subr.mxu0 0.0
    %7337 = vmatpush1.msra.mxu0 0.0
    %7338 = vmatprep.subr.mxu0 0.0
    %7339 = vmatpush1.msra.mxu0 0.0
    %7340 = vmatprep.subr.mxu0 0.0
    %7341 = vmatpush1.msra.mxu0 0.0
    %7342 = vmatprep.subr.mxu0 0.0
    %7343 = vmatpush1.msra.mxu0 0.0
    %7344 = vmatprep.subr.mxu0 0.0
    %7345 = vmatpush1.msra.mxu0 0.0
    %7346 = vmatprep.mubr.f32.mxu0 0.0
    %v7347 = vand.u32 %v5843, 4294901760
    %7348 = vmatmul.mubr.f32.gmra.mrb[0].mxu0 %v7347
    %v7349 = vpop.f32.mrb[0].mxu0
    %v7350 = vadd.f32 %v7269, %v7349
    %v7351 = vpop.f32.mrb[0].mxu0
    %7352 = vmatprep.mubr.f32.mxu0 0.0
    %v7353 = vand.u32 %v5846, 4294901760
    %7354 = vmatmul.mubr.f32.gmra.mrb[0].mxu0 %v7353
    %v7355 = vpop.f32.mrb[0].mxu0
    %v7356 = vadd.f32 %v7275, %v7355
    %v7357 = vpop.f32.mrb[0].mxu0
    %7358 = vdwg.mxu0
    %v7359 = vld [vmem:[#allocation2 + $0x68] sm:$0x1]
    %v7360 = vlaneseq
    %v7361 = vshrl.u32 %v7360, 7
    %v7362 = vsub.s32 0, %v7361
    %v7363 = vrot.slane %v7359, %v7362
    %v7364 = vadd.f32 %v7350, %v7363
    %v7365 = vadd.f32 %v7356, %v7363
    %v7366 = vld [vmem:[#allocation2 + $0x70] sm:$0x1]
    %v7367 = vsel %vm1525, %v6825, inf
    %7368 = vmin.xlane.f32.xlu0 %v7367
    %v7369 = vpop.xlane.xlu0 %7368
    %v7370 = vsel %vm1525, %v6826, inf
    %7371 = vmin.xlane.f32.xlu0 %v7370
    %v7372 = vpop.xlane.xlu0 %7371
    %vm7373 = vcmp.le.f32.partialorder %v6825, %v7369
    %vm7374 = vcmp.le.f32.partialorder %v6826, %v7372
    %v7375 = vsel %vm7373, %v30, 16.0
    %v7376 = vsel %vm7374, %v30, 16.0
    %v7377 = vsel %vm1525, %v7375, inf
    %7378 = vmin.xlane.f32.xlu0 %v7377
    %v7379 = vpop.xlane.xlu0 %7378
    %v7380 = vsel %vm1525, %v7376, inf
    %7381 = vmin.xlane.f32.xlu0 %v7380
    %v7382 = vpop.xlane.xlu0 %7381
    %vm7383 = vcmp.eq.f32.partialorder %v30, %v7379
    %vm7384 = vcmp.eq.f32.partialorder %v30, %v7382
    %v7385 = vsel %vm7383, 1.0, 0.0
    %v7386 = vsel %vm7384, 1.0, 0.0
    %7389 = vrot.lane.b32.xlu0 %v7350, 64
    %v7390 = vpop.permute.xlu0 %7389
    %7391 = vrot.lane.b32.xlu0 %v7356, 64
    %v7392 = vpop.permute.xlu0 %7391
    %v7396 = vsel %vm1525, %v7385, 0
    %v7399 = vsel %vm1525, %v7386, 0
    %7401 = vmatprep.subr.mxu0 0.0
    %v7402 = vand.u32 %v7390, 4294901760
    %7403 = vmatpush1.msra.mxu0 %v7402
    %7404 = vmatprep.subr.mxu0 0.0
    %v7405 = vand.u32 %v7392, 4294901760
    %7406 = vmatpush1.msra.mxu0 %v7405
    %7407 = vmatprep.subr.mxu0 0.0
    %7408 = vmatpush1.msra.mxu0 0.0
    %7409 = vmatprep.subr.mxu0 0.0
    %7410 = vmatpush1.msra.mxu0 0.0
    %7411 = vmatprep.subr.mxu0 0.0
    %7412 = vmatpush1.msra.mxu0 0.0
    %7413 = vmatprep.subr.mxu0 0.0
    %7414 = vmatpush1.msra.mxu0 0.0
    %7415 = vmatprep.subr.mxu0 0.0
    %7416 = vmatpush1.msra.mxu0 0.0
    %7417 = vmatprep.subr.mxu0 0.0
    %7418 = vmatpush1.msra.mxu0 0.0
    %7419 = vmatprep.subr.mxu0 0.0
    %7420 = vmatpush1.msra.mxu0 0.0
    %7421 = vmatprep.subr.mxu0 0.0
    %7422 = vmatpush1.msra.mxu0 0.0
    %7423 = vmatprep.subr.mxu0 0.0
    %7424 = vmatpush1.msra.mxu0 0.0
    %7425 = vmatprep.subr.mxu0 0.0
    %7426 = vmatpush1.msra.mxu0 0.0
    %7427 = vmatprep.subr.mxu0 0.0
    %7428 = vmatpush1.msra.mxu0 0.0
    %7429 = vmatprep.subr.mxu0 0.0
    %7430 = vmatpush1.msra.mxu0 0.0
    %7431 = vmatprep.subr.mxu0 0.0
    %7432 = vmatpush1.msra.mxu0 0.0
    %7433 = vmatprep.subr.mxu0 0.0
    %7434 = vmatpush1.msra.mxu0 0.0
    %7435 = vmatprep.subr.mxu0 0.0
    %7436 = vmatpush1.msra.mxu0 0.0
    %7437 = vmatprep.subr.mxu0 0.0
    %7438 = vmatpush1.msra.mxu0 0.0
    %7439 = vmatprep.subr.mxu0 0.0
    %7440 = vmatpush1.msra.mxu0 0.0
    %7441 = vmatprep.subr.mxu0 0.0
    %7442 = vmatpush1.msra.mxu0 0.0
    %7443 = vmatprep.subr.mxu0 0.0
    %7444 = vmatpush1.msra.mxu0 0.0
    %7445 = vmatprep.subr.mxu0 0.0
    %7446 = vmatpush1.msra.mxu0 0.0
    %7447 = vmatprep.subr.mxu0 0.0
    %7448 = vmatpush1.msra.mxu0 0.0
    %7449 = vmatprep.subr.mxu0 0.0
    %7450 = vmatpush1.msra.mxu0 0.0
    %7451 = vmatprep.subr.mxu0 0.0
    %7452 = vmatpush1.msra.mxu0 0.0
    %7453 = vmatprep.subr.mxu0 0.0
    %7454 = vmatpush1.msra.mxu0 0.0
    %7455 = vmatprep.subr.mxu0 0.0
    %7456 = vmatpush1.msra.mxu0 0.0
    %7457 = vmatprep.subr.mxu0 0.0
    %7458 = vmatpush1.msra.mxu0 0.0
    %7459 = vmatprep.subr.mxu0 0.0
    %7460 = vmatpush1.msra.mxu0 0.0
    %7461 = vmatprep.subr.mxu0 0.0
    %7462 = vmatpush1.msra.mxu0 0.0
    %7463 = vmatprep.subr.mxu0 0.0
    %7464 = vmatpush1.msra.mxu0 0.0
    %7465 = vmatprep.subr.mxu0 0.0
    %7466 = vmatpush1.msra.mxu0 0.0
    %7467 = vmatprep.mubr.f32.mxu0 0.0
    %v7468 = vand.u32 %v7396, 4294901760
    %v7469 = vsub.f32 %v7396, %v7468
    %v7470 = vand.u32 %v7469, 4294901760
    %v7471 = vsub.f32 %v7469, %v7470
    %v7472 = vand.u32 %v7471, 4294901760
    %7473 = vmatmul.mubr.f32.gmra.mrb[0].mxu0 %v7472
    %v7474 = vpop.f32.mrb[0].mxu0
    %v7475 = vadd.f32 0.0, %v7474
    %v7476 = vpop.f32.mrb[0].mxu0
    %7477 = vmatprep.mubr.f32.mxu0 0.0
    %v7478 = vand.u32 %v7399, 4294901760
    %v7479 = vsub.f32 %v7399, %v7478
    %v7480 = vand.u32 %v7479, 4294901760
    %v7481 = vsub.f32 %v7479, %v7480
    %v7482 = vand.u32 %v7481, 4294901760
    %7483 = vmatmul.mubr.f32.gmra.mrb[0].mxu0 %v7482
    %v7484 = vpop.f32.mrb[0].mxu0
    %v7485 = vadd.f32 0.0, %v7484
    %v7486 = vpop.f32.mrb[0].mxu0
    %7487 = vdwg.mxu0
    %7488 = vmatprep.subr.mxu0 0.0
    %v7489 = vand.u32 %v7390, 4294901760
    %v7490 = vsub.f32 %v7390, %v7489
    %v7491 = vand.u32 %v7490, 4294901760
    %v7492 = vsub.f32 %v7490, %v7491
    %v7493 = vand.u32 %v7492, 4294901760
    %7494 = vmatpush1.msra.mxu0 %v7493
    %7495 = vmatprep.subr.mxu0 0.0
    %v7496 = vand.u32 %v7392, 4294901760
    %v7497 = vsub.f32 %v7392, %v7496
    %v7498 = vand.u32 %v7497, 4294901760
    %v7499 = vsub.f32 %v7497, %v7498
    %v7500 = vand.u32 %v7499, 4294901760
    %7501 = vmatpush1.msra.mxu0 %v7500
    %7502 = vmatprep.subr.mxu0 0.0
    %7503 = vmatpush1.msra.mxu0 0.0
    %7504 = vmatprep.subr.mxu0 0.0
    %7505 = vmatpush1.msra.mxu0 0.0
    %7506 = vmatprep.subr.mxu0 0.0
    %7507 = vmatpush1.msra.mxu0 0.0
    %7508 = vmatprep.subr.mxu0 0.0
    %7509 = vmatpush1.msra.mxu0 0.0
    %7510 = vmatprep.subr.mxu0 0.0
    %7511 = vmatpush1.msra.mxu0 0.0
    %7512 = vmatprep.subr.mxu0 0.0
    %7513 = vmatpush1.msra.mxu0 0.0
    %7514 = vmatprep.subr.mxu0 0.0
    %7515 = vmatpush1.msra.mxu0 0.0
    %7516 = vmatprep.subr.mxu0 0.0
    %7517 = vmatpush1.msra.mxu0 0.0
    %7518 = vmatprep.subr.mxu0 0.0
    %7519 = vmatpush1.msra.mxu0 0.0
    %7520 = vmatprep.subr.mxu0 0.0
    %7521 = vmatpush1.msra.mxu0 0.0
    %7522 = vmatprep.subr.mxu0 0.0
    %7523 = vmatpush1.msra.mxu0 0.0
    %7524 = vmatprep.subr.mxu0 0.0
    %7525 = vmatpush1.msra.mxu0 0.0
    %7526 = vmatprep.subr.mxu0 0.0
    %7527 = vmatpush1.msra.mxu0 0.0
    %7528 = vmatprep.subr.mxu0 0.0
    %7529 = vmatpush1.msra.mxu0 0.0
    %7530 = vmatprep.subr.mxu0 0.0
    %7531 = vmatpush1.msra.mxu0 0.0
    %7532 = vmatprep.subr.mxu0 0.0
    %7533 = vmatpush1.msra.mxu0 0.0
    %7534 = vmatprep.subr.mxu0 0.0
    %7535 = vmatpush1.msra.mxu0 0.0
    %7536 = vmatprep.subr.mxu0 0.0
    %7537 = vmatpush1.msra.mxu0 0.0
    %7538 = vmatprep.subr.mxu0 0.0
    %7539 = vmatpush1.msra.mxu0 0.0
    %7540 = vmatprep.subr.mxu0 0.0
    %7541 = vmatpush1.msra.mxu0 0.0
    %7542 = vmatprep.subr.mxu0 0.0
    %7543 = vmatpush1.msra.mxu0 0.0
    %7544 = vmatprep.subr.mxu0 0.0
    %7545 = vmatpush1.msra.mxu0 0.0
    %7546 = vmatprep.subr.mxu0 0.0
    %7547 = vmatpush1.msra.mxu0 0.0
    %7548 = vmatprep.subr.mxu0 0.0
    %7549 = vmatpush1.msra.mxu0 0.0
    %7550 = vmatprep.subr.mxu0 0.0
    %7551 = vmatpush1.msra.mxu0 0.0
    %7552 = vmatprep.subr.mxu0 0.0
    %7553 = vmatpush1.msra.mxu0 0.0
    %7554 = vmatprep.subr.mxu0 0.0
    %7555 = vmatpush1.msra.mxu0 0.0
    %7556 = vmatprep.subr.mxu0 0.0
    %7557 = vmatpush1.msra.mxu0 0.0
    %7558 = vmatprep.subr.mxu0 0.0
    %7559 = vmatpush1.msra.mxu0 0.0
    %7560 = vmatprep.subr.mxu0 0.0
    %7561 = vmatpush1.msra.mxu0 0.0
    %7562 = vmatprep.mubr.f32.mxu0 0.0
    %v7563 = vand.u32 %v7396, 4294901760
    %7564 = vmatmul.mubr.f32.gmra.mrb[0].mxu0 %v7563
    %v7565 = vpop.f32.mrb[0].mxu0
    %v7566 = vadd.f32 %v7475, %v7565
    %v7567 = vpop.f32.mrb[0].mxu0
    %7568 = vmatprep.mubr.f32.mxu0 0.0
    %v7569 = vand.u32 %v7399, 4294901760
    %7570 = vmatmul.mubr.f32.gmra.mrb[0].mxu0 %v7569
    %v7571 = vpop.f32.mrb[0].mxu0
    %v7572 = vadd.f32 %v7485, %v7571
    %v7573 = vpop.f32.mrb[0].mxu0
    %7574 = vdwg.mxu0
    %7575 = vmatprep.subr.mxu0 0.0
    %v7576 = vand.u32 %v7390, 4294901760
    %v7577 = vsub.f32 %v7390, %v7576
    %7578 = vmatpush1.msra.mxu0 %v7577
    %7579 = vmatprep.subr.mxu0 0.0
    %v7580 = vand.u32 %v7392, 4294901760
    %v7581 = vsub.f32 %v7392, %v7580
    %7582 = vmatpush1.msra.mxu0 %v7581
    %7583 = vmatprep.subr.mxu0 0.0
    %7584 = vmatpush1.msra.mxu0 0.0
    %7585 = vmatprep.subr.mxu0 0.0
    %7586 = vmatpush1.msra.mxu0 0.0
    %7587 = vmatprep.subr.mxu0 0.0
    %7588 = vmatpush1.msra.mxu0 0.0
    %7589 = vmatprep.subr.mxu0 0.0
    %7590 = vmatpush1.msra.mxu0 0.0
    %7591 = vmatprep.subr.mxu0 0.0
    %7592 = vmatpush1.msra.mxu0 0.0
    %7593 = vmatprep.subr.mxu0 0.0
    %7594 = vmatpush1.msra.mxu0 0.0
    %7595 = vmatprep.subr.mxu0 0.0
    %7596 = vmatpush1.msra.mxu0 0.0
    %7597 = vmatprep.subr.mxu0 0.0
    %7598 = vmatpush1.msra.mxu0 0.0
    %7599 = vmatprep.subr.mxu0 0.0
    %7600 = vmatpush1.msra.mxu0 0.0
    %7601 = vmatprep.subr.mxu0 0.0
    %7602 = vmatpush1.msra.mxu0 0.0
    %7603 = vmatprep.subr.mxu0 0.0
    %7604 = vmatpush1.msra.mxu0 0.0
    %7605 = vmatprep.subr.mxu0 0.0
    %7606 = vmatpush1.msra.mxu0 0.0
    %7607 = vmatprep.subr.mxu0 0.0
    %7608 = vmatpush1.msra.mxu0 0.0
    %7609 = vmatprep.subr.mxu0 0.0
    %7610 = vmatpush1.msra.mxu0 0.0
    %7611 = vmatprep.subr.mxu0 0.0
    %7612 = vmatpush1.msra.mxu0 0.0
    %7613 = vmatprep.subr.mxu0 0.0
    %7614 = vmatpush1.msra.mxu0 0.0
    %7615 = vmatprep.subr.mxu0 0.0
    %7616 = vmatpush1.msra.mxu0 0.0
    %7617 = vmatprep.subr.mxu0 0.0
    %7618 = vmatpush1.msra.mxu0 0.0
    %7619 = vmatprep.subr.mxu0 0.0
    %7620 = vmatpush1.msra.mxu0 0.0
    %7621 = vmatprep.subr.mxu0 0.0
    %7622 = vmatpush1.msra.mxu0 0.0
    %7623 = vmatprep.subr.mxu0 0.0
    %7624 = vmatpush1.msra.mxu0 0.0
    %7625 = vmatprep.subr.mxu0 0.0
    %7626 = vmatpush1.msra.mxu0 0.0
    %7627 = vmatprep.subr.mxu0 0.0
    %7628 = vmatpush1.msra.mxu0 0.0
    %7629 = vmatprep.subr.mxu0 0.0
    %7630 = vmatpush1.msra.mxu0 0.0
    %7631 = vmatprep.subr.mxu0 0.0
    %7632 = vmatpush1.msra.mxu0 0.0
    %7633 = vmatprep.subr.mxu0 0.0
    %7634 = vmatpush1.msra.mxu0 0.0
    %7635 = vmatprep.subr.mxu0 0.0
    %7636 = vmatpush1.msra.mxu0 0.0
    %7637 = vmatprep.subr.mxu0 0.0
    %7638 = vmatpush1.msra.mxu0 0.0
    %7639 = vmatprep.subr.mxu0 0.0
    %7640 = vmatpush1.msra.mxu0 0.0
    %7641 = vmatprep.subr.mxu0 0.0
    %7642 = vmatpush1.msra.mxu0 0.0
    %7643 = vmatprep.mubr.f32.mxu0 0.0
    %v7644 = vand.u32 %v7396, 4294901760
    %v7645 = vsub.f32 %v7396, %v7644
    %7646 = vmatmul.mubr.f32.gmra.mrb[0].mxu0 %v7645
    %v7647 = vpop.f32.mrb[0].mxu0
    %v7648 = vadd.f32 %v7566, %v7647
    %v7649 = vpop.f32.mrb[0].mxu0
    %7650 = vmatprep.mubr.f32.mxu0 0.0
    %v7651 = vand.u32 %v7399, 4294901760
    %v7652 = vsub.f32 %v7399, %v7651
    %7653 = vmatmul.mubr.f32.gmra.mrb[0].mxu0 %v7652
    %v7654 = vpop.f32.mrb[0].mxu0
    %v7655 = vadd.f32 %v7572, %v7654
    %v7656 = vpop.f32.mrb[0].mxu0
    %7657 = vdwg.mxu0
    %7658 = vmatprep.subr.mxu0 0.0
    %v7659 = vand.u32 %v7390, 4294901760
    %7660 = vmatpush1.msra.mxu0 %v7659
    %7661 = vmatprep.subr.mxu0 0.0
    %v7662 = vand.u32 %v7392, 4294901760
    %7663 = vmatpush1.msra.mxu0 %v7662
    %7664 = vmatprep.subr.mxu0 0.0
    %7665 = vmatpush1.msra.mxu0 0.0
    %7666 = vmatprep.subr.mxu0 0.0
    %7667 = vmatpush1.msra.mxu0 0.0
    %7668 = vmatprep.subr.mxu0 0.0
    %7669 = vmatpush1.msra.mxu0 0.0
    %7670 = vmatprep.subr.mxu0 0.0
    %7671 = vmatpush1.msra.mxu0 0.0
    %7672 = vmatprep.subr.mxu0 0.0
    %7673 = vmatpush1.msra.mxu0 0.0
    %7674 = vmatprep.subr.mxu0 0.0
    %7675 = vmatpush1.msra.mxu0 0.0
    %7676 = vmatprep.subr.mxu0 0.0
    %7677 = vmatpush1.msra.mxu0 0.0
    %7678 = vmatprep.subr.mxu0 0.0
    %7679 = vmatpush1.msra.mxu0 0.0
    %7680 = vmatprep.subr.mxu0 0.0
    %7681 = vmatpush1.msra.mxu0 0.0
    %7682 = vmatprep.subr.mxu0 0.0
    %7683 = vmatpush1.msra.mxu0 0.0
    %7684 = vmatprep.subr.mxu0 0.0
    %7685 = vmatpush1.msra.mxu0 0.0
    %7686 = vmatprep.subr.mxu0 0.0
    %7687 = vmatpush1.msra.mxu0 0.0
    %7688 = vmatprep.subr.mxu0 0.0
    %7689 = vmatpush1.msra.mxu0 0.0
    %7690 = vmatprep.subr.mxu0 0.0
    %7691 = vmatpush1.msra.mxu0 0.0
    %7692 = vmatprep.subr.mxu0 0.0
    %7693 = vmatpush1.msra.mxu0 0.0
    %7694 = vmatprep.subr.mxu0 0.0
    %7695 = vmatpush1.msra.mxu0 0.0
    %7696 = vmatprep.subr.mxu0 0.0
    %7697 = vmatpush1.msra.mxu0 0.0
    %7698 = vmatprep.subr.mxu0 0.0
    %7699 = vmatpush1.msra.mxu0 0.0
    %7700 = vmatprep.subr.mxu0 0.0
    %7701 = vmatpush1.msra.mxu0 0.0
    %7702 = vmatprep.subr.mxu0 0.0
    %7703 = vmatpush1.msra.mxu0 0.0
    %7704 = vmatprep.subr.mxu0 0.0
    %7705 = vmatpush1.msra.mxu0 0.0
    %7706 = vmatprep.subr.mxu0 0.0
    %7707 = vmatpush1.msra.mxu0 0.0
    %7708 = vmatprep.subr.mxu0 0.0
    %7709 = vmatpush1.msra.mxu0 0.0
    %7710 = vmatprep.subr.mxu0 0.0
    %7711 = vmatpush1.msra.mxu0 0.0
    %7712 = vmatprep.subr.mxu0 0.0
    %7713 = vmatpush1.msra.mxu0 0.0
    %7714 = vmatprep.subr.mxu0 0.0
    %7715 = vmatpush1.msra.mxu0 0.0
    %7716 = vmatprep.subr.mxu0 0.0
    %7717 = vmatpush1.msra.mxu0 0.0
    %7718 = vmatprep.subr.mxu0 0.0
    %7719 = vmatpush1.msra.mxu0 0.0
    %7720 = vmatprep.subr.mxu0 0.0
    %7721 = vmatpush1.msra.mxu0 0.0
    %7722 = vmatprep.subr.mxu0 0.0
    %7723 = vmatpush1.msra.mxu0 0.0
    %7724 = vmatprep.mubr.f32.mxu0 0.0
    %v7725 = vand.u32 %v7396, 4294901760
    %v7726 = vsub.f32 %v7396, %v7725
    %v7727 = vand.u32 %v7726, 4294901760
    %7728 = vmatmul.mubr.f32.gmra.mrb[0].mxu0 %v7727
    %v7729 = vpop.f32.mrb[0].mxu0
    %v7730 = vadd.f32 %v7648, %v7729
    %v7731 = vpop.f32.mrb[0].mxu0
    %7732 = vmatprep.mubr.f32.mxu0 0.0
    %v7733 = vand.u32 %v7399, 4294901760
    %v7734 = vsub.f32 %v7399, %v7733
    %v7735 = vand.u32 %v7734, 4294901760
    %7736 = vmatmul.mubr.f32.gmra.mrb[0].mxu0 %v7735
    %v7737 = vpop.f32.mrb[0].mxu0
    %v7738 = vadd.f32 %v7655, %v7737
    %v7739 = vpop.f32.mrb[0].mxu0
    %7740 = vdwg.mxu0
    %7741 = vmatprep.subr.mxu0 0.0
    %v7742 = vand.u32 %v7390, 4294901760
    %v7743 = vsub.f32 %v7390, %v7742
    %v7744 = vand.u32 %v7743, 4294901760
    %7745 = vmatpush1.msra.mxu0 %v7744
    %7746 = vmatprep.subr.mxu0 0.0
    %v7747 = vand.u32 %v7392, 4294901760
    %v7748 = vsub.f32 %v7392, %v7747
    %v7749 = vand.u32 %v7748, 4294901760
    %7750 = vmatpush1.msra.mxu0 %v7749
    %7751 = vmatprep.subr.mxu0 0.0
    %7752 = vmatpush1.msra.mxu0 0.0
    %7753 = vmatprep.subr.mxu0 0.0
    %7754 = vmatpush1.msra.mxu0 0.0
    %7755 = vmatprep.subr.mxu0 0.0
    %7756 = vmatpush1.msra.mxu0 0.0
    %7757 = vmatprep.subr.mxu0 0.0
    %7758 = vmatpush1.msra.mxu0 0.0
    %7759 = vmatprep.subr.mxu0 0.0
    %7760 = vmatpush1.msra.mxu0 0.0
    %7761 = vmatprep.subr.mxu0 0.0
    %7762 = vmatpush1.msra.mxu0 0.0
    %7763 = vmatprep.subr.mxu0 0.0
    %7764 = vmatpush1.msra.mxu0 0.0
    %7765 = vmatprep.subr.mxu0 0.0
    %7766 = vmatpush1.msra.mxu0 0.0
    %7767 = vmatprep.subr.mxu0 0.0
    %7768 = vmatpush1.msra.mxu0 0.0
    %7769 = vmatprep.subr.mxu0 0.0
    %7770 = vmatpush1.msra.mxu0 0.0
    %7771 = vmatprep.subr.mxu0 0.0
    %7772 = vmatpush1.msra.mxu0 0.0
    %7773 = vmatprep.subr.mxu0 0.0
    %7774 = vmatpush1.msra.mxu0 0.0
    %7775 = vmatprep.subr.mxu0 0.0
    %7776 = vmatpush1.msra.mxu0 0.0
    %7777 = vmatprep.subr.mxu0 0.0
    %7778 = vmatpush1.msra.mxu0 0.0
    %7779 = vmatprep.subr.mxu0 0.0
    %7780 = vmatpush1.msra.mxu0 0.0
    %7781 = vmatprep.subr.mxu0 0.0
    %7782 = vmatpush1.msra.mxu0 0.0
    %7783 = vmatprep.subr.mxu0 0.0
    %7784 = vmatpush1.msra.mxu0 0.0
    %7785 = vmatprep.subr.mxu0 0.0
    %7786 = vmatpush1.msra.mxu0 0.0
    %7787 = vmatprep.subr.mxu0 0.0
    %7788 = vmatpush1.msra.mxu0 0.0
    %7789 = vmatprep.subr.mxu0 0.0
    %7790 = vmatpush1.msra.mxu0 0.0
    %7791 = vmatprep.subr.mxu0 0.0
    %7792 = vmatpush1.msra.mxu0 0.0
    %7793 = vmatprep.subr.mxu0 0.0
    %7794 = vmatpush1.msra.mxu0 0.0
    %7795 = vmatprep.subr.mxu0 0.0
    %7796 = vmatpush1.msra.mxu0 0.0
    %7797 = vmatprep.subr.mxu0 0.0
    %7798 = vmatpush1.msra.mxu0 0.0
    %7799 = vmatprep.subr.mxu0 0.0
    %7800 = vmatpush1.msra.mxu0 0.0
    %7801 = vmatprep.subr.mxu0 0.0
    %7802 = vmatpush1.msra.mxu0 0.0
    %7803 = vmatprep.subr.mxu0 0.0
    %7804 = vmatpush1.msra.mxu0 0.0
    %7805 = vmatprep.subr.mxu0 0.0
    %7806 = vmatpush1.msra.mxu0 0.0
    %7807 = vmatprep.subr.mxu0 0.0
    %7808 = vmatpush1.msra.mxu0 0.0
    %7809 = vmatprep.subr.mxu0 0.0
    %7810 = vmatpush1.msra.mxu0 0.0
    %7811 = vmatprep.mubr.f32.mxu0 0.0
    %v7812 = vand.u32 %v7396, 4294901760
    %7813 = vmatmul.mubr.f32.gmra.mrb[0].mxu0 %v7812
    %v7814 = vpop.f32.mrb[0].mxu0
    %v7815 = vadd.f32 %v7730, %v7814
    %v7816 = vpop.f32.mrb[0].mxu0
    %7817 = vmatprep.mubr.f32.mxu0 0.0
    %v7818 = vand.u32 %v7399, 4294901760
    %7819 = vmatmul.mubr.f32.gmra.mrb[0].mxu0 %v7818
    %v7820 = vpop.f32.mrb[0].mxu0
    %v7821 = vadd.f32 %v7738, %v7820
    %v7822 = vpop.f32.mrb[0].mxu0
    %7823 = vdwg.mxu0
    %7824 = vmatprep.subr.mxu0 0.0
    %v7825 = vand.u32 %v7390, 4294901760
    %7826 = vmatpush1.msra.mxu0 %v7825
    %7827 = vmatprep.subr.mxu0 0.0
    %v7828 = vand.u32 %v7392, 4294901760
    %7829 = vmatpush1.msra.mxu0 %v7828
    %7830 = vmatprep.subr.mxu0 0.0
    %7831 = vmatpush1.msra.mxu0 0.0
    %7832 = vmatprep.subr.mxu0 0.0
    %7833 = vmatpush1.msra.mxu0 0.0
    %7834 = vmatprep.subr.mxu0 0.0
    %7835 = vmatpush1.msra.mxu0 0.0
    %7836 = vmatprep.subr.mxu0 0.0
    %7837 = vmatpush1.msra.mxu0 0.0
    %7838 = vmatprep.subr.mxu0 0.0
    %7839 = vmatpush1.msra.mxu0 0.0
    %7840 = vmatprep.subr.mxu0 0.0
    %7841 = vmatpush1.msra.mxu0 0.0
    %7842 = vmatprep.subr.mxu0 0.0
    %7843 = vmatpush1.msra.mxu0 0.0
    %7844 = vmatprep.subr.mxu0 0.0
    %7845 = vmatpush1.msra.mxu0 0.0
    %7846 = vmatprep.subr.mxu0 0.0
    %7847 = vmatpush1.msra.mxu0 0.0
    %7848 = vmatprep.subr.mxu0 0.0
    %7849 = vmatpush1.msra.mxu0 0.0
    %7850 = vmatprep.subr.mxu0 0.0
    %7851 = vmatpush1.msra.mxu0 0.0
    %7852 = vmatprep.subr.mxu0 0.0
    %7853 = vmatpush1.msra.mxu0 0.0
    %7854 = vmatprep.subr.mxu0 0.0
    %7855 = vmatpush1.msra.mxu0 0.0
    %7856 = vmatprep.subr.mxu0 0.0
    %7857 = vmatpush1.msra.mxu0 0.0
    %7858 = vmatprep.subr.mxu0 0.0
    %7859 = vmatpush1.msra.mxu0 0.0
    %7860 = vmatprep.subr.mxu0 0.0
    %7861 = vmatpush1.msra.mxu0 0.0
    %7862 = vmatprep.subr.mxu0 0.0
    %7863 = vmatpush1.msra.mxu0 0.0
    %7864 = vmatprep.subr.mxu0 0.0
    %7865 = vmatpush1.msra.mxu0 0.0
    %7866 = vmatprep.subr.mxu0 0.0
    %7867 = vmatpush1.msra.mxu0 0.0
    %7868 = vmatprep.subr.mxu0 0.0
    %7869 = vmatpush1.msra.mxu0 0.0
    %7870 = vmatprep.subr.mxu0 0.0
    %7871 = vmatpush1.msra.mxu0 0.0
    %7872 = vmatprep.subr.mxu0 0.0
    %7873 = vmatpush1.msra.mxu0 0.0
    %7874 = vmatprep.subr.mxu0 0.0
    %7875 = vmatpush1.msra.mxu0 0.0
    %7876 = vmatprep.subr.mxu0 0.0
    %7877 = vmatpush1.msra.mxu0 0.0
    %7878 = vmatprep.subr.mxu0 0.0
    %7879 = vmatpush1.msra.mxu0 0.0
    %7880 = vmatprep.subr.mxu0 0.0
    %7881 = vmatpush1.msra.mxu0 0.0
    %7882 = vmatprep.subr.mxu0 0.0
    %7883 = vmatpush1.msra.mxu0 0.0
    %7884 = vmatprep.subr.mxu0 0.0
    %7885 = vmatpush1.msra.mxu0 0.0
    %7886 = vmatprep.subr.mxu0 0.0
    %7887 = vmatpush1.msra.mxu0 0.0
    %7888 = vmatprep.subr.mxu0 0.0
    %7889 = vmatpush1.msra.mxu0 0.0
    %7890 = vmatprep.mubr.f32.mxu0 0.0
    %v7891 = vand.u32 %v7396, 4294901760
    %7892 = vmatmul.mubr.f32.gmra.mrb[0].mxu0 %v7891
    %v7893 = vpop.f32.mrb[0].mxu0
    %v7894 = vadd.f32 %v7815, %v7893
    %v7895 = vpop.f32.mrb[0].mxu0
    %7896 = vmatprep.mubr.f32.mxu0 0.0
    %v7897 = vand.u32 %v7399, 4294901760
    %7898 = vmatmul.mubr.f32.gmra.mrb[0].mxu0 %v7897
    %v7899 = vpop.f32.mrb[0].mxu0
    %v7900 = vadd.f32 %v7821, %v7899
    %v7901 = vpop.f32.mrb[0].mxu0
    %7902 = vdwg.mxu0
    %v7903 = vadd.f32 %v7364, %v7894
    %v7904 = vadd.f32 %v7365, %v7900
    %v7905 = vmax.f32 %v7903, 0.0
    %v7906 = vmax.f32 %v7904, 0.0
    %v7907 = vlaneseq
    %v7908 = vshrl.u32 %v7907, 7
    %v7909 = vsub.s32 0, %v7908
    %v7910 = vrot.slane %v7366, %v7909
    %v7911 = vmul.f32 %v7905, %v7910
    %v7912 = vmul.f32 %v7906, %v7910
    %v7913 = vsel %vm7383, 1e+30, %v6825
    %v7914 = vsel %vm7384, 1e+30, %v6826
    %v7915 = vsel %vm1525, %v7913, inf
    %7916 = vmin.xlane.f32.xlu0 %v7915
    %v7917 = vpop.xlane.xlu0 %7916
    %v7918 = vsel %vm1525, %v7914, inf
    %7919 = vmin.xlane.f32.xlu0 %v7918
    %v7920 = vpop.xlane.xlu0 %7919
    %vm7921 = vcmp.le.f32.partialorder %v7913, %v7917
    %vm7922 = vcmp.le.f32.partialorder %v7914, %v7920
    %v7923 = vsel %vm7921, %v30, 16.0
    %v7924 = vsel %vm7922, %v30, 16.0
    %v7925 = vsel %vm1525, %v7923, inf
    %7926 = vmin.xlane.f32.xlu0 %v7925
    %v7927 = vpop.xlane.xlu0 %7926
    %v7928 = vsel %vm1525, %v7924, inf
    %7929 = vmin.xlane.f32.xlu0 %v7928
    %v7930 = vpop.xlane.xlu0 %7929
    %vm7931 = vcmp.eq.f32.partialorder %v30, %v7927
    %vm7932 = vcmp.eq.f32.partialorder %v30, %v7930
    %v7933 = vsel %vm7931, 1.0, 0.0
    %v7934 = vsel %vm7932, 1.0, 0.0
    %v7936 = vsel %vm1525, %v7933, 0
    %v7939 = vsel %vm1525, %v7934, 0
    %7941 = vmatprep.subr.mxu0 0.0
    %v7942 = vand.u32 %v7390, 4294901760
    %7943 = vmatpush1.msra.mxu0 %v7942
    %7944 = vmatprep.subr.mxu0 0.0
    %v7945 = vand.u32 %v7392, 4294901760
    %7946 = vmatpush1.msra.mxu0 %v7945
    %7947 = vmatprep.subr.mxu0 0.0
    %7948 = vmatpush1.msra.mxu0 0.0
    %7949 = vmatprep.subr.mxu0 0.0
    %7950 = vmatpush1.msra.mxu0 0.0
    %7951 = vmatprep.subr.mxu0 0.0
    %7952 = vmatpush1.msra.mxu0 0.0
    %7953 = vmatprep.subr.mxu0 0.0
    %7954 = vmatpush1.msra.mxu0 0.0
    %7955 = vmatprep.subr.mxu0 0.0
    %7956 = vmatpush1.msra.mxu0 0.0
    %7957 = vmatprep.subr.mxu0 0.0
    %7958 = vmatpush1.msra.mxu0 0.0
    %7959 = vmatprep.subr.mxu0 0.0
    %7960 = vmatpush1.msra.mxu0 0.0
    %7961 = vmatprep.subr.mxu0 0.0
    %7962 = vmatpush1.msra.mxu0 0.0
    %7963 = vmatprep.subr.mxu0 0.0
    %7964 = vmatpush1.msra.mxu0 0.0
    %7965 = vmatprep.subr.mxu0 0.0
    %7966 = vmatpush1.msra.mxu0 0.0
    %7967 = vmatprep.subr.mxu0 0.0
    %7968 = vmatpush1.msra.mxu0 0.0
    %7969 = vmatprep.subr.mxu0 0.0
    %7970 = vmatpush1.msra.mxu0 0.0
    %7971 = vmatprep.subr.mxu0 0.0
    %7972 = vmatpush1.msra.mxu0 0.0
    %7973 = vmatprep.subr.mxu0 0.0
    %7974 = vmatpush1.msra.mxu0 0.0
    %7975 = vmatprep.subr.mxu0 0.0
    %7976 = vmatpush1.msra.mxu0 0.0
    %7977 = vmatprep.subr.mxu0 0.0
    %7978 = vmatpush1.msra.mxu0 0.0
    %7979 = vmatprep.subr.mxu0 0.0
    %7980 = vmatpush1.msra.mxu0 0.0
    %7981 = vmatprep.subr.mxu0 0.0
    %7982 = vmatpush1.msra.mxu0 0.0
    %7983 = vmatprep.subr.mxu0 0.0
    %7984 = vmatpush1.msra.mxu0 0.0
    %7985 = vmatprep.subr.mxu0 0.0
    %7986 = vmatpush1.msra.mxu0 0.0
    %7987 = vmatprep.subr.mxu0 0.0
    %7988 = vmatpush1.msra.mxu0 0.0
    %7989 = vmatprep.subr.mxu0 0.0
    %7990 = vmatpush1.msra.mxu0 0.0
    %7991 = vmatprep.subr.mxu0 0.0
    %7992 = vmatpush1.msra.mxu0 0.0
    %7993 = vmatprep.subr.mxu0 0.0
    %7994 = vmatpush1.msra.mxu0 0.0
    %7995 = vmatprep.subr.mxu0 0.0
    %7996 = vmatpush1.msra.mxu0 0.0
    %7997 = vmatprep.subr.mxu0 0.0
    %7998 = vmatpush1.msra.mxu0 0.0
    %7999 = vmatprep.subr.mxu0 0.0
    %8000 = vmatpush1.msra.mxu0 0.0
    %8001 = vmatprep.subr.mxu0 0.0
    %8002 = vmatpush1.msra.mxu0 0.0
    %8003 = vmatprep.subr.mxu0 0.0
    %8004 = vmatpush1.msra.mxu0 0.0
    %8005 = vmatprep.subr.mxu0 0.0
    %8006 = vmatpush1.msra.mxu0 0.0
    %8007 = vmatprep.mubr.f32.mxu0 0.0
    %v8008 = vand.u32 %v7936, 4294901760
    %v8009 = vsub.f32 %v7936, %v8008
    %v8010 = vand.u32 %v8009, 4294901760
    %v8011 = vsub.f32 %v8009, %v8010
    %v8012 = vand.u32 %v8011, 4294901760
    %8013 = vmatmul.mubr.f32.gmra.mrb[0].mxu0 %v8012
    %v8014 = vpop.f32.mrb[0].mxu0
    %v8015 = vadd.f32 0.0, %v8014
    %v8016 = vpop.f32.mrb[0].mxu0
    %8017 = vmatprep.mubr.f32.mxu0 0.0
    %v8018 = vand.u32 %v7939, 4294901760
    %v8019 = vsub.f32 %v7939, %v8018
    %v8020 = vand.u32 %v8019, 4294901760
    %v8021 = vsub.f32 %v8019, %v8020
    %v8022 = vand.u32 %v8021, 4294901760
    %8023 = vmatmul.mubr.f32.gmra.mrb[0].mxu0 %v8022
    %v8024 = vpop.f32.mrb[0].mxu0
    %v8025 = vadd.f32 0.0, %v8024
    %v8026 = vpop.f32.mrb[0].mxu0
    %8027 = vdwg.mxu0
    %8028 = vmatprep.subr.mxu0 0.0
    %v8029 = vand.u32 %v7390, 4294901760
    %v8030 = vsub.f32 %v7390, %v8029
    %v8031 = vand.u32 %v8030, 4294901760
    %v8032 = vsub.f32 %v8030, %v8031
    %v8033 = vand.u32 %v8032, 4294901760
    %8034 = vmatpush1.msra.mxu0 %v8033
    %8035 = vmatprep.subr.mxu0 0.0
    %v8036 = vand.u32 %v7392, 4294901760
    %v8037 = vsub.f32 %v7392, %v8036
    %v8038 = vand.u32 %v8037, 4294901760
    %v8039 = vsub.f32 %v8037, %v8038
    %v8040 = vand.u32 %v8039, 4294901760
    %8041 = vmatpush1.msra.mxu0 %v8040
    %8042 = vmatprep.subr.mxu0 0.0
    %8043 = vmatpush1.msra.mxu0 0.0
    %8044 = vmatprep.subr.mxu0 0.0
    %8045 = vmatpush1.msra.mxu0 0.0
    %8046 = vmatprep.subr.mxu0 0.0
    %8047 = vmatpush1.msra.mxu0 0.0
    %8048 = vmatprep.subr.mxu0 0.0
    %8049 = vmatpush1.msra.mxu0 0.0
    %8050 = vmatprep.subr.mxu0 0.0
    %8051 = vmatpush1.msra.mxu0 0.0
    %8052 = vmatprep.subr.mxu0 0.0
    %8053 = vmatpush1.msra.mxu0 0.0
    %8054 = vmatprep.subr.mxu0 0.0
    %8055 = vmatpush1.msra.mxu0 0.0
    %8056 = vmatprep.subr.mxu0 0.0
    %8057 = vmatpush1.msra.mxu0 0.0
    %8058 = vmatprep.subr.mxu0 0.0
    %8059 = vmatpush1.msra.mxu0 0.0
    %8060 = vmatprep.subr.mxu0 0.0
    %8061 = vmatpush1.msra.mxu0 0.0
    %8062 = vmatprep.subr.mxu0 0.0
    %8063 = vmatpush1.msra.mxu0 0.0
    %8064 = vmatprep.subr.mxu0 0.0
    %8065 = vmatpush1.msra.mxu0 0.0
    %8066 = vmatprep.subr.mxu0 0.0
    %8067 = vmatpush1.msra.mxu0 0.0
    %8068 = vmatprep.subr.mxu0 0.0
    %8069 = vmatpush1.msra.mxu0 0.0
    %8070 = vmatprep.subr.mxu0 0.0
    %8071 = vmatpush1.msra.mxu0 0.0
    %8072 = vmatprep.subr.mxu0 0.0
    %8073 = vmatpush1.msra.mxu0 0.0
    %8074 = vmatprep.subr.mxu0 0.0
    %8075 = vmatpush1.msra.mxu0 0.0
    %8076 = vmatprep.subr.mxu0 0.0
    %8077 = vmatpush1.msra.mxu0 0.0
    %8078 = vmatprep.subr.mxu0 0.0
    %8079 = vmatpush1.msra.mxu0 0.0
    %8080 = vmatprep.subr.mxu0 0.0
    %8081 = vmatpush1.msra.mxu0 0.0
    %8082 = vmatprep.subr.mxu0 0.0
    %8083 = vmatpush1.msra.mxu0 0.0
    %8084 = vmatprep.subr.mxu0 0.0
    %8085 = vmatpush1.msra.mxu0 0.0
    %8086 = vmatprep.subr.mxu0 0.0
    %8087 = vmatpush1.msra.mxu0 0.0
    %8088 = vmatprep.subr.mxu0 0.0
    %8089 = vmatpush1.msra.mxu0 0.0
    %8090 = vmatprep.subr.mxu0 0.0
    %8091 = vmatpush1.msra.mxu0 0.0
    %8092 = vmatprep.subr.mxu0 0.0
    %8093 = vmatpush1.msra.mxu0 0.0
    %8094 = vmatprep.subr.mxu0 0.0
    %8095 = vmatpush1.msra.mxu0 0.0
    %8096 = vmatprep.subr.mxu0 0.0
    %8097 = vmatpush1.msra.mxu0 0.0
    %8098 = vmatprep.subr.mxu0 0.0
    %8099 = vmatpush1.msra.mxu0 0.0
    %8100 = vmatprep.subr.mxu0 0.0
    %8101 = vmatpush1.msra.mxu0 0.0
    %8102 = vmatprep.mubr.f32.mxu0 0.0
    %v8103 = vand.u32 %v7936, 4294901760
    %8104 = vmatmul.mubr.f32.gmra.mrb[0].mxu0 %v8103
    %v8105 = vpop.f32.mrb[0].mxu0
    %v8106 = vadd.f32 %v8015, %v8105
    %v8107 = vpop.f32.mrb[0].mxu0
    %8108 = vmatprep.mubr.f32.mxu0 0.0
    %v8109 = vand.u32 %v7939, 4294901760
    %8110 = vmatmul.mubr.f32.gmra.mrb[0].mxu0 %v8109
    %v8111 = vpop.f32.mrb[0].mxu0
    %v8112 = vadd.f32 %v8025, %v8111
    %v8113 = vpop.f32.mrb[0].mxu0
    %8114 = vdwg.mxu0
    %8115 = vmatprep.subr.mxu0 0.0
    %v8116 = vand.u32 %v7390, 4294901760
    %v8117 = vsub.f32 %v7390, %v8116
    %8118 = vmatpush1.msra.mxu0 %v8117
    %8119 = vmatprep.subr.mxu0 0.0
    %v8120 = vand.u32 %v7392, 4294901760
    %v8121 = vsub.f32 %v7392, %v8120
    %8122 = vmatpush1.msra.mxu0 %v8121
    %8123 = vmatprep.subr.mxu0 0.0
    %8124 = vmatpush1.msra.mxu0 0.0
    %8125 = vmatprep.subr.mxu0 0.0
    %8126 = vmatpush1.msra.mxu0 0.0
    %8127 = vmatprep.subr.mxu0 0.0
    %8128 = vmatpush1.msra.mxu0 0.0
    %8129 = vmatprep.subr.mxu0 0.0
    %8130 = vmatpush1.msra.mxu0 0.0
    %8131 = vmatprep.subr.mxu0 0.0
    %8132 = vmatpush1.msra.mxu0 0.0
    %8133 = vmatprep.subr.mxu0 0.0
    %8134 = vmatpush1.msra.mxu0 0.0
    %8135 = vmatprep.subr.mxu0 0.0
    %8136 = vmatpush1.msra.mxu0 0.0
    %8137 = vmatprep.subr.mxu0 0.0
    %8138 = vmatpush1.msra.mxu0 0.0
    %8139 = vmatprep.subr.mxu0 0.0
    %8140 = vmatpush1.msra.mxu0 0.0
    %8141 = vmatprep.subr.mxu0 0.0
    %8142 = vmatpush1.msra.mxu0 0.0
    %8143 = vmatprep.subr.mxu0 0.0
    %8144 = vmatpush1.msra.mxu0 0.0
    %8145 = vmatprep.subr.mxu0 0.0
    %8146 = vmatpush1.msra.mxu0 0.0
    %8147 = vmatprep.subr.mxu0 0.0
    %8148 = vmatpush1.msra.mxu0 0.0
    %8149 = vmatprep.subr.mxu0 0.0
    %8150 = vmatpush1.msra.mxu0 0.0
    %8151 = vmatprep.subr.mxu0 0.0
    %8152 = vmatpush1.msra.mxu0 0.0
    %8153 = vmatprep.subr.mxu0 0.0
    %8154 = vmatpush1.msra.mxu0 0.0
    %8155 = vmatprep.subr.mxu0 0.0
    %8156 = vmatpush1.msra.mxu0 0.0
    %8157 = vmatprep.subr.mxu0 0.0
    %8158 = vmatpush1.msra.mxu0 0.0
    %8159 = vmatprep.subr.mxu0 0.0
    %8160 = vmatpush1.msra.mxu0 0.0
    %8161 = vmatprep.subr.mxu0 0.0
    %8162 = vmatpush1.msra.mxu0 0.0
    %8163 = vmatprep.subr.mxu0 0.0
    %8164 = vmatpush1.msra.mxu0 0.0
    %8165 = vmatprep.subr.mxu0 0.0
    %8166 = vmatpush1.msra.mxu0 0.0
    %8167 = vmatprep.subr.mxu0 0.0
    %8168 = vmatpush1.msra.mxu0 0.0
    %8169 = vmatprep.subr.mxu0 0.0
    %8170 = vmatpush1.msra.mxu0 0.0
    %8171 = vmatprep.subr.mxu0 0.0
    %8172 = vmatpush1.msra.mxu0 0.0
    %8173 = vmatprep.subr.mxu0 0.0
    %8174 = vmatpush1.msra.mxu0 0.0
    %8175 = vmatprep.subr.mxu0 0.0
    %8176 = vmatpush1.msra.mxu0 0.0
    %8177 = vmatprep.subr.mxu0 0.0
    %8178 = vmatpush1.msra.mxu0 0.0
    %8179 = vmatprep.subr.mxu0 0.0
    %8180 = vmatpush1.msra.mxu0 0.0
    %8181 = vmatprep.subr.mxu0 0.0
    %8182 = vmatpush1.msra.mxu0 0.0
    %8183 = vmatprep.mubr.f32.mxu0 0.0
    %v8184 = vand.u32 %v7936, 4294901760
    %v8185 = vsub.f32 %v7936, %v8184
    %8186 = vmatmul.mubr.f32.gmra.mrb[0].mxu0 %v8185
    %v8187 = vpop.f32.mrb[0].mxu0
    %v8188 = vadd.f32 %v8106, %v8187
    %v8189 = vpop.f32.mrb[0].mxu0
    %8190 = vmatprep.mubr.f32.mxu0 0.0
    %v8191 = vand.u32 %v7939, 4294901760
    %v8192 = vsub.f32 %v7939, %v8191
    %8193 = vmatmul.mubr.f32.gmra.mrb[0].mxu0 %v8192
    %v8194 = vpop.f32.mrb[0].mxu0
    %v8195 = vadd.f32 %v8112, %v8194
    %v8196 = vpop.f32.mrb[0].mxu0
    %8197 = vdwg.mxu0
    %8198 = vmatprep.subr.mxu0 0.0
    %v8199 = vand.u32 %v7390, 4294901760
    %8200 = vmatpush1.msra.mxu0 %v8199
    %8201 = vmatprep.subr.mxu0 0.0
    %v8202 = vand.u32 %v7392, 4294901760
    %8203 = vmatpush1.msra.mxu0 %v8202
    %8204 = vmatprep.subr.mxu0 0.0
    %8205 = vmatpush1.msra.mxu0 0.0
    %8206 = vmatprep.subr.mxu0 0.0
    %8207 = vmatpush1.msra.mxu0 0.0
    %8208 = vmatprep.subr.mxu0 0.0
    %8209 = vmatpush1.msra.mxu0 0.0
    %8210 = vmatprep.subr.mxu0 0.0
    %8211 = vmatpush1.msra.mxu0 0.0
    %8212 = vmatprep.subr.mxu0 0.0
    %8213 = vmatpush1.msra.mxu0 0.0
    %8214 = vmatprep.subr.mxu0 0.0
    %8215 = vmatpush1.msra.mxu0 0.0
    %8216 = vmatprep.subr.mxu0 0.0
    %8217 = vmatpush1.msra.mxu0 0.0
    %8218 = vmatprep.subr.mxu0 0.0
    %8219 = vmatpush1.msra.mxu0 0.0
    %8220 = vmatprep.subr.mxu0 0.0
    %8221 = vmatpush1.msra.mxu0 0.0
    %8222 = vmatprep.subr.mxu0 0.0
    %8223 = vmatpush1.msra.mxu0 0.0
    %8224 = vmatprep.subr.mxu0 0.0
    %8225 = vmatpush1.msra.mxu0 0.0
    %8226 = vmatprep.subr.mxu0 0.0
    %8227 = vmatpush1.msra.mxu0 0.0
    %8228 = vmatprep.subr.mxu0 0.0
    %8229 = vmatpush1.msra.mxu0 0.0
    %8230 = vmatprep.subr.mxu0 0.0
    %8231 = vmatpush1.msra.mxu0 0.0
    %8232 = vmatprep.subr.mxu0 0.0
    %8233 = vmatpush1.msra.mxu0 0.0
    %8234 = vmatprep.subr.mxu0 0.0
    %8235 = vmatpush1.msra.mxu0 0.0
    %8236 = vmatprep.subr.mxu0 0.0
    %8237 = vmatpush1.msra.mxu0 0.0
    %8238 = vmatprep.subr.mxu0 0.0
    %8239 = vmatpush1.msra.mxu0 0.0
    %8240 = vmatprep.subr.mxu0 0.0
    %8241 = vmatpush1.msra.mxu0 0.0
    %8242 = vmatprep.subr.mxu0 0.0
    %8243 = vmatpush1.msra.mxu0 0.0
    %8244 = vmatprep.subr.mxu0 0.0
    %8245 = vmatpush1.msra.mxu0 0.0
    %8246 = vmatprep.subr.mxu0 0.0
    %8247 = vmatpush1.msra.mxu0 0.0
    %8248 = vmatprep.subr.mxu0 0.0
    %8249 = vmatpush1.msra.mxu0 0.0
    %8250 = vmatprep.subr.mxu0 0.0
    %8251 = vmatpush1.msra.mxu0 0.0
    %8252 = vmatprep.subr.mxu0 0.0
    %8253 = vmatpush1.msra.mxu0 0.0
    %8254 = vmatprep.subr.mxu0 0.0
    %8255 = vmatpush1.msra.mxu0 0.0
    %8256 = vmatprep.subr.mxu0 0.0
    %8257 = vmatpush1.msra.mxu0 0.0
    %8258 = vmatprep.subr.mxu0 0.0
    %8259 = vmatpush1.msra.mxu0 0.0
    %8260 = vmatprep.subr.mxu0 0.0
    %8261 = vmatpush1.msra.mxu0 0.0
    %8262 = vmatprep.subr.mxu0 0.0
    %8263 = vmatpush1.msra.mxu0 0.0
    %8264 = vmatprep.mubr.f32.mxu0 0.0
    %v8265 = vand.u32 %v7936, 4294901760
    %v8266 = vsub.f32 %v7936, %v8265
    %v8267 = vand.u32 %v8266, 4294901760
    %8268 = vmatmul.mubr.f32.gmra.mrb[0].mxu0 %v8267
    %v8269 = vpop.f32.mrb[0].mxu0
    %v8270 = vadd.f32 %v8188, %v8269
    %v8271 = vpop.f32.mrb[0].mxu0
    %8272 = vmatprep.mubr.f32.mxu0 0.0
    %v8273 = vand.u32 %v7939, 4294901760
    %v8274 = vsub.f32 %v7939, %v8273
    %v8275 = vand.u32 %v8274, 4294901760
    %8276 = vmatmul.mubr.f32.gmra.mrb[0].mxu0 %v8275
    %v8277 = vpop.f32.mrb[0].mxu0
    %v8278 = vadd.f32 %v8195, %v8277
    %v8279 = vpop.f32.mrb[0].mxu0
    %8280 = vdwg.mxu0
    %8281 = vmatprep.subr.mxu0 0.0
    %v8282 = vand.u32 %v7390, 4294901760
    %v8283 = vsub.f32 %v7390, %v8282
    %v8284 = vand.u32 %v8283, 4294901760
    %8285 = vmatpush1.msra.mxu0 %v8284
    %8286 = vmatprep.subr.mxu0 0.0
    %v8287 = vand.u32 %v7392, 4294901760
    %v8288 = vsub.f32 %v7392, %v8287
    %v8289 = vand.u32 %v8288, 4294901760
    %8290 = vmatpush1.msra.mxu0 %v8289
    %8291 = vmatprep.subr.mxu0 0.0
    %8292 = vmatpush1.msra.mxu0 0.0
    %8293 = vmatprep.subr.mxu0 0.0
    %8294 = vmatpush1.msra.mxu0 0.0
    %8295 = vmatprep.subr.mxu0 0.0
    %8296 = vmatpush1.msra.mxu0 0.0
    %8297 = vmatprep.subr.mxu0 0.0
    %8298 = vmatpush1.msra.mxu0 0.0
    %8299 = vmatprep.subr.mxu0 0.0
    %8300 = vmatpush1.msra.mxu0 0.0
    %8301 = vmatprep.subr.mxu0 0.0
    %8302 = vmatpush1.msra.mxu0 0.0
    %8303 = vmatprep.subr.mxu0 0.0
    %8304 = vmatpush1.msra.mxu0 0.0
    %8305 = vmatprep.subr.mxu0 0.0
    %8306 = vmatpush1.msra.mxu0 0.0
    %8307 = vmatprep.subr.mxu0 0.0
    %8308 = vmatpush1.msra.mxu0 0.0
    %8309 = vmatprep.subr.mxu0 0.0
    %8310 = vmatpush1.msra.mxu0 0.0
    %8311 = vmatprep.subr.mxu0 0.0
    %8312 = vmatpush1.msra.mxu0 0.0
    %8313 = vmatprep.subr.mxu0 0.0
    %8314 = vmatpush1.msra.mxu0 0.0
    %8315 = vmatprep.subr.mxu0 0.0
    %8316 = vmatpush1.msra.mxu0 0.0
    %8317 = vmatprep.subr.mxu0 0.0
    %8318 = vmatpush1.msra.mxu0 0.0
    %8319 = vmatprep.subr.mxu0 0.0
    %8320 = vmatpush1.msra.mxu0 0.0
    %8321 = vmatprep.subr.mxu0 0.0
    %8322 = vmatpush1.msra.mxu0 0.0
    %8323 = vmatprep.subr.mxu0 0.0
    %8324 = vmatpush1.msra.mxu0 0.0
    %8325 = vmatprep.subr.mxu0 0.0
    %8326 = vmatpush1.msra.mxu0 0.0
    %8327 = vmatprep.subr.mxu0 0.0
    %8328 = vmatpush1.msra.mxu0 0.0
    %8329 = vmatprep.subr.mxu0 0.0
    %8330 = vmatpush1.msra.mxu0 0.0
    %8331 = vmatprep.subr.mxu0 0.0
    %8332 = vmatpush1.msra.mxu0 0.0
    %8333 = vmatprep.subr.mxu0 0.0
    %8334 = vmatpush1.msra.mxu0 0.0
    %8335 = vmatprep.subr.mxu0 0.0
    %8336 = vmatpush1.msra.mxu0 0.0
    %8337 = vmatprep.subr.mxu0 0.0
    %8338 = vmatpush1.msra.mxu0 0.0
    %8339 = vmatprep.subr.mxu0 0.0
    %8340 = vmatpush1.msra.mxu0 0.0
    %8341 = vmatprep.subr.mxu0 0.0
    %8342 = vmatpush1.msra.mxu0 0.0
    %8343 = vmatprep.subr.mxu0 0.0
    %8344 = vmatpush1.msra.mxu0 0.0
    %8345 = vmatprep.subr.mxu0 0.0
    %8346 = vmatpush1.msra.mxu0 0.0
    %8347 = vmatprep.subr.mxu0 0.0
    %8348 = vmatpush1.msra.mxu0 0.0
    %8349 = vmatprep.subr.mxu0 0.0
    %8350 = vmatpush1.msra.mxu0 0.0
    %8351 = vmatprep.mubr.f32.mxu0 0.0
    %v8352 = vand.u32 %v7936, 4294901760
    %8353 = vmatmul.mubr.f32.gmra.mrb[0].mxu0 %v8352
    %v8354 = vpop.f32.mrb[0].mxu0
    %v8355 = vadd.f32 %v8270, %v8354
    %v8356 = vpop.f32.mrb[0].mxu0
    %8357 = vmatprep.mubr.f32.mxu0 0.0
    %v8358 = vand.u32 %v7939, 4294901760
    %8359 = vmatmul.mubr.f32.gmra.mrb[0].mxu0 %v8358
    %v8360 = vpop.f32.mrb[0].mxu0
    %v8361 = vadd.f32 %v8278, %v8360
    %v8362 = vpop.f32.mrb[0].mxu0
    %8363 = vdwg.mxu0
    %8364 = vmatprep.subr.mxu0 0.0
    %v8365 = vand.u32 %v7390, 4294901760
    %8366 = vmatpush1.msra.mxu0 %v8365
    %8367 = vmatprep.subr.mxu0 0.0
    %v8368 = vand.u32 %v7392, 4294901760
    %8369 = vmatpush1.msra.mxu0 %v8368
    %8370 = vmatprep.subr.mxu0 0.0
    %8371 = vmatpush1.msra.mxu0 0.0
    %8372 = vmatprep.subr.mxu0 0.0
    %8373 = vmatpush1.msra.mxu0 0.0
    %8374 = vmatprep.subr.mxu0 0.0
    %8375 = vmatpush1.msra.mxu0 0.0
    %8376 = vmatprep.subr.mxu0 0.0
    %8377 = vmatpush1.msra.mxu0 0.0
    %8378 = vmatprep.subr.mxu0 0.0
    %8379 = vmatpush1.msra.mxu0 0.0
    %8380 = vmatprep.subr.mxu0 0.0
    %8381 = vmatpush1.msra.mxu0 0.0
    %8382 = vmatprep.subr.mxu0 0.0
    %8383 = vmatpush1.msra.mxu0 0.0
    %8384 = vmatprep.subr.mxu0 0.0
    %8385 = vmatpush1.msra.mxu0 0.0
    %8386 = vmatprep.subr.mxu0 0.0
    %8387 = vmatpush1.msra.mxu0 0.0
    %8388 = vmatprep.subr.mxu0 0.0
    %8389 = vmatpush1.msra.mxu0 0.0
    %8390 = vmatprep.subr.mxu0 0.0
    %8391 = vmatpush1.msra.mxu0 0.0
    %8392 = vmatprep.subr.mxu0 0.0
    %8393 = vmatpush1.msra.mxu0 0.0
    %8394 = vmatprep.subr.mxu0 0.0
    %8395 = vmatpush1.msra.mxu0 0.0
    %8396 = vmatprep.subr.mxu0 0.0
    %8397 = vmatpush1.msra.mxu0 0.0
    %8398 = vmatprep.subr.mxu0 0.0
    %8399 = vmatpush1.msra.mxu0 0.0
    %8400 = vmatprep.subr.mxu0 0.0
    %8401 = vmatpush1.msra.mxu0 0.0
    %8402 = vmatprep.subr.mxu0 0.0
    %8403 = vmatpush1.msra.mxu0 0.0
    %8404 = vmatprep.subr.mxu0 0.0
    %8405 = vmatpush1.msra.mxu0 0.0
    %8406 = vmatprep.subr.mxu0 0.0
    %8407 = vmatpush1.msra.mxu0 0.0
    %8408 = vmatprep.subr.mxu0 0.0
    %8409 = vmatpush1.msra.mxu0 0.0
    %8410 = vmatprep.subr.mxu0 0.0
    %8411 = vmatpush1.msra.mxu0 0.0
    %8412 = vmatprep.subr.mxu0 0.0
    %8413 = vmatpush1.msra.mxu0 0.0
    %8414 = vmatprep.subr.mxu0 0.0
    %8415 = vmatpush1.msra.mxu0 0.0
    %8416 = vmatprep.subr.mxu0 0.0
    %8417 = vmatpush1.msra.mxu0 0.0
    %8418 = vmatprep.subr.mxu0 0.0
    %8419 = vmatpush1.msra.mxu0 0.0
    %8420 = vmatprep.subr.mxu0 0.0
    %8421 = vmatpush1.msra.mxu0 0.0
    %8422 = vmatprep.subr.mxu0 0.0
    %8423 = vmatpush1.msra.mxu0 0.0
    %8424 = vmatprep.subr.mxu0 0.0
    %8425 = vmatpush1.msra.mxu0 0.0
    %8426 = vmatprep.subr.mxu0 0.0
    %8427 = vmatpush1.msra.mxu0 0.0
    %8428 = vmatprep.subr.mxu0 0.0
    %8429 = vmatpush1.msra.mxu0 0.0
    %8430 = vmatprep.mubr.f32.mxu0 0.0
    %v8431 = vand.u32 %v7936, 4294901760
    %8432 = vmatmul.mubr.f32.gmra.mrb[0].mxu0 %v8431
    %v8433 = vpop.f32.mrb[0].mxu0
    %v8434 = vadd.f32 %v8355, %v8433
    %v8435 = vpop.f32.mrb[0].mxu0
    %8436 = vmatprep.mubr.f32.mxu0 0.0
    %v8437 = vand.u32 %v7939, 4294901760
    %8438 = vmatmul.mubr.f32.gmra.mrb[0].mxu0 %v8437
    %v8439 = vpop.f32.mrb[0].mxu0
    %v8440 = vadd.f32 %v8361, %v8439
    %v8441 = vpop.f32.mrb[0].mxu0
    %8442 = vdwg.mxu0
    %v8443 = vadd.f32 %v7364, %v8434
    %v8444 = vadd.f32 %v7365, %v8440
    %v8445 = vmax.f32 %v8443, 0.0
    %v8446 = vmax.f32 %v8444, 0.0
    %v8447 = vmul.f32 %v8445, %v7910
    %v8448 = vmul.f32 %v8446, %v7910
    %v8449 = vmax.f32 %v7911, %v8447
    %v8450 = vmax.f32 %v7912, %v8448
    %v8451 = vsel %vm7931, 1e+30, %v7913
    %v8452 = vsel %vm7932, 1e+30, %v7914
    %v8453 = vsel %vm1525, %v8451, inf
    %8454 = vmin.xlane.f32.xlu0 %v8453
    %v8455 = vpop.xlane.xlu0 %8454
    %v8456 = vsel %vm1525, %v8452, inf
    %8457 = vmin.xlane.f32.xlu0 %v8456
    %v8458 = vpop.xlane.xlu0 %8457
    %vm8459 = vcmp.le.f32.partialorder %v8451, %v8455
    %vm8460 = vcmp.le.f32.partialorder %v8452, %v8458
    %v8461 = vsel %vm8459, %v30, 16.0
    %v8462 = vsel %vm8460, %v30, 16.0
    %v8463 = vsel %vm1525, %v8461, inf
    %8464 = vmin.xlane.f32.xlu0 %v8463
    %v8465 = vpop.xlane.xlu0 %8464
    %v8466 = vsel %vm1525, %v8462, inf
    %8467 = vmin.xlane.f32.xlu0 %v8466
    %v8468 = vpop.xlane.xlu0 %8467
    %vm8469 = vcmp.eq.f32.partialorder %v30, %v8465
    %vm8470 = vcmp.eq.f32.partialorder %v30, %v8468
    %v8471 = vsel %vm8469, 1.0, 0.0
    %v8472 = vsel %vm8470, 1.0, 0.0
    %v8474 = vsel %vm1525, %v8471, 0
    %v8477 = vsel %vm1525, %v8472, 0
    %8479 = vmatprep.subr.mxu0 0.0
    %v8480 = vand.u32 %v7390, 4294901760
    %8481 = vmatpush1.msra.mxu0 %v8480
    %8482 = vmatprep.subr.mxu0 0.0
    %v8483 = vand.u32 %v7392, 4294901760
    %8484 = vmatpush1.msra.mxu0 %v8483
    %8485 = vmatprep.subr.mxu0 0.0
    %8486 = vmatpush1.msra.mxu0 0.0
    %8487 = vmatprep.subr.mxu0 0.0
    %8488 = vmatpush1.msra.mxu0 0.0
    %8489 = vmatprep.subr.mxu0 0.0
    %8490 = vmatpush1.msra.mxu0 0.0
    %8491 = vmatprep.subr.mxu0 0.0
    %8492 = vmatpush1.msra.mxu0 0.0
    %8493 = vmatprep.subr.mxu0 0.0
    %8494 = vmatpush1.msra.mxu0 0.0
    %8495 = vmatprep.subr.mxu0 0.0
    %8496 = vmatpush1.msra.mxu0 0.0
    %8497 = vmatprep.subr.mxu0 0.0
    %8498 = vmatpush1.msra.mxu0 0.0
    %8499 = vmatprep.subr.mxu0 0.0
    %8500 = vmatpush1.msra.mxu0 0.0
    %8501 = vmatprep.subr.mxu0 0.0
    %8502 = vmatpush1.msra.mxu0 0.0
    %8503 = vmatprep.subr.mxu0 0.0
    %8504 = vmatpush1.msra.mxu0 0.0
    %8505 = vmatprep.subr.mxu0 0.0
    %8506 = vmatpush1.msra.mxu0 0.0
    %8507 = vmatprep.subr.mxu0 0.0
    %8508 = vmatpush1.msra.mxu0 0.0
    %8509 = vmatprep.subr.mxu0 0.0
    %8510 = vmatpush1.msra.mxu0 0.0
    %8511 = vmatprep.subr.mxu0 0.0
    %8512 = vmatpush1.msra.mxu0 0.0
    %8513 = vmatprep.subr.mxu0 0.0
    %8514 = vmatpush1.msra.mxu0 0.0
    %8515 = vmatprep.subr.mxu0 0.0
    %8516 = vmatpush1.msra.mxu0 0.0
    %8517 = vmatprep.subr.mxu0 0.0
    %8518 = vmatpush1.msra.mxu0 0.0
    %8519 = vmatprep.subr.mxu0 0.0
    %8520 = vmatpush1.msra.mxu0 0.0
    %8521 = vmatprep.subr.mxu0 0.0
    %8522 = vmatpush1.msra.mxu0 0.0
    %8523 = vmatprep.subr.mxu0 0.0
    %8524 = vmatpush1.msra.mxu0 0.0
    %8525 = vmatprep.subr.mxu0 0.0
    %8526 = vmatpush1.msra.mxu0 0.0
    %8527 = vmatprep.subr.mxu0 0.0
    %8528 = vmatpush1.msra.mxu0 0.0
    %8529 = vmatprep.subr.mxu0 0.0
    %8530 = vmatpush1.msra.mxu0 0.0
    %8531 = vmatprep.subr.mxu0 0.0
    %8532 = vmatpush1.msra.mxu0 0.0
    %8533 = vmatprep.subr.mxu0 0.0
    %8534 = vmatpush1.msra.mxu0 0.0
    %8535 = vmatprep.subr.mxu0 0.0
    %8536 = vmatpush1.msra.mxu0 0.0
    %8537 = vmatprep.subr.mxu0 0.0
    %8538 = vmatpush1.msra.mxu0 0.0
    %8539 = vmatprep.subr.mxu0 0.0
    %8540 = vmatpush1.msra.mxu0 0.0
    %8541 = vmatprep.subr.mxu0 0.0
    %8542 = vmatpush1.msra.mxu0 0.0
    %8543 = vmatprep.subr.mxu0 0.0
    %8544 = vmatpush1.msra.mxu0 0.0
    %8545 = vmatprep.mubr.f32.mxu0 0.0
    %v8546 = vand.u32 %v8474, 4294901760
    %v8547 = vsub.f32 %v8474, %v8546
    %v8548 = vand.u32 %v8547, 4294901760
    %v8549 = vsub.f32 %v8547, %v8548
    %v8550 = vand.u32 %v8549, 4294901760
    %8551 = vmatmul.mubr.f32.gmra.mrb[0].mxu0 %v8550
    %v8552 = vpop.f32.mrb[0].mxu0
    %v8553 = vadd.f32 0.0, %v8552
    %v8554 = vpop.f32.mrb[0].mxu0
    %8555 = vmatprep.mubr.f32.mxu0 0.0
    %v8556 = vand.u32 %v8477, 4294901760
    %v8557 = vsub.f32 %v8477, %v8556
    %v8558 = vand.u32 %v8557, 4294901760
    %v8559 = vsub.f32 %v8557, %v8558
    %v8560 = vand.u32 %v8559, 4294901760
    %8561 = vmatmul.mubr.f32.gmra.mrb[0].mxu0 %v8560
    %v8562 = vpop.f32.mrb[0].mxu0
    %v8563 = vadd.f32 0.0, %v8562
    %v8564 = vpop.f32.mrb[0].mxu0
    %8565 = vdwg.mxu0
    %8566 = vmatprep.subr.mxu0 0.0
    %v8567 = vand.u32 %v7390, 4294901760
    %v8568 = vsub.f32 %v7390, %v8567
    %v8569 = vand.u32 %v8568, 4294901760
    %v8570 = vsub.f32 %v8568, %v8569
    %v8571 = vand.u32 %v8570, 4294901760
    %8572 = vmatpush1.msra.mxu0 %v8571
    %8573 = vmatprep.subr.mxu0 0.0
    %v8574 = vand.u32 %v7392, 4294901760
    %v8575 = vsub.f32 %v7392, %v8574
    %v8576 = vand.u32 %v8575, 4294901760
    %v8577 = vsub.f32 %v8575, %v8576
    %v8578 = vand.u32 %v8577, 4294901760
    %8579 = vmatpush1.msra.mxu0 %v8578
    %8580 = vmatprep.subr.mxu0 0.0
    %8581 = vmatpush1.msra.mxu0 0.0
    %8582 = vmatprep.subr.mxu0 0.0
    %8583 = vmatpush1.msra.mxu0 0.0
    %8584 = vmatprep.subr.mxu0 0.0
    %8585 = vmatpush1.msra.mxu0 0.0
    %8586 = vmatprep.subr.mxu0 0.0
    %8587 = vmatpush1.msra.mxu0 0.0
    %8588 = vmatprep.subr.mxu0 0.0
    %8589 = vmatpush1.msra.mxu0 0.0
    %8590 = vmatprep.subr.mxu0 0.0
    %8591 = vmatpush1.msra.mxu0 0.0
    %8592 = vmatprep.subr.mxu0 0.0
    %8593 = vmatpush1.msra.mxu0 0.0
    %8594 = vmatprep.subr.mxu0 0.0
    %8595 = vmatpush1.msra.mxu0 0.0
    %8596 = vmatprep.subr.mxu0 0.0
    %8597 = vmatpush1.msra.mxu0 0.0
    %8598 = vmatprep.subr.mxu0 0.0
    %8599 = vmatpush1.msra.mxu0 0.0
    %8600 = vmatprep.subr.mxu0 0.0
    %8601 = vmatpush1.msra.mxu0 0.0
    %8602 = vmatprep.subr.mxu0 0.0
    %8603 = vmatpush1.msra.mxu0 0.0
    %8604 = vmatprep.subr.mxu0 0.0
    %8605 = vmatpush1.msra.mxu0 0.0
    %8606 = vmatprep.subr.mxu0 0.0
    %8607 = vmatpush1.msra.mxu0 0.0
    %8608 = vmatprep.subr.mxu0 0.0
    %8609 = vmatpush1.msra.mxu0 0.0
    %8610 = vmatprep.subr.mxu0 0.0
    %8611 = vmatpush1.msra.mxu0 0.0
    %8612 = vmatprep.subr.mxu0 0.0
    %8613 = vmatpush1.msra.mxu0 0.0
    %8614 = vmatprep.subr.mxu0 0.0
    %8615 = vmatpush1.msra.mxu0 0.0
    %8616 = vmatprep.subr.mxu0 0.0
    %8617 = vmatpush1.msra.mxu0 0.0
    %8618 = vmatprep.subr.mxu0 0.0
    %8619 = vmatpush1.msra.mxu0 0.0
    %8620 = vmatprep.subr.mxu0 0.0
    %8621 = vmatpush1.msra.mxu0 0.0
    %8622 = vmatprep.subr.mxu0 0.0
    %8623 = vmatpush1.msra.mxu0 0.0
    %8624 = vmatprep.subr.mxu0 0.0
    %8625 = vmatpush1.msra.mxu0 0.0
    %8626 = vmatprep.subr.mxu0 0.0
    %8627 = vmatpush1.msra.mxu0 0.0
    %8628 = vmatprep.subr.mxu0 0.0
    %8629 = vmatpush1.msra.mxu0 0.0
    %8630 = vmatprep.subr.mxu0 0.0
    %8631 = vmatpush1.msra.mxu0 0.0
    %8632 = vmatprep.subr.mxu0 0.0
    %8633 = vmatpush1.msra.mxu0 0.0
    %8634 = vmatprep.subr.mxu0 0.0
    %8635 = vmatpush1.msra.mxu0 0.0
    %8636 = vmatprep.subr.mxu0 0.0
    %8637 = vmatpush1.msra.mxu0 0.0
    %8638 = vmatprep.subr.mxu0 0.0
    %8639 = vmatpush1.msra.mxu0 0.0
    %8640 = vmatprep.mubr.f32.mxu0 0.0
    %v8641 = vand.u32 %v8474, 4294901760
    %8642 = vmatmul.mubr.f32.gmra.mrb[0].mxu0 %v8641
    %v8643 = vpop.f32.mrb[0].mxu0
    %v8644 = vadd.f32 %v8553, %v8643
    %v8645 = vpop.f32.mrb[0].mxu0
    %8646 = vmatprep.mubr.f32.mxu0 0.0
    %v8647 = vand.u32 %v8477, 4294901760
    %8648 = vmatmul.mubr.f32.gmra.mrb[0].mxu0 %v8647
    %v8649 = vpop.f32.mrb[0].mxu0
    %v8650 = vadd.f32 %v8563, %v8649
    %v8651 = vpop.f32.mrb[0].mxu0
    %8652 = vdwg.mxu0
    %8653 = vmatprep.subr.mxu0 0.0
    %v8654 = vand.u32 %v7390, 4294901760
    %v8655 = vsub.f32 %v7390, %v8654
    %8656 = vmatpush1.msra.mxu0 %v8655
    %8657 = vmatprep.subr.mxu0 0.0
    %v8658 = vand.u32 %v7392, 4294901760
    %v8659 = vsub.f32 %v7392, %v8658
    %8660 = vmatpush1.msra.mxu0 %v8659
    %8661 = vmatprep.subr.mxu0 0.0
    %8662 = vmatpush1.msra.mxu0 0.0
    %8663 = vmatprep.subr.mxu0 0.0
    %8664 = vmatpush1.msra.mxu0 0.0
    %8665 = vmatprep.subr.mxu0 0.0
    %8666 = vmatpush1.msra.mxu0 0.0
    %8667 = vmatprep.subr.mxu0 0.0
    %8668 = vmatpush1.msra.mxu0 0.0
    %8669 = vmatprep.subr.mxu0 0.0
    %8670 = vmatpush1.msra.mxu0 0.0
    %8671 = vmatprep.subr.mxu0 0.0
    %8672 = vmatpush1.msra.mxu0 0.0
    %8673 = vmatprep.subr.mxu0 0.0
    %8674 = vmatpush1.msra.mxu0 0.0
    %8675 = vmatprep.subr.mxu0 0.0
    %8676 = vmatpush1.msra.mxu0 0.0
    %8677 = vmatprep.subr.mxu0 0.0
    %8678 = vmatpush1.msra.mxu0 0.0
    %8679 = vmatprep.subr.mxu0 0.0
    %8680 = vmatpush1.msra.mxu0 0.0
    %8681 = vmatprep.subr.mxu0 0.0
    %8682 = vmatpush1.msra.mxu0 0.0
    %8683 = vmatprep.subr.mxu0 0.0
    %8684 = vmatpush1.msra.mxu0 0.0
    %8685 = vmatprep.subr.mxu0 0.0
    %8686 = vmatpush1.msra.mxu0 0.0
    %8687 = vmatprep.subr.mxu0 0.0
    %8688 = vmatpush1.msra.mxu0 0.0
    %8689 = vmatprep.subr.mxu0 0.0
    %8690 = vmatpush1.msra.mxu0 0.0
    %8691 = vmatprep.subr.mxu0 0.0
    %8692 = vmatpush1.msra.mxu0 0.0
    %8693 = vmatprep.subr.mxu0 0.0
    %8694 = vmatpush1.msra.mxu0 0.0
    %8695 = vmatprep.subr.mxu0 0.0
    %8696 = vmatpush1.msra.mxu0 0.0
    %8697 = vmatprep.subr.mxu0 0.0
    %8698 = vmatpush1.msra.mxu0 0.0
    %8699 = vmatprep.subr.mxu0 0.0
    %8700 = vmatpush1.msra.mxu0 0.0
    %8701 = vmatprep.subr.mxu0 0.0
    %8702 = vmatpush1.msra.mxu0 0.0
    %8703 = vmatprep.subr.mxu0 0.0
    %8704 = vmatpush1.msra.mxu0 0.0
    %8705 = vmatprep.subr.mxu0 0.0
    %8706 = vmatpush1.msra.mxu0 0.0
    %8707 = vmatprep.subr.mxu0 0.0
    %8708 = vmatpush1.msra.mxu0 0.0
    %8709 = vmatprep.subr.mxu0 0.0
    %8710 = vmatpush1.msra.mxu0 0.0
    %8711 = vmatprep.subr.mxu0 0.0
    %8712 = vmatpush1.msra.mxu0 0.0
    %8713 = vmatprep.subr.mxu0 0.0
    %8714 = vmatpush1.msra.mxu0 0.0
    %8715 = vmatprep.subr.mxu0 0.0
    %8716 = vmatpush1.msra.mxu0 0.0
    %8717 = vmatprep.subr.mxu0 0.0
    %8718 = vmatpush1.msra.mxu0 0.0
    %8719 = vmatprep.subr.mxu0 0.0
    %8720 = vmatpush1.msra.mxu0 0.0
    %8721 = vmatprep.mubr.f32.mxu0 0.0
    %v8722 = vand.u32 %v8474, 4294901760
    %v8723 = vsub.f32 %v8474, %v8722
    %8724 = vmatmul.mubr.f32.gmra.mrb[0].mxu0 %v8723
    %v8725 = vpop.f32.mrb[0].mxu0
    %v8726 = vadd.f32 %v8644, %v8725
    %v8727 = vpop.f32.mrb[0].mxu0
    %8728 = vmatprep.mubr.f32.mxu0 0.0
    %v8729 = vand.u32 %v8477, 4294901760
    %v8730 = vsub.f32 %v8477, %v8729
    %8731 = vmatmul.mubr.f32.gmra.mrb[0].mxu0 %v8730
    %v8732 = vpop.f32.mrb[0].mxu0
    %v8733 = vadd.f32 %v8650, %v8732
    %v8734 = vpop.f32.mrb[0].mxu0
    %8735 = vdwg.mxu0
    %8736 = vmatprep.subr.mxu0 0.0
    %v8737 = vand.u32 %v7390, 4294901760
    %8738 = vmatpush1.msra.mxu0 %v8737
    %8739 = vmatprep.subr.mxu0 0.0
    %v8740 = vand.u32 %v7392, 4294901760
    %8741 = vmatpush1.msra.mxu0 %v8740
    %8742 = vmatprep.subr.mxu0 0.0
    %8743 = vmatpush1.msra.mxu0 0.0
    %8744 = vmatprep.subr.mxu0 0.0
    %8745 = vmatpush1.msra.mxu0 0.0
    %8746 = vmatprep.subr.mxu0 0.0
    %8747 = vmatpush1.msra.mxu0 0.0
    %8748 = vmatprep.subr.mxu0 0.0
    %8749 = vmatpush1.msra.mxu0 0.0
    %8750 = vmatprep.subr.mxu0 0.0
    %8751 = vmatpush1.msra.mxu0 0.0
    %8752 = vmatprep.subr.mxu0 0.0
    %8753 = vmatpush1.msra.mxu0 0.0
    %8754 = vmatprep.subr.mxu0 0.0
    %8755 = vmatpush1.msra.mxu0 0.0
    %8756 = vmatprep.subr.mxu0 0.0
    %8757 = vmatpush1.msra.mxu0 0.0
    %8758 = vmatprep.subr.mxu0 0.0
    %8759 = vmatpush1.msra.mxu0 0.0
    %8760 = vmatprep.subr.mxu0 0.0
    %8761 = vmatpush1.msra.mxu0 0.0
    %8762 = vmatprep.subr.mxu0 0.0
    %8763 = vmatpush1.msra.mxu0 0.0
    %8764 = vmatprep.subr.mxu0 0.0
    %8765 = vmatpush1.msra.mxu0 0.0
    %8766 = vmatprep.subr.mxu0 0.0
    %8767 = vmatpush1.msra.mxu0 0.0
    %8768 = vmatprep.subr.mxu0 0.0
    %8769 = vmatpush1.msra.mxu0 0.0
    %8770 = vmatprep.subr.mxu0 0.0
    %8771 = vmatpush1.msra.mxu0 0.0
    %8772 = vmatprep.subr.mxu0 0.0
    %8773 = vmatpush1.msra.mxu0 0.0
    %8774 = vmatprep.subr.mxu0 0.0
    %8775 = vmatpush1.msra.mxu0 0.0
    %8776 = vmatprep.subr.mxu0 0.0
    %8777 = vmatpush1.msra.mxu0 0.0
    %8778 = vmatprep.subr.mxu0 0.0
    %8779 = vmatpush1.msra.mxu0 0.0
    %8780 = vmatprep.subr.mxu0 0.0
    %8781 = vmatpush1.msra.mxu0 0.0
    %8782 = vmatprep.subr.mxu0 0.0
    %8783 = vmatpush1.msra.mxu0 0.0
    %8784 = vmatprep.subr.mxu0 0.0
    %8785 = vmatpush1.msra.mxu0 0.0
    %8786 = vmatprep.subr.mxu0 0.0
    %8787 = vmatpush1.msra.mxu0 0.0
    %8788 = vmatprep.subr.mxu0 0.0
    %8789 = vmatpush1.msra.mxu0 0.0
    %8790 = vmatprep.subr.mxu0 0.0
    %8791 = vmatpush1.msra.mxu0 0.0
    %8792 = vmatprep.subr.mxu0 0.0
    %8793 = vmatpush1.msra.mxu0 0.0
    %8794 = vmatprep.subr.mxu0 0.0
    %8795 = vmatpush1.msra.mxu0 0.0
    %8796 = vmatprep.subr.mxu0 0.0
    %8797 = vmatpush1.msra.mxu0 0.0
    %8798 = vmatprep.subr.mxu0 0.0
    %8799 = vmatpush1.msra.mxu0 0.0
    %8800 = vmatprep.subr.mxu0 0.0
    %8801 = vmatpush1.msra.mxu0 0.0
    %8802 = vmatprep.mubr.f32.mxu0 0.0
    %v8803 = vand.u32 %v8474, 4294901760
    %v8804 = vsub.f32 %v8474, %v8803
    %v8805 = vand.u32 %v8804, 4294901760
    %8806 = vmatmul.mubr.f32.gmra.mrb[0].mxu0 %v8805
    %v8807 = vpop.f32.mrb[0].mxu0
    %v8808 = vadd.f32 %v8726, %v8807
    %v8809 = vpop.f32.mrb[0].mxu0
    %8810 = vmatprep.mubr.f32.mxu0 0.0
    %v8811 = vand.u32 %v8477, 4294901760
    %v8812 = vsub.f32 %v8477, %v8811
    %v8813 = vand.u32 %v8812, 4294901760
    %8814 = vmatmul.mubr.f32.gmra.mrb[0].mxu0 %v8813
    %v8815 = vpop.f32.mrb[0].mxu0
    %v8816 = vadd.f32 %v8733, %v8815
    %v8817 = vpop.f32.mrb[0].mxu0
    %8818 = vdwg.mxu0
    %8819 = vmatprep.subr.mxu0 0.0
    %v8820 = vand.u32 %v7390, 4294901760
    %v8821 = vsub.f32 %v7390, %v8820
    %v8822 = vand.u32 %v8821, 4294901760
    %8823 = vmatpush1.msra.mxu0 %v8822
    %8824 = vmatprep.subr.mxu0 0.0
    %v8825 = vand.u32 %v7392, 4294901760
    %v8826 = vsub.f32 %v7392, %v8825
    %v8827 = vand.u32 %v8826, 4294901760
    %8828 = vmatpush1.msra.mxu0 %v8827
    %8829 = vmatprep.subr.mxu0 0.0
    %8830 = vmatpush1.msra.mxu0 0.0
    %8831 = vmatprep.subr.mxu0 0.0
    %8832 = vmatpush1.msra.mxu0 0.0
    %8833 = vmatprep.subr.mxu0 0.0
    %8834 = vmatpush1.msra.mxu0 0.0
    %8835 = vmatprep.subr.mxu0 0.0
    %8836 = vmatpush1.msra.mxu0 0.0
    %8837 = vmatprep.subr.mxu0 0.0
    %8838 = vmatpush1.msra.mxu0 0.0
    %8839 = vmatprep.subr.mxu0 0.0
    %8840 = vmatpush1.msra.mxu0 0.0
    %8841 = vmatprep.subr.mxu0 0.0
    %8842 = vmatpush1.msra.mxu0 0.0
    %8843 = vmatprep.subr.mxu0 0.0
    %8844 = vmatpush1.msra.mxu0 0.0
    %8845 = vmatprep.subr.mxu0 0.0
    %8846 = vmatpush1.msra.mxu0 0.0
    %8847 = vmatprep.subr.mxu0 0.0
    %8848 = vmatpush1.msra.mxu0 0.0
    %8849 = vmatprep.subr.mxu0 0.0
    %8850 = vmatpush1.msra.mxu0 0.0
    %8851 = vmatprep.subr.mxu0 0.0
    %8852 = vmatpush1.msra.mxu0 0.0
    %8853 = vmatprep.subr.mxu0 0.0
    %8854 = vmatpush1.msra.mxu0 0.0
    %8855 = vmatprep.subr.mxu0 0.0
    %8856 = vmatpush1.msra.mxu0 0.0
    %8857 = vmatprep.subr.mxu0 0.0
    %8858 = vmatpush1.msra.mxu0 0.0
    %8859 = vmatprep.subr.mxu0 0.0
    %8860 = vmatpush1.msra.mxu0 0.0
    %8861 = vmatprep.subr.mxu0 0.0
    %8862 = vmatpush1.msra.mxu0 0.0
    %8863 = vmatprep.subr.mxu0 0.0
    %8864 = vmatpush1.msra.mxu0 0.0
    %8865 = vmatprep.subr.mxu0 0.0
    %8866 = vmatpush1.msra.mxu0 0.0
    %8867 = vmatprep.subr.mxu0 0.0
    %8868 = vmatpush1.msra.mxu0 0.0
    %8869 = vmatprep.subr.mxu0 0.0
    %8870 = vmatpush1.msra.mxu0 0.0
    %8871 = vmatprep.subr.mxu0 0.0
    %8872 = vmatpush1.msra.mxu0 0.0
    %8873 = vmatprep.subr.mxu0 0.0
    %8874 = vmatpush1.msra.mxu0 0.0
    %8875 = vmatprep.subr.mxu0 0.0
    %8876 = vmatpush1.msra.mxu0 0.0
    %8877 = vmatprep.subr.mxu0 0.0
    %8878 = vmatpush1.msra.mxu0 0.0
    %8879 = vmatprep.subr.mxu0 0.0
    %8880 = vmatpush1.msra.mxu0 0.0
    %8881 = vmatprep.subr.mxu0 0.0
    %8882 = vmatpush1.msra.mxu0 0.0
    %8883 = vmatprep.subr.mxu0 0.0
    %8884 = vmatpush1.msra.mxu0 0.0
    %8885 = vmatprep.subr.mxu0 0.0
    %8886 = vmatpush1.msra.mxu0 0.0
    %8887 = vmatprep.subr.mxu0 0.0
    %8888 = vmatpush1.msra.mxu0 0.0
    %8889 = vmatprep.mubr.f32.mxu0 0.0
    %v8890 = vand.u32 %v8474, 4294901760
    %8891 = vmatmul.mubr.f32.gmra.mrb[0].mxu0 %v8890
    %v8892 = vpop.f32.mrb[0].mxu0
    %v8893 = vadd.f32 %v8808, %v8892
    %v8894 = vpop.f32.mrb[0].mxu0
    %8895 = vmatprep.mubr.f32.mxu0 0.0
    %v8896 = vand.u32 %v8477, 4294901760
    %8897 = vmatmul.mubr.f32.gmra.mrb[0].mxu0 %v8896
    %v8898 = vpop.f32.mrb[0].mxu0
    %v8899 = vadd.f32 %v8816, %v8898
    %v8900 = vpop.f32.mrb[0].mxu0
    %8901 = vdwg.mxu0
    %8902 = vmatprep.subr.mxu0 0.0
    %v8903 = vand.u32 %v7390, 4294901760
    %8904 = vmatpush1.msra.mxu0 %v8903
    %8905 = vmatprep.subr.mxu0 0.0
    %v8906 = vand.u32 %v7392, 4294901760
    %8907 = vmatpush1.msra.mxu0 %v8906
    %8908 = vmatprep.subr.mxu0 0.0
    %8909 = vmatpush1.msra.mxu0 0.0
    %8910 = vmatprep.subr.mxu0 0.0
    %8911 = vmatpush1.msra.mxu0 0.0
    %8912 = vmatprep.subr.mxu0 0.0
    %8913 = vmatpush1.msra.mxu0 0.0
    %8914 = vmatprep.subr.mxu0 0.0
    %8915 = vmatpush1.msra.mxu0 0.0
    %8916 = vmatprep.subr.mxu0 0.0
    %8917 = vmatpush1.msra.mxu0 0.0
    %8918 = vmatprep.subr.mxu0 0.0
    %8919 = vmatpush1.msra.mxu0 0.0
    %8920 = vmatprep.subr.mxu0 0.0
    %8921 = vmatpush1.msra.mxu0 0.0
    %8922 = vmatprep.subr.mxu0 0.0
    %8923 = vmatpush1.msra.mxu0 0.0
    %8924 = vmatprep.subr.mxu0 0.0
    %8925 = vmatpush1.msra.mxu0 0.0
    %8926 = vmatprep.subr.mxu0 0.0
    %8927 = vmatpush1.msra.mxu0 0.0
    %8928 = vmatprep.subr.mxu0 0.0
    %8929 = vmatpush1.msra.mxu0 0.0
    %8930 = vmatprep.subr.mxu0 0.0
    %8931 = vmatpush1.msra.mxu0 0.0
    %8932 = vmatprep.subr.mxu0 0.0
    %8933 = vmatpush1.msra.mxu0 0.0
    %8934 = vmatprep.subr.mxu0 0.0
    %8935 = vmatpush1.msra.mxu0 0.0
    %8936 = vmatprep.subr.mxu0 0.0
    %8937 = vmatpush1.msra.mxu0 0.0
    %8938 = vmatprep.subr.mxu0 0.0
    %8939 = vmatpush1.msra.mxu0 0.0
    %8940 = vmatprep.subr.mxu0 0.0
    %8941 = vmatpush1.msra.mxu0 0.0
    %8942 = vmatprep.subr.mxu0 0.0
    %8943 = vmatpush1.msra.mxu0 0.0
    %8944 = vmatprep.subr.mxu0 0.0
    %8945 = vmatpush1.msra.mxu0 0.0
    %8946 = vmatprep.subr.mxu0 0.0
    %8947 = vmatpush1.msra.mxu0 0.0
    %8948 = vmatprep.subr.mxu0 0.0
    %8949 = vmatpush1.msra.mxu0 0.0
    %8950 = vmatprep.subr.mxu0 0.0
    %8951 = vmatpush1.msra.mxu0 0.0
    %8952 = vmatprep.subr.mxu0 0.0
    %8953 = vmatpush1.msra.mxu0 0.0
    %8954 = vmatprep.subr.mxu0 0.0
    %8955 = vmatpush1.msra.mxu0 0.0
    %8956 = vmatprep.subr.mxu0 0.0
    %8957 = vmatpush1.msra.mxu0 0.0
    %8958 = vmatprep.subr.mxu0 0.0
    %8959 = vmatpush1.msra.mxu0 0.0
    %8960 = vmatprep.subr.mxu0 0.0
    %8961 = vmatpush1.msra.mxu0 0.0
    %8962 = vmatprep.subr.mxu0 0.0
    %8963 = vmatpush1.msra.mxu0 0.0
    %8964 = vmatprep.subr.mxu0 0.0
    %8965 = vmatpush1.msra.mxu0 0.0
    %8966 = vmatprep.subr.mxu0 0.0
    %8967 = vmatpush1.msra.mxu0 0.0
    %8968 = vmatprep.mubr.f32.mxu0 0.0
    %v8969 = vand.u32 %v8474, 4294901760
    %8970 = vmatmul.mubr.f32.gmra.mrb[0].mxu0 %v8969
    %v8971 = vpop.f32.mrb[0].mxu0
    %v8972 = vadd.f32 %v8893, %v8971
    %v8973 = vpop.f32.mrb[0].mxu0
    %8974 = vmatprep.mubr.f32.mxu0 0.0
    %v8975 = vand.u32 %v8477, 4294901760
    %8976 = vmatmul.mubr.f32.gmra.mrb[0].mxu0 %v8975
    %v8977 = vpop.f32.mrb[0].mxu0
    %v8978 = vadd.f32 %v8899, %v8977
    %v8979 = vpop.f32.mrb[0].mxu0
    %8980 = vdwg.mxu0
    %v8981 = vadd.f32 %v7364, %v8972
    %v8982 = vadd.f32 %v7365, %v8978
    %v8983 = vmax.f32 %v8981, 0.0
    %v8984 = vmax.f32 %v8982, 0.0
    %v8985 = vmul.f32 %v8983, %v7910
    %v8986 = vmul.f32 %v8984, %v7910
    %v8987 = vmax.f32 %v8449, %v8985
    %v8988 = vmax.f32 %v8450, %v8986
    %v8989 = vsel %vm8469, 1e+30, %v8451
    %v8990 = vsel %vm8470, 1e+30, %v8452
    %v8991 = vsel %vm1525, %v8989, inf
    %8992 = vmin.xlane.f32.xlu0 %v8991
    %v8993 = vpop.xlane.xlu0 %8992
    %v8994 = vsel %vm1525, %v8990, inf
    %8995 = vmin.xlane.f32.xlu0 %v8994
    %v8996 = vpop.xlane.xlu0 %8995
    %vm8997 = vcmp.le.f32.partialorder %v8989, %v8993
    %vm8998 = vcmp.le.f32.partialorder %v8990, %v8996
    %v8999 = vsel %vm8997, %v30, 16.0
    %v9000 = vsel %vm8998, %v30, 16.0
    %v9001 = vsel %vm1525, %v8999, inf
    %9002 = vmin.xlane.f32.xlu0 %v9001
    %v9003 = vpop.xlane.xlu0 %9002
    %v9004 = vsel %vm1525, %v9000, inf
    %9005 = vmin.xlane.f32.xlu0 %v9004
    %v9006 = vpop.xlane.xlu0 %9005
    %vm9007 = vcmp.eq.f32.partialorder %v30, %v9003
    %vm9008 = vcmp.eq.f32.partialorder %v30, %v9006
    %v9009 = vsel %vm9007, 1.0, 0.0
    %v9010 = vsel %vm9008, 1.0, 0.0
    %v9012 = vsel %vm1525, %v9009, 0
    %v9015 = vsel %vm1525, %v9010, 0
    %9017 = vmatprep.subr.mxu0 0.0
    %v9018 = vand.u32 %v7390, 4294901760
    %9019 = vmatpush1.msra.mxu0 %v9018
    %9020 = vmatprep.subr.mxu0 0.0
    %v9021 = vand.u32 %v7392, 4294901760
    %9022 = vmatpush1.msra.mxu0 %v9021
    %9023 = vmatprep.subr.mxu0 0.0
    %9024 = vmatpush1.msra.mxu0 0.0
    %9025 = vmatprep.subr.mxu0 0.0
    %9026 = vmatpush1.msra.mxu0 0.0
    %9027 = vmatprep.subr.mxu0 0.0
    %9028 = vmatpush1.msra.mxu0 0.0
    %9029 = vmatprep.subr.mxu0 0.0
    %9030 = vmatpush1.msra.mxu0 0.0
    %9031 = vmatprep.subr.mxu0 0.0
    %9032 = vmatpush1.msra.mxu0 0.0
    %9033 = vmatprep.subr.mxu0 0.0
    %9034 = vmatpush1.msra.mxu0 0.0
    %9035 = vmatprep.subr.mxu0 0.0
    %9036 = vmatpush1.msra.mxu0 0.0
    %9037 = vmatprep.subr.mxu0 0.0
    %9038 = vmatpush1.msra.mxu0 0.0
    %9039 = vmatprep.subr.mxu0 0.0
    %9040 = vmatpush1.msra.mxu0 0.0
    %9041 = vmatprep.subr.mxu0 0.0
    %9042 = vmatpush1.msra.mxu0 0.0
    %9043 = vmatprep.subr.mxu0 0.0
    %9044 = vmatpush1.msra.mxu0 0.0
    %9045 = vmatprep.subr.mxu0 0.0
    %9046 = vmatpush1.msra.mxu0 0.0
    %9047 = vmatprep.subr.mxu0 0.0
    %9048 = vmatpush1.msra.mxu0 0.0
    %9049 = vmatprep.subr.mxu0 0.0
    %9050 = vmatpush1.msra.mxu0 0.0
    %9051 = vmatprep.subr.mxu0 0.0
    %9052 = vmatpush1.msra.mxu0 0.0
    %9053 = vmatprep.subr.mxu0 0.0
    %9054 = vmatpush1.msra.mxu0 0.0
    %9055 = vmatprep.subr.mxu0 0.0
    %9056 = vmatpush1.msra.mxu0 0.0
    %9057 = vmatprep.subr.mxu0 0.0
    %9058 = vmatpush1.msra.mxu0 0.0
    %9059 = vmatprep.subr.mxu0 0.0
    %9060 = vmatpush1.msra.mxu0 0.0
    %9061 = vmatprep.subr.mxu0 0.0
    %9062 = vmatpush1.msra.mxu0 0.0
    %9063 = vmatprep.subr.mxu0 0.0
    %9064 = vmatpush1.msra.mxu0 0.0
    %9065 = vmatprep.subr.mxu0 0.0
    %9066 = vmatpush1.msra.mxu0 0.0
    %9067 = vmatprep.subr.mxu0 0.0
    %9068 = vmatpush1.msra.mxu0 0.0
    %9069 = vmatprep.subr.mxu0 0.0
    %9070 = vmatpush1.msra.mxu0 0.0
    %9071 = vmatprep.subr.mxu0 0.0
    %9072 = vmatpush1.msra.mxu0 0.0
    %9073 = vmatprep.subr.mxu0 0.0
    %9074 = vmatpush1.msra.mxu0 0.0
    %9075 = vmatprep.subr.mxu0 0.0
    %9076 = vmatpush1.msra.mxu0 0.0
    %9077 = vmatprep.subr.mxu0 0.0
    %9078 = vmatpush1.msra.mxu0 0.0
    %9079 = vmatprep.subr.mxu0 0.0
    %9080 = vmatpush1.msra.mxu0 0.0
    %9081 = vmatprep.subr.mxu0 0.0
    %9082 = vmatpush1.msra.mxu0 0.0
    %9083 = vmatprep.mubr.f32.mxu0 0.0
    %v9084 = vand.u32 %v9012, 4294901760
    %v9085 = vsub.f32 %v9012, %v9084
    %v9086 = vand.u32 %v9085, 4294901760
    %v9087 = vsub.f32 %v9085, %v9086
    %v9088 = vand.u32 %v9087, 4294901760
    %9089 = vmatmul.mubr.f32.gmra.mrb[0].mxu0 %v9088
    %v9090 = vpop.f32.mrb[0].mxu0
    %v9091 = vadd.f32 0.0, %v9090
    %v9092 = vpop.f32.mrb[0].mxu0
    %9093 = vmatprep.mubr.f32.mxu0 0.0
    %v9094 = vand.u32 %v9015, 4294901760
    %v9095 = vsub.f32 %v9015, %v9094
    %v9096 = vand.u32 %v9095, 4294901760
    %v9097 = vsub.f32 %v9095, %v9096
    %v9098 = vand.u32 %v9097, 4294901760
    %9099 = vmatmul.mubr.f32.gmra.mrb[0].mxu0 %v9098
    %v9100 = vpop.f32.mrb[0].mxu0
    %v9101 = vadd.f32 0.0, %v9100
    %v9102 = vpop.f32.mrb[0].mxu0
    %9103 = vdwg.mxu0
    %9104 = vmatprep.subr.mxu0 0.0
    %v9105 = vand.u32 %v7390, 4294901760
    %v9106 = vsub.f32 %v7390, %v9105
    %v9107 = vand.u32 %v9106, 4294901760
    %v9108 = vsub.f32 %v9106, %v9107
    %v9109 = vand.u32 %v9108, 4294901760
    %9110 = vmatpush1.msra.mxu0 %v9109
    %9111 = vmatprep.subr.mxu0 0.0
    %v9112 = vand.u32 %v7392, 4294901760
    %v9113 = vsub.f32 %v7392, %v9112
    %v9114 = vand.u32 %v9113, 4294901760
    %v9115 = vsub.f32 %v9113, %v9114
    %v9116 = vand.u32 %v9115, 4294901760
    %9117 = vmatpush1.msra.mxu0 %v9116
    %9118 = vmatprep.subr.mxu0 0.0
    %9119 = vmatpush1.msra.mxu0 0.0
    %9120 = vmatprep.subr.mxu0 0.0
    %9121 = vmatpush1.msra.mxu0 0.0
    %9122 = vmatprep.subr.mxu0 0.0
    %9123 = vmatpush1.msra.mxu0 0.0
    %9124 = vmatprep.subr.mxu0 0.0
    %9125 = vmatpush1.msra.mxu0 0.0
    %9126 = vmatprep.subr.mxu0 0.0
    %9127 = vmatpush1.msra.mxu0 0.0
    %9128 = vmatprep.subr.mxu0 0.0
    %9129 = vmatpush1.msra.mxu0 0.0
    %9130 = vmatprep.subr.mxu0 0.0
    %9131 = vmatpush1.msra.mxu0 0.0
    %9132 = vmatprep.subr.mxu0 0.0
    %9133 = vmatpush1.msra.mxu0 0.0
    %9134 = vmatprep.subr.mxu0 0.0
    %9135 = vmatpush1.msra.mxu0 0.0
    %9136 = vmatprep.subr.mxu0 0.0
    %9137 = vmatpush1.msra.mxu0 0.0
    %9138 = vmatprep.subr.mxu0 0.0
    %9139 = vmatpush1.msra.mxu0 0.0
    %9140 = vmatprep.subr.mxu0 0.0
    %9141 = vmatpush1.msra.mxu0 0.0
    %9142 = vmatprep.subr.mxu0 0.0
    %9143 = vmatpush1.msra.mxu0 0.0
    %9144 = vmatprep.subr.mxu0 0.0
    %9145 = vmatpush1.msra.mxu0 0.0
    %9146 = vmatprep.subr.mxu0 0.0
    %9147 = vmatpush1.msra.mxu0 0.0
    %9148 = vmatprep.subr.mxu0 0.0
    %9149 = vmatpush1.msra.mxu0 0.0
    %9150 = vmatprep.subr.mxu0 0.0
    %9151 = vmatpush1.msra.mxu0 0.0
    %9152 = vmatprep.subr.mxu0 0.0
    %9153 = vmatpush1.msra.mxu0 0.0
    %9154 = vmatprep.subr.mxu0 0.0
    %9155 = vmatpush1.msra.mxu0 0.0
    %9156 = vmatprep.subr.mxu0 0.0
    %9157 = vmatpush1.msra.mxu0 0.0
    %9158 = vmatprep.subr.mxu0 0.0
    %9159 = vmatpush1.msra.mxu0 0.0
    %9160 = vmatprep.subr.mxu0 0.0
    %9161 = vmatpush1.msra.mxu0 0.0
    %9162 = vmatprep.subr.mxu0 0.0
    %9163 = vmatpush1.msra.mxu0 0.0
    %9164 = vmatprep.subr.mxu0 0.0
    %9165 = vmatpush1.msra.mxu0 0.0
    %9166 = vmatprep.subr.mxu0 0.0
    %9167 = vmatpush1.msra.mxu0 0.0
    %9168 = vmatprep.subr.mxu0 0.0
    %9169 = vmatpush1.msra.mxu0 0.0
    %9170 = vmatprep.subr.mxu0 0.0
    %9171 = vmatpush1.msra.mxu0 0.0
    %9172 = vmatprep.subr.mxu0 0.0
    %9173 = vmatpush1.msra.mxu0 0.0
    %9174 = vmatprep.subr.mxu0 0.0
    %9175 = vmatpush1.msra.mxu0 0.0
    %9176 = vmatprep.subr.mxu0 0.0
    %9177 = vmatpush1.msra.mxu0 0.0
    %9178 = vmatprep.mubr.f32.mxu0 0.0
    %v9179 = vand.u32 %v9012, 4294901760
    %9180 = vmatmul.mubr.f32.gmra.mrb[0].mxu0 %v9179
    %v9181 = vpop.f32.mrb[0].mxu0
    %v9182 = vadd.f32 %v9091, %v9181
    %v9183 = vpop.f32.mrb[0].mxu0
    %9184 = vmatprep.mubr.f32.mxu0 0.0
    %v9185 = vand.u32 %v9015, 4294901760
    %9186 = vmatmul.mubr.f32.gmra.mrb[0].mxu0 %v9185
    %v9187 = vpop.f32.mrb[0].mxu0
    %v9188 = vadd.f32 %v9101, %v9187
    %v9189 = vpop.f32.mrb[0].mxu0
    %9190 = vdwg.mxu0
    %9191 = vmatprep.subr.mxu0 0.0
    %v9192 = vand.u32 %v7390, 4294901760
    %v9193 = vsub.f32 %v7390, %v9192
    %9194 = vmatpush1.msra.mxu0 %v9193
    %9195 = vmatprep.subr.mxu0 0.0
    %v9196 = vand.u32 %v7392, 4294901760
    %v9197 = vsub.f32 %v7392, %v9196
    %9198 = vmatpush1.msra.mxu0 %v9197
    %9199 = vmatprep.subr.mxu0 0.0
    %9200 = vmatpush1.msra.mxu0 0.0
    %9201 = vmatprep.subr.mxu0 0.0
    %9202 = vmatpush1.msra.mxu0 0.0
    %9203 = vmatprep.subr.mxu0 0.0
    %9204 = vmatpush1.msra.mxu0 0.0
    %9205 = vmatprep.subr.mxu0 0.0
    %9206 = vmatpush1.msra.mxu0 0.0
    %9207 = vmatprep.subr.mxu0 0.0
    %9208 = vmatpush1.msra.mxu0 0.0
    %9209 = vmatprep.subr.mxu0 0.0
    %9210 = vmatpush1.msra.mxu0 0.0
    %9211 = vmatprep.subr.mxu0 0.0
    %9212 = vmatpush1.msra.mxu0 0.0
    %9213 = vmatprep.subr.mxu0 0.0
    %9214 = vmatpush1.msra.mxu0 0.0
    %9215 = vmatprep.subr.mxu0 0.0
    %9216 = vmatpush1.msra.mxu0 0.0
    %9217 = vmatprep.subr.mxu0 0.0
    %9218 = vmatpush1.msra.mxu0 0.0
    %9219 = vmatprep.subr.mxu0 0.0
    %9220 = vmatpush1.msra.mxu0 0.0
    %9221 = vmatprep.subr.mxu0 0.0
    %9222 = vmatpush1.msra.mxu0 0.0
    %9223 = vmatprep.subr.mxu0 0.0
    %9224 = vmatpush1.msra.mxu0 0.0
    %9225 = vmatprep.subr.mxu0 0.0
    %9226 = vmatpush1.msra.mxu0 0.0
    %9227 = vmatprep.subr.mxu0 0.0
    %9228 = vmatpush1.msra.mxu0 0.0
    %9229 = vmatprep.subr.mxu0 0.0
    %9230 = vmatpush1.msra.mxu0 0.0
    %9231 = vmatprep.subr.mxu0 0.0
    %9232 = vmatpush1.msra.mxu0 0.0
    %9233 = vmatprep.subr.mxu0 0.0
    %9234 = vmatpush1.msra.mxu0 0.0
    %9235 = vmatprep.subr.mxu0 0.0
    %9236 = vmatpush1.msra.mxu0 0.0
    %9237 = vmatprep.subr.mxu0 0.0
    %9238 = vmatpush1.msra.mxu0 0.0
    %9239 = vmatprep.subr.mxu0 0.0
    %9240 = vmatpush1.msra.mxu0 0.0
    %9241 = vmatprep.subr.mxu0 0.0
    %9242 = vmatpush1.msra.mxu0 0.0
    %9243 = vmatprep.subr.mxu0 0.0
    %9244 = vmatpush1.msra.mxu0 0.0
    %9245 = vmatprep.subr.mxu0 0.0
    %9246 = vmatpush1.msra.mxu0 0.0
    %9247 = vmatprep.subr.mxu0 0.0
    %9248 = vmatpush1.msra.mxu0 0.0
    %9249 = vmatprep.subr.mxu0 0.0
    %9250 = vmatpush1.msra.mxu0 0.0
    %9251 = vmatprep.subr.mxu0 0.0
    %9252 = vmatpush1.msra.mxu0 0.0
    %9253 = vmatprep.subr.mxu0 0.0
    %9254 = vmatpush1.msra.mxu0 0.0
    %9255 = vmatprep.subr.mxu0 0.0
    %9256 = vmatpush1.msra.mxu0 0.0
    %9257 = vmatprep.subr.mxu0 0.0
    %9258 = vmatpush1.msra.mxu0 0.0
    %9259 = vmatprep.mubr.f32.mxu0 0.0
    %v9260 = vand.u32 %v9012, 4294901760
    %v9261 = vsub.f32 %v9012, %v9260
    %9262 = vmatmul.mubr.f32.gmra.mrb[0].mxu0 %v9261
    %v9263 = vpop.f32.mrb[0].mxu0
    %v9264 = vadd.f32 %v9182, %v9263
    %v9265 = vpop.f32.mrb[0].mxu0
    %9266 = vmatprep.mubr.f32.mxu0 0.0
    %v9267 = vand.u32 %v9015, 4294901760
    %v9268 = vsub.f32 %v9015, %v9267
    %9269 = vmatmul.mubr.f32.gmra.mrb[0].mxu0 %v9268
    %v9270 = vpop.f32.mrb[0].mxu0
    %v9271 = vadd.f32 %v9188, %v9270
    %v9272 = vpop.f32.mrb[0].mxu0
    %9273 = vdwg.mxu0
    %9274 = vmatprep.subr.mxu0 0.0
    %v9275 = vand.u32 %v7390, 4294901760
    %9276 = vmatpush1.msra.mxu0 %v9275
    %9277 = vmatprep.subr.mxu0 0.0
    %v9278 = vand.u32 %v7392, 4294901760
    %9279 = vmatpush1.msra.mxu0 %v9278
    %9280 = vmatprep.subr.mxu0 0.0
    %9281 = vmatpush1.msra.mxu0 0.0
    %9282 = vmatprep.subr.mxu0 0.0
    %9283 = vmatpush1.msra.mxu0 0.0
    %9284 = vmatprep.subr.mxu0 0.0
    %9285 = vmatpush1.msra.mxu0 0.0
    %9286 = vmatprep.subr.mxu0 0.0
    %9287 = vmatpush1.msra.mxu0 0.0
    %9288 = vmatprep.subr.mxu0 0.0
    %9289 = vmatpush1.msra.mxu0 0.0
    %9290 = vmatprep.subr.mxu0 0.0
    %9291 = vmatpush1.msra.mxu0 0.0
    %9292 = vmatprep.subr.mxu0 0.0
    %9293 = vmatpush1.msra.mxu0 0.0
    %9294 = vmatprep.subr.mxu0 0.0
    %9295 = vmatpush1.msra.mxu0 0.0
    %9296 = vmatprep.subr.mxu0 0.0
    %9297 = vmatpush1.msra.mxu0 0.0
    %9298 = vmatprep.subr.mxu0 0.0
    %9299 = vmatpush1.msra.mxu0 0.0
    %9300 = vmatprep.subr.mxu0 0.0
    %9301 = vmatpush1.msra.mxu0 0.0
    %9302 = vmatprep.subr.mxu0 0.0
    %9303 = vmatpush1.msra.mxu0 0.0
    %9304 = vmatprep.subr.mxu0 0.0
    %9305 = vmatpush1.msra.mxu0 0.0
    %9306 = vmatprep.subr.mxu0 0.0
    %9307 = vmatpush1.msra.mxu0 0.0
    %9308 = vmatprep.subr.mxu0 0.0
    %9309 = vmatpush1.msra.mxu0 0.0
    %9310 = vmatprep.subr.mxu0 0.0
    %9311 = vmatpush1.msra.mxu0 0.0
    %9312 = vmatprep.subr.mxu0 0.0
    %9313 = vmatpush1.msra.mxu0 0.0
    %9314 = vmatprep.subr.mxu0 0.0
    %9315 = vmatpush1.msra.mxu0 0.0
    %9316 = vmatprep.subr.mxu0 0.0
    %9317 = vmatpush1.msra.mxu0 0.0
    %9318 = vmatprep.subr.mxu0 0.0
    %9319 = vmatpush1.msra.mxu0 0.0
    %9320 = vmatprep.subr.mxu0 0.0
    %9321 = vmatpush1.msra.mxu0 0.0
    %9322 = vmatprep.subr.mxu0 0.0
    %9323 = vmatpush1.msra.mxu0 0.0
    %9324 = vmatprep.subr.mxu0 0.0
    %9325 = vmatpush1.msra.mxu0 0.0
    %9326 = vmatprep.subr.mxu0 0.0
    %9327 = vmatpush1.msra.mxu0 0.0
    %9328 = vmatprep.subr.mxu0 0.0
    %9329 = vmatpush1.msra.mxu0 0.0
    %9330 = vmatprep.subr.mxu0 0.0
    %9331 = vmatpush1.msra.mxu0 0.0
    %9332 = vmatprep.subr.mxu0 0.0
    %9333 = vmatpush1.msra.mxu0 0.0
    %9334 = vmatprep.subr.mxu0 0.0
    %9335 = vmatpush1.msra.mxu0 0.0
    %9336 = vmatprep.subr.mxu0 0.0
    %9337 = vmatpush1.msra.mxu0 0.0
    %9338 = vmatprep.subr.mxu0 0.0
    %9339 = vmatpush1.msra.mxu0 0.0
    %9340 = vmatprep.mubr.f32.mxu0 0.0
    %v9341 = vand.u32 %v9012, 4294901760
    %v9342 = vsub.f32 %v9012, %v9341
    %v9343 = vand.u32 %v9342, 4294901760
    %9344 = vmatmul.mubr.f32.gmra.mrb[0].mxu0 %v9343
    %v9345 = vpop.f32.mrb[0].mxu0
    %v9346 = vadd.f32 %v9264, %v9345
    %v9347 = vpop.f32.mrb[0].mxu0
    %9348 = vmatprep.mubr.f32.mxu0 0.0
    %v9349 = vand.u32 %v9015, 4294901760
    %v9350 = vsub.f32 %v9015, %v9349
    %v9351 = vand.u32 %v9350, 4294901760
    %9352 = vmatmul.mubr.f32.gmra.mrb[0].mxu0 %v9351
    %v9353 = vpop.f32.mrb[0].mxu0
    %v9354 = vadd.f32 %v9271, %v9353
    %v9355 = vpop.f32.mrb[0].mxu0
    %9356 = vdwg.mxu0
    %9357 = vmatprep.subr.mxu0 0.0
    %v9358 = vand.u32 %v7390, 4294901760
    %v9359 = vsub.f32 %v7390, %v9358
    %v9360 = vand.u32 %v9359, 4294901760
    %9361 = vmatpush1.msra.mxu0 %v9360
    %9362 = vmatprep.subr.mxu0 0.0
    %v9363 = vand.u32 %v7392, 4294901760
    %v9364 = vsub.f32 %v7392, %v9363
    %v9365 = vand.u32 %v9364, 4294901760
    %9366 = vmatpush1.msra.mxu0 %v9365
    %9367 = vmatprep.subr.mxu0 0.0
    %9368 = vmatpush1.msra.mxu0 0.0
    %9369 = vmatprep.subr.mxu0 0.0
    %9370 = vmatpush1.msra.mxu0 0.0
    %9371 = vmatprep.subr.mxu0 0.0
    %9372 = vmatpush1.msra.mxu0 0.0
    %9373 = vmatprep.subr.mxu0 0.0
    %9374 = vmatpush1.msra.mxu0 0.0
    %9375 = vmatprep.subr.mxu0 0.0
    %9376 = vmatpush1.msra.mxu0 0.0
    %9377 = vmatprep.subr.mxu0 0.0
    %9378 = vmatpush1.msra.mxu0 0.0
    %9379 = vmatprep.subr.mxu0 0.0
    %9380 = vmatpush1.msra.mxu0 0.0
    %9381 = vmatprep.subr.mxu0 0.0
    %9382 = vmatpush1.msra.mxu0 0.0
    %9383 = vmatprep.subr.mxu0 0.0
    %9384 = vmatpush1.msra.mxu0 0.0
    %9385 = vmatprep.subr.mxu0 0.0
    %9386 = vmatpush1.msra.mxu0 0.0
    %9387 = vmatprep.subr.mxu0 0.0
    %9388 = vmatpush1.msra.mxu0 0.0
    %9389 = vmatprep.subr.mxu0 0.0
    %9390 = vmatpush1.msra.mxu0 0.0
    %9391 = vmatprep.subr.mxu0 0.0
    %9392 = vmatpush1.msra.mxu0 0.0
    %9393 = vmatprep.subr.mxu0 0.0
    %9394 = vmatpush1.msra.mxu0 0.0
    %9395 = vmatprep.subr.mxu0 0.0
    %9396 = vmatpush1.msra.mxu0 0.0
    %9397 = vmatprep.subr.mxu0 0.0
    %9398 = vmatpush1.msra.mxu0 0.0
    %9399 = vmatprep.subr.mxu0 0.0
    %9400 = vmatpush1.msra.mxu0 0.0
    %9401 = vmatprep.subr.mxu0 0.0
    %9402 = vmatpush1.msra.mxu0 0.0
    %9403 = vmatprep.subr.mxu0 0.0
    %9404 = vmatpush1.msra.mxu0 0.0
    %9405 = vmatprep.subr.mxu0 0.0
    %9406 = vmatpush1.msra.mxu0 0.0
    %9407 = vmatprep.subr.mxu0 0.0
    %9408 = vmatpush1.msra.mxu0 0.0
    %9409 = vmatprep.subr.mxu0 0.0
    %9410 = vmatpush1.msra.mxu0 0.0
    %9411 = vmatprep.subr.mxu0 0.0
    %9412 = vmatpush1.msra.mxu0 0.0
    %9413 = vmatprep.subr.mxu0 0.0
    %9414 = vmatpush1.msra.mxu0 0.0
    %9415 = vmatprep.subr.mxu0 0.0
    %9416 = vmatpush1.msra.mxu0 0.0
    %9417 = vmatprep.subr.mxu0 0.0
    %9418 = vmatpush1.msra.mxu0 0.0
    %9419 = vmatprep.subr.mxu0 0.0
    %9420 = vmatpush1.msra.mxu0 0.0
    %9421 = vmatprep.subr.mxu0 0.0
    %9422 = vmatpush1.msra.mxu0 0.0
    %9423 = vmatprep.subr.mxu0 0.0
    %9424 = vmatpush1.msra.mxu0 0.0
    %9425 = vmatprep.subr.mxu0 0.0
    %9426 = vmatpush1.msra.mxu0 0.0
    %9427 = vmatprep.mubr.f32.mxu0 0.0
    %v9428 = vand.u32 %v9012, 4294901760
    %9429 = vmatmul.mubr.f32.gmra.mrb[0].mxu0 %v9428
    %v9430 = vpop.f32.mrb[0].mxu0
    %v9431 = vadd.f32 %v9346, %v9430
    %v9432 = vpop.f32.mrb[0].mxu0
    %9433 = vmatprep.mubr.f32.mxu0 0.0
    %v9434 = vand.u32 %v9015, 4294901760
    %9435 = vmatmul.mubr.f32.gmra.mrb[0].mxu0 %v9434
    %v9436 = vpop.f32.mrb[0].mxu0
    %v9437 = vadd.f32 %v9354, %v9436
    %v9438 = vpop.f32.mrb[0].mxu0
    %9439 = vdwg.mxu0
    %9440 = vmatprep.subr.mxu0 0.0
    %v9441 = vand.u32 %v7390, 4294901760
    %9442 = vmatpush1.msra.mxu0 %v9441
    %9443 = vmatprep.subr.mxu0 0.0
    %v9444 = vand.u32 %v7392, 4294901760
    %9445 = vmatpush1.msra.mxu0 %v9444
    %9446 = vmatprep.subr.mxu0 0.0
    %9447 = vmatpush1.msra.mxu0 0.0
    %9448 = vmatprep.subr.mxu0 0.0
    %9449 = vmatpush1.msra.mxu0 0.0
    %9450 = vmatprep.subr.mxu0 0.0
    %9451 = vmatpush1.msra.mxu0 0.0
    %9452 = vmatprep.subr.mxu0 0.0
    %9453 = vmatpush1.msra.mxu0 0.0
    %9454 = vmatprep.subr.mxu0 0.0
    %9455 = vmatpush1.msra.mxu0 0.0
    %9456 = vmatprep.subr.mxu0 0.0
    %9457 = vmatpush1.msra.mxu0 0.0
    %9458 = vmatprep.subr.mxu0 0.0
    %9459 = vmatpush1.msra.mxu0 0.0
    %9460 = vmatprep.subr.mxu0 0.0
    %9461 = vmatpush1.msra.mxu0 0.0
    %9462 = vmatprep.subr.mxu0 0.0
    %9463 = vmatpush1.msra.mxu0 0.0
    %9464 = vmatprep.subr.mxu0 0.0
    %9465 = vmatpush1.msra.mxu0 0.0
    %9466 = vmatprep.subr.mxu0 0.0
    %9467 = vmatpush1.msra.mxu0 0.0
    %9468 = vmatprep.subr.mxu0 0.0
    %9469 = vmatpush1.msra.mxu0 0.0
    %9470 = vmatprep.subr.mxu0 0.0
    %9471 = vmatpush1.msra.mxu0 0.0
    %9472 = vmatprep.subr.mxu0 0.0
    %9473 = vmatpush1.msra.mxu0 0.0
    %9474 = vmatprep.subr.mxu0 0.0
    %9475 = vmatpush1.msra.mxu0 0.0
    %9476 = vmatprep.subr.mxu0 0.0
    %9477 = vmatpush1.msra.mxu0 0.0
    %9478 = vmatprep.subr.mxu0 0.0
    %9479 = vmatpush1.msra.mxu0 0.0
    %9480 = vmatprep.subr.mxu0 0.0
    %9481 = vmatpush1.msra.mxu0 0.0
    %9482 = vmatprep.subr.mxu0 0.0
    %9483 = vmatpush1.msra.mxu0 0.0
    %9484 = vmatprep.subr.mxu0 0.0
    %9485 = vmatpush1.msra.mxu0 0.0
    %9486 = vmatprep.subr.mxu0 0.0
    %9487 = vmatpush1.msra.mxu0 0.0
    %9488 = vmatprep.subr.mxu0 0.0
    %9489 = vmatpush1.msra.mxu0 0.0
    %9490 = vmatprep.subr.mxu0 0.0
    %9491 = vmatpush1.msra.mxu0 0.0
    %9492 = vmatprep.subr.mxu0 0.0
    %9493 = vmatpush1.msra.mxu0 0.0
    %9494 = vmatprep.subr.mxu0 0.0
    %9495 = vmatpush1.msra.mxu0 0.0
    %9496 = vmatprep.subr.mxu0 0.0
    %9497 = vmatpush1.msra.mxu0 0.0
    %9498 = vmatprep.subr.mxu0 0.0
    %9499 = vmatpush1.msra.mxu0 0.0
    %9500 = vmatprep.subr.mxu0 0.0
    %9501 = vmatpush1.msra.mxu0 0.0
    %9502 = vmatprep.subr.mxu0 0.0
    %9503 = vmatpush1.msra.mxu0 0.0
    %9504 = vmatprep.subr.mxu0 0.0
    %9505 = vmatpush1.msra.mxu0 0.0
    %9506 = vmatprep.mubr.f32.mxu0 0.0
    %v9507 = vand.u32 %v9012, 4294901760
    %9508 = vmatmul.mubr.f32.gmra.mrb[0].mxu0 %v9507
    %v9509 = vpop.f32.mrb[0].mxu0
    %v9510 = vadd.f32 %v9431, %v9509
    %v9511 = vpop.f32.mrb[0].mxu0
    %9512 = vmatprep.mubr.f32.mxu0 0.0
    %v9513 = vand.u32 %v9015, 4294901760
    %9514 = vmatmul.mubr.f32.gmra.mrb[0].mxu0 %v9513
    %v9515 = vpop.f32.mrb[0].mxu0
    %v9516 = vadd.f32 %v9437, %v9515
    %v9517 = vpop.f32.mrb[0].mxu0
    %9518 = vdwg.mxu0
    %v9519 = vadd.f32 %v7364, %v9510
    %v9520 = vadd.f32 %v7365, %v9516
    %v9521 = vmax.f32 %v9519, 0.0
    %v9522 = vmax.f32 %v9520, 0.0
    %v9523 = vmul.f32 %v9521, %v7910
    %v9524 = vmul.f32 %v9522, %v7910
    %v9525 = vmax.f32 %v8987, %v9523
    %v9526 = vmax.f32 %v8988, %v9524
    %v9527 = vld [vmem:[#allocation2 + $0x78] sm:$0x1]
    %v9528 = vlaneseq
    %v9529 = vshrl.u32 %v9528, 7
    %v9530 = vsub.s32 0, %v9529
    %v9531 = vrot.slane %v9527, %v9530
    %v9532 = vadd.f32 %v9525, %v9531
    %v9533 = vadd.f32 %v9526, %v9531
    %v9534 = vld [vmem:[#allocation2 + $0x80] sm:$0xff]
    %v9535 = vld [vmem:[#allocation2 + $0x88] sm:$0xff]
    %v9536 = vld [vmem:[#allocation2 + $0x90] sm:$0xff]
    %v9537 = vld [vmem:[#allocation2 + $0x98] sm:$0xff]
    %v9538 = vld [vmem:[#allocation2 + $0xa0] sm:$0xff]
    %v9539 = vld [vmem:[#allocation2 + $0xa8] sm:$0xff]
    %v9540 = vld [vmem:[#allocation2 + $0xb0] sm:$0xff]
    %v9541 = vld [vmem:[#allocation2 + $0xb8] sm:$0xff]
    %v9542 = vld [vmem:[#allocation2 + $0xc0] sm:$0xff]
    %v9543 = vld [vmem:[#allocation2 + $0xc8] sm:$0xff]
    %v9544 = vld [vmem:[#allocation2 + $0xd0] sm:$0xff]
    %v9545 = vld [vmem:[#allocation2 + $0xd8] sm:$0xff]
    %vm9546 = vcmask 523264
    %v9548 = vsel %vm9546, %v9532, 0
    %v9551 = vsel %vm9546, %v9533, 0
    %9553 = vmatprep.subr.mxu0 0.0
    %v9554 = vand.u32 %v9538, 4294901760
    %9555 = vmatpush1.msra.mxu0 %v9554
    %9556 = vmatprep.subr.mxu0 0.0
    %v9557 = vand.u32 %v9539, 4294901760
    %9558 = vmatpush1.msra.mxu0 %v9557
    %9559 = vmatprep.subr.mxu0 0.0
    %v9560 = vand.u32 %v9540, 4294901760
    %9561 = vmatpush1.msra.mxu0 %v9560
    %9562 = vmatprep.subr.mxu0 0.0
    %v9563 = vand.u32 %v9541, 4294901760
    %9564 = vmatpush1.msra.mxu0 %v9563
    %9565 = vmatprep.subr.mxu0 0.0
    %v9566 = vand.u32 %v9542, 4294901760
    %9567 = vmatpush1.msra.mxu0 %v9566
    %9568 = vmatprep.subr.mxu0 0.0
    %v9569 = vand.u32 %v9543, 4294901760
    %9570 = vmatpush1.msra.mxu0 %v9569
    %9571 = vmatprep.subr.mxu0 0.0
    %v9572 = vand.u32 %v9544, 4294901760
    %9573 = vmatpush1.msra.mxu0 %v9572
    %9574 = vmatprep.subr.mxu0 0.0
    %v9575 = vand.u32 %v9545, 4294901760
    %9576 = vmatpush1.msra.mxu0 %v9575
    %9577 = vmatprep.subr.mxu0 0.0
    %9578 = vmatpush1.msra.mxu0 0.0
    %9579 = vmatprep.subr.mxu0 0.0
    %9580 = vmatpush1.msra.mxu0 0.0
    %9581 = vmatprep.subr.mxu0 0.0
    %9582 = vmatpush1.msra.mxu0 0.0
    %9583 = vmatprep.subr.mxu0 0.0
    %9584 = vmatpush1.msra.mxu0 0.0
    %9585 = vmatprep.subr.mxu0 0.0
    %9586 = vmatpush1.msra.mxu0 0.0
    %9587 = vmatprep.subr.mxu0 0.0
    %9588 = vmatpush1.msra.mxu0 0.0
    %9589 = vmatprep.subr.mxu0 0.0
    %9590 = vmatpush1.msra.mxu0 0.0
    %9591 = vmatprep.subr.mxu0 0.0
    %9592 = vmatpush1.msra.mxu0 0.0
    %9593 = vmatprep.subr.mxu0 0.0
    %9594 = vmatpush1.msra.mxu0 0.0
    %9595 = vmatprep.subr.mxu0 0.0
    %9596 = vmatpush1.msra.mxu0 0.0
    %9597 = vmatprep.subr.mxu0 0.0
    %9598 = vmatpush1.msra.mxu0 0.0
    %9599 = vmatprep.subr.mxu0 0.0
    %9600 = vmatpush1.msra.mxu0 0.0
    %9601 = vmatprep.subr.mxu0 0.0
    %9602 = vmatpush1.msra.mxu0 0.0
    %9603 = vmatprep.subr.mxu0 0.0
    %9604 = vmatpush1.msra.mxu0 0.0
    %9605 = vmatprep.subr.mxu0 0.0
    %9606 = vmatpush1.msra.mxu0 0.0
    %9607 = vmatprep.subr.mxu0 0.0
    %9608 = vmatpush1.msra.mxu0 0.0
    %9609 = vmatprep.subr.mxu0 0.0
    %9610 = vmatpush1.msra.mxu0 0.0
    %9611 = vmatprep.subr.mxu0 0.0
    %9612 = vmatpush1.msra.mxu0 0.0
    %9613 = vmatprep.subr.mxu0 0.0
    %9614 = vmatpush1.msra.mxu0 0.0
    %9615 = vmatprep.subr.mxu0 0.0
    %9616 = vmatpush1.msra.mxu0 0.0
    %9617 = vmatprep.subr.mxu0 0.0
    %9618 = vmatpush1.msra.mxu0 0.0
    %9619 = vmatprep.subr.mxu0 0.0
    %9620 = vmatpush1.msra.mxu0 0.0
    %9621 = vmatprep.subr.mxu0 0.0
    %9622 = vmatpush1.msra.mxu0 0.0
    %9623 = vmatprep.subr.mxu0 0.0
    %9624 = vmatpush1.msra.mxu0 0.0
    %9625 = vmatprep.mubr.f32.mxu0 0.0
    %v9626 = vand.u32 %v9548, 4294901760
    %v9627 = vsub.f32 %v9548, %v9626
    %v9628 = vand.u32 %v9627, 4294901760
    %v9629 = vsub.f32 %v9627, %v9628
    %v9630 = vand.u32 %v9629, 4294901760
    %9631 = vmatmul.mubr.f32.gmra.mrb[0].mxu0 %v9630
    %v9632 = vpop.f32.mrb[0].mxu0
    %v9633 = vadd.f32 0.0, %v9632
    %v9634 = vpop.f32.mrb[0].mxu0
    %9635 = vmatprep.mubr.f32.mxu0 0.0
    %v9636 = vand.u32 %v9551, 4294901760
    %v9637 = vsub.f32 %v9551, %v9636
    %v9638 = vand.u32 %v9637, 4294901760
    %v9639 = vsub.f32 %v9637, %v9638
    %v9640 = vand.u32 %v9639, 4294901760
    %9641 = vmatmul.mubr.f32.gmra.mrb[0].mxu0 %v9640
    %v9642 = vpop.f32.mrb[0].mxu0
    %v9643 = vadd.f32 0.0, %v9642
    %v9644 = vpop.f32.mrb[0].mxu0
    %9645 = vdwg.mxu0
    %9646 = vmatprep.subr.mxu0 0.0
    %v9647 = vand.u32 %v9538, 4294901760
    %v9648 = vsub.f32 %v9538, %v9647
    %v9649 = vand.u32 %v9648, 4294901760
    %v9650 = vsub.f32 %v9648, %v9649
    %v9651 = vand.u32 %v9650, 4294901760
    %9652 = vmatpush1.msra.mxu0 %v9651
    %9653 = vmatprep.subr.mxu0 0.0
    %v9654 = vand.u32 %v9539, 4294901760
    %v9655 = vsub.f32 %v9539, %v9654
    %v9656 = vand.u32 %v9655, 4294901760
    %v9657 = vsub.f32 %v9655, %v9656
    %v9658 = vand.u32 %v9657, 4294901760
    %9659 = vmatpush1.msra.mxu0 %v9658
    %9660 = vmatprep.subr.mxu0 0.0
    %v9661 = vand.u32 %v9540, 4294901760
    %v9662 = vsub.f32 %v9540, %v9661
    %v9663 = vand.u32 %v9662, 4294901760
    %v9664 = vsub.f32 %v9662, %v9663
    %v9665 = vand.u32 %v9664, 4294901760
    %9666 = vmatpush1.msra.mxu0 %v9665
    %9667 = vmatprep.subr.mxu0 0.0
    %v9668 = vand.u32 %v9541, 4294901760
    %v9669 = vsub.f32 %v9541, %v9668
    %v9670 = vand.u32 %v9669, 4294901760
    %v9671 = vsub.f32 %v9669, %v9670
    %v9672 = vand.u32 %v9671, 4294901760
    %9673 = vmatpush1.msra.mxu0 %v9672
    %9674 = vmatprep.subr.mxu0 0.0
    %v9675 = vand.u32 %v9542, 4294901760
    %v9676 = vsub.f32 %v9542, %v9675
    %v9677 = vand.u32 %v9676, 4294901760
    %v9678 = vsub.f32 %v9676, %v9677
    %v9679 = vand.u32 %v9678, 4294901760
    %9680 = vmatpush1.msra.mxu0 %v9679
    %9681 = vmatprep.subr.mxu0 0.0
    %v9682 = vand.u32 %v9543, 4294901760
    %v9683 = vsub.f32 %v9543, %v9682
    %v9684 = vand.u32 %v9683, 4294901760
    %v9685 = vsub.f32 %v9683, %v9684
    %v9686 = vand.u32 %v9685, 4294901760
    %9687 = vmatpush1.msra.mxu0 %v9686
    %9688 = vmatprep.subr.mxu0 0.0
    %v9689 = vand.u32 %v9544, 4294901760
    %v9690 = vsub.f32 %v9544, %v9689
    %v9691 = vand.u32 %v9690, 4294901760
    %v9692 = vsub.f32 %v9690, %v9691
    %v9693 = vand.u32 %v9692, 4294901760
    %9694 = vmatpush1.msra.mxu0 %v9693
    %9695 = vmatprep.subr.mxu0 0.0
    %v9696 = vand.u32 %v9545, 4294901760
    %v9697 = vsub.f32 %v9545, %v9696
    %v9698 = vand.u32 %v9697, 4294901760
    %v9699 = vsub.f32 %v9697, %v9698
    %v9700 = vand.u32 %v9699, 4294901760
    %9701 = vmatpush1.msra.mxu0 %v9700
    %9702 = vmatprep.subr.mxu0 0.0
    %9703 = vmatpush1.msra.mxu0 0.0
    %9704 = vmatprep.subr.mxu0 0.0
    %9705 = vmatpush1.msra.mxu0 0.0
    %9706 = vmatprep.subr.mxu0 0.0
    %9707 = vmatpush1.msra.mxu0 0.0
    %9708 = vmatprep.subr.mxu0 0.0
    %9709 = vmatpush1.msra.mxu0 0.0
    %9710 = vmatprep.subr.mxu0 0.0
    %9711 = vmatpush1.msra.mxu0 0.0
    %9712 = vmatprep.subr.mxu0 0.0
    %9713 = vmatpush1.msra.mxu0 0.0
    %9714 = vmatprep.subr.mxu0 0.0
    %9715 = vmatpush1.msra.mxu0 0.0
    %9716 = vmatprep.subr.mxu0 0.0
    %9717 = vmatpush1.msra.mxu0 0.0
    %9718 = vmatprep.subr.mxu0 0.0
    %9719 = vmatpush1.msra.mxu0 0.0
    %9720 = vmatprep.subr.mxu0 0.0
    %9721 = vmatpush1.msra.mxu0 0.0
    %9722 = vmatprep.subr.mxu0 0.0
    %9723 = vmatpush1.msra.mxu0 0.0
    %9724 = vmatprep.subr.mxu0 0.0
    %9725 = vmatpush1.msra.mxu0 0.0
    %9726 = vmatprep.subr.mxu0 0.0
    %9727 = vmatpush1.msra.mxu0 0.0
    %9728 = vmatprep.subr.mxu0 0.0
    %9729 = vmatpush1.msra.mxu0 0.0
    %9730 = vmatprep.subr.mxu0 0.0
    %9731 = vmatpush1.msra.mxu0 0.0
    %9732 = vmatprep.subr.mxu0 0.0
    %9733 = vmatpush1.msra.mxu0 0.0
    %9734 = vmatprep.subr.mxu0 0.0
    %9735 = vmatpush1.msra.mxu0 0.0
    %9736 = vmatprep.subr.mxu0 0.0
    %9737 = vmatpush1.msra.mxu0 0.0
    %9738 = vmatprep.subr.mxu0 0.0
    %9739 = vmatpush1.msra.mxu0 0.0
    %9740 = vmatprep.subr.mxu0 0.0
    %9741 = vmatpush1.msra.mxu0 0.0
    %9742 = vmatprep.subr.mxu0 0.0
    %9743 = vmatpush1.msra.mxu0 0.0
    %9744 = vmatprep.subr.mxu0 0.0
    %9745 = vmatpush1.msra.mxu0 0.0
    %9746 = vmatprep.subr.mxu0 0.0
    %9747 = vmatpush1.msra.mxu0 0.0
    %9748 = vmatprep.subr.mxu0 0.0
    %9749 = vmatpush1.msra.mxu0 0.0
    %9750 = vmatprep.mubr.f32.mxu0 0.0
    %v9751 = vand.u32 %v9548, 4294901760
    %9752 = vmatmul.mubr.f32.gmra.mrb[0].mxu0 %v9751
    %v9753 = vpop.f32.mrb[0].mxu0
    %v9754 = vadd.f32 %v9633, %v9753
    %v9755 = vpop.f32.mrb[0].mxu0
    %9756 = vmatprep.mubr.f32.mxu0 0.0
    %v9757 = vand.u32 %v9551, 4294901760
    %9758 = vmatmul.mubr.f32.gmra.mrb[0].mxu0 %v9757
    %v9759 = vpop.f32.mrb[0].mxu0
    %v9760 = vadd.f32 %v9643, %v9759
    %v9761 = vpop.f32.mrb[0].mxu0
    %9762 = vdwg.mxu0
    %9763 = vmatprep.subr.mxu0 0.0
    %v9764 = vand.u32 %v9538, 4294901760
    %v9765 = vsub.f32 %v9538, %v9764
    %9766 = vmatpush1.msra.mxu0 %v9765
    %9767 = vmatprep.subr.mxu0 0.0
    %v9768 = vand.u32 %v9539, 4294901760
    %v9769 = vsub.f32 %v9539, %v9768
    %9770 = vmatpush1.msra.mxu0 %v9769
    %9771 = vmatprep.subr.mxu0 0.0
    %v9772 = vand.u32 %v9540, 4294901760
    %v9773 = vsub.f32 %v9540, %v9772
    %9774 = vmatpush1.msra.mxu0 %v9773
    %9775 = vmatprep.subr.mxu0 0.0
    %v9776 = vand.u32 %v9541, 4294901760
    %v9777 = vsub.f32 %v9541, %v9776
    %9778 = vmatpush1.msra.mxu0 %v9777
    %9779 = vmatprep.subr.mxu0 0.0
    %v9780 = vand.u32 %v9542, 4294901760
    %v9781 = vsub.f32 %v9542, %v9780
    %9782 = vmatpush1.msra.mxu0 %v9781
    %9783 = vmatprep.subr.mxu0 0.0
    %v9784 = vand.u32 %v9543, 4294901760
    %v9785 = vsub.f32 %v9543, %v9784
    %9786 = vmatpush1.msra.mxu0 %v9785
    %9787 = vmatprep.subr.mxu0 0.0
    %v9788 = vand.u32 %v9544, 4294901760
    %v9789 = vsub.f32 %v9544, %v9788
    %9790 = vmatpush1.msra.mxu0 %v9789
    %9791 = vmatprep.subr.mxu0 0.0
    %v9792 = vand.u32 %v9545, 4294901760
    %v9793 = vsub.f32 %v9545, %v9792
    %9794 = vmatpush1.msra.mxu0 %v9793
    %9795 = vmatprep.subr.mxu0 0.0
    %9796 = vmatpush1.msra.mxu0 0.0
    %9797 = vmatprep.subr.mxu0 0.0
    %9798 = vmatpush1.msra.mxu0 0.0
    %9799 = vmatprep.subr.mxu0 0.0
    %9800 = vmatpush1.msra.mxu0 0.0
    %9801 = vmatprep.subr.mxu0 0.0
    %9802 = vmatpush1.msra.mxu0 0.0
    %9803 = vmatprep.subr.mxu0 0.0
    %9804 = vmatpush1.msra.mxu0 0.0
    %9805 = vmatprep.subr.mxu0 0.0
    %9806 = vmatpush1.msra.mxu0 0.0
    %9807 = vmatprep.subr.mxu0 0.0
    %9808 = vmatpush1.msra.mxu0 0.0
    %9809 = vmatprep.subr.mxu0 0.0
    %9810 = vmatpush1.msra.mxu0 0.0
    %9811 = vmatprep.subr.mxu0 0.0
    %9812 = vmatpush1.msra.mxu0 0.0
    %9813 = vmatprep.subr.mxu0 0.0
    %9814 = vmatpush1.msra.mxu0 0.0
    %9815 = vmatprep.subr.mxu0 0.0
    %9816 = vmatpush1.msra.mxu0 0.0
    %9817 = vmatprep.subr.mxu0 0.0
    %9818 = vmatpush1.msra.mxu0 0.0
    %9819 = vmatprep.subr.mxu0 0.0
    %9820 = vmatpush1.msra.mxu0 0.0
    %9821 = vmatprep.subr.mxu0 0.0
    %9822 = vmatpush1.msra.mxu0 0.0
    %9823 = vmatprep.subr.mxu0 0.0
    %9824 = vmatpush1.msra.mxu0 0.0
    %9825 = vmatprep.subr.mxu0 0.0
    %9826 = vmatpush1.msra.mxu0 0.0
    %9827 = vmatprep.subr.mxu0 0.0
    %9828 = vmatpush1.msra.mxu0 0.0
    %9829 = vmatprep.subr.mxu0 0.0
    %9830 = vmatpush1.msra.mxu0 0.0
    %9831 = vmatprep.subr.mxu0 0.0
    %9832 = vmatpush1.msra.mxu0 0.0
    %9833 = vmatprep.subr.mxu0 0.0
    %9834 = vmatpush1.msra.mxu0 0.0
    %9835 = vmatprep.subr.mxu0 0.0
    %9836 = vmatpush1.msra.mxu0 0.0
    %9837 = vmatprep.subr.mxu0 0.0
    %9838 = vmatpush1.msra.mxu0 0.0
    %9839 = vmatprep.subr.mxu0 0.0
    %9840 = vmatpush1.msra.mxu0 0.0
    %9841 = vmatprep.subr.mxu0 0.0
    %9842 = vmatpush1.msra.mxu0 0.0
    %9843 = vmatprep.mubr.f32.mxu0 0.0
    %v9844 = vand.u32 %v9548, 4294901760
    %v9845 = vsub.f32 %v9548, %v9844
    %9846 = vmatmul.mubr.f32.gmra.mrb[0].mxu0 %v9845
    %v9847 = vpop.f32.mrb[0].mxu0
    %v9848 = vadd.f32 %v9754, %v9847
    %v9849 = vpop.f32.mrb[0].mxu0
    %9850 = vmatprep.mubr.f32.mxu0 0.0
    %v9851 = vand.u32 %v9551, 4294901760
    %v9852 = vsub.f32 %v9551, %v9851
    %9853 = vmatmul.mubr.f32.gmra.mrb[0].mxu0 %v9852
    %v9854 = vpop.f32.mrb[0].mxu0
    %v9855 = vadd.f32 %v9760, %v9854
    %v9856 = vpop.f32.mrb[0].mxu0
    %9857 = vdwg.mxu0
    %9858 = vmatprep.subr.mxu0 0.0
    %v9859 = vand.u32 %v9538, 4294901760
    %9860 = vmatpush1.msra.mxu0 %v9859
    %9861 = vmatprep.subr.mxu0 0.0
    %v9862 = vand.u32 %v9539, 4294901760
    %9863 = vmatpush1.msra.mxu0 %v9862
    %9864 = vmatprep.subr.mxu0 0.0
    %v9865 = vand.u32 %v9540, 4294901760
    %9866 = vmatpush1.msra.mxu0 %v9865
    %9867 = vmatprep.subr.mxu0 0.0
    %v9868 = vand.u32 %v9541, 4294901760
    %9869 = vmatpush1.msra.mxu0 %v9868
    %9870 = vmatprep.subr.mxu0 0.0
    %v9871 = vand.u32 %v9542, 4294901760
    %9872 = vmatpush1.msra.mxu0 %v9871
    %9873 = vmatprep.subr.mxu0 0.0
    %v9874 = vand.u32 %v9543, 4294901760
    %9875 = vmatpush1.msra.mxu0 %v9874
    %9876 = vmatprep.subr.mxu0 0.0
    %v9877 = vand.u32 %v9544, 4294901760
    %9878 = vmatpush1.msra.mxu0 %v9877
    %9879 = vmatprep.subr.mxu0 0.0
    %v9880 = vand.u32 %v9545, 4294901760
    %9881 = vmatpush1.msra.mxu0 %v9880
    %9882 = vmatprep.subr.mxu0 0.0
    %9883 = vmatpush1.msra.mxu0 0.0
    %9884 = vmatprep.subr.mxu0 0.0
    %9885 = vmatpush1.msra.mxu0 0.0
    %9886 = vmatprep.subr.mxu0 0.0
    %9887 = vmatpush1.msra.mxu0 0.0
    %9888 = vmatprep.subr.mxu0 0.0
    %9889 = vmatpush1.msra.mxu0 0.0
    %9890 = vmatprep.subr.mxu0 0.0
    %9891 = vmatpush1.msra.mxu0 0.0
    %9892 = vmatprep.subr.mxu0 0.0
    %9893 = vmatpush1.msra.mxu0 0.0
    %9894 = vmatprep.subr.mxu0 0.0
    %9895 = vmatpush1.msra.mxu0 0.0
    %9896 = vmatprep.subr.mxu0 0.0
    %9897 = vmatpush1.msra.mxu0 0.0
    %9898 = vmatprep.subr.mxu0 0.0
    %9899 = vmatpush1.msra.mxu0 0.0
    %9900 = vmatprep.subr.mxu0 0.0
    %9901 = vmatpush1.msra.mxu0 0.0
    %9902 = vmatprep.subr.mxu0 0.0
    %9903 = vmatpush1.msra.mxu0 0.0
    %9904 = vmatprep.subr.mxu0 0.0
    %9905 = vmatpush1.msra.mxu0 0.0
    %9906 = vmatprep.subr.mxu0 0.0
    %9907 = vmatpush1.msra.mxu0 0.0
    %9908 = vmatprep.subr.mxu0 0.0
    %9909 = vmatpush1.msra.mxu0 0.0
    %9910 = vmatprep.subr.mxu0 0.0
    %9911 = vmatpush1.msra.mxu0 0.0
    %9912 = vmatprep.subr.mxu0 0.0
    %9913 = vmatpush1.msra.mxu0 0.0
    %9914 = vmatprep.subr.mxu0 0.0
    %9915 = vmatpush1.msra.mxu0 0.0
    %9916 = vmatprep.subr.mxu0 0.0
    %9917 = vmatpush1.msra.mxu0 0.0
    %9918 = vmatprep.subr.mxu0 0.0
    %9919 = vmatpush1.msra.mxu0 0.0
    %9920 = vmatprep.subr.mxu0 0.0
    %9921 = vmatpush1.msra.mxu0 0.0
    %9922 = vmatprep.subr.mxu0 0.0
    %9923 = vmatpush1.msra.mxu0 0.0
    %9924 = vmatprep.subr.mxu0 0.0
    %9925 = vmatpush1.msra.mxu0 0.0
    %9926 = vmatprep.subr.mxu0 0.0
    %9927 = vmatpush1.msra.mxu0 0.0
    %9928 = vmatprep.subr.mxu0 0.0
    %9929 = vmatpush1.msra.mxu0 0.0
    %9930 = vmatprep.mubr.f32.mxu0 0.0
    %v9931 = vand.u32 %v9548, 4294901760
    %v9932 = vsub.f32 %v9548, %v9931
    %v9933 = vand.u32 %v9932, 4294901760
    %9934 = vmatmul.mubr.f32.gmra.mrb[0].mxu0 %v9933
    %v9935 = vpop.f32.mrb[0].mxu0
    %v9936 = vadd.f32 %v9848, %v9935
    %v9937 = vpop.f32.mrb[0].mxu0
    %9938 = vmatprep.mubr.f32.mxu0 0.0
    %v9939 = vand.u32 %v9551, 4294901760
    %v9940 = vsub.f32 %v9551, %v9939
    %v9941 = vand.u32 %v9940, 4294901760
    %9942 = vmatmul.mubr.f32.gmra.mrb[0].mxu0 %v9941
    %v9943 = vpop.f32.mrb[0].mxu0
    %v9944 = vadd.f32 %v9855, %v9943
    %v9945 = vpop.f32.mrb[0].mxu0
    %9946 = vdwg.mxu0
    %9947 = vmatprep.subr.mxu0 0.0
    %v9948 = vand.u32 %v9538, 4294901760
    %v9949 = vsub.f32 %v9538, %v9948
    %v9950 = vand.u32 %v9949, 4294901760
    %9951 = vmatpush1.msra.mxu0 %v9950
    %9952 = vmatprep.subr.mxu0 0.0
    %v9953 = vand.u32 %v9539, 4294901760
    %v9954 = vsub.f32 %v9539, %v9953
    %v9955 = vand.u32 %v9954, 4294901760
    %9956 = vmatpush1.msra.mxu0 %v9955
    %9957 = vmatprep.subr.mxu0 0.0
    %v9958 = vand.u32 %v9540, 4294901760
    %v9959 = vsub.f32 %v9540, %v9958
    %v9960 = vand.u32 %v9959, 4294901760
    %9961 = vmatpush1.msra.mxu0 %v9960
    %9962 = vmatprep.subr.mxu0 0.0
    %v9963 = vand.u32 %v9541, 4294901760
    %v9964 = vsub.f32 %v9541, %v9963
    %v9965 = vand.u32 %v9964, 4294901760
    %9966 = vmatpush1.msra.mxu0 %v9965
    %9967 = vmatprep.subr.mxu0 0.0
    %v9968 = vand.u32 %v9542, 4294901760
    %v9969 = vsub.f32 %v9542, %v9968
    %v9970 = vand.u32 %v9969, 4294901760
    %9971 = vmatpush1.msra.mxu0 %v9970
    %9972 = vmatprep.subr.mxu0 0.0
    %v9973 = vand.u32 %v9543, 4294901760
    %v9974 = vsub.f32 %v9543, %v9973
    %v9975 = vand.u32 %v9974, 4294901760
    %9976 = vmatpush1.msra.mxu0 %v9975
    %9977 = vmatprep.subr.mxu0 0.0
    %v9978 = vand.u32 %v9544, 4294901760
    %v9979 = vsub.f32 %v9544, %v9978
    %v9980 = vand.u32 %v9979, 4294901760
    %9981 = vmatpush1.msra.mxu0 %v9980
    %9982 = vmatprep.subr.mxu0 0.0
    %v9983 = vand.u32 %v9545, 4294901760
    %v9984 = vsub.f32 %v9545, %v9983
    %v9985 = vand.u32 %v9984, 4294901760
    %9986 = vmatpush1.msra.mxu0 %v9985
    %9987 = vmatprep.subr.mxu0 0.0
    %9988 = vmatpush1.msra.mxu0 0.0
    %9989 = vmatprep.subr.mxu0 0.0
    %9990 = vmatpush1.msra.mxu0 0.0
    %9991 = vmatprep.subr.mxu0 0.0
    %9992 = vmatpush1.msra.mxu0 0.0
    %9993 = vmatprep.subr.mxu0 0.0
    %9994 = vmatpush1.msra.mxu0 0.0
    %9995 = vmatprep.subr.mxu0 0.0
    %9996 = vmatpush1.msra.mxu0 0.0
    %9997 = vmatprep.subr.mxu0 0.0
    %9998 = vmatpush1.msra.mxu0 0.0
    %9999 = vmatprep.subr.mxu0 0.0
    %10000 = vmatpush1.msra.mxu0 0.0
    %10001 = vmatprep.subr.mxu0 0.0
    %10002 = vmatpush1.msra.mxu0 0.0
    %10003 = vmatprep.subr.mxu0 0.0
    %10004 = vmatpush1.msra.mxu0 0.0
    %10005 = vmatprep.subr.mxu0 0.0
    %10006 = vmatpush1.msra.mxu0 0.0
    %10007 = vmatprep.subr.mxu0 0.0
    %10008 = vmatpush1.msra.mxu0 0.0
    %10009 = vmatprep.subr.mxu0 0.0
    %10010 = vmatpush1.msra.mxu0 0.0
    %10011 = vmatprep.subr.mxu0 0.0
    %10012 = vmatpush1.msra.mxu0 0.0
    %10013 = vmatprep.subr.mxu0 0.0
    %10014 = vmatpush1.msra.mxu0 0.0
    %10015 = vmatprep.subr.mxu0 0.0
    %10016 = vmatpush1.msra.mxu0 0.0
    %10017 = vmatprep.subr.mxu0 0.0
    %10018 = vmatpush1.msra.mxu0 0.0
    %10019 = vmatprep.subr.mxu0 0.0
    %10020 = vmatpush1.msra.mxu0 0.0
    %10021 = vmatprep.subr.mxu0 0.0
    %10022 = vmatpush1.msra.mxu0 0.0
    %10023 = vmatprep.subr.mxu0 0.0
    %10024 = vmatpush1.msra.mxu0 0.0
    %10025 = vmatprep.subr.mxu0 0.0
    %10026 = vmatpush1.msra.mxu0 0.0
    %10027 = vmatprep.subr.mxu0 0.0
    %10028 = vmatpush1.msra.mxu0 0.0
    %10029 = vmatprep.subr.mxu0 0.0
    %10030 = vmatpush1.msra.mxu0 0.0
    %10031 = vmatprep.subr.mxu0 0.0
    %10032 = vmatpush1.msra.mxu0 0.0
    %10033 = vmatprep.subr.mxu0 0.0
    %10034 = vmatpush1.msra.mxu0 0.0
    %10035 = vmatprep.mubr.f32.mxu0 0.0
    %v10036 = vand.u32 %v9548, 4294901760
    %10037 = vmatmul.mubr.f32.gmra.mrb[0].mxu0 %v10036
    %v10038 = vpop.f32.mrb[0].mxu0
    %v10039 = vadd.f32 %v9936, %v10038
    %v10040 = vpop.f32.mrb[0].mxu0
    %10041 = vmatprep.mubr.f32.mxu0 0.0
    %v10042 = vand.u32 %v9551, 4294901760
    %10043 = vmatmul.mubr.f32.gmra.mrb[0].mxu0 %v10042
    %v10044 = vpop.f32.mrb[0].mxu0
    %v10045 = vadd.f32 %v9944, %v10044
    %v10046 = vpop.f32.mrb[0].mxu0
    %10047 = vdwg.mxu0
    %10048 = vmatprep.subr.mxu0 0.0
    %v10049 = vand.u32 %v9538, 4294901760
    %10050 = vmatpush1.msra.mxu0 %v10049
    %10051 = vmatprep.subr.mxu0 0.0
    %v10052 = vand.u32 %v9539, 4294901760
    %10053 = vmatpush1.msra.mxu0 %v10052
    %10054 = vmatprep.subr.mxu0 0.0
    %v10055 = vand.u32 %v9540, 4294901760
    %10056 = vmatpush1.msra.mxu0 %v10055
    %10057 = vmatprep.subr.mxu0 0.0
    %v10058 = vand.u32 %v9541, 4294901760
    %10059 = vmatpush1.msra.mxu0 %v10058
    %10060 = vmatprep.subr.mxu0 0.0
    %v10061 = vand.u32 %v9542, 4294901760
    %10062 = vmatpush1.msra.mxu0 %v10061
    %10063 = vmatprep.subr.mxu0 0.0
    %v10064 = vand.u32 %v9543, 4294901760
    %10065 = vmatpush1.msra.mxu0 %v10064
    %10066 = vmatprep.subr.mxu0 0.0
    %v10067 = vand.u32 %v9544, 4294901760
    %10068 = vmatpush1.msra.mxu0 %v10067
    %10069 = vmatprep.subr.mxu0 0.0
    %v10070 = vand.u32 %v9545, 4294901760
    %10071 = vmatpush1.msra.mxu0 %v10070
    %10072 = vmatprep.subr.mxu0 0.0
    %10073 = vmatpush1.msra.mxu0 0.0
    %10074 = vmatprep.subr.mxu0 0.0
    %10075 = vmatpush1.msra.mxu0 0.0
    %10076 = vmatprep.subr.mxu0 0.0
    %10077 = vmatpush1.msra.mxu0 0.0
    %10078 = vmatprep.subr.mxu0 0.0
    %10079 = vmatpush1.msra.mxu0 0.0
    %10080 = vmatprep.subr.mxu0 0.0
    %10081 = vmatpush1.msra.mxu0 0.0
    %10082 = vmatprep.subr.mxu0 0.0
    %10083 = vmatpush1.msra.mxu0 0.0
    %10084 = vmatprep.subr.mxu0 0.0
    %10085 = vmatpush1.msra.mxu0 0.0
    %10086 = vmatprep.subr.mxu0 0.0
    %10087 = vmatpush1.msra.mxu0 0.0
    %10088 = vmatprep.subr.mxu0 0.0
    %10089 = vmatpush1.msra.mxu0 0.0
    %10090 = vmatprep.subr.mxu0 0.0
    %10091 = vmatpush1.msra.mxu0 0.0
    %10092 = vmatprep.subr.mxu0 0.0
    %10093 = vmatpush1.msra.mxu0 0.0
    %10094 = vmatprep.subr.mxu0 0.0
    %10095 = vmatpush1.msra.mxu0 0.0
    %10096 = vmatprep.subr.mxu0 0.0
    %10097 = vmatpush1.msra.mxu0 0.0
    %10098 = vmatprep.subr.mxu0 0.0
    %10099 = vmatpush1.msra.mxu0 0.0
    %10100 = vmatprep.subr.mxu0 0.0
    %10101 = vmatpush1.msra.mxu0 0.0
    %10102 = vmatprep.subr.mxu0 0.0
    %10103 = vmatpush1.msra.mxu0 0.0
    %10104 = vmatprep.subr.mxu0 0.0
    %10105 = vmatpush1.msra.mxu0 0.0
    %10106 = vmatprep.subr.mxu0 0.0
    %10107 = vmatpush1.msra.mxu0 0.0
    %10108 = vmatprep.subr.mxu0 0.0
    %10109 = vmatpush1.msra.mxu0 0.0
    %10110 = vmatprep.subr.mxu0 0.0
    %10111 = vmatpush1.msra.mxu0 0.0
    %10112 = vmatprep.subr.mxu0 0.0
    %10113 = vmatpush1.msra.mxu0 0.0
    %10114 = vmatprep.subr.mxu0 0.0
    %10115 = vmatpush1.msra.mxu0 0.0
    %10116 = vmatprep.subr.mxu0 0.0
    %10117 = vmatpush1.msra.mxu0 0.0
    %10118 = vmatprep.subr.mxu0 0.0
    %10119 = vmatpush1.msra.mxu0 0.0
    %10120 = vmatprep.mubr.f32.mxu0 0.0
    %v10121 = vand.u32 %v9548, 4294901760
    %10122 = vmatmul.mubr.f32.gmra.mrb[0].mxu0 %v10121
    %v10123 = vpop.f32.mrb[0].mxu0
    %v10124 = vadd.f32 %v10039, %v10123
    %v10125 = vpop.f32.mrb[0].mxu0
    %10126 = vmatprep.mubr.f32.mxu0 0.0
    %v10127 = vand.u32 %v9551, 4294901760
    %10128 = vmatmul.mubr.f32.gmra.mrb[0].mxu0 %v10127
    %v10129 = vpop.f32.mrb[0].mxu0
    %v10130 = vadd.f32 %v10045, %v10129
    %v10131 = vpop.f32.mrb[0].mxu0
    %10132 = vdwg.mxu0
    %10133 = vmatprep.subr.mxu0 0.0
    %v10134 = vand.u32 %v9534, 4294901760
    %10135 = vmatpush1.msra.mxu0 %v10134
    %10136 = vmatprep.subr.mxu0 0.0
    %v10137 = vand.u32 %v9535, 4294901760
    %10138 = vmatpush1.msra.mxu0 %v10137
    %10139 = vmatprep.subr.mxu0 0.0
    %v10140 = vand.u32 %v9536, 4294901760
    %10141 = vmatpush1.msra.mxu0 %v10140
    %10142 = vmatprep.subr.mxu0 0.0
    %v10143 = vand.u32 %v9537, 4294901760
    %10144 = vmatpush1.msra.mxu0 %v10143
    %10145 = vmatprep.subr.mxu0 0.0
    %10146 = vmatpush1.msra.mxu0 0.0
    %10147 = vmatprep.subr.mxu0 0.0
    %10148 = vmatpush1.msra.mxu0 0.0
    %10149 = vmatprep.subr.mxu0 0.0
    %10150 = vmatpush1.msra.mxu0 0.0
    %10151 = vmatprep.subr.mxu0 0.0
    %10152 = vmatpush1.msra.mxu0 0.0
    %10153 = vmatprep.subr.mxu0 0.0
    %10154 = vmatpush1.msra.mxu0 0.0
    %10155 = vmatprep.subr.mxu0 0.0
    %10156 = vmatpush1.msra.mxu0 0.0
    %10157 = vmatprep.subr.mxu0 0.0
    %10158 = vmatpush1.msra.mxu0 0.0
    %10159 = vmatprep.subr.mxu0 0.0
    %10160 = vmatpush1.msra.mxu0 0.0
    %10161 = vmatprep.subr.mxu0 0.0
    %10162 = vmatpush1.msra.mxu0 0.0
    %10163 = vmatprep.subr.mxu0 0.0
    %10164 = vmatpush1.msra.mxu0 0.0
    %10165 = vmatprep.subr.mxu0 0.0
    %10166 = vmatpush1.msra.mxu0 0.0
    %10167 = vmatprep.subr.mxu0 0.0
    %10168 = vmatpush1.msra.mxu0 0.0
    %10169 = vmatprep.subr.mxu0 0.0
    %10170 = vmatpush1.msra.mxu0 0.0
    %10171 = vmatprep.subr.mxu0 0.0
    %10172 = vmatpush1.msra.mxu0 0.0
    %10173 = vmatprep.subr.mxu0 0.0
    %10174 = vmatpush1.msra.mxu0 0.0
    %10175 = vmatprep.subr.mxu0 0.0
    %10176 = vmatpush1.msra.mxu0 0.0
    %10177 = vmatprep.subr.mxu0 0.0
    %10178 = vmatpush1.msra.mxu0 0.0
    %10179 = vmatprep.subr.mxu0 0.0
    %10180 = vmatpush1.msra.mxu0 0.0
    %10181 = vmatprep.subr.mxu0 0.0
    %10182 = vmatpush1.msra.mxu0 0.0
    %10183 = vmatprep.subr.mxu0 0.0
    %10184 = vmatpush1.msra.mxu0 0.0
    %10185 = vmatprep.subr.mxu0 0.0
    %10186 = vmatpush1.msra.mxu0 0.0
    %10187 = vmatprep.subr.mxu0 0.0
    %10188 = vmatpush1.msra.mxu0 0.0
    %10189 = vmatprep.subr.mxu0 0.0
    %10190 = vmatpush1.msra.mxu0 0.0
    %10191 = vmatprep.subr.mxu0 0.0
    %10192 = vmatpush1.msra.mxu0 0.0
    %10193 = vmatprep.subr.mxu0 0.0
    %10194 = vmatpush1.msra.mxu0 0.0
    %10195 = vmatprep.subr.mxu0 0.0
    %10196 = vmatpush1.msra.mxu0 0.0
    %10197 = vmatprep.subr.mxu0 0.0
    %10198 = vmatpush1.msra.mxu0 0.0
    %10199 = vmatprep.subr.mxu0 0.0
    %10200 = vmatpush1.msra.mxu0 0.0
    %10201 = vmatprep.mubr.f32.mxu0 0.0
    %v10202 = vand.u32 %v5843, 4294901760
    %v10203 = vsub.f32 %v5843, %v10202
    %v10204 = vand.u32 %v10203, 4294901760
    %v10205 = vsub.f32 %v10203, %v10204
    %v10206 = vand.u32 %v10205, 4294901760
    %10207 = vmatmul.mubr.f32.gmra.mrb[0].mxu0 %v10206
    %v10208 = vpop.f32.mrb[0].mxu0
    %v10209 = vadd.f32 %v10124, %v10208
    %v10210 = vpop.f32.mrb[0].mxu0
    %10211 = vmatprep.mubr.f32.mxu0 0.0
    %v10212 = vand.u32 %v5846, 4294901760
    %v10213 = vsub.f32 %v5846, %v10212
    %v10214 = vand.u32 %v10213, 4294901760
    %v10215 = vsub.f32 %v10213, %v10214
    %v10216 = vand.u32 %v10215, 4294901760
    %10217 = vmatmul.mubr.f32.gmra.mrb[0].mxu0 %v10216
    %v10218 = vpop.f32.mrb[0].mxu0
    %v10219 = vadd.f32 %v10130, %v10218
    %v10220 = vpop.f32.mrb[0].mxu0
    %10221 = vdwg.mxu0
    %10222 = vmatprep.subr.mxu0 0.0
    %v10223 = vand.u32 %v9534, 4294901760
    %v10224 = vsub.f32 %v9534, %v10223
    %v10225 = vand.u32 %v10224, 4294901760
    %v10226 = vsub.f32 %v10224, %v10225
    %v10227 = vand.u32 %v10226, 4294901760
    %10228 = vmatpush1.msra.mxu0 %v10227
    %10229 = vmatprep.subr.mxu0 0.0
    %v10230 = vand.u32 %v9535, 4294901760
    %v10231 = vsub.f32 %v9535, %v10230
    %v10232 = vand.u32 %v10231, 4294901760
    %v10233 = vsub.f32 %v10231, %v10232
    %v10234 = vand.u32 %v10233, 4294901760
    %10235 = vmatpush1.msra.mxu0 %v10234
    %10236 = vmatprep.subr.mxu0 0.0
    %v10237 = vand.u32 %v9536, 4294901760
    %v10238 = vsub.f32 %v9536, %v10237
    %v10239 = vand.u32 %v10238, 4294901760
    %v10240 = vsub.f32 %v10238, %v10239
    %v10241 = vand.u32 %v10240, 4294901760
    %10242 = vmatpush1.msra.mxu0 %v10241
    %10243 = vmatprep.subr.mxu0 0.0
    %v10244 = vand.u32 %v9537, 4294901760
    %v10245 = vsub.f32 %v9537, %v10244
    %v10246 = vand.u32 %v10245, 4294901760
    %v10247 = vsub.f32 %v10245, %v10246
    %v10248 = vand.u32 %v10247, 4294901760
    %10249 = vmatpush1.msra.mxu0 %v10248
    %10250 = vmatprep.subr.mxu0 0.0
    %10251 = vmatpush1.msra.mxu0 0.0
    %10252 = vmatprep.subr.mxu0 0.0
    %10253 = vmatpush1.msra.mxu0 0.0
    %10254 = vmatprep.subr.mxu0 0.0
    %10255 = vmatpush1.msra.mxu0 0.0
    %10256 = vmatprep.subr.mxu0 0.0
    %10257 = vmatpush1.msra.mxu0 0.0
    %10258 = vmatprep.subr.mxu0 0.0
    %10259 = vmatpush1.msra.mxu0 0.0
    %10260 = vmatprep.subr.mxu0 0.0
    %10261 = vmatpush1.msra.mxu0 0.0
    %10262 = vmatprep.subr.mxu0 0.0
    %10263 = vmatpush1.msra.mxu0 0.0
    %10264 = vmatprep.subr.mxu0 0.0
    %10265 = vmatpush1.msra.mxu0 0.0
    %10266 = vmatprep.subr.mxu0 0.0
    %10267 = vmatpush1.msra.mxu0 0.0
    %10268 = vmatprep.subr.mxu0 0.0
    %10269 = vmatpush1.msra.mxu0 0.0
    %10270 = vmatprep.subr.mxu0 0.0
    %10271 = vmatpush1.msra.mxu0 0.0
    %10272 = vmatprep.subr.mxu0 0.0
    %10273 = vmatpush1.msra.mxu0 0.0
    %10274 = vmatprep.subr.mxu0 0.0
    %10275 = vmatpush1.msra.mxu0 0.0
    %10276 = vmatprep.subr.mxu0 0.0
    %10277 = vmatpush1.msra.mxu0 0.0
    %10278 = vmatprep.subr.mxu0 0.0
    %10279 = vmatpush1.msra.mxu0 0.0
    %10280 = vmatprep.subr.mxu0 0.0
    %10281 = vmatpush1.msra.mxu0 0.0
    %10282 = vmatprep.subr.mxu0 0.0
    %10283 = vmatpush1.msra.mxu0 0.0
    %10284 = vmatprep.subr.mxu0 0.0
    %10285 = vmatpush1.msra.mxu0 0.0
    %10286 = vmatprep.subr.mxu0 0.0
    %10287 = vmatpush1.msra.mxu0 0.0
    %10288 = vmatprep.subr.mxu0 0.0
    %10289 = vmatpush1.msra.mxu0 0.0
    %10290 = vmatprep.subr.mxu0 0.0
    %10291 = vmatpush1.msra.mxu0 0.0
    %10292 = vmatprep.subr.mxu0 0.0
    %10293 = vmatpush1.msra.mxu0 0.0
    %10294 = vmatprep.subr.mxu0 0.0
    %10295 = vmatpush1.msra.mxu0 0.0
    %10296 = vmatprep.subr.mxu0 0.0
    %10297 = vmatpush1.msra.mxu0 0.0
    %10298 = vmatprep.subr.mxu0 0.0
    %10299 = vmatpush1.msra.mxu0 0.0
    %10300 = vmatprep.subr.mxu0 0.0
    %10301 = vmatpush1.msra.mxu0 0.0
    %10302 = vmatprep.subr.mxu0 0.0
    %10303 = vmatpush1.msra.mxu0 0.0
    %10304 = vmatprep.subr.mxu0 0.0
    %10305 = vmatpush1.msra.mxu0 0.0
    %10306 = vmatprep.mubr.f32.mxu0 0.0
    %v10307 = vand.u32 %v5843, 4294901760
    %10308 = vmatmul.mubr.f32.gmra.mrb[0].mxu0 %v10307
    %v10309 = vpop.f32.mrb[0].mxu0
    %v10310 = vadd.f32 %v10209, %v10309
    %v10311 = vpop.f32.mrb[0].mxu0
    %10312 = vmatprep.mubr.f32.mxu0 0.0
    %v10313 = vand.u32 %v5846, 4294901760
    %10314 = vmatmul.mubr.f32.gmra.mrb[0].mxu0 %v10313
    %v10315 = vpop.f32.mrb[0].mxu0
    %v10316 = vadd.f32 %v10219, %v10315
    %v10317 = vpop.f32.mrb[0].mxu0
    %10318 = vdwg.mxu0
    %10319 = vmatprep.subr.mxu0 0.0
    %v10320 = vand.u32 %v9534, 4294901760
    %v10321 = vsub.f32 %v9534, %v10320
    %10322 = vmatpush1.msra.mxu0 %v10321
    %10323 = vmatprep.subr.mxu0 0.0
    %v10324 = vand.u32 %v9535, 4294901760
    %v10325 = vsub.f32 %v9535, %v10324
    %10326 = vmatpush1.msra.mxu0 %v10325
    %10327 = vmatprep.subr.mxu0 0.0
    %v10328 = vand.u32 %v9536, 4294901760
    %v10329 = vsub.f32 %v9536, %v10328
    %10330 = vmatpush1.msra.mxu0 %v10329
    %10331 = vmatprep.subr.mxu0 0.0
    %v10332 = vand.u32 %v9537, 4294901760
    %v10333 = vsub.f32 %v9537, %v10332
    %10334 = vmatpush1.msra.mxu0 %v10333
    %10335 = vmatprep.subr.mxu0 0.0
    %10336 = vmatpush1.msra.mxu0 0.0
    %10337 = vmatprep.subr.mxu0 0.0
    %10338 = vmatpush1.msra.mxu0 0.0
    %10339 = vmatprep.subr.mxu0 0.0
    %10340 = vmatpush1.msra.mxu0 0.0
    %10341 = vmatprep.subr.mxu0 0.0
    %10342 = vmatpush1.msra.mxu0 0.0
    %10343 = vmatprep.subr.mxu0 0.0
    %10344 = vmatpush1.msra.mxu0 0.0
    %10345 = vmatprep.subr.mxu0 0.0
    %10346 = vmatpush1.msra.mxu0 0.0
    %10347 = vmatprep.subr.mxu0 0.0
    %10348 = vmatpush1.msra.mxu0 0.0
    %10349 = vmatprep.subr.mxu0 0.0
    %10350 = vmatpush1.msra.mxu0 0.0
    %10351 = vmatprep.subr.mxu0 0.0
    %10352 = vmatpush1.msra.mxu0 0.0
    %10353 = vmatprep.subr.mxu0 0.0
    %10354 = vmatpush1.msra.mxu0 0.0
    %10355 = vmatprep.subr.mxu0 0.0
    %10356 = vmatpush1.msra.mxu0 0.0
    %10357 = vmatprep.subr.mxu0 0.0
    %10358 = vmatpush1.msra.mxu0 0.0
    %10359 = vmatprep.subr.mxu0 0.0
    %10360 = vmatpush1.msra.mxu0 0.0
    %10361 = vmatprep.subr.mxu0 0.0
    %10362 = vmatpush1.msra.mxu0 0.0
    %10363 = vmatprep.subr.mxu0 0.0
    %10364 = vmatpush1.msra.mxu0 0.0
    %10365 = vmatprep.subr.mxu0 0.0
    %10366 = vmatpush1.msra.mxu0 0.0
    %10367 = vmatprep.subr.mxu0 0.0
    %10368 = vmatpush1.msra.mxu0 0.0
    %10369 = vmatprep.subr.mxu0 0.0
    %10370 = vmatpush1.msra.mxu0 0.0
    %10371 = vmatprep.subr.mxu0 0.0
    %10372 = vmatpush1.msra.mxu0 0.0
    %10373 = vmatprep.subr.mxu0 0.0
    %10374 = vmatpush1.msra.mxu0 0.0
    %10375 = vmatprep.subr.mxu0 0.0
    %10376 = vmatpush1.msra.mxu0 0.0
    %10377 = vmatprep.subr.mxu0 0.0
    %10378 = vmatpush1.msra.mxu0 0.0
    %10379 = vmatprep.subr.mxu0 0.0
    %10380 = vmatpush1.msra.mxu0 0.0
    %10381 = vmatprep.subr.mxu0 0.0
    %10382 = vmatpush1.msra.mxu0 0.0
    %10383 = vmatprep.subr.mxu0 0.0
    %10384 = vmatpush1.msra.mxu0 0.0
    %10385 = vmatprep.subr.mxu0 0.0
    %10386 = vmatpush1.msra.mxu0 0.0
    %10387 = vmatprep.subr.mxu0 0.0
    %10388 = vmatpush1.msra.mxu0 0.0
    %10389 = vmatprep.subr.mxu0 0.0
    %10390 = vmatpush1.msra.mxu0 0.0
    %10391 = vmatprep.mubr.f32.mxu0 0.0
    %v10392 = vand.u32 %v5843, 4294901760
    %v10393 = vsub.f32 %v5843, %v10392
    %10394 = vmatmul.mubr.f32.gmra.mrb[0].mxu0 %v10393
    %v10395 = vpop.f32.mrb[0].mxu0
    %v10396 = vadd.f32 %v10310, %v10395
    %v10397 = vpop.f32.mrb[0].mxu0
    %10398 = vmatprep.mubr.f32.mxu0 0.0
    %v10399 = vand.u32 %v5846, 4294901760
    %v10400 = vsub.f32 %v5846, %v10399
    %10401 = vmatmul.mubr.f32.gmra.mrb[0].mxu0 %v10400
    %v10402 = vpop.f32.mrb[0].mxu0
    %v10403 = vadd.f32 %v10316, %v10402
    %v10404 = vpop.f32.mrb[0].mxu0
    %10405 = vdwg.mxu0
    %10406 = vmatprep.subr.mxu0 0.0
    %v10407 = vand.u32 %v9534, 4294901760
    %10408 = vmatpush1.msra.mxu0 %v10407
    %10409 = vmatprep.subr.mxu0 0.0
    %v10410 = vand.u32 %v9535, 4294901760
    %10411 = vmatpush1.msra.mxu0 %v10410
    %10412 = vmatprep.subr.mxu0 0.0
    %v10413 = vand.u32 %v9536, 4294901760
    %10414 = vmatpush1.msra.mxu0 %v10413
    %10415 = vmatprep.subr.mxu0 0.0
    %v10416 = vand.u32 %v9537, 4294901760
    %10417 = vmatpush1.msra.mxu0 %v10416
    %10418 = vmatprep.subr.mxu0 0.0
    %10419 = vmatpush1.msra.mxu0 0.0
    %10420 = vmatprep.subr.mxu0 0.0
    %10421 = vmatpush1.msra.mxu0 0.0
    %10422 = vmatprep.subr.mxu0 0.0
    %10423 = vmatpush1.msra.mxu0 0.0
    %10424 = vmatprep.subr.mxu0 0.0
    %10425 = vmatpush1.msra.mxu0 0.0
    %10426 = vmatprep.subr.mxu0 0.0
    %10427 = vmatpush1.msra.mxu0 0.0
    %10428 = vmatprep.subr.mxu0 0.0
    %10429 = vmatpush1.msra.mxu0 0.0
    %10430 = vmatprep.subr.mxu0 0.0
    %10431 = vmatpush1.msra.mxu0 0.0
    %10432 = vmatprep.subr.mxu0 0.0
    %10433 = vmatpush1.msra.mxu0 0.0
    %10434 = vmatprep.subr.mxu0 0.0
    %10435 = vmatpush1.msra.mxu0 0.0
    %10436 = vmatprep.subr.mxu0 0.0
    %10437 = vmatpush1.msra.mxu0 0.0
    %10438 = vmatprep.subr.mxu0 0.0
    %10439 = vmatpush1.msra.mxu0 0.0
    %10440 = vmatprep.subr.mxu0 0.0
    %10441 = vmatpush1.msra.mxu0 0.0
    %10442 = vmatprep.subr.mxu0 0.0
    %10443 = vmatpush1.msra.mxu0 0.0
    %10444 = vmatprep.subr.mxu0 0.0
    %10445 = vmatpush1.msra.mxu0 0.0
    %10446 = vmatprep.subr.mxu0 0.0
    %10447 = vmatpush1.msra.mxu0 0.0
    %10448 = vmatprep.subr.mxu0 0.0
    %10449 = vmatpush1.msra.mxu0 0.0
    %10450 = vmatprep.subr.mxu0 0.0
    %10451 = vmatpush1.msra.mxu0 0.0
    %10452 = vmatprep.subr.mxu0 0.0
    %10453 = vmatpush1.msra.mxu0 0.0
    %10454 = vmatprep.subr.mxu0 0.0
    %10455 = vmatpush1.msra.mxu0 0.0
    %10456 = vmatprep.subr.mxu0 0.0
    %10457 = vmatpush1.msra.mxu0 0.0
    %10458 = vmatprep.subr.mxu0 0.0
    %10459 = vmatpush1.msra.mxu0 0.0
    %10460 = vmatprep.subr.mxu0 0.0
    %10461 = vmatpush1.msra.mxu0 0.0
    %10462 = vmatprep.subr.mxu0 0.0
    %10463 = vmatpush1.msra.mxu0 0.0
    %10464 = vmatprep.subr.mxu0 0.0
    %10465 = vmatpush1.msra.mxu0 0.0
    %10466 = vmatprep.subr.mxu0 0.0
    %10467 = vmatpush1.msra.mxu0 0.0
    %10468 = vmatprep.subr.mxu0 0.0
    %10469 = vmatpush1.msra.mxu0 0.0
    %10470 = vmatprep.subr.mxu0 0.0
    %10471 = vmatpush1.msra.mxu0 0.0
    %10472 = vmatprep.subr.mxu0 0.0
    %10473 = vmatpush1.msra.mxu0 0.0
    %10474 = vmatprep.mubr.f32.mxu0 0.0
    %v10475 = vand.u32 %v5843, 4294901760
    %v10476 = vsub.f32 %v5843, %v10475
    %v10477 = vand.u32 %v10476, 4294901760
    %10478 = vmatmul.mubr.f32.gmra.mrb[0].mxu0 %v10477
    %v10479 = vpop.f32.mrb[0].mxu0
    %v10480 = vadd.f32 %v10396, %v10479
    %v10481 = vpop.f32.mrb[0].mxu0
    %10482 = vmatprep.mubr.f32.mxu0 0.0
    %v10483 = vand.u32 %v5846, 4294901760
    %v10484 = vsub.f32 %v5846, %v10483
    %v10485 = vand.u32 %v10484, 4294901760
    %10486 = vmatmul.mubr.f32.gmra.mrb[0].mxu0 %v10485
    %v10487 = vpop.f32.mrb[0].mxu0
    %v10488 = vadd.f32 %v10403, %v10487
    %v10489 = vpop.f32.mrb[0].mxu0
    %10490 = vdwg.mxu0
    %10491 = vmatprep.subr.mxu0 0.0
    %v10492 = vand.u32 %v9534, 4294901760
    %v10493 = vsub.f32 %v9534, %v10492
    %v10494 = vand.u32 %v10493, 4294901760
    %10495 = vmatpush1.msra.mxu0 %v10494
    %10496 = vmatprep.subr.mxu0 0.0
    %v10497 = vand.u32 %v9535, 4294901760
    %v10498 = vsub.f32 %v9535, %v10497
    %v10499 = vand.u32 %v10498, 4294901760
    %10500 = vmatpush1.msra.mxu0 %v10499
    %10501 = vmatprep.subr.mxu0 0.0
    %v10502 = vand.u32 %v9536, 4294901760
    %v10503 = vsub.f32 %v9536, %v10502
    %v10504 = vand.u32 %v10503, 4294901760
    %10505 = vmatpush1.msra.mxu0 %v10504
    %10506 = vmatprep.subr.mxu0 0.0
    %v10507 = vand.u32 %v9537, 4294901760
    %v10508 = vsub.f32 %v9537, %v10507
    %v10509 = vand.u32 %v10508, 4294901760
    %10510 = vmatpush1.msra.mxu0 %v10509
    %10511 = vmatprep.subr.mxu0 0.0
    %10512 = vmatpush1.msra.mxu0 0.0
    %10513 = vmatprep.subr.mxu0 0.0
    %10514 = vmatpush1.msra.mxu0 0.0
    %10515 = vmatprep.subr.mxu0 0.0
    %10516 = vmatpush1.msra.mxu0 0.0
    %10517 = vmatprep.subr.mxu0 0.0
    %10518 = vmatpush1.msra.mxu0 0.0
    %10519 = vmatprep.subr.mxu0 0.0
    %10520 = vmatpush1.msra.mxu0 0.0
    %10521 = vmatprep.subr.mxu0 0.0
    %10522 = vmatpush1.msra.mxu0 0.0
    %10523 = vmatprep.subr.mxu0 0.0
    %10524 = vmatpush1.msra.mxu0 0.0
    %10525 = vmatprep.subr.mxu0 0.0
    %10526 = vmatpush1.msra.mxu0 0.0
    %10527 = vmatprep.subr.mxu0 0.0
    %10528 = vmatpush1.msra.mxu0 0.0
    %10529 = vmatprep.subr.mxu0 0.0
    %10530 = vmatpush1.msra.mxu0 0.0
    %10531 = vmatprep.subr.mxu0 0.0
    %10532 = vmatpush1.msra.mxu0 0.0
    %10533 = vmatprep.subr.mxu0 0.0
    %10534 = vmatpush1.msra.mxu0 0.0
    %10535 = vmatprep.subr.mxu0 0.0
    %10536 = vmatpush1.msra.mxu0 0.0
    %10537 = vmatprep.subr.mxu0 0.0
    %10538 = vmatpush1.msra.mxu0 0.0
    %10539 = vmatprep.subr.mxu0 0.0
    %10540 = vmatpush1.msra.mxu0 0.0
    %10541 = vmatprep.subr.mxu0 0.0
    %10542 = vmatpush1.msra.mxu0 0.0
    %10543 = vmatprep.subr.mxu0 0.0
    %10544 = vmatpush1.msra.mxu0 0.0
    %10545 = vmatprep.subr.mxu0 0.0
    %10546 = vmatpush1.msra.mxu0 0.0
    %10547 = vmatprep.subr.mxu0 0.0
    %10548 = vmatpush1.msra.mxu0 0.0
    %10549 = vmatprep.subr.mxu0 0.0
    %10550 = vmatpush1.msra.mxu0 0.0
    %10551 = vmatprep.subr.mxu0 0.0
    %10552 = vmatpush1.msra.mxu0 0.0
    %10553 = vmatprep.subr.mxu0 0.0
    %10554 = vmatpush1.msra.mxu0 0.0
    %10555 = vmatprep.subr.mxu0 0.0
    %10556 = vmatpush1.msra.mxu0 0.0
    %10557 = vmatprep.subr.mxu0 0.0
    %10558 = vmatpush1.msra.mxu0 0.0
    %10559 = vmatprep.subr.mxu0 0.0
    %10560 = vmatpush1.msra.mxu0 0.0
    %10561 = vmatprep.subr.mxu0 0.0
    %10562 = vmatpush1.msra.mxu0 0.0
    %10563 = vmatprep.subr.mxu0 0.0
    %10564 = vmatpush1.msra.mxu0 0.0
    %10565 = vmatprep.subr.mxu0 0.0
    %10566 = vmatpush1.msra.mxu0 0.0
    %10567 = vmatprep.mubr.f32.mxu0 0.0
    %v10568 = vand.u32 %v5843, 4294901760
    %10569 = vmatmul.mubr.f32.gmra.mrb[0].mxu0 %v10568
    %v10570 = vpop.f32.mrb[0].mxu0
    %v10571 = vadd.f32 %v10480, %v10570
    %v10572 = vpop.f32.mrb[0].mxu0
    %10573 = vmatprep.mubr.f32.mxu0 0.0
    %v10574 = vand.u32 %v5846, 4294901760
    %10575 = vmatmul.mubr.f32.gmra.mrb[0].mxu0 %v10574
    %v10576 = vpop.f32.mrb[0].mxu0
    %v10577 = vadd.f32 %v10488, %v10576
    %v10578 = vpop.f32.mrb[0].mxu0
    %10579 = vdwg.mxu0
    %10580 = vmatprep.subr.mxu0 0.0
    %v10581 = vand.u32 %v9534, 4294901760
    %10582 = vmatpush1.msra.mxu0 %v10581
    %10583 = vmatprep.subr.mxu0 0.0
    %v10584 = vand.u32 %v9535, 4294901760
    %10585 = vmatpush1.msra.mxu0 %v10584
    %10586 = vmatprep.subr.mxu0 0.0
    %v10587 = vand.u32 %v9536, 4294901760
    %10588 = vmatpush1.msra.mxu0 %v10587
    %10589 = vmatprep.subr.mxu0 0.0
    %v10590 = vand.u32 %v9537, 4294901760
    %10591 = vmatpush1.msra.mxu0 %v10590
    %10592 = vmatprep.subr.mxu0 0.0
    %10593 = vmatpush1.msra.mxu0 0.0
    %10594 = vmatprep.subr.mxu0 0.0
    %10595 = vmatpush1.msra.mxu0 0.0
    %10596 = vmatprep.subr.mxu0 0.0
    %10597 = vmatpush1.msra.mxu0 0.0
    %10598 = vmatprep.subr.mxu0 0.0
    %10599 = vmatpush1.msra.mxu0 0.0
    %10600 = vmatprep.subr.mxu0 0.0
    %10601 = vmatpush1.msra.mxu0 0.0
    %10602 = vmatprep.subr.mxu0 0.0
    %10603 = vmatpush1.msra.mxu0 0.0
    %10604 = vmatprep.subr.mxu0 0.0
    %10605 = vmatpush1.msra.mxu0 0.0
    %10606 = vmatprep.subr.mxu0 0.0
    %10607 = vmatpush1.msra.mxu0 0.0
    %10608 = vmatprep.subr.mxu0 0.0
    %10609 = vmatpush1.msra.mxu0 0.0
    %10610 = vmatprep.subr.mxu0 0.0
    %10611 = vmatpush1.msra.mxu0 0.0
    %10612 = vmatprep.subr.mxu0 0.0
    %10613 = vmatpush1.msra.mxu0 0.0
    %10614 = vmatprep.subr.mxu0 0.0
    %10615 = vmatpush1.msra.mxu0 0.0
    %10616 = vmatprep.subr.mxu0 0.0
    %10617 = vmatpush1.msra.mxu0 0.0
    %10618 = vmatprep.subr.mxu0 0.0
    %10619 = vmatpush1.msra.mxu0 0.0
    %10620 = vmatprep.subr.mxu0 0.0
    %10621 = vmatpush1.msra.mxu0 0.0
    %10622 = vmatprep.subr.mxu0 0.0
    %10623 = vmatpush1.msra.mxu0 0.0
    %10624 = vmatprep.subr.mxu0 0.0
    %10625 = vmatpush1.msra.mxu0 0.0
    %10626 = vmatprep.subr.mxu0 0.0
    %10627 = vmatpush1.msra.mxu0 0.0
    %10628 = vmatprep.subr.mxu0 0.0
    %10629 = vmatpush1.msra.mxu0 0.0
    %10630 = vmatprep.subr.mxu0 0.0
    %10631 = vmatpush1.msra.mxu0 0.0
    %10632 = vmatprep.subr.mxu0 0.0
    %10633 = vmatpush1.msra.mxu0 0.0
    %10634 = vmatprep.subr.mxu0 0.0
    %10635 = vmatpush1.msra.mxu0 0.0
    %10636 = vmatprep.subr.mxu0 0.0
    %10637 = vmatpush1.msra.mxu0 0.0
    %10638 = vmatprep.subr.mxu0 0.0
    %10639 = vmatpush1.msra.mxu0 0.0
    %10640 = vmatprep.subr.mxu0 0.0
    %10641 = vmatpush1.msra.mxu0 0.0
    %10642 = vmatprep.subr.mxu0 0.0
    %10643 = vmatpush1.msra.mxu0 0.0
    %10644 = vmatprep.subr.mxu0 0.0
    %10645 = vmatpush1.msra.mxu0 0.0
    %10646 = vmatprep.subr.mxu0 0.0
    %10647 = vmatpush1.msra.mxu0 0.0
    %10648 = vmatprep.mubr.f32.mxu0 0.0
    %v10649 = vand.u32 %v5843, 4294901760
    %10650 = vmatmul.mubr.f32.gmra.mrb[0].mxu0 %v10649
    %v10651 = vpop.f32.mrb[0].mxu0
    %v10652 = vadd.f32 %v10571, %v10651
    %v10653 = vpop.f32.mrb[0].mxu0
    %10654 = vmatprep.mubr.f32.mxu0 0.0
    %v10655 = vand.u32 %v5846, 4294901760
    %10656 = vmatmul.mubr.f32.gmra.mrb[0].mxu0 %v10655
    %v10657 = vpop.f32.mrb[0].mxu0
    %v10658 = vadd.f32 %v10577, %v10657
    %v10659 = vpop.f32.mrb[0].mxu0
    %10660 = vdwg.mxu0
    %v10661 = vld [vmem:[#allocation2 + $0xe0] sm:$0x1]
    %v10662 = vlaneseq
    %v10663 = vshrl.u32 %v10662, 7
    %v10664 = vsub.s32 0, %v10663
    %v10665 = vrot.slane %v10661, %v10664
    %v10666 = vadd.f32 %v10652, %v10665
    %v10667 = vadd.f32 %v10658, %v10665
    %v10668 = vmax.f32 %v10666, 0.0
    %v10669 = vmax.f32 %v10667, 0.0
    %v10670 = vld [vmem:[#allocation2 + $0xe8] sm:$0x1]
    %v10671 = vlaneseq
    %v10672 = vshrl.u32 %v10671, 7
    %v10673 = vsub.s32 0, %v10672
    %v10674 = vrot.slane %v10670, %v10673
    %v10675 = vmul.f32 %v10668, %v10674
    %v10676 = vmul.f32 %v10669, %v10674
    %v10677 = vld [vmem:[#allocation2 + $0xf0] sm:$0x1]
    %v10678 = vlaneseq
    %v10679 = vshrl.u32 %v10678, 7
    %v10680 = vsub.s32 0, %v10679
    %v10681 = vrot.slane %v10677, %v10680
    %v10682 = vadd.f32 %v10675, %v10681
    %v10683 = vadd.f32 %v10676, %v10681
    %vm10684 = vcmask 785408
    %v10685 = vsel %vm10684, %v10682, -inf
    %v10686 = vsel %vm10684, %v10683, -inf
    %v10687 = vmax.f32 %v10685, %v10686
    %v10688 = vrot.slane %v10687, 4
    %v10689 = vmax.f32 %v10687, %v10688
    %v10690 = vrot.slane %v10689, 2
    %v10691 = vmax.f32 %v10689, %v10690
    %v10692 = vrot.slane %v10691, 1
    %v10693 = vmax.f32 %v10691, %v10692
    %v10694 = vld [vmem:[#allocation2 + $0xf8] sm:$0xff]
    %v10695 = vld [vmem:[#allocation2 + $0x100] sm:$0xff]
    %v10696 = vld [vmem:[#allocation2 + $0x108] sm:$0xff]
    %v10697 = vld [vmem:[#allocation2 + $0x110] sm:$0xff]
    %v10698 = vld [vmem:[#allocation2 + $0x118] sm:$0xff]
    %v10699 = vld [vmem:[#allocation2 + $0x120] sm:$0xff]
    %v10700 = vld [vmem:[#allocation2 + $0x128] sm:$0xff]
    %v10701 = vld [vmem:[#allocation2 + $0x130] sm:$0xff]
    %v10702 = vld [vmem:[#allocation2 + $0x138] sm:$0xff]
    %v10703 = vld [vmem:[#allocation2 + $0x140] sm:$0xff]
    %v10704 = vld [vmem:[#allocation2 + $0x148] sm:$0xff]
    %v10705 = vld [vmem:[#allocation2 + $0x150] sm:$0xff]
    %v10706 = vld [vmem:[#allocation2 + $0x158] sm:$0x1]
    %v10708 = vsel %vm10684, %v10693, 0
    %10710 = vmatprep.subr.mxu0 0.0
    %v10711 = vand.u32 %v10694, 4294901760
    %10712 = vmatpush1.msra.mxu0 %v10711
    %10713 = vmatprep.subr.mxu0 0.0
    %v10714 = vand.u32 %v10695, 4294901760
    %10715 = vmatpush1.msra.mxu0 %v10714
    %10716 = vmatprep.subr.mxu0 0.0
    %v10717 = vand.u32 %v10696, 4294901760
    %10718 = vmatpush1.msra.mxu0 %v10717
    %10719 = vmatprep.subr.mxu0 0.0
    %v10720 = vand.u32 %v10697, 4294901760
    %10721 = vmatpush1.msra.mxu0 %v10720
    %10722 = vmatprep.subr.mxu0 0.0
    %v10723 = vand.u32 %v10698, 4294901760
    %10724 = vmatpush1.msra.mxu0 %v10723
    %10725 = vmatprep.subr.mxu0 0.0
    %v10726 = vand.u32 %v10699, 4294901760
    %10727 = vmatpush1.msra.mxu0 %v10726
    %10728 = vmatprep.subr.mxu0 0.0
    %v10729 = vand.u32 %v10700, 4294901760
    %10730 = vmatpush1.msra.mxu0 %v10729
    %10731 = vmatprep.subr.mxu0 0.0
    %v10732 = vand.u32 %v10701, 4294901760
    %10733 = vmatpush1.msra.mxu0 %v10732
    %10734 = vmatprep.subr.mxu0 0.0
    %v10735 = vand.u32 %v10702, 4294901760
    %10736 = vmatpush1.msra.mxu0 %v10735
    %10737 = vmatprep.subr.mxu0 0.0
    %v10738 = vand.u32 %v10703, 4294901760
    %10739 = vmatpush1.msra.mxu0 %v10738
    %10740 = vmatprep.subr.mxu0 0.0
    %v10741 = vand.u32 %v10704, 4294901760
    %10742 = vmatpush1.msra.mxu0 %v10741
    %10743 = vmatprep.subr.mxu0 0.0
    %v10744 = vand.u32 %v10705, 4294901760
    %10745 = vmatpush1.msra.mxu0 %v10744
    %10746 = vmatprep.subr.mxu0 0.0
    %10747 = vmatpush1.msra.mxu0 0.0
    %10748 = vmatprep.subr.mxu0 0.0
    %10749 = vmatpush1.msra.mxu0 0.0
    %10750 = vmatprep.subr.mxu0 0.0
    %10751 = vmatpush1.msra.mxu0 0.0
    %10752 = vmatprep.subr.mxu0 0.0
    %10753 = vmatpush1.msra.mxu0 0.0
    %10754 = vmatprep.subr.mxu0 0.0
    %10755 = vmatpush1.msra.mxu0 0.0
    %10756 = vmatprep.subr.mxu0 0.0
    %10757 = vmatpush1.msra.mxu0 0.0
    %10758 = vmatprep.subr.mxu0 0.0
    %10759 = vmatpush1.msra.mxu0 0.0
    %10760 = vmatprep.subr.mxu0 0.0
    %10761 = vmatpush1.msra.mxu0 0.0
    %10762 = vmatprep.subr.mxu0 0.0
    %10763 = vmatpush1.msra.mxu0 0.0
    %10764 = vmatprep.subr.mxu0 0.0
    %10765 = vmatpush1.msra.mxu0 0.0
    %10766 = vmatprep.subr.mxu0 0.0
    %10767 = vmatpush1.msra.mxu0 0.0
    %10768 = vmatprep.subr.mxu0 0.0
    %10769 = vmatpush1.msra.mxu0 0.0
    %10770 = vmatprep.subr.mxu0 0.0
    %10771 = vmatpush1.msra.mxu0 0.0
    %10772 = vmatprep.subr.mxu0 0.0
    %10773 = vmatpush1.msra.mxu0 0.0
    %10774 = vmatprep.subr.mxu0 0.0
    %10775 = vmatpush1.msra.mxu0 0.0
    %10776 = vmatprep.subr.mxu0 0.0
    %10777 = vmatpush1.msra.mxu0 0.0
    %10778 = vmatprep.subr.mxu0 0.0
    %10779 = vmatpush1.msra.mxu0 0.0
    %10780 = vmatprep.subr.mxu0 0.0
    %10781 = vmatpush1.msra.mxu0 0.0
    %10782 = vmatprep.subr.mxu0 0.0
    %10783 = vmatpush1.msra.mxu0 0.0
    %10784 = vmatprep.subr.mxu0 0.0
    %10785 = vmatpush1.msra.mxu0 0.0
    %10786 = vmatprep.mubr.f32.mxu0 0.0
    %v10787 = vand.u32 %v10708, 4294901760
    %v10788 = vsub.f32 %v10708, %v10787
    %v10789 = vand.u32 %v10788, 4294901760
    %v10790 = vsub.f32 %v10788, %v10789
    %v10791 = vand.u32 %v10790, 4294901760
    %10792 = vmatmul.mubr.f32.gmra.mrb[0].mxu0 %v10791
    %v10793 = vpop.f32.mrb[0].mxu0
    %v10794 = vadd.f32 %v10706, %v10793
    %v10795 = vpop.f32.mrb[0].mxu0
    %10796 = vdwg.mxu0
    %10797 = vmatprep.subr.mxu0 0.0
    %v10798 = vand.u32 %v10694, 4294901760
    %v10799 = vsub.f32 %v10694, %v10798
    %v10800 = vand.u32 %v10799, 4294901760
    %v10801 = vsub.f32 %v10799, %v10800
    %v10802 = vand.u32 %v10801, 4294901760
    %10803 = vmatpush1.msra.mxu0 %v10802
    %10804 = vmatprep.subr.mxu0 0.0
    %v10805 = vand.u32 %v10695, 4294901760
    %v10806 = vsub.f32 %v10695, %v10805
    %v10807 = vand.u32 %v10806, 4294901760
    %v10808 = vsub.f32 %v10806, %v10807
    %v10809 = vand.u32 %v10808, 4294901760
    %10810 = vmatpush1.msra.mxu0 %v10809
    %10811 = vmatprep.subr.mxu0 0.0
    %v10812 = vand.u32 %v10696, 4294901760
    %v10813 = vsub.f32 %v10696, %v10812
    %v10814 = vand.u32 %v10813, 4294901760
    %v10815 = vsub.f32 %v10813, %v10814
    %v10816 = vand.u32 %v10815, 4294901760
    %10817 = vmatpush1.msra.mxu0 %v10816
    %10818 = vmatprep.subr.mxu0 0.0
    %v10819 = vand.u32 %v10697, 4294901760
    %v10820 = vsub.f32 %v10697, %v10819
    %v10821 = vand.u32 %v10820, 4294901760
    %v10822 = vsub.f32 %v10820, %v10821
    %v10823 = vand.u32 %v10822, 4294901760
    %10824 = vmatpush1.msra.mxu0 %v10823
    %10825 = vmatprep.subr.mxu0 0.0
    %v10826 = vand.u32 %v10698, 4294901760
    %v10827 = vsub.f32 %v10698, %v10826
    %v10828 = vand.u32 %v10827, 4294901760
    %v10829 = vsub.f32 %v10827, %v10828
    %v10830 = vand.u32 %v10829, 4294901760
    %10831 = vmatpush1.msra.mxu0 %v10830
    %10832 = vmatprep.subr.mxu0 0.0
    %v10833 = vand.u32 %v10699, 4294901760
    %v10834 = vsub.f32 %v10699, %v10833
    %v10835 = vand.u32 %v10834, 4294901760
    %v10836 = vsub.f32 %v10834, %v10835
    %v10837 = vand.u32 %v10836, 4294901760
    %10838 = vmatpush1.msra.mxu0 %v10837
    %10839 = vmatprep.subr.mxu0 0.0
    %v10840 = vand.u32 %v10700, 4294901760
    %v10841 = vsub.f32 %v10700, %v10840
    %v10842 = vand.u32 %v10841, 4294901760
    %v10843 = vsub.f32 %v10841, %v10842
    %v10844 = vand.u32 %v10843, 4294901760
    %10845 = vmatpush1.msra.mxu0 %v10844
    %10846 = vmatprep.subr.mxu0 0.0
    %v10847 = vand.u32 %v10701, 4294901760
    %v10848 = vsub.f32 %v10701, %v10847
    %v10849 = vand.u32 %v10848, 4294901760
    %v10850 = vsub.f32 %v10848, %v10849
    %v10851 = vand.u32 %v10850, 4294901760
    %10852 = vmatpush1.msra.mxu0 %v10851
    %10853 = vmatprep.subr.mxu0 0.0
    %v10854 = vand.u32 %v10702, 4294901760
    %v10855 = vsub.f32 %v10702, %v10854
    %v10856 = vand.u32 %v10855, 4294901760
    %v10857 = vsub.f32 %v10855, %v10856
    %v10858 = vand.u32 %v10857, 4294901760
    %10859 = vmatpush1.msra.mxu0 %v10858
    %10860 = vmatprep.subr.mxu0 0.0
    %v10861 = vand.u32 %v10703, 4294901760
    %v10862 = vsub.f32 %v10703, %v10861
    %v10863 = vand.u32 %v10862, 4294901760
    %v10864 = vsub.f32 %v10862, %v10863
    %v10865 = vand.u32 %v10864, 4294901760
    %10866 = vmatpush1.msra.mxu0 %v10865
    %10867 = vmatprep.subr.mxu0 0.0
    %v10868 = vand.u32 %v10704, 4294901760
    %v10869 = vsub.f32 %v10704, %v10868
    %v10870 = vand.u32 %v10869, 4294901760
    %v10871 = vsub.f32 %v10869, %v10870
    %v10872 = vand.u32 %v10871, 4294901760
    %10873 = vmatpush1.msra.mxu0 %v10872
    %10874 = vmatprep.subr.mxu0 0.0
    %v10875 = vand.u32 %v10705, 4294901760
    %v10876 = vsub.f32 %v10705, %v10875
    %v10877 = vand.u32 %v10876, 4294901760
    %v10878 = vsub.f32 %v10876, %v10877
    %v10879 = vand.u32 %v10878, 4294901760
    %10880 = vmatpush1.msra.mxu0 %v10879
    %10881 = vmatprep.subr.mxu0 0.0
    %10882 = vmatpush1.msra.mxu0 0.0
    %10883 = vmatprep.subr.mxu0 0.0
    %10884 = vmatpush1.msra.mxu0 0.0
    %10885 = vmatprep.subr.mxu0 0.0
    %10886 = vmatpush1.msra.mxu0 0.0
    %10887 = vmatprep.subr.mxu0 0.0
    %10888 = vmatpush1.msra.mxu0 0.0
    %10889 = vmatprep.subr.mxu0 0.0
    %10890 = vmatpush1.msra.mxu0 0.0
    %10891 = vmatprep.subr.mxu0 0.0
    %10892 = vmatpush1.msra.mxu0 0.0
    %10893 = vmatprep.subr.mxu0 0.0
    %10894 = vmatpush1.msra.mxu0 0.0
    %10895 = vmatprep.subr.mxu0 0.0
    %10896 = vmatpush1.msra.mxu0 0.0
    %10897 = vmatprep.subr.mxu0 0.0
    %10898 = vmatpush1.msra.mxu0 0.0
    %10899 = vmatprep.subr.mxu0 0.0
    %10900 = vmatpush1.msra.mxu0 0.0
    %10901 = vmatprep.subr.mxu0 0.0
    %10902 = vmatpush1.msra.mxu0 0.0
    %10903 = vmatprep.subr.mxu0 0.0
    %10904 = vmatpush1.msra.mxu0 0.0
    %10905 = vmatprep.subr.mxu0 0.0
    %10906 = vmatpush1.msra.mxu0 0.0
    %10907 = vmatprep.subr.mxu0 0.0
    %10908 = vmatpush1.msra.mxu0 0.0
    %10909 = vmatprep.subr.mxu0 0.0
    %10910 = vmatpush1.msra.mxu0 0.0
    %10911 = vmatprep.subr.mxu0 0.0
    %10912 = vmatpush1.msra.mxu0 0.0
    %10913 = vmatprep.subr.mxu0 0.0
    %10914 = vmatpush1.msra.mxu0 0.0
    %10915 = vmatprep.subr.mxu0 0.0
    %10916 = vmatpush1.msra.mxu0 0.0
    %10917 = vmatprep.subr.mxu0 0.0
    %10918 = vmatpush1.msra.mxu0 0.0
    %10919 = vmatprep.subr.mxu0 0.0
    %10920 = vmatpush1.msra.mxu0 0.0
    %10921 = vmatprep.mubr.f32.mxu0 0.0
    %v10922 = vand.u32 %v10708, 4294901760
    %10923 = vmatmul.mubr.f32.gmra.mrb[0].mxu0 %v10922
    %v10924 = vpop.f32.mrb[0].mxu0
    %v10925 = vadd.f32 %v10794, %v10924
    %v10926 = vpop.f32.mrb[0].mxu0
    %10927 = vdwg.mxu0
    %10928 = vmatprep.subr.mxu0 0.0
    %v10929 = vand.u32 %v10694, 4294901760
    %v10930 = vsub.f32 %v10694, %v10929
    %10931 = vmatpush1.msra.mxu0 %v10930
    %10932 = vmatprep.subr.mxu0 0.0
    %v10933 = vand.u32 %v10695, 4294901760
    %v10934 = vsub.f32 %v10695, %v10933
    %10935 = vmatpush1.msra.mxu0 %v10934
    %10936 = vmatprep.subr.mxu0 0.0
    %v10937 = vand.u32 %v10696, 4294901760
    %v10938 = vsub.f32 %v10696, %v10937
    %10939 = vmatpush1.msra.mxu0 %v10938
    %10940 = vmatprep.subr.mxu0 0.0
    %v10941 = vand.u32 %v10697, 4294901760
    %v10942 = vsub.f32 %v10697, %v10941
    %10943 = vmatpush1.msra.mxu0 %v10942
    %10944 = vmatprep.subr.mxu0 0.0
    %v10945 = vand.u32 %v10698, 4294901760
    %v10946 = vsub.f32 %v10698, %v10945
    %10947 = vmatpush1.msra.mxu0 %v10946
    %10948 = vmatprep.subr.mxu0 0.0
    %v10949 = vand.u32 %v10699, 4294901760
    %v10950 = vsub.f32 %v10699, %v10949
    %10951 = vmatpush1.msra.mxu0 %v10950
    %10952 = vmatprep.subr.mxu0 0.0
    %v10953 = vand.u32 %v10700, 4294901760
    %v10954 = vsub.f32 %v10700, %v10953
    %10955 = vmatpush1.msra.mxu0 %v10954
    %10956 = vmatprep.subr.mxu0 0.0
    %v10957 = vand.u32 %v10701, 4294901760
    %v10958 = vsub.f32 %v10701, %v10957
    %10959 = vmatpush1.msra.mxu0 %v10958
    %10960 = vmatprep.subr.mxu0 0.0
    %v10961 = vand.u32 %v10702, 4294901760
    %v10962 = vsub.f32 %v10702, %v10961
    %10963 = vmatpush1.msra.mxu0 %v10962
    %10964 = vmatprep.subr.mxu0 0.0
    %v10965 = vand.u32 %v10703, 4294901760
    %v10966 = vsub.f32 %v10703, %v10965
    %10967 = vmatpush1.msra.mxu0 %v10966
    %10968 = vmatprep.subr.mxu0 0.0
    %v10969 = vand.u32 %v10704, 4294901760
    %v10970 = vsub.f32 %v10704, %v10969
    %10971 = vmatpush1.msra.mxu0 %v10970
    %10972 = vmatprep.subr.mxu0 0.0
    %v10973 = vand.u32 %v10705, 4294901760
    %v10974 = vsub.f32 %v10705, %v10973
    %10975 = vmatpush1.msra.mxu0 %v10974
    %10976 = vmatprep.subr.mxu0 0.0
    %10977 = vmatpush1.msra.mxu0 0.0
    %10978 = vmatprep.subr.mxu0 0.0
    %10979 = vmatpush1.msra.mxu0 0.0
    %10980 = vmatprep.subr.mxu0 0.0
    %10981 = vmatpush1.msra.mxu0 0.0
    %10982 = vmatprep.subr.mxu0 0.0
    %10983 = vmatpush1.msra.mxu0 0.0
    %10984 = vmatprep.subr.mxu0 0.0
    %10985 = vmatpush1.msra.mxu0 0.0
    %10986 = vmatprep.subr.mxu0 0.0
    %10987 = vmatpush1.msra.mxu0 0.0
    %10988 = vmatprep.subr.mxu0 0.0
    %10989 = vmatpush1.msra.mxu0 0.0
    %10990 = vmatprep.subr.mxu0 0.0
    %10991 = vmatpush1.msra.mxu0 0.0
    %10992 = vmatprep.subr.mxu0 0.0
    %10993 = vmatpush1.msra.mxu0 0.0
    %10994 = vmatprep.subr.mxu0 0.0
    %10995 = vmatpush1.msra.mxu0 0.0
    %10996 = vmatprep.subr.mxu0 0.0
    %10997 = vmatpush1.msra.mxu0 0.0
    %10998 = vmatprep.subr.mxu0 0.0
    %10999 = vmatpush1.msra.mxu0 0.0
    %11000 = vmatprep.subr.mxu0 0.0
    %11001 = vmatpush1.msra.mxu0 0.0
    %11002 = vmatprep.subr.mxu0 0.0
    %11003 = vmatpush1.msra.mxu0 0.0
    %11004 = vmatprep.subr.mxu0 0.0
    %11005 = vmatpush1.msra.mxu0 0.0
    %11006 = vmatprep.subr.mxu0 0.0
    %11007 = vmatpush1.msra.mxu0 0.0
    %11008 = vmatprep.subr.mxu0 0.0
    %11009 = vmatpush1.msra.mxu0 0.0
    %11010 = vmatprep.subr.mxu0 0.0
    %11011 = vmatpush1.msra.mxu0 0.0
    %11012 = vmatprep.subr.mxu0 0.0
    %11013 = vmatpush1.msra.mxu0 0.0
    %11014 = vmatprep.subr.mxu0 0.0
    %11015 = vmatpush1.msra.mxu0 0.0
    %11016 = vmatprep.mubr.f32.mxu0 0.0
    %v11017 = vand.u32 %v10708, 4294901760
    %v11018 = vsub.f32 %v10708, %v11017
    %11019 = vmatmul.mubr.f32.gmra.mrb[0].mxu0 %v11018
    %v11020 = vpop.f32.mrb[0].mxu0
    %v11021 = vadd.f32 %v10925, %v11020
    %v11022 = vpop.f32.mrb[0].mxu0
    %11023 = vdwg.mxu0
    %11024 = vmatprep.subr.mxu0 0.0
    %v11025 = vand.u32 %v10694, 4294901760
    %11026 = vmatpush1.msra.mxu0 %v11025
    %11027 = vmatprep.subr.mxu0 0.0
    %v11028 = vand.u32 %v10695, 4294901760
    %11029 = vmatpush1.msra.mxu0 %v11028
    %11030 = vmatprep.subr.mxu0 0.0
    %v11031 = vand.u32 %v10696, 4294901760
    %11032 = vmatpush1.msra.mxu0 %v11031
    %11033 = vmatprep.subr.mxu0 0.0
    %v11034 = vand.u32 %v10697, 4294901760
    %11035 = vmatpush1.msra.mxu0 %v11034
    %11036 = vmatprep.subr.mxu0 0.0
    %v11037 = vand.u32 %v10698, 4294901760
    %11038 = vmatpush1.msra.mxu0 %v11037
    %11039 = vmatprep.subr.mxu0 0.0
    %v11040 = vand.u32 %v10699, 4294901760
    %11041 = vmatpush1.msra.mxu0 %v11040
    %11042 = vmatprep.subr.mxu0 0.0
    %v11043 = vand.u32 %v10700, 4294901760
    %11044 = vmatpush1.msra.mxu0 %v11043
    %11045 = vmatprep.subr.mxu0 0.0
    %v11046 = vand.u32 %v10701, 4294901760
    %11047 = vmatpush1.msra.mxu0 %v11046
    %11048 = vmatprep.subr.mxu0 0.0
    %v11049 = vand.u32 %v10702, 4294901760
    %11050 = vmatpush1.msra.mxu0 %v11049
    %11051 = vmatprep.subr.mxu0 0.0
    %v11052 = vand.u32 %v10703, 4294901760
    %11053 = vmatpush1.msra.mxu0 %v11052
    %11054 = vmatprep.subr.mxu0 0.0
    %v11055 = vand.u32 %v10704, 4294901760
    %11056 = vmatpush1.msra.mxu0 %v11055
    %11057 = vmatprep.subr.mxu0 0.0
    %v11058 = vand.u32 %v10705, 4294901760
    %11059 = vmatpush1.msra.mxu0 %v11058
    %11060 = vmatprep.subr.mxu0 0.0
    %11061 = vmatpush1.msra.mxu0 0.0
    %11062 = vmatprep.subr.mxu0 0.0
    %11063 = vmatpush1.msra.mxu0 0.0
    %11064 = vmatprep.subr.mxu0 0.0
    %11065 = vmatpush1.msra.mxu0 0.0
    %11066 = vmatprep.subr.mxu0 0.0
    %11067 = vmatpush1.msra.mxu0 0.0
    %11068 = vmatprep.subr.mxu0 0.0
    %11069 = vmatpush1.msra.mxu0 0.0
    %11070 = vmatprep.subr.mxu0 0.0
    %11071 = vmatpush1.msra.mxu0 0.0
    %11072 = vmatprep.subr.mxu0 0.0
    %11073 = vmatpush1.msra.mxu0 0.0
    %11074 = vmatprep.subr.mxu0 0.0
    %11075 = vmatpush1.msra.mxu0 0.0
    %11076 = vmatprep.subr.mxu0 0.0
    %11077 = vmatpush1.msra.mxu0 0.0
    %11078 = vmatprep.subr.mxu0 0.0
    %11079 = vmatpush1.msra.mxu0 0.0
    %11080 = vmatprep.subr.mxu0 0.0
    %11081 = vmatpush1.msra.mxu0 0.0
    %11082 = vmatprep.subr.mxu0 0.0
    %11083 = vmatpush1.msra.mxu0 0.0
    %11084 = vmatprep.subr.mxu0 0.0
    %11085 = vmatpush1.msra.mxu0 0.0
    %11086 = vmatprep.subr.mxu0 0.0
    %11087 = vmatpush1.msra.mxu0 0.0
    %11088 = vmatprep.subr.mxu0 0.0
    %11089 = vmatpush1.msra.mxu0 0.0
    %11090 = vmatprep.subr.mxu0 0.0
    %11091 = vmatpush1.msra.mxu0 0.0
    %11092 = vmatprep.subr.mxu0 0.0
    %11093 = vmatpush1.msra.mxu0 0.0
    %11094 = vmatprep.subr.mxu0 0.0
    %11095 = vmatpush1.msra.mxu0 0.0
    %11096 = vmatprep.subr.mxu0 0.0
    %11097 = vmatpush1.msra.mxu0 0.0
    %11098 = vmatprep.subr.mxu0 0.0
    %11099 = vmatpush1.msra.mxu0 0.0
    %11100 = vmatprep.mubr.f32.mxu0 0.0
    %v11101 = vand.u32 %v10708, 4294901760
    %v11102 = vsub.f32 %v10708, %v11101
    %v11103 = vand.u32 %v11102, 4294901760
    %11104 = vmatmul.mubr.f32.gmra.mrb[0].mxu0 %v11103
    %v11105 = vpop.f32.mrb[0].mxu0
    %v11106 = vadd.f32 %v11021, %v11105
    %v11107 = vpop.f32.mrb[0].mxu0
    %11108 = vdwg.mxu0
    %11109 = vmatprep.subr.mxu0 0.0
    %v11110 = vand.u32 %v10694, 4294901760
    %v11111 = vsub.f32 %v10694, %v11110
    %v11112 = vand.u32 %v11111, 4294901760
    %11113 = vmatpush1.msra.mxu0 %v11112
    %11114 = vmatprep.subr.mxu0 0.0
    %v11115 = vand.u32 %v10695, 4294901760
    %v11116 = vsub.f32 %v10695, %v11115
    %v11117 = vand.u32 %v11116, 4294901760
    %11118 = vmatpush1.msra.mxu0 %v11117
    %11119 = vmatprep.subr.mxu0 0.0
    %v11120 = vand.u32 %v10696, 4294901760
    %v11121 = vsub.f32 %v10696, %v11120
    %v11122 = vand.u32 %v11121, 4294901760
    %11123 = vmatpush1.msra.mxu0 %v11122
    %11124 = vmatprep.subr.mxu0 0.0
    %v11125 = vand.u32 %v10697, 4294901760
    %v11126 = vsub.f32 %v10697, %v11125
    %v11127 = vand.u32 %v11126, 4294901760
    %11128 = vmatpush1.msra.mxu0 %v11127
    %11129 = vmatprep.subr.mxu0 0.0
    %v11130 = vand.u32 %v10698, 4294901760
    %v11131 = vsub.f32 %v10698, %v11130
    %v11132 = vand.u32 %v11131, 4294901760
    %11133 = vmatpush1.msra.mxu0 %v11132
    %11134 = vmatprep.subr.mxu0 0.0
    %v11135 = vand.u32 %v10699, 4294901760
    %v11136 = vsub.f32 %v10699, %v11135
    %v11137 = vand.u32 %v11136, 4294901760
    %11138 = vmatpush1.msra.mxu0 %v11137
    %11139 = vmatprep.subr.mxu0 0.0
    %v11140 = vand.u32 %v10700, 4294901760
    %v11141 = vsub.f32 %v10700, %v11140
    %v11142 = vand.u32 %v11141, 4294901760
    %11143 = vmatpush1.msra.mxu0 %v11142
    %11144 = vmatprep.subr.mxu0 0.0
    %v11145 = vand.u32 %v10701, 4294901760
    %v11146 = vsub.f32 %v10701, %v11145
    %v11147 = vand.u32 %v11146, 4294901760
    %11148 = vmatpush1.msra.mxu0 %v11147
    %11149 = vmatprep.subr.mxu0 0.0
    %v11150 = vand.u32 %v10702, 4294901760
    %v11151 = vsub.f32 %v10702, %v11150
    %v11152 = vand.u32 %v11151, 4294901760
    %11153 = vmatpush1.msra.mxu0 %v11152
    %11154 = vmatprep.subr.mxu0 0.0
    %v11155 = vand.u32 %v10703, 4294901760
    %v11156 = vsub.f32 %v10703, %v11155
    %v11157 = vand.u32 %v11156, 4294901760
    %11158 = vmatpush1.msra.mxu0 %v11157
    %11159 = vmatprep.subr.mxu0 0.0
    %v11160 = vand.u32 %v10704, 4294901760
    %v11161 = vsub.f32 %v10704, %v11160
    %v11162 = vand.u32 %v11161, 4294901760
    %11163 = vmatpush1.msra.mxu0 %v11162
    %11164 = vmatprep.subr.mxu0 0.0
    %v11165 = vand.u32 %v10705, 4294901760
    %v11166 = vsub.f32 %v10705, %v11165
    %v11167 = vand.u32 %v11166, 4294901760
    %11168 = vmatpush1.msra.mxu0 %v11167
    %11169 = vmatprep.subr.mxu0 0.0
    %11170 = vmatpush1.msra.mxu0 0.0
    %11171 = vmatprep.subr.mxu0 0.0
    %11172 = vmatpush1.msra.mxu0 0.0
    %11173 = vmatprep.subr.mxu0 0.0
    %11174 = vmatpush1.msra.mxu0 0.0
    %11175 = vmatprep.subr.mxu0 0.0
    %11176 = vmatpush1.msra.mxu0 0.0
    %11177 = vmatprep.subr.mxu0 0.0
    %11178 = vmatpush1.msra.mxu0 0.0
    %11179 = vmatprep.subr.mxu0 0.0
    %11180 = vmatpush1.msra.mxu0 0.0
    %11181 = vmatprep.subr.mxu0 0.0
    %11182 = vmatpush1.msra.mxu0 0.0
    %11183 = vmatprep.subr.mxu0 0.0
    %11184 = vmatpush1.msra.mxu0 0.0
    %11185 = vmatprep.subr.mxu0 0.0
    %11186 = vmatpush1.msra.mxu0 0.0
    %11187 = vmatprep.subr.mxu0 0.0
    %11188 = vmatpush1.msra.mxu0 0.0
    %11189 = vmatprep.subr.mxu0 0.0
    %11190 = vmatpush1.msra.mxu0 0.0
    %11191 = vmatprep.subr.mxu0 0.0
    %11192 = vmatpush1.msra.mxu0 0.0
    %11193 = vmatprep.subr.mxu0 0.0
    %11194 = vmatpush1.msra.mxu0 0.0
    %11195 = vmatprep.subr.mxu0 0.0
    %11196 = vmatpush1.msra.mxu0 0.0
    %11197 = vmatprep.subr.mxu0 0.0
    %11198 = vmatpush1.msra.mxu0 0.0
    %11199 = vmatprep.subr.mxu0 0.0
    %11200 = vmatpush1.msra.mxu0 0.0
    %11201 = vmatprep.subr.mxu0 0.0
    %11202 = vmatpush1.msra.mxu0 0.0
    %11203 = vmatprep.subr.mxu0 0.0
    %11204 = vmatpush1.msra.mxu0 0.0
    %11205 = vmatprep.subr.mxu0 0.0
    %11206 = vmatpush1.msra.mxu0 0.0
    %11207 = vmatprep.subr.mxu0 0.0
    %11208 = vmatpush1.msra.mxu0 0.0
    %11209 = vmatprep.mubr.f32.mxu0 0.0
    %v11210 = vand.u32 %v10708, 4294901760
    %11211 = vmatmul.mubr.f32.gmra.mrb[0].mxu0 %v11210
    %v11212 = vpop.f32.mrb[0].mxu0
    %v11213 = vadd.f32 %v11106, %v11212
    %v11214 = vpop.f32.mrb[0].mxu0
    %11215 = vdwg.mxu0
    %11216 = vmatprep.subr.mxu0 0.0
    %v11217 = vand.u32 %v10694, 4294901760
    %11218 = vmatpush1.msra.mxu0 %v11217
    %11219 = vmatprep.subr.mxu0 0.0
    %v11220 = vand.u32 %v10695, 4294901760
    %11221 = vmatpush1.msra.mxu0 %v11220
    %11222 = vmatprep.subr.mxu0 0.0
    %v11223 = vand.u32 %v10696, 4294901760
    %11224 = vmatpush1.msra.mxu0 %v11223
    %11225 = vmatprep.subr.mxu0 0.0
    %v11226 = vand.u32 %v10697, 4294901760
    %11227 = vmatpush1.msra.mxu0 %v11226
    %11228 = vmatprep.subr.mxu0 0.0
    %v11229 = vand.u32 %v10698, 4294901760
    %11230 = vmatpush1.msra.mxu0 %v11229
    %11231 = vmatprep.subr.mxu0 0.0
    %v11232 = vand.u32 %v10699, 4294901760
    %11233 = vmatpush1.msra.mxu0 %v11232
    %11234 = vmatprep.subr.mxu0 0.0
    %v11235 = vand.u32 %v10700, 4294901760
    %11236 = vmatpush1.msra.mxu0 %v11235
    %11237 = vmatprep.subr.mxu0 0.0
    %v11238 = vand.u32 %v10701, 4294901760
    %11239 = vmatpush1.msra.mxu0 %v11238
    %11240 = vmatprep.subr.mxu0 0.0
    %v11241 = vand.u32 %v10702, 4294901760
    %11242 = vmatpush1.msra.mxu0 %v11241
    %11243 = vmatprep.subr.mxu0 0.0
    %v11244 = vand.u32 %v10703, 4294901760
    %11245 = vmatpush1.msra.mxu0 %v11244
    %11246 = vmatprep.subr.mxu0 0.0
    %v11247 = vand.u32 %v10704, 4294901760
    %11248 = vmatpush1.msra.mxu0 %v11247
    %11249 = vmatprep.subr.mxu0 0.0
    %v11250 = vand.u32 %v10705, 4294901760
    %11251 = vmatpush1.msra.mxu0 %v11250
    %11252 = vmatprep.subr.mxu0 0.0
    %11253 = vmatpush1.msra.mxu0 0.0
    %11254 = vmatprep.subr.mxu0 0.0
    %11255 = vmatpush1.msra.mxu0 0.0
    %11256 = vmatprep.subr.mxu0 0.0
    %11257 = vmatpush1.msra.mxu0 0.0
    %11258 = vmatprep.subr.mxu0 0.0
    %11259 = vmatpush1.msra.mxu0 0.0
    %11260 = vmatprep.subr.mxu0 0.0
    %11261 = vmatpush1.msra.mxu0 0.0
    %11262 = vmatprep.subr.mxu0 0.0
    %11263 = vmatpush1.msra.mxu0 0.0
    %11264 = vmatprep.subr.mxu0 0.0
    %11265 = vmatpush1.msra.mxu0 0.0
    %11266 = vmatprep.subr.mxu0 0.0
    %11267 = vmatpush1.msra.mxu0 0.0
    %11268 = vmatprep.subr.mxu0 0.0
    %11269 = vmatpush1.msra.mxu0 0.0
    %11270 = vmatprep.subr.mxu0 0.0
    %11271 = vmatpush1.msra.mxu0 0.0
    %11272 = vmatprep.subr.mxu0 0.0
    %11273 = vmatpush1.msra.mxu0 0.0
    %11274 = vmatprep.subr.mxu0 0.0
    %11275 = vmatpush1.msra.mxu0 0.0
    %11276 = vmatprep.subr.mxu0 0.0
    %11277 = vmatpush1.msra.mxu0 0.0
    %11278 = vmatprep.subr.mxu0 0.0
    %11279 = vmatpush1.msra.mxu0 0.0
    %11280 = vmatprep.subr.mxu0 0.0
    %11281 = vmatpush1.msra.mxu0 0.0
    %11282 = vmatprep.subr.mxu0 0.0
    %11283 = vmatpush1.msra.mxu0 0.0
    %11284 = vmatprep.subr.mxu0 0.0
    %11285 = vmatpush1.msra.mxu0 0.0
    %11286 = vmatprep.subr.mxu0 0.0
    %11287 = vmatpush1.msra.mxu0 0.0
    %11288 = vmatprep.subr.mxu0 0.0
    %11289 = vmatpush1.msra.mxu0 0.0
    %11290 = vmatprep.subr.mxu0 0.0
    %11291 = vmatpush1.msra.mxu0 0.0
    %11292 = vmatprep.mubr.f32.mxu0 0.0
    %v11293 = vand.u32 %v10708, 4294901760
    %11294 = vmatmul.mubr.f32.gmra.mrb[0].mxu0 %v11293
    %v11295 = vpop.f32.mrb[0].mxu0
    %v11296 = vadd.f32 %v11213, %v11295
    %v11297 = vpop.f32.mrb[0].mxu0
    %11298 = vdwg.mxu0
    %v11299 = vmax.f32 %v11296, 0.0
    %v11300 = vld [vmem:[#allocation2 + $0x160] sm:$0xff]
    %v11301 = vld [vmem:[#allocation2 + $0x168] sm:$0xff]
    %v11302 = vld [vmem:[#allocation2 + $0x170] sm:$0xff]
    %v11303 = vld [vmem:[#allocation2 + $0x178] sm:$0xff]
    %v11304 = vld [vmem:[#allocation2 + $0x180] sm:$0xff]
    %v11305 = vld [vmem:[#allocation2 + $0x188] sm:$0xff]
    %v11306 = vld [vmem:[#allocation2 + $0x190] sm:$0xff]
    %v11307 = vld [vmem:[#allocation2 + $0x198] sm:$0xff]
    %v11308 = vld [vmem:[#allocation2 + $0x1a0] sm:$0xff]
    %v11309 = vld [vmem:[#allocation2 + $0x1a8] sm:$0xff]
    %v11310 = vld [vmem:[#allocation2 + $0x1b0] sm:$0xff]
    %v11311 = vld [vmem:[#allocation2 + $0x1b8] sm:$0xff]
    %v11312 = vld [vmem:[#allocation2 + $0x1c0] sm:$0x1]
    %v11314 = vsel %vm10684, %v11299, 0
    %11316 = vmatprep.subr.mxu0 0.0
    %v11317 = vand.u32 %v11300, 4294901760
    %11318 = vmatpush1.msra.mxu0 %v11317
    %11319 = vmatprep.subr.mxu0 0.0
    %v11320 = vand.u32 %v11301, 4294901760
    %11321 = vmatpush1.msra.mxu0 %v11320
    %11322 = vmatprep.subr.mxu0 0.0
    %v11323 = vand.u32 %v11302, 4294901760
    %11324 = vmatpush1.msra.mxu0 %v11323
    %11325 = vmatprep.subr.mxu0 0.0
    %v11326 = vand.u32 %v11303, 4294901760
    %11327 = vmatpush1.msra.mxu0 %v11326
    %11328 = vmatprep.subr.mxu0 0.0
    %v11329 = vand.u32 %v11304, 4294901760
    %11330 = vmatpush1.msra.mxu0 %v11329
    %11331 = vmatprep.subr.mxu0 0.0
    %v11332 = vand.u32 %v11305, 4294901760
    %11333 = vmatpush1.msra.mxu0 %v11332
    %11334 = vmatprep.subr.mxu0 0.0
    %v11335 = vand.u32 %v11306, 4294901760
    %11336 = vmatpush1.msra.mxu0 %v11335
    %11337 = vmatprep.subr.mxu0 0.0
    %v11338 = vand.u32 %v11307, 4294901760
    %11339 = vmatpush1.msra.mxu0 %v11338
    %11340 = vmatprep.subr.mxu0 0.0
    %v11341 = vand.u32 %v11308, 4294901760
    %11342 = vmatpush1.msra.mxu0 %v11341
    %11343 = vmatprep.subr.mxu0 0.0
    %v11344 = vand.u32 %v11309, 4294901760
    %11345 = vmatpush1.msra.mxu0 %v11344
    %11346 = vmatprep.subr.mxu0 0.0
    %v11347 = vand.u32 %v11310, 4294901760
    %11348 = vmatpush1.msra.mxu0 %v11347
    %11349 = vmatprep.subr.mxu0 0.0
    %v11350 = vand.u32 %v11311, 4294901760
    %11351 = vmatpush1.msra.mxu0 %v11350
    %11352 = vmatprep.subr.mxu0 0.0
    %11353 = vmatpush1.msra.mxu0 0.0
    %11354 = vmatprep.subr.mxu0 0.0
    %11355 = vmatpush1.msra.mxu0 0.0
    %11356 = vmatprep.subr.mxu0 0.0
    %11357 = vmatpush1.msra.mxu0 0.0
    %11358 = vmatprep.subr.mxu0 0.0
    %11359 = vmatpush1.msra.mxu0 0.0
    %11360 = vmatprep.subr.mxu0 0.0
    %11361 = vmatpush1.msra.mxu0 0.0
    %11362 = vmatprep.subr.mxu0 0.0
    %11363 = vmatpush1.msra.mxu0 0.0
    %11364 = vmatprep.subr.mxu0 0.0
    %11365 = vmatpush1.msra.mxu0 0.0
    %11366 = vmatprep.subr.mxu0 0.0
    %11367 = vmatpush1.msra.mxu0 0.0
    %11368 = vmatprep.subr.mxu0 0.0
    %11369 = vmatpush1.msra.mxu0 0.0
    %11370 = vmatprep.subr.mxu0 0.0
    %11371 = vmatpush1.msra.mxu0 0.0
    %11372 = vmatprep.subr.mxu0 0.0
    %11373 = vmatpush1.msra.mxu0 0.0
    %11374 = vmatprep.subr.mxu0 0.0
    %11375 = vmatpush1.msra.mxu0 0.0
    %11376 = vmatprep.subr.mxu0 0.0
    %11377 = vmatpush1.msra.mxu0 0.0
    %11378 = vmatprep.subr.mxu0 0.0
    %11379 = vmatpush1.msra.mxu0 0.0
    %11380 = vmatprep.subr.mxu0 0.0
    %11381 = vmatpush1.msra.mxu0 0.0
    %11382 = vmatprep.subr.mxu0 0.0
    %11383 = vmatpush1.msra.mxu0 0.0
    %11384 = vmatprep.subr.mxu0 0.0
    %11385 = vmatpush1.msra.mxu0 0.0
    %11386 = vmatprep.subr.mxu0 0.0
    %11387 = vmatpush1.msra.mxu0 0.0
    %11388 = vmatprep.subr.mxu0 0.0
    %11389 = vmatpush1.msra.mxu0 0.0
    %11390 = vmatprep.subr.mxu0 0.0
    %11391 = vmatpush1.msra.mxu0 0.0
    %11392 = vmatprep.mubr.f32.mxu0 0.0
    %v11393 = vand.u32 %v11314, 4294901760
    %v11394 = vsub.f32 %v11314, %v11393
    %v11395 = vand.u32 %v11394, 4294901760
    %v11396 = vsub.f32 %v11394, %v11395
    %v11397 = vand.u32 %v11396, 4294901760
    %11398 = vmatmul.mubr.f32.gmra.mrb[0].mxu0 %v11397
    %v11399 = vpop.f32.mrb[0].mxu0
    %v11400 = vadd.f32 %v11312, %v11399
    %v11401 = vpop.f32.mrb[0].mxu0
    %11402 = vdwg.mxu0
    %11403 = vmatprep.subr.mxu0 0.0
    %v11404 = vand.u32 %v11300, 4294901760
    %v11405 = vsub.f32 %v11300, %v11404
    %v11406 = vand.u32 %v11405, 4294901760
    %v11407 = vsub.f32 %v11405, %v11406
    %v11408 = vand.u32 %v11407, 4294901760
    %11409 = vmatpush1.msra.mxu0 %v11408
    %11410 = vmatprep.subr.mxu0 0.0
    %v11411 = vand.u32 %v11301, 4294901760
    %v11412 = vsub.f32 %v11301, %v11411
    %v11413 = vand.u32 %v11412, 4294901760
    %v11414 = vsub.f32 %v11412, %v11413
    %v11415 = vand.u32 %v11414, 4294901760
    %11416 = vmatpush1.msra.mxu0 %v11415
    %11417 = vmatprep.subr.mxu0 0.0
    %v11418 = vand.u32 %v11302, 4294901760
    %v11419 = vsub.f32 %v11302, %v11418
    %v11420 = vand.u32 %v11419, 4294901760
    %v11421 = vsub.f32 %v11419, %v11420
    %v11422 = vand.u32 %v11421, 4294901760
    %11423 = vmatpush1.msra.mxu0 %v11422
    %11424 = vmatprep.subr.mxu0 0.0
    %v11425 = vand.u32 %v11303, 4294901760
    %v11426 = vsub.f32 %v11303, %v11425
    %v11427 = vand.u32 %v11426, 4294901760
    %v11428 = vsub.f32 %v11426, %v11427
    %v11429 = vand.u32 %v11428, 4294901760
    %11430 = vmatpush1.msra.mxu0 %v11429
    %11431 = vmatprep.subr.mxu0 0.0
    %v11432 = vand.u32 %v11304, 4294901760
    %v11433 = vsub.f32 %v11304, %v11432
    %v11434 = vand.u32 %v11433, 4294901760
    %v11435 = vsub.f32 %v11433, %v11434
    %v11436 = vand.u32 %v11435, 4294901760
    %11437 = vmatpush1.msra.mxu0 %v11436
    %11438 = vmatprep.subr.mxu0 0.0
    %v11439 = vand.u32 %v11305, 4294901760
    %v11440 = vsub.f32 %v11305, %v11439
    %v11441 = vand.u32 %v11440, 4294901760
    %v11442 = vsub.f32 %v11440, %v11441
    %v11443 = vand.u32 %v11442, 4294901760
    %11444 = vmatpush1.msra.mxu0 %v11443
    %11445 = vmatprep.subr.mxu0 0.0
    %v11446 = vand.u32 %v11306, 4294901760
    %v11447 = vsub.f32 %v11306, %v11446
    %v11448 = vand.u32 %v11447, 4294901760
    %v11449 = vsub.f32 %v11447, %v11448
    %v11450 = vand.u32 %v11449, 4294901760
    %11451 = vmatpush1.msra.mxu0 %v11450
    %11452 = vmatprep.subr.mxu0 0.0
    %v11453 = vand.u32 %v11307, 4294901760
    %v11454 = vsub.f32 %v11307, %v11453
    %v11455 = vand.u32 %v11454, 4294901760
    %v11456 = vsub.f32 %v11454, %v11455
    %v11457 = vand.u32 %v11456, 4294901760
    %11458 = vmatpush1.msra.mxu0 %v11457
    %11459 = vmatprep.subr.mxu0 0.0
    %v11460 = vand.u32 %v11308, 4294901760
    %v11461 = vsub.f32 %v11308, %v11460
    %v11462 = vand.u32 %v11461, 4294901760
    %v11463 = vsub.f32 %v11461, %v11462
    %v11464 = vand.u32 %v11463, 4294901760
    %11465 = vmatpush1.msra.mxu0 %v11464
    %11466 = vmatprep.subr.mxu0 0.0
    %v11467 = vand.u32 %v11309, 4294901760
    %v11468 = vsub.f32 %v11309, %v11467
    %v11469 = vand.u32 %v11468, 4294901760
    %v11470 = vsub.f32 %v11468, %v11469
    %v11471 = vand.u32 %v11470, 4294901760
    %11472 = vmatpush1.msra.mxu0 %v11471
    %11473 = vmatprep.subr.mxu0 0.0
    %v11474 = vand.u32 %v11310, 4294901760
    %v11475 = vsub.f32 %v11310, %v11474
    %v11476 = vand.u32 %v11475, 4294901760
    %v11477 = vsub.f32 %v11475, %v11476
    %v11478 = vand.u32 %v11477, 4294901760
    %11479 = vmatpush1.msra.mxu0 %v11478
    %11480 = vmatprep.subr.mxu0 0.0
    %v11481 = vand.u32 %v11311, 4294901760
    %v11482 = vsub.f32 %v11311, %v11481
    %v11483 = vand.u32 %v11482, 4294901760
    %v11484 = vsub.f32 %v11482, %v11483
    %v11485 = vand.u32 %v11484, 4294901760
    %11486 = vmatpush1.msra.mxu0 %v11485
    %11487 = vmatprep.subr.mxu0 0.0
    %11488 = vmatpush1.msra.mxu0 0.0
    %11489 = vmatprep.subr.mxu0 0.0
    %11490 = vmatpush1.msra.mxu0 0.0
    %11491 = vmatprep.subr.mxu0 0.0
    %11492 = vmatpush1.msra.mxu0 0.0
    %11493 = vmatprep.subr.mxu0 0.0
    %11494 = vmatpush1.msra.mxu0 0.0
    %11495 = vmatprep.subr.mxu0 0.0
    %11496 = vmatpush1.msra.mxu0 0.0
    %11497 = vmatprep.subr.mxu0 0.0
    %11498 = vmatpush1.msra.mxu0 0.0
    %11499 = vmatprep.subr.mxu0 0.0
    %11500 = vmatpush1.msra.mxu0 0.0
    %11501 = vmatprep.subr.mxu0 0.0
    %11502 = vmatpush1.msra.mxu0 0.0
    %11503 = vmatprep.subr.mxu0 0.0
    %11504 = vmatpush1.msra.mxu0 0.0
    %11505 = vmatprep.subr.mxu0 0.0
    %11506 = vmatpush1.msra.mxu0 0.0
    %11507 = vmatprep.subr.mxu0 0.0
    %11508 = vmatpush1.msra.mxu0 0.0
    %11509 = vmatprep.subr.mxu0 0.0
    %11510 = vmatpush1.msra.mxu0 0.0
    %11511 = vmatprep.subr.mxu0 0.0
    %11512 = vmatpush1.msra.mxu0 0.0
    %11513 = vmatprep.subr.mxu0 0.0
    %11514 = vmatpush1.msra.mxu0 0.0
    %11515 = vmatprep.subr.mxu0 0.0
    %11516 = vmatpush1.msra.mxu0 0.0
    %11517 = vmatprep.subr.mxu0 0.0
    %11518 = vmatpush1.msra.mxu0 0.0
    %11519 = vmatprep.subr.mxu0 0.0
    %11520 = vmatpush1.msra.mxu0 0.0
    %11521 = vmatprep.subr.mxu0 0.0
    %11522 = vmatpush1.msra.mxu0 0.0
    %11523 = vmatprep.subr.mxu0 0.0
    %11524 = vmatpush1.msra.mxu0 0.0
    %11525 = vmatprep.subr.mxu0 0.0
    %11526 = vmatpush1.msra.mxu0 0.0
    %11527 = vmatprep.mubr.f32.mxu0 0.0
    %v11528 = vand.u32 %v11314, 4294901760
    %11529 = vmatmul.mubr.f32.gmra.mrb[0].mxu0 %v11528
    %v11530 = vpop.f32.mrb[0].mxu0
    %v11531 = vadd.f32 %v11400, %v11530
    %v11532 = vpop.f32.mrb[0].mxu0
    %11533 = vdwg.mxu0
    %11534 = vmatprep.subr.mxu0 0.0
    %v11535 = vand.u32 %v11300, 4294901760
    %v11536 = vsub.f32 %v11300, %v11535
    %11537 = vmatpush1.msra.mxu0 %v11536
    %11538 = vmatprep.subr.mxu0 0.0
    %v11539 = vand.u32 %v11301, 4294901760
    %v11540 = vsub.f32 %v11301, %v11539
    %11541 = vmatpush1.msra.mxu0 %v11540
    %11542 = vmatprep.subr.mxu0 0.0
    %v11543 = vand.u32 %v11302, 4294901760
    %v11544 = vsub.f32 %v11302, %v11543
    %11545 = vmatpush1.msra.mxu0 %v11544
    %11546 = vmatprep.subr.mxu0 0.0
    %v11547 = vand.u32 %v11303, 4294901760
    %v11548 = vsub.f32 %v11303, %v11547
    %11549 = vmatpush1.msra.mxu0 %v11548
    %11550 = vmatprep.subr.mxu0 0.0
    %v11551 = vand.u32 %v11304, 4294901760
    %v11552 = vsub.f32 %v11304, %v11551
    %11553 = vmatpush1.msra.mxu0 %v11552
    %11554 = vmatprep.subr.mxu0 0.0
    %v11555 = vand.u32 %v11305, 4294901760
    %v11556 = vsub.f32 %v11305, %v11555
    %11557 = vmatpush1.msra.mxu0 %v11556
    %11558 = vmatprep.subr.mxu0 0.0
    %v11559 = vand.u32 %v11306, 4294901760
    %v11560 = vsub.f32 %v11306, %v11559
    %11561 = vmatpush1.msra.mxu0 %v11560
    %11562 = vmatprep.subr.mxu0 0.0
    %v11563 = vand.u32 %v11307, 4294901760
    %v11564 = vsub.f32 %v11307, %v11563
    %11565 = vmatpush1.msra.mxu0 %v11564
    %11566 = vmatprep.subr.mxu0 0.0
    %v11567 = vand.u32 %v11308, 4294901760
    %v11568 = vsub.f32 %v11308, %v11567
    %11569 = vmatpush1.msra.mxu0 %v11568
    %11570 = vmatprep.subr.mxu0 0.0
    %v11571 = vand.u32 %v11309, 4294901760
    %v11572 = vsub.f32 %v11309, %v11571
    %11573 = vmatpush1.msra.mxu0 %v11572
    %11574 = vmatprep.subr.mxu0 0.0
    %v11575 = vand.u32 %v11310, 4294901760
    %v11576 = vsub.f32 %v11310, %v11575
    %11577 = vmatpush1.msra.mxu0 %v11576
    %11578 = vmatprep.subr.mxu0 0.0
    %v11579 = vand.u32 %v11311, 4294901760
    %v11580 = vsub.f32 %v11311, %v11579
    %11581 = vmatpush1.msra.mxu0 %v11580
    %11582 = vmatprep.subr.mxu0 0.0
    %11583 = vmatpush1.msra.mxu0 0.0
    %11584 = vmatprep.subr.mxu0 0.0
    %11585 = vmatpush1.msra.mxu0 0.0
    %11586 = vmatprep.subr.mxu0 0.0
    %11587 = vmatpush1.msra.mxu0 0.0
    %11588 = vmatprep.subr.mxu0 0.0
    %11589 = vmatpush1.msra.mxu0 0.0
    %11590 = vmatprep.subr.mxu0 0.0
    %11591 = vmatpush1.msra.mxu0 0.0
    %11592 = vmatprep.subr.mxu0 0.0
    %11593 = vmatpush1.msra.mxu0 0.0
    %11594 = vmatprep.subr.mxu0 0.0
    %11595 = vmatpush1.msra.mxu0 0.0
    %11596 = vmatprep.subr.mxu0 0.0
    %11597 = vmatpush1.msra.mxu0 0.0
    %11598 = vmatprep.subr.mxu0 0.0
    %11599 = vmatpush1.msra.mxu0 0.0
    %11600 = vmatprep.subr.mxu0 0.0
    %11601 = vmatpush1.msra.mxu0 0.0
    %11602 = vmatprep.subr.mxu0 0.0
    %11603 = vmatpush1.msra.mxu0 0.0
    %11604 = vmatprep.subr.mxu0 0.0
    %11605 = vmatpush1.msra.mxu0 0.0
    %11606 = vmatprep.subr.mxu0 0.0
    %11607 = vmatpush1.msra.mxu0 0.0
    %11608 = vmatprep.subr.mxu0 0.0
    %11609 = vmatpush1.msra.mxu0 0.0
    %11610 = vmatprep.subr.mxu0 0.0
    %11611 = vmatpush1.msra.mxu0 0.0
    %11612 = vmatprep.subr.mxu0 0.0
    %11613 = vmatpush1.msra.mxu0 0.0
    %11614 = vmatprep.subr.mxu0 0.0
    %11615 = vmatpush1.msra.mxu0 0.0
    %11616 = vmatprep.subr.mxu0 0.0
    %11617 = vmatpush1.msra.mxu0 0.0
    %11618 = vmatprep.subr.mxu0 0.0
    %11619 = vmatpush1.msra.mxu0 0.0
    %11620 = vmatprep.subr.mxu0 0.0
    %11621 = vmatpush1.msra.mxu0 0.0
    %11622 = vmatprep.mubr.f32.mxu0 0.0
    %v11623 = vand.u32 %v11314, 4294901760
    %v11624 = vsub.f32 %v11314, %v11623
    %11625 = vmatmul.mubr.f32.gmra.mrb[0].mxu0 %v11624
    %v11626 = vpop.f32.mrb[0].mxu0
    %v11627 = vadd.f32 %v11531, %v11626
    %v11628 = vpop.f32.mrb[0].mxu0
    %11629 = vdwg.mxu0
    %11630 = vmatprep.subr.mxu0 0.0
    %v11631 = vand.u32 %v11300, 4294901760
    %11632 = vmatpush1.msra.mxu0 %v11631
    %11633 = vmatprep.subr.mxu0 0.0
    %v11634 = vand.u32 %v11301, 4294901760
    %11635 = vmatpush1.msra.mxu0 %v11634
    %11636 = vmatprep.subr.mxu0 0.0
    %v11637 = vand.u32 %v11302, 4294901760
    %11638 = vmatpush1.msra.mxu0 %v11637
    %11639 = vmatprep.subr.mxu0 0.0
    %v11640 = vand.u32 %v11303, 4294901760
    %11641 = vmatpush1.msra.mxu0 %v11640
    %11642 = vmatprep.subr.mxu0 0.0
    %v11643 = vand.u32 %v11304, 4294901760
    %11644 = vmatpush1.msra.mxu0 %v11643
    %11645 = vmatprep.subr.mxu0 0.0
    %v11646 = vand.u32 %v11305, 4294901760
    %11647 = vmatpush1.msra.mxu0 %v11646
    %11648 = vmatprep.subr.mxu0 0.0
    %v11649 = vand.u32 %v11306, 4294901760
    %11650 = vmatpush1.msra.mxu0 %v11649
    %11651 = vmatprep.subr.mxu0 0.0
    %v11652 = vand.u32 %v11307, 4294901760
    %11653 = vmatpush1.msra.mxu0 %v11652
    %11654 = vmatprep.subr.mxu0 0.0
    %v11655 = vand.u32 %v11308, 4294901760
    %11656 = vmatpush1.msra.mxu0 %v11655
    %11657 = vmatprep.subr.mxu0 0.0
    %v11658 = vand.u32 %v11309, 4294901760
    %11659 = vmatpush1.msra.mxu0 %v11658
    %11660 = vmatprep.subr.mxu0 0.0
    %v11661 = vand.u32 %v11310, 4294901760
    %11662 = vmatpush1.msra.mxu0 %v11661
    %11663 = vmatprep.subr.mxu0 0.0
    %v11664 = vand.u32 %v11311, 4294901760
    %11665 = vmatpush1.msra.mxu0 %v11664
    %11666 = vmatprep.subr.mxu0 0.0
    %11667 = vmatpush1.msra.mxu0 0.0
    %11668 = vmatprep.subr.mxu0 0.0
    %11669 = vmatpush1.msra.mxu0 0.0
    %11670 = vmatprep.subr.mxu0 0.0
    %11671 = vmatpush1.msra.mxu0 0.0
    %11672 = vmatprep.subr.mxu0 0.0
    %11673 = vmatpush1.msra.mxu0 0.0
    %11674 = vmatprep.subr.mxu0 0.0
    %11675 = vmatpush1.msra.mxu0 0.0
    %11676 = vmatprep.subr.mxu0 0.0
    %11677 = vmatpush1.msra.mxu0 0.0
    %11678 = vmatprep.subr.mxu0 0.0
    %11679 = vmatpush1.msra.mxu0 0.0
    %11680 = vmatprep.subr.mxu0 0.0
    %11681 = vmatpush1.msra.mxu0 0.0
    %11682 = vmatprep.subr.mxu0 0.0
    %11683 = vmatpush1.msra.mxu0 0.0
    %11684 = vmatprep.subr.mxu0 0.0
    %11685 = vmatpush1.msra.mxu0 0.0
    %11686 = vmatprep.subr.mxu0 0.0
    %11687 = vmatpush1.msra.mxu0 0.0
    %11688 = vmatprep.subr.mxu0 0.0
    %11689 = vmatpush1.msra.mxu0 0.0
    %11690 = vmatprep.subr.mxu0 0.0
    %11691 = vmatpush1.msra.mxu0 0.0
    %11692 = vmatprep.subr.mxu0 0.0
    %11693 = vmatpush1.msra.mxu0 0.0
    %11694 = vmatprep.subr.mxu0 0.0
    %11695 = vmatpush1.msra.mxu0 0.0
    %11696 = vmatprep.subr.mxu0 0.0
    %11697 = vmatpush1.msra.mxu0 0.0
    %11698 = vmatprep.subr.mxu0 0.0
    %11699 = vmatpush1.msra.mxu0 0.0
    %11700 = vmatprep.subr.mxu0 0.0
    %11701 = vmatpush1.msra.mxu0 0.0
    %11702 = vmatprep.subr.mxu0 0.0
    %11703 = vmatpush1.msra.mxu0 0.0
    %11704 = vmatprep.subr.mxu0 0.0
    %11705 = vmatpush1.msra.mxu0 0.0
    %11706 = vmatprep.mubr.f32.mxu0 0.0
    %v11707 = vand.u32 %v11314, 4294901760
    %v11708 = vsub.f32 %v11314, %v11707
    %v11709 = vand.u32 %v11708, 4294901760
    %11710 = vmatmul.mubr.f32.gmra.mrb[0].mxu0 %v11709
    %v11711 = vpop.f32.mrb[0].mxu0
    %v11712 = vadd.f32 %v11627, %v11711
    %v11713 = vpop.f32.mrb[0].mxu0
    %11714 = vdwg.mxu0
    %11715 = vmatprep.subr.mxu0 0.0
    %v11716 = vand.u32 %v11300, 4294901760
    %v11717 = vsub.f32 %v11300, %v11716
    %v11718 = vand.u32 %v11717, 4294901760
    %11719 = vmatpush1.msra.mxu0 %v11718
    %11720 = vmatprep.subr.mxu0 0.0
    %v11721 = vand.u32 %v11301, 4294901760
    %v11722 = vsub.f32 %v11301, %v11721
    %v11723 = vand.u32 %v11722, 4294901760
    %11724 = vmatpush1.msra.mxu0 %v11723
    %11725 = vmatprep.subr.mxu0 0.0
    %v11726 = vand.u32 %v11302, 4294901760
    %v11727 = vsub.f32 %v11302, %v11726
    %v11728 = vand.u32 %v11727, 4294901760
    %11729 = vmatpush1.msra.mxu0 %v11728
    %11730 = vmatprep.subr.mxu0 0.0
    %v11731 = vand.u32 %v11303, 4294901760
    %v11732 = vsub.f32 %v11303, %v11731
    %v11733 = vand.u32 %v11732, 4294901760
    %11734 = vmatpush1.msra.mxu0 %v11733
    %11735 = vmatprep.subr.mxu0 0.0
    %v11736 = vand.u32 %v11304, 4294901760
    %v11737 = vsub.f32 %v11304, %v11736
    %v11738 = vand.u32 %v11737, 4294901760
    %11739 = vmatpush1.msra.mxu0 %v11738
    %11740 = vmatprep.subr.mxu0 0.0
    %v11741 = vand.u32 %v11305, 4294901760
    %v11742 = vsub.f32 %v11305, %v11741
    %v11743 = vand.u32 %v11742, 4294901760
    %11744 = vmatpush1.msra.mxu0 %v11743
    %11745 = vmatprep.subr.mxu0 0.0
    %v11746 = vand.u32 %v11306, 4294901760
    %v11747 = vsub.f32 %v11306, %v11746
    %v11748 = vand.u32 %v11747, 4294901760
    %11749 = vmatpush1.msra.mxu0 %v11748
    %11750 = vmatprep.subr.mxu0 0.0
    %v11751 = vand.u32 %v11307, 4294901760
    %v11752 = vsub.f32 %v11307, %v11751
    %v11753 = vand.u32 %v11752, 4294901760
    %11754 = vmatpush1.msra.mxu0 %v11753
    %11755 = vmatprep.subr.mxu0 0.0
    %v11756 = vand.u32 %v11308, 4294901760
    %v11757 = vsub.f32 %v11308, %v11756
    %v11758 = vand.u32 %v11757, 4294901760
    %11759 = vmatpush1.msra.mxu0 %v11758
    %11760 = vmatprep.subr.mxu0 0.0
    %v11761 = vand.u32 %v11309, 4294901760
    %v11762 = vsub.f32 %v11309, %v11761
    %v11763 = vand.u32 %v11762, 4294901760
    %11764 = vmatpush1.msra.mxu0 %v11763
    %11765 = vmatprep.subr.mxu0 0.0
    %v11766 = vand.u32 %v11310, 4294901760
    %v11767 = vsub.f32 %v11310, %v11766
    %v11768 = vand.u32 %v11767, 4294901760
    %11769 = vmatpush1.msra.mxu0 %v11768
    %11770 = vmatprep.subr.mxu0 0.0
    %v11771 = vand.u32 %v11311, 4294901760
    %v11772 = vsub.f32 %v11311, %v11771
    %v11773 = vand.u32 %v11772, 4294901760
    %11774 = vmatpush1.msra.mxu0 %v11773
    %11775 = vmatprep.subr.mxu0 0.0
    %11776 = vmatpush1.msra.mxu0 0.0
    %11777 = vmatprep.subr.mxu0 0.0
    %11778 = vmatpush1.msra.mxu0 0.0
    %11779 = vmatprep.subr.mxu0 0.0
    %11780 = vmatpush1.msra.mxu0 0.0
    %11781 = vmatprep.subr.mxu0 0.0
    %11782 = vmatpush1.msra.mxu0 0.0
    %11783 = vmatprep.subr.mxu0 0.0
    %11784 = vmatpush1.msra.mxu0 0.0
    %11785 = vmatprep.subr.mxu0 0.0
    %11786 = vmatpush1.msra.mxu0 0.0
    %11787 = vmatprep.subr.mxu0 0.0
    %11788 = vmatpush1.msra.mxu0 0.0
    %11789 = vmatprep.subr.mxu0 0.0
    %11790 = vmatpush1.msra.mxu0 0.0
    %11791 = vmatprep.subr.mxu0 0.0
    %11792 = vmatpush1.msra.mxu0 0.0
    %11793 = vmatprep.subr.mxu0 0.0
    %11794 = vmatpush1.msra.mxu0 0.0
    %11795 = vmatprep.subr.mxu0 0.0
    %11796 = vmatpush1.msra.mxu0 0.0
    %11797 = vmatprep.subr.mxu0 0.0
    %11798 = vmatpush1.msra.mxu0 0.0
    %11799 = vmatprep.subr.mxu0 0.0
    %11800 = vmatpush1.msra.mxu0 0.0
    %11801 = vmatprep.subr.mxu0 0.0
    %11802 = vmatpush1.msra.mxu0 0.0
    %11803 = vmatprep.subr.mxu0 0.0
    %11804 = vmatpush1.msra.mxu0 0.0
    %11805 = vmatprep.subr.mxu0 0.0
    %11806 = vmatpush1.msra.mxu0 0.0
    %11807 = vmatprep.subr.mxu0 0.0
    %11808 = vmatpush1.msra.mxu0 0.0
    %11809 = vmatprep.subr.mxu0 0.0
    %11810 = vmatpush1.msra.mxu0 0.0
    %11811 = vmatprep.subr.mxu0 0.0
    %11812 = vmatpush1.msra.mxu0 0.0
    %11813 = vmatprep.subr.mxu0 0.0
    %11814 = vmatpush1.msra.mxu0 0.0
    %11815 = vmatprep.mubr.f32.mxu0 0.0
    %v11816 = vand.u32 %v11314, 4294901760
    %11817 = vmatmul.mubr.f32.gmra.mrb[0].mxu0 %v11816
    %v11818 = vpop.f32.mrb[0].mxu0
    %v11819 = vadd.f32 %v11712, %v11818
    %v11820 = vpop.f32.mrb[0].mxu0
    %11821 = vdwg.mxu0
    %11822 = vmatprep.subr.mxu0 0.0
    %v11823 = vand.u32 %v11300, 4294901760
    %11824 = vmatpush1.msra.mxu0 %v11823
    %11825 = vmatprep.subr.mxu0 0.0
    %v11826 = vand.u32 %v11301, 4294901760
    %11827 = vmatpush1.msra.mxu0 %v11826
    %11828 = vmatprep.subr.mxu0 0.0
    %v11829 = vand.u32 %v11302, 4294901760
    %11830 = vmatpush1.msra.mxu0 %v11829
    %11831 = vmatprep.subr.mxu0 0.0
    %v11832 = vand.u32 %v11303, 4294901760
    %11833 = vmatpush1.msra.mxu0 %v11832
    %11834 = vmatprep.subr.mxu0 0.0
    %v11835 = vand.u32 %v11304, 4294901760
    %11836 = vmatpush1.msra.mxu0 %v11835
    %11837 = vmatprep.subr.mxu0 0.0
    %v11838 = vand.u32 %v11305, 4294901760
    %11839 = vmatpush1.msra.mxu0 %v11838
    %11840 = vmatprep.subr.mxu0 0.0
    %v11841 = vand.u32 %v11306, 4294901760
    %11842 = vmatpush1.msra.mxu0 %v11841
    %11843 = vmatprep.subr.mxu0 0.0
    %v11844 = vand.u32 %v11307, 4294901760
    %11845 = vmatpush1.msra.mxu0 %v11844
    %11846 = vmatprep.subr.mxu0 0.0
    %v11847 = vand.u32 %v11308, 4294901760
    %11848 = vmatpush1.msra.mxu0 %v11847
    %11849 = vmatprep.subr.mxu0 0.0
    %v11850 = vand.u32 %v11309, 4294901760
    %11851 = vmatpush1.msra.mxu0 %v11850
    %11852 = vmatprep.subr.mxu0 0.0
    %v11853 = vand.u32 %v11310, 4294901760
    %11854 = vmatpush1.msra.mxu0 %v11853
    %11855 = vmatprep.subr.mxu0 0.0
    %v11856 = vand.u32 %v11311, 4294901760
    %11857 = vmatpush1.msra.mxu0 %v11856
    %11858 = vmatprep.subr.mxu0 0.0
    %11859 = vmatpush1.msra.mxu0 0.0
    %11860 = vmatprep.subr.mxu0 0.0
    %11861 = vmatpush1.msra.mxu0 0.0
    %11862 = vmatprep.subr.mxu0 0.0
    %11863 = vmatpush1.msra.mxu0 0.0
    %11864 = vmatprep.subr.mxu0 0.0
    %11865 = vmatpush1.msra.mxu0 0.0
    %11866 = vmatprep.subr.mxu0 0.0
    %11867 = vmatpush1.msra.mxu0 0.0
    %11868 = vmatprep.subr.mxu0 0.0
    %11869 = vmatpush1.msra.mxu0 0.0
    %11870 = vmatprep.subr.mxu0 0.0
    %11871 = vmatpush1.msra.mxu0 0.0
    %11872 = vmatprep.subr.mxu0 0.0
    %11873 = vmatpush1.msra.mxu0 0.0
    %11874 = vmatprep.subr.mxu0 0.0
    %11875 = vmatpush1.msra.mxu0 0.0
    %11876 = vmatprep.subr.mxu0 0.0
    %11877 = vmatpush1.msra.mxu0 0.0
    %11878 = vmatprep.subr.mxu0 0.0
    %11879 = vmatpush1.msra.mxu0 0.0
    %11880 = vmatprep.subr.mxu0 0.0
    %11881 = vmatpush1.msra.mxu0 0.0
    %11882 = vmatprep.subr.mxu0 0.0
    %11883 = vmatpush1.msra.mxu0 0.0
    %11884 = vmatprep.subr.mxu0 0.0
    %11885 = vmatpush1.msra.mxu0 0.0
    %11886 = vmatprep.subr.mxu0 0.0
    %11887 = vmatpush1.msra.mxu0 0.0
    %11888 = vmatprep.subr.mxu0 0.0
    %11889 = vmatpush1.msra.mxu0 0.0
    %11890 = vmatprep.subr.mxu0 0.0
    %11891 = vmatpush1.msra.mxu0 0.0
    %11892 = vmatprep.subr.mxu0 0.0
    %11893 = vmatpush1.msra.mxu0 0.0
    %11894 = vmatprep.subr.mxu0 0.0
    %11895 = vmatpush1.msra.mxu0 0.0
    %11896 = vmatprep.subr.mxu0 0.0
    %11897 = vmatpush1.msra.mxu0 0.0
    %11898 = vmatprep.mubr.f32.mxu0 0.0
    %v11899 = vand.u32 %v11314, 4294901760
    %11900 = vmatmul.mubr.f32.gmra.mrb[0].mxu0 %v11899
    %v11901 = vpop.f32.mrb[0].mxu0
    %v11902 = vadd.f32 %v11819, %v11901
    %v11903 = vpop.f32.mrb[0].mxu0
    %11904 = vdwg.mxu0
    %v11905 = vmax.f32 %v11902, 0.0
    %v11906 = vld [vmem:[#allocation2 + $0x1c8] sm:$0x1]
    %v11907 = vmul.f32 %v11905, %v11906
    %v11908 = vld [vmem:[#allocation2 + $0x1d0] sm:$0x1]
    %v11909 = vadd.f32 %v11907, %v11908
    %11910 = vst [vmem:[#allocation5] sm:$0x1] %v11909
    // Predicated region
    $region14: #{tpu_custom_call.1} parent=1 // pred_check
      _
    $region15: #{tpu_custom_call.1} parent=1 // pred_check_branch
      %11912 = sbr.rel (0) target = $region17
    $region16: #{tpu_custom_call.1} parent=1 // pred_region
      %s11914 = ssub.s32 16, 16
      %11915 = vsyncadd [#allocation4], %s11914
      %s11917 = sshll.u32 [#allocation5], 4
      %s11918 = int_to_ptr.vmem [resolvable:$true] %s11917
      %11920 = dma.vmem_to_hbm [thread:$0]  %s11918, 16, %s2, [#allocation4]
    $region17: #{tpu_custom_call.1} parent=1 // pred_fallthru
      _
    // Predicated region
    $region18: #{tpu_custom_call.1} parent=1 // pred_check
      _
    $region19: #{tpu_custom_call.1} parent=1 // pred_check_branch
      %11922 = sbr.rel (0) target = $region21
    $region20: #{tpu_custom_call.1} parent=1 // pred_region
      %11923 = dma.done [#allocation4], 16
    $region21: #{tpu_custom_call.1} parent=1 // pred_fallthru
      _
    %11924 = vsyncpa [#allocation3], 1
    %11925 = vsyncpa [#allocation4], 1

</llo_original>
